<compile_context>
chip_gen: v6e
topology: v6e:2x2x1
jax: 0.10.0
libtpu: 0.0.40
codegen_flags: <defaults>
</compile_context>

<pallas_src>
import jax
import jax.numpy as jnp
from jax.experimental import pallas as pl
from jax.experimental.pallas import tpu as pltpu

_VMEM_LIMIT = 32 * 1024 * 1024   # raises v5e's 16MiB scoped default, < v7x budget


def _round_up(x, m):
    return (x + m - 1) // m * m


def _cdiv(a, b):
    return (a + b - 1) // b


# --------------------------- Pallas kernels ---------------------------------

def _conv1_pool_kernel(x_ref, w_ref, o_ref):
    """conv1 (im2col matmul, bias-free) + sigmoid + 2x2 avg pool, bf16 out.

    x_ref: (4, tm, K1) bf16 -- the 4 elements of each 2x2 pool window; each row
                               is one pooled output position.
    w_ref: (K1, 128)   bf16 -- conv1 weight matrix (zero padded).
    o_ref: (tm, 128)   bf16 -- pooled sigmoid(conv1) output.

    sigmoid(z) = 0.5*tanh(0.5*z) + 0.5, so avg over the 4 window elements is
    0.125 * sum_f tanh(0.5*z_f) + 0.5  (one EUP op per element, not two).
    """
    w = w_ref[...]
    acc = jnp.zeros(o_ref.shape, jnp.float32)
    for f in range(4):                                     # unrolled, 4 MXU dots
        z = jnp.dot(x_ref[f], w, preferred_element_type=jnp.float32)
        acc = acc + jnp.tanh(z * 0.5)
    o_ref[...] = (acc * 0.125 + 0.5).astype(o_ref.dtype)


def _conv2_fc_kernel(x_ref, w2_ref, w1_ref, wf2_ref, wf3_ref, b_ref, o_ref):
    """Fused conv2 + sigmoid + avgpool + linear1 -> linear2 -> linear3.

    x_ref : (4, P*nb, K2) bf16 -- conv2 pool windows for one batch tile; rows
                                  ordered position-major: row = p*nb + n_local.
    w2_ref: (K2, 128)     bf16 -- conv2 weight matrix (bias-free, zero padded).
    w1_ref: (P, 128, 128) bf16 -- linear1 weight split per pooled position p
                                  (flatten permutation + channel padding folded
                                  in; padded channels are zero rows).
    wf2_ref, wf3_ref: (128, 128) bf16 -- linear2 / linear3 weights (padded).
    b_ref : (8, 128) f32 -- rows 0,1,2 hold linear1/2/3 biases.
    o_ref : (nb, 128) f32 -- logits for this batch tile (cols >= num_classes: 0).
    """
    P = w1_ref.shape[0]
    nb = o_ref.shape[0]
    w2 = w2_ref[...]

    # conv2 + sigmoid + 2x2 avg pool for all P*nb pooled rows, kept in VMEM.
    acc = jnp.zeros((P * nb, 128), jnp.float32)
    for f in range(4):
        z = jnp.dot(x_ref[f], w2, preferred_element_type=jnp.float32)
        acc = acc + jnp.tanh(z * 0.5)
    y2 = acc * 0.125 + 0.5                              # (P*nb, 128) f32

    # linear1: contract over pooled positions; padded conv2 lanes (value 0.5)
    # hit the zero rows of w1, so they contribute nothing.
    h = jnp.zeros((nb, 128), jnp.float32)
    for p in range(P):                                   # P == 25, unrolled
        yp = y2[p * nb:(p + 1) * nb, :].astype(jnp.bfloat16)   # 8-aligned slice
        h = h + jnp.dot(yp, w1_ref[p], preferred_element_type=jnp.float32)
    h = h + b_ref[0:1, :]

    # linear2 -> linear3 (no activation between, matching the reference module)
    h = jnp.dot(h.astype(jnp.bfloat16), wf2_ref[...],
                preferred_element_type=jnp.float32) + b_ref[1:2, :]
    h = jnp.dot(h.astype(jnp.bfloat16), wf3_ref[...],
                preferred_element_type=jnp.float32) + b_ref[2:3, :]
    o_ref[...] = h


# --------------------------- XLA-side glue -----------------------------------

def _im2col_nhwc(x, kh, kw):
    """x: (N, H, W, C) -> (N, Ho, Wo, kh*kw*C), column order (i, j, c)."""
    N, H, W, C = x.shape
    Ho, Wo = H - kh + 1, W - kw + 1
    cols = [x[:, i:i + Ho, j:j + Wo, :] for i in range(kh) for j in range(kw)]
    p = jnp.stack(cols, axis=3)                         # (N, Ho, Wo, kh*kw, C)
    return p.reshape(N, Ho, Wo, kh * kw * C)


def _pool_windows(p):
    """(N, Ho, Wo, K) -> (4, N, Hp, Wp, K): the 2x2 window elements on axis 0."""
    N, Ho, Wo, K = p.shape
    wins = [p[:, di::2, dj::2, :] for di in (0, 1) for dj in (0, 1)]
    return jnp.stack(wins, axis=0), (Ho // 2, Wo // 2)


# --------------------------- stage wrappers ----------------------------------

def conv1_sigmoid_pool(x_nhwc_bf16, w_mat, tm_cap=1024):
    """conv1 (pad=2, no bias) + sigmoid + 2x2/2 avg pool in one Pallas kernel."""
    N = x_nhwc_bf16.shape[0]
    xp = jnp.pad(x_nhwc_bf16, ((0, 0), (2, 2), (2, 2), (0, 0)))     # bf16 glue
    p = _im2col_nhwc(xp, 5, 5)
    wins, (Hp, Wp) = _pool_windows(p)                  # (4, N, Hp, Wp, K)
    K = wins.shape[-1]
    x4 = wins.reshape(4, N * Hp * Wp, K)
    M = x4.shape[1]
    Kpad, Cpad = w_mat.shape

    # >=2 grid steps when possible so v7x's two TensorCores both get work.
    tm = min(tm_cap, max(8, _round_up(_cdiv(M, 2), 8)))
    Mpad = _round_up(M, tm)
    x4 = jnp.pad(x4, ((0, 0), (0, Mpad - M), (0, Kpad - K)))

    out = pl.pallas_call(
        _conv1_pool_kernel,
        out_shape=jax.ShapeDtypeStruct((Mpad, Cpad), jnp.bfloat16),
        grid=(Mpad // tm,),
        in_specs=[pl.BlockSpec((4, tm, Kpad), lambda i: (0, i, 0)),
                  pl.BlockSpec((Kpad, Cpad), lambda i: (0, 0))],
        out_specs=pl.BlockSpec((tm, Cpad), lambda i: (i, 0)),
        compiler_params=pltpu.CompilerParams(
            dimension_semantics=("parallel",),
            vmem_limit_bytes=_VMEM_LIMIT),
    )(x4, w_mat)
    # padded output channels hold sigmoid(0)=0.5; slice the 6 real ones.
    return out[:M, :6].reshape(N, Hp, Wp, 6)


def conv2_pool_fc(y1, pp, n_rows, num_classes, nb_cap=64):
    """Fused conv2 + sigmoid + avgpool + linear1/2/3 in one Pallas kernel."""
    N = y1.shape[0]
    nb = min(nb_cap, max(8, _round_up(_cdiv(N, 2), 8)))   # batch-tile size
    Npad = _round_up(N, nb)
    T = Npad // nb

    y1p = jnp.pad(y1, ((0, Npad - N), (0, 0), (0, 0), (0, 0)))      # bf16 glue
    p2 = _im2col_nhwc(y1p, 5, 5)                        # (Npad, 10, 10, 150)
    wins, (Hp2, Wp2) = _pool_windows(p2)                # (4, Npad, 5, 5, 150)
    P = Hp2 * Wp2
    K2 = wins.shape[-1]
    Kpad2 = pp["w_conv2"].shape[0]

    # rows within each batch tile are position-major: row = p*nb + n_local.
    xc2 = wins.reshape(4, T, nb, P, K2)
    xc2 = jnp.transpose(xc2, (1, 0, 3, 2, 4)).reshape(T, 4, P * nb, K2)
    xc2 = jnp.pad(xc2, ((0, 0), (0, 0), (0, 0), (0, Kpad2 - K2)))

    out = pl.pallas_call(
        _conv2_fc_kernel,
        out_shape=jax.ShapeDtypeStruct((Npad, 128), jnp.float32),
        grid=(T,),
        in_specs=[pl.BlockSpec((None, 4, P * nb, Kpad2), lambda i: (i, 0, 0, 0)),
                  pl.BlockSpec(pp["w_conv2"].shape, lambda i: (0, 0)),
                  pl.BlockSpec(pp["w_fc1"].shape, lambda i: (0, 0, 0)),
                  pl.BlockSpec(pp["w_fc2"].shape, lambda i: (0, 0)),
                  pl.BlockSpec(pp["w_fc3"].shape, lambda i: (0, 0)),
                  pl.BlockSpec(pp["b_fc"].shape, lambda i: (0, 0))],
        out_specs=pl.BlockSpec((nb, 128), lambda i: (i, 0)),
        compiler_params=pltpu.CompilerParams(
            dimension_semantics=("parallel",),
            vmem_limit_bytes=_VMEM_LIMIT),
    )(xc2, pp["w_conv2"], pp["w_fc1"], pp["w_fc2"], pp["w_fc3"], pp["b_fc"])
    return out[:n_rows, :num_classes]


# --------------------------- params ------------------------------------------

def init_params(key, input_shape=28, num_classes=10):
    """PyTorch-shaped parameters for TorchLeNet (conv layers bias-free)."""
    ks = jax.random.split(key, 8)
    flat = ((input_shape // 2 - 4) // 2) ** 2 * 16        # 400 for input 28
    return {
        "conv1_w": 0.1 * jax.random.normal(ks[0], (6, 3, 5, 5), jnp.float32),
        "conv2_w": 0.1 * jax.random.normal(ks[1], (16, 6, 5, 5), jnp.float32),
        "lin1_w": 0.05 * jax.random.normal(ks[2], (120, flat), jnp.float32),
        "lin1_b": 0.01 * jax.random.normal(ks[3], (120,), jnp.float32),
        "lin2_w": 0.05 * jax.random.normal(ks[4], (84, 120), jnp.float32),
        "lin2_b": 0.01 * jax.random.normal(ks[5], (84,), jnp.float32),
        "lin3_w": 0.05 * jax.random.normal(ks[6], (num_classes, 84), jnp.float32),
        "lin3_b": 0.01 * jax.random.normal(ks[7], (num_classes,), jnp.float32),
    }


def _conv_weight_to_matrix(w_oihw, k_pad, c_pad):
    """(Cout, Cin, kh, kw) -> zero-padded (k_pad, c_pad) matrix, im2col order."""
    Cout, Cin, kh, kw = w_oihw.shape
    m = jnp.transpose(w_oihw, (2, 3, 1, 0)).reshape(kh * kw * Cin, Cout)
    m = jnp.pad(m, ((0, k_pad - m.shape[0]), (0, c_pad - m.shape[1])))
    return m.astype(jnp.bfloat16)


def prepare_params(params, input_shape=28, num_classes=10):
    """One-time weight prep: lane-dense padding + fold flatten permutation."""
    spat = (input_shape // 2 - 4) // 2                    # 5 for input 28
    P = spat * spat                                       # 25 pooled positions
    CP = 128

    w_conv1 = _conv_weight_to_matrix(params["conv1_w"], 128, CP)    # (128, 128)
    w_conv2 = _conv_weight_to_matrix(params["conv2_w"], 256, CP)    # (256, 128)

    # linear1: split per pooled position p = h*spat + w so the fused kernel can
    # contract directly against its (nb, 128) conv2 rows.  torch.flatten's
    # (C, H, W) order is folded here; padded channels (16..127) get zero rows.
    l1 = params["lin1_w"].reshape(120, 16, spat, spat)    # (out, c, h, w)
    l1 = jnp.transpose(l1, (2, 3, 1, 0)).reshape(P, 16, 120)   # (p, c, out)
    w_fc1 = jnp.pad(l1, ((0, 0), (0, CP - 16), (0, 128 - 120))).astype(jnp.bfloat16)

    w_fc2 = jnp.pad(params["lin2_w"].T,
                    ((0, 128 - 120), (0, 128 - 84))).astype(jnp.bfloat16)
    w_fc3 = jnp.pad(params["lin3_w"].T,
                    ((0, 128 - 84), (0, 128 - num_classes))).astype(jnp.bfloat16)

    b = jnp.zeros((8, 128), jnp.float32)
    b = b.at[0, :120].set(params["lin1_b"])
    b = b.at[1, :84].set(params["lin2_b"])
    b = b.at[2, :num_classes].set(params["lin3_b"])

    return {"w_conv1": w_conv1, "w_conv2": w_conv2,
            "w_fc1": w_fc1, "w_fc2": w_fc2, "w_fc3": w_fc3, "b_fc": b}


# --------------------------- model -------------------------------------------

def lenet_forward(x_nchw, pp, num_classes=10):
    N = x_nchw.shape[0]
    # NCHW -> NHWC; cast to bf16 BEFORE the im2col expansion (halves glue traffic)
    x = jnp.transpose(x_nchw, (0, 2, 3, 1)).astype(jnp.bfloat16)
    # stage 1: conv1 + sigmoid + avgpool (one kernel, bf16 activations out)
    y1 = conv1_sigmoid_pool(x, pp["w_conv1"])             # (N, 14, 14, 6) bf16
    # stage 2: conv2 + sigmoid + avgpool + linear1/2/3 (one fused kernel)
    return conv2_pool_fc(y1, pp, N, num_classes)          # (N, num_classes) f32


# --------------------------- main ---------------------------------------------

if __name__ == "__main__":
    key = jax.random.PRNGKey(0)
    k_params, k_x = jax.random.split(key)

    # input_shape=28 (so linear1 input size is 400), 3 input channels, batch=2
    params = init_params(k_params, input_shape=28, num_classes=10)
    pp = prepare_params(params, input_shape=28, num_classes=10)     # one-time prep
    x = jax.random.normal(k_x, (2, 3, 28, 28), jnp.float32)         # NCHW

    fwd = jax.jit(lenet_forward)
    y = jax.block_until_ready(fwd(x, pp))

    assert y.shape == (2, 10) and y.dtype == jnp.float32
    assert bool(jnp.all(jnp.isfinite(y)))
    print("KERNEL_OK")
</pallas_src>

<mosaic_0001>
module attributes {stable_mosaic.version = 11 : i64} {
  func.func @_conv1_pool_kernel(%arg0: i32, %arg1: memref<4x200x128xbf16, #tpu.memory_space<vmem>>, %arg2: memref<128x128xbf16, #tpu.memory_space<vmem>>, %arg3: memref<200x128xbf16, #tpu.memory_space<vmem>>) attributes {dimension_semantics = [#tpu.dimension_semantics<parallel>], iteration_bounds = array<i64: 2>, scalar_prefetch = 0 : i64, scratch_operands = 0 : i64, tpu.core_type = #tpu.core_type<tc>, window_params = [{transform_indices = @transform_0, window_bounds = array<i64: 4, 200, 128>}, {pipeline_mode = #tpu.pipeline_mode<synchronous>, transform_indices = @transform_1, window_bounds = array<i64: 128, 128>}, {transform_indices = @transform_2, window_bounds = array<i64: 200, 128>}]} {
    %c0 = arith.constant 0 : index
    %c0_0 = arith.constant 0 : index
    %0 = vector.load %arg2[%c0, %c0_0] : memref<128x128xbf16, #tpu.memory_space<vmem>>, vector<128x128xbf16>
    %cst = arith.constant 0.000000e+00 : f32
    %1 = vector.broadcast %cst : f32 to vector<200x128xf32>
    %c0_1 = arith.constant 0 : index
    %c0_2 = arith.constant 0 : index
    %c0_3 = arith.constant 0 : index
    %2 = vector.load %arg1[%c0_1, %c0_2, %c0_3] : memref<4x200x128xbf16, #tpu.memory_space<vmem>>, vector<1x200x128xbf16>
    %3 = vector.shape_cast %2 : vector<1x200x128xbf16> to vector<200x128xbf16>
    %cst_4 = arith.constant dense<0.000000e+00> : vector<200x128xf32>
    %4 = tpu.matmul %3, %0, %cst_4 {dimension_numbers = #tpu.dot_dimension_numbers<[1], [0], [0], [1], [0, 0, 1, 1], [], []>} : vector<200x128xbf16>, vector<128x128xbf16>, vector<200x128xf32> -> vector<200x128xf32>
    %cst_5 = arith.constant 5.000000e-01 : f32
    %5 = vector.broadcast %cst_5 : f32 to vector<200x128xf32>
    %6 = arith.mulf %4, %5 : vector<200x128xf32>
    %7 = math.tanh %6 : vector<200x128xf32>
    %8 = arith.addf %1, %7 : vector<200x128xf32>
    %c1 = arith.constant 1 : index
    %c0_6 = arith.constant 0 : index
    %c0_7 = arith.constant 0 : index
    %9 = vector.load %arg1[%c1, %c0_6, %c0_7] : memref<4x200x128xbf16, #tpu.memory_space<vmem>>, vector<1x200x128xbf16>
    %10 = vector.shape_cast %9 : vector<1x200x128xbf16> to vector<200x128xbf16>
    %cst_8 = arith.constant dense<0.000000e+00> : vector<200x128xf32>
    %11 = tpu.matmul %10, %0, %cst_8 {dimension_numbers = #tpu.dot_dimension_numbers<[1], [0], [0], [1], [0, 0, 1, 1], [], []>} : vector<200x128xbf16>, vector<128x128xbf16>, vector<200x128xf32> -> vector<200x128xf32>
    %cst_9 = arith.constant 5.000000e-01 : f32
    %12 = vector.broadcast %cst_9 : f32 to vector<200x128xf32>
    %13 = arith.mulf %11, %12 : vector<200x128xf32>
    %14 = math.tanh %13 : vector<200x128xf32>
    %15 = arith.addf %8, %14 : vector<200x128xf32>
    %c2 = arith.constant 2 : index
    %c0_10 = arith.constant 0 : index
    %c0_11 = arith.constant 0 : index
    %16 = vector.load %arg1[%c2, %c0_10, %c0_11] : memref<4x200x128xbf16, #tpu.memory_space<vmem>>, vector<1x200x128xbf16>
    %17 = vector.shape_cast %16 : vector<1x200x128xbf16> to vector<200x128xbf16>
    %cst_12 = arith.constant dense<0.000000e+00> : vector<200x128xf32>
    %18 = tpu.matmul %17, %0, %cst_12 {dimension_numbers = #tpu.dot_dimension_numbers<[1], [0], [0], [1], [0, 0, 1, 1], [], []>} : vector<200x128xbf16>, vector<128x128xbf16>, vector<200x128xf32> -> vector<200x128xf32>
    %cst_13 = arith.constant 5.000000e-01 : f32
    %19 = vector.broadcast %cst_13 : f32 to vector<200x128xf32>
    %20 = arith.mulf %18, %19 : vector<200x128xf32>
    %21 = math.tanh %20 : vector<200x128xf32>
    %22 = arith.addf %15, %21 : vector<200x128xf32>
    %c3 = arith.constant 3 : index
    %c0_14 = arith.constant 0 : index
    %c0_15 = arith.constant 0 : index
    %23 = vector.load %arg1[%c3, %c0_14, %c0_15] : memref<4x200x128xbf16, #tpu.memory_space<vmem>>, vector<1x200x128xbf16>
    %24 = vector.shape_cast %23 : vector<1x200x128xbf16> to vector<200x128xbf16>
    %cst_16 = arith.constant dense<0.000000e+00> : vector<200x128xf32>
    %25 = tpu.matmul %24, %0, %cst_16 {dimension_numbers = #tpu.dot_dimension_numbers<[1], [0], [0], [1], [0, 0, 1, 1], [], []>} : vector<200x128xbf16>, vector<128x128xbf16>, vector<200x128xf32> -> vector<200x128xf32>
    %cst_17 = arith.constant 5.000000e-01 : f32
    %26 = vector.broadcast %cst_17 : f32 to vector<200x128xf32>
    %27 = arith.mulf %25, %26 : vector<200x128xf32>
    %28 = math.tanh %27 : vector<200x128xf32>
    %29 = arith.addf %22, %28 : vector<200x128xf32>
    %cst_18 = arith.constant 1.250000e-01 : f32
    %30 = vector.broadcast %cst_18 : f32 to vector<200x128xf32>
    %31 = arith.mulf %29, %30 : vector<200x128xf32>
    %cst_19 = arith.constant 5.000000e-01 : f32
    %32 = vector.broadcast %cst_19 : f32 to vector<200x128xf32>
    %33 = arith.addf %31, %32 : vector<200x128xf32>
    %34 = arith.truncf %33 : vector<200x128xf32> to vector<200x128xbf16>
    %c0_20 = arith.constant 0 : index
    %c0_21 = arith.constant 0 : index
    %35 = vector.load %arg3[%c0_20, %c0_21] : memref<200x128xbf16, #tpu.memory_space<vmem>>, vector<200x128xbf16>
    tpu.vector_store %arg3[%c0_20, %c0_21], %34 {strides = array<i32>} : memref<200x128xbf16, #tpu.memory_space<vmem>>, vector<200x128xbf16>,
    return
  }
  func.func @transform_0(%arg0: i32) -> (i32, i32, i32) {
    %c0_i32 = arith.constant 0 : i32
    %c0_i32_0 = arith.constant 0 : i32
    %c0_i32_1 = arith.constant 0 : i32
    return %c0_i32, %arg0, %c0_i32_0 : i32, i32, i32
  }
  func.func @transform_1(%arg0: i32) -> (i32, i32) {
    %c0_i32 = arith.constant 0 : i32
    %c0_i32_0 = arith.constant 0 : i32
    %c0_i32_1 = arith.constant 0 : i32
    return %c0_i32, %c0_i32_0 : i32, i32
  }
  func.func @transform_2(%arg0: i32) -> (i32, i32) {
    %c0_i32 = arith.constant 0 : i32
    %c0_i32_0 = arith.constant 0 : i32
    return %arg0, %c0_i32 : i32, i32
  }
}

module attributes {stable_mosaic.version = 11 : i64} {
  func.func @_conv2_fc_kernel(%arg0: i32, %arg1: memref<1x4x200x256xbf16, #tpu.memory_space<vmem>>, %arg2: memref<256x128xbf16, #tpu.memory_space<vmem>>, %arg3: memref<25x128x128xbf16, #tpu.memory_space<vmem>>, %arg4: memref<128x128xbf16, #tpu.memory_space<vmem>>, %arg5: memref<128x128xbf16, #tpu.memory_space<vmem>>, %arg6: memref<8x128xf32, #tpu.memory_space<vmem>>, %arg7: memref<8x128xf32, #tpu.memory_space<vmem>>) attributes {dimension_semantics = [#tpu.dimension_semantics<parallel>], iteration_bounds = array<i64: 1>, scalar_prefetch = 0 : i64, scratch_operands = 0 : i64, tpu.core_type = #tpu.core_type<tc>, window_params = [{transform_indices = @transform_0, window_bounds = array<i64: 1, 4, 200, 256>}, {pipeline_mode = #tpu.pipeline_mode<synchronous>, transform_indices = @transform_1, window_bounds = array<i64: 256, 128>}, {pipeline_mode = #tpu.pipeline_mode<synchronous>, transform_indices = @transform_2, window_bounds = array<i64: 25, 128, 128>}, {pipeline_mode = #tpu.pipeline_mode<synchronous>, transform_indices = @transform_3, window_bounds = array<i64: 128, 128>}, {pipeline_mode = #tpu.pipeline_mode<synchronous>, transform_indices = @transform_4, window_bounds = array<i64: 128, 128>}, {pipeline_mode = #tpu.pipeline_mode<synchronous>, transform_indices = @transform_5, window_bounds = array<i64: 8, 128>}, {transform_indices = @transform_6, window_bounds = array<i64: 8, 128>}]} {
    %c0 = arith.constant 0 : index
    %c0_0 = arith.constant 0 : index
    %0 = vector.load %arg2[%c0, %c0_0] : memref<256x128xbf16, #tpu.memory_space<vmem>>, vector<256x128xbf16>
    %cst = arith.constant 0.000000e+00 : f32
    %1 = vector.broadcast %cst : f32 to vector<200x128xf32>
    %c0_1 = arith.constant 0 : index
    %c0_2 = arith.constant 0 : index
    %c0_3 = arith.constant 0 : index
    %c0_4 = arith.constant 0 : index
    %2 = vector.load %arg1[%c0_1, %c0_2, %c0_3, %c0_4] : memref<1x4x200x256xbf16, #tpu.memory_space<vmem>>, vector<1x1x200x256xbf16>
    %3 = vector.shape_cast %2 : vector<1x1x200x256xbf16> to vector<200x256xbf16>
    %cst_5 = arith.constant dense<0.000000e+00> : vector<200x128xf32>
    %4 = tpu.matmul %3, %0, %cst_5 {dimension_numbers = #tpu.dot_dimension_numbers<[1], [0], [0], [1], [0, 0, 1, 1], [], []>} : vector<200x256xbf16>, vector<256x128xbf16>, vector<200x128xf32> -> vector<200x128xf32>
    %cst_6 = arith.constant 5.000000e-01 : f32
    %5 = vector.broadcast %cst_6 : f32 to vector<200x128xf32>
    %6 = arith.mulf %4, %5 : vector<200x128xf32>
    %7 = math.tanh %6 : vector<200x128xf32>
    %8 = arith.addf %1, %7 : vector<200x128xf32>
    %c0_7 = arith.constant 0 : index
    %c1 = arith.constant 1 : index
    %c0_8 = arith.constant 0 : index
    %c0_9 = arith.constant 0 : index
    %9 = vector.load %arg1[%c0_7, %c1, %c0_8, %c0_9] : memref<1x4x200x256xbf16, #tpu.memory_space<vmem>>, vector<1x1x200x256xbf16>
    %10 = vector.shape_cast %9 : vector<1x1x200x256xbf16> to vector<200x256xbf16>
    %cst_10 = arith.constant dense<0.000000e+00> : vector<200x128xf32>
    %11 = tpu.matmul %10, %0, %cst_10 {dimension_numbers = #tpu.dot_dimension_numbers<[1], [0], [0], [1], [0, 0, 1, 1], [], []>} : vector<200x256xbf16>, vector<256x128xbf16>, vector<200x128xf32> -> vector<200x128xf32>
    %cst_11 = arith.constant 5.000000e-01 : f32
    %12 = vector.broadcast %cst_11 : f32 to vector<200x128xf32>
    %13 = arith.mulf %11, %12 : vector<200x128xf32>
    %14 = math.tanh %13 : vector<200x128xf32>
    %15 = arith.addf %8, %14 : vector<200x128xf32>
    %c0_12 = arith.constant 0 : index
    %c2 = arith.constant 2 : index
    %c0_13 = arith.constant 0 : index
    %c0_14 = arith.constant 0 : index
    %16 = vector.load %arg1[%c0_12, %c2, %c0_13, %c0_14] : memref<1x4x200x256xbf16, #tpu.memory_space<vmem>>, vector<1x1x200x256xbf16>
    %17 = vector.shape_cast %16 : vector<1x1x200x256xbf16> to vector<200x256xbf16>
    %cst_15 = arith.constant dense<0.000000e+00> : vector<200x128xf32>
    %18 = tpu.matmul %17, %0, %cst_15 {dimension_numbers = #tpu.dot_dimension_numbers<[1], [0], [0], [1], [0, 0, 1, 1], [], []>} : vector<200x256xbf16>, vector<256x128xbf16>, vector<200x128xf32> -> vector<200x128xf32>
    %cst_16 = arith.constant 5.000000e-01 : f32
    %19 = vector.broadcast %cst_16 : f32 to vector<200x128xf32>
    %20 = arith.mulf %18, %19 : vector<200x128xf32>
    %21 = math.tanh %20 : vector<200x128xf32>
    %22 = arith.addf %15, %21 : vector<200x128xf32>
    %c0_17 = arith.constant 0 : index
    %c3 = arith.constant 3 : index
    %c0_18 = arith.constant 0 : index
    %c0_19 = arith.constant 0 : index
    %23 = vector.load %arg1[%c0_17, %c3, %c0_18, %c0_19] : memref<1x4x200x256xbf16, #tpu.memory_space<vmem>>, vector<1x1x200x256xbf16>
    %24 = vector.shape_cast %23 : vector<1x1x200x256xbf16> to vector<200x256xbf16>
    %cst_20 = arith.constant dense<0.000000e+00> : vector<200x128xf32>
    %25 = tpu.matmul %24, %0, %cst_20 {dimension_numbers = #tpu.dot_dimension_numbers<[1], [0], [0], [1], [0, 0, 1, 1], [], []>} : vector<200x256xbf16>, vector<256x128xbf16>, vector<200x128xf32> -> vector<200x128xf32>
    %cst_21 = arith.constant 5.000000e-01 : f32
    %26 = vector.broadcast %cst_21 : f32 to vector<200x128xf32>
    %27 = arith.mulf %25, %26 : vector<200x128xf32>
    %28 = math.tanh %27 : vector<200x128xf32>
    %29 = arith.addf %22, %28 : vector<200x128xf32>
    %cst_22 = arith.constant 1.250000e-01 : f32
    %30 = vector.broadcast %cst_22 : f32 to vector<200x128xf32>
    %31 = arith.mulf %29, %30 : vector<200x128xf32>
    %cst_23 = arith.constant 5.000000e-01 : f32
    %32 = vector.broadcast %cst_23 : f32 to vector<200x128xf32>
    %33 = arith.addf %31, %32 : vector<200x128xf32>
    %cst_24 = arith.constant 0.000000e+00 : f32
    %34 = vector.broadcast %cst_24 : f32 to vector<8x128xf32>
    %35 = vector.extract_strided_slice %33 {offsets = [0, 0], sizes = [8, 128], strides = [1, 1]} : vector<200x128xf32> to vector<8x128xf32>
    %36 = arith.truncf %35 : vector<8x128xf32> to vector<8x128xbf16>
    %c0_25 = arith.constant 0 : index
    %c0_26 = arith.constant 0 : index
    %c0_27 = arith.constant 0 : index
    %37 = vector.load %arg3[%c0_25, %c0_26, %c0_27] : memref<25x128x128xbf16, #tpu.memory_space<vmem>>, vector<1x128x128xbf16>
    %38 = vector.shape_cast %37 : vector<1x128x128xbf16> to vector<128x128xbf16>
    %cst_28 = arith.constant dense<0.000000e+00> : vector<8x128xf32>
    %39 = tpu.matmul %36, %38, %cst_28 {dimension_numbers = #tpu.dot_dimension_numbers<[1], [0], [0], [1], [0, 0, 1, 1], [], []>} : vector<8x128xbf16>, vector<128x128xbf16>, vector<8x128xf32> -> vector<8x128xf32>
    %40 = arith.addf %34, %39 : vector<8x128xf32>
    %41 = vector.extract_strided_slice %33 {offsets = [8, 0], sizes = [8, 128], strides = [1, 1]} : vector<200x128xf32> to vector<8x128xf32>
    %42 = arith.truncf %41 : vector<8x128xf32> to vector<8x128xbf16>
    %c1_29 = arith.constant 1 : index
    %c0_30 = arith.constant 0 : index
    %c0_31 = arith.constant 0 : index
    %43 = vector.load %arg3[%c1_29, %c0_30, %c0_31] : memref<25x128x128xbf16, #tpu.memory_space<vmem>>, vector<1x128x128xbf16>
    %44 = vector.shape_cast %43 : vector<1x128x128xbf16> to vector<128x128xbf16>
    %cst_32 = arith.constant dense<0.000000e+00> : vector<8x128xf32>
    %45 = tpu.matmul %42, %44, %cst_32 {dimension_numbers = #tpu.dot_dimension_numbers<[1], [0], [0], [1], [0, 0, 1, 1], [], []>} : vector<8x128xbf16>, vector<128x128xbf16>, vector<8x128xf32> -> vector<8x128xf32>
    %46 = arith.addf %40, %45 : vector<8x128xf32>
    %47 = vector.extract_strided_slice %33 {offsets = [16, 0], sizes = [8, 128], strides = [1, 1]} : vector<200x128xf32> to vector<8x128xf32>
    %48 = arith.truncf %47 : vector<8x128xf32> to vector<8x128xbf16>
    %c2_33 = arith.constant 2 : index
    %c0_34 = arith.constant 0 : index
    %c0_35 = arith.constant 0 : index
    %49 = vector.load %arg3[%c2_33, %c0_34, %c0_35] : memref<25x128x128xbf16, #tpu.memory_space<vmem>>, vector<1x128x128xbf16>
    %50 = vector.shape_cast %49 : vector<1x128x128xbf16> to vector<128x128xbf16>
    %cst_36 = arith.constant dense<0.000000e+00> : vector<8x128xf32>
    %51 = tpu.matmul %48, %50, %cst_36 {dimension_numbers = #tpu.dot_dimension_numbers<[1], [0], [0], [1], [0, 0, 1, 1], [], []>} : vector<8x128xbf16>, vector<128x128xbf16>, vector<8x128xf32> -> vector<8x128xf32>
    %52 = arith.addf %46, %51 : vector<8x128xf32>
    %53 = vector.extract_strided_slice %33 {offsets = [24, 0], sizes = [8, 128], strides = [1, 1]} : vector<200x128xf32> to vector<8x128xf32>
    %54 = arith.truncf %53 : vector<8x128xf32> to vector<8x128xbf16>
    %c3_37 = arith.constant 3 : index
    %c0_38 = arith.constant 0 : index
    %c0_39 = arith.constant 0 : index
    %55 = vector.load %arg3[%c3_37, %c0_38, %c0_39] : memref<25x128x128xbf16, #tpu.memory_space<vmem>>, vector<1x128x128xbf16>
    %56 = vector.shape_cast %55 : vector<1x128x128xbf16> to vector<128x128xbf16>
    %cst_40 = arith.constant dense<0.000000e+00> : vector<8x128xf32>
    %57 = tpu.matmul %54, %56, %cst_40 {dimension_numbers = #tpu.dot_dimension_numbers<[1], [0], [0], [1], [0, 0, 1, 1], [], []>} : vector<8x128xbf16>, vector<128x128xbf16>, vector<8x128xf32> -> vector<8x128xf32>
    %58 = arith.addf %52, %57 : vector<8x128xf32>
    %59 = vector.extract_strided_slice %33 {offsets = [32, 0], sizes = [8, 128], strides = [1, 1]} : vector<200x128xf32> to vector<8x128xf32>
    %60 = arith.truncf %59 : vector<8x128xf32> to vector<8x128xbf16>
    %c4 = arith.constant 4 : index
    %c0_41 = arith.constant 0 : index
    %c0_42 = arith.constant 0 : index
    %61 = vector.load %arg3[%c4, %c0_41, %c0_42] : memref<25x128x128xbf16, #tpu.memory_space<vmem>>, vector<1x128x128xbf16>
    %62 = vector.shape_cast %61 : vector<1x128x128xbf16> to vector<128x128xbf16>
    %cst_43 = arith.constant dense<0.000000e+00> : vector<8x128xf32>
    %63 = tpu.matmul %60, %62, %cst_43 {dimension_numbers = #tpu.dot_dimension_numbers<[1], [0], [0], [1], [0, 0, 1, 1], [], []>} : vector<8x128xbf16>, vector<128x128xbf16>, vector<8x128xf32> -> vector<8x128xf32>
    %64 = arith.addf %58, %63 : vector<8x128xf32>
    %65 = vector.extract_strided_slice %33 {offsets = [40, 0], sizes = [8, 128], strides = [1, 1]} : vector<200x128xf32> to vector<8x128xf32>
    %66 = arith.truncf %65 : vector<8x128xf32> to vector<8x128xbf16>
    %c5 = arith.constant 5 : index
    %c0_44 = arith.constant 0 : index
    %c0_45 = arith.constant 0 : index
    %67 = vector.load %arg3[%c5, %c0_44, %c0_45] : memref<25x128x128xbf16, #tpu.memory_space<vmem>>, vector<1x128x128xbf16>
    %68 = vector.shape_cast %67 : vector<1x128x128xbf16> to vector<128x128xbf16>
    %cst_46 = arith.constant dense<0.000000e+00> : vector<8x128xf32>
    %69 = tpu.matmul %66, %68, %cst_46 {dimension_numbers = #tpu.dot_dimension_numbers<[1], [0], [0], [1], [0, 0, 1, 1], [], []>} : vector<8x128xbf16>, vector<128x128xbf16>, vector<8x128xf32> -> vector<8x128xf32>
    %70 = arith.addf %64, %69 : vector<8x128xf32>
    %71 = vector.extract_strided_slice %33 {offsets = [48, 0], sizes = [8, 128], strides = [1, 1]} : vector<200x128xf32> to vector<8x128xf32>
    %72 = arith.truncf %71 : vector<8x128xf32> to vector<8x128xbf16>
    %c6 = arith.constant 6 : index
    %c0_47 = arith.constant 0 : index
    %c0_48 = arith.constant 0 : index
    %73 = vector.load %arg3[%c6, %c0_47, %c0_48] : memref<25x128x128xbf16, #tpu.memory_space<vmem>>, vector<1x128x128xbf16>
    %74 = vector.shape_cast %73 : vector<1x128x128xbf16> to vector<128x128xbf16>
    %cst_49 = arith.constant dense<0.000000e+00> : vector<8x128xf32>
    %75 = tpu.matmul %72, %74, %cst_49 {dimension_numbers = #tpu.dot_dimension_numbers<[1], [0], [0], [1], [0, 0, 1, 1], [], []>} : vector<8x128xbf16>, vector<128x128xbf16>, vector<8x128xf32> -> vector<8x128xf32>
    %76 = arith.addf %70, %75 : vector<8x128xf32>
    %77 = vector.extract_strided_slice %33 {offsets = [56, 0], sizes = [8, 128], strides = [1, 1]} : vector<200x128xf32> to vector<8x128xf32>
    %78 = arith.truncf %77 : vector<8x128xf32> to vector<8x128xbf16>
    %c7 = arith.constant 7 : index
    %c0_50 = arith.constant 0 : index
    %c0_51 = arith.constant 0 : index
    %79 = vector.load %arg3[%c7, %c0_50, %c0_51] : memref<25x128x128xbf16, #tpu.memory_space<vmem>>, vector<1x128x128xbf16>
    %80 = vector.shape_cast %79 : vector<1x128x128xbf16> to vector<128x128xbf16>
    %cst_52 = arith.constant dense<0.000000e+00> : vector<8x128xf32>
    %81 = tpu.matmul %78, %80, %cst_52 {dimension_numbers = #tpu.dot_dimension_numbers<[1], [0], [0], [1], [0, 0, 1, 1], [], []>} : vector<8x128xbf16>, vector<128x128xbf16>, vector<8x128xf32> -> vector<8x128xf32>
    %82 = arith.addf %76, %81 : vector<8x128xf32>
    %83 = vector.extract_strided_slice %33 {offsets = [64, 0], sizes = [8, 128], strides = [1, 1]} : vector<200x128xf32> to vector<8x128xf32>
    %84 = arith.truncf %83 : vector<8x128xf32> to vector<8x128xbf16>
    %c8 = arith.constant 8 : index
    %c0_53 = arith.constant 0 : index
    %c0_54 = arith.constant 0 : index
    %85 = vector.load %arg3[%c8, %c0_53, %c0_54] : memref<25x128x128xbf16, #tpu.memory_space<vmem>>, vector<1x128x128xbf16>
    %86 = vector.shape_cast %85 : vector<1x128x128xbf16> to vector<128x128xbf16>
    %cst_55 = arith.constant dense<0.000000e+00> : vector<8x128xf32>
    %87 = tpu.matmul %84, %86, %cst_55 {dimension_numbers = #tpu.dot_dimension_numbers<[1], [0], [0], [1], [0, 0, 1, 1], [], []>} : vector<8x128xbf16>, vector<128x128xbf16>, vector<8x128xf32> -> vector<8x128xf32>
    %88 = arith.addf %82, %87 : vector<8x128xf32>
    %89 = vector.extract_strided_slice %33 {offsets = [72, 0], sizes = [8, 128], strides = [1, 1]} : vector<200x128xf32> to vector<8x128xf32>
    %90 = arith.truncf %89 : vector<8x128xf32> to vector<8x128xbf16>
    %c9 = arith.constant 9 : index
    %c0_56 = arith.constant 0 : index
    %c0_57 = arith.constant 0 : index
    %91 = vector.load %arg3[%c9, %c0_56, %c0_57] : memref<25x128x128xbf16, #tpu.memory_space<vmem>>, vector<1x128x128xbf16>
    %92 = vector.shape_cast %91 : vector<1x128x128xbf16> to vector<128x128xbf16>
    %cst_58 = arith.constant dense<0.000000e+00> : vector<8x128xf32>
    %93 = tpu.matmul %90, %92, %cst_58 {dimension_numbers = #tpu.dot_dimension_numbers<[1], [0], [0], [1], [0, 0, 1, 1], [], []>} : vector<8x128xbf16>, vector<128x128xbf16>, vector<8x128xf32> -> vector<8x128xf32>
    %94 = arith.addf %88, %93 : vector<8x128xf32>
    %95 = vector.extract_strided_slice %33 {offsets = [80, 0], sizes = [8, 128], strides = [1, 1]} : vector<200x128xf32> to vector<8x128xf32>
    %96 = arith.truncf %95 : vector<8x128xf32> to vector<8x128xbf16>
    %c10 = arith.constant 10 : index
    %c0_59 = arith.constant 0 : index
    %c0_60 = arith.constant 0 : index
    %97 = vector.load %arg3[%c10, %c0_59, %c0_60] : memref<25x128x128xbf16, #tpu.memory_space<vmem>>, vector<1x128x128xbf16>
    %98 = vector.shape_cast %97 : vector<1x128x128xbf16> to vector<128x128xbf16>
    %cst_61 = arith.constant dense<0.000000e+00> : vector<8x128xf32>
    %99 = tpu.matmul %96, %98, %cst_61 {dimension_numbers = #tpu.dot_dimension_numbers<[1], [0], [0], [1], [0, 0, 1, 1], [], []>} : vector<8x128xbf16>, vector<128x128xbf16>, vector<8x128xf32> -> vector<8x128xf32>
    %100 = arith.addf %94, %99 : vector<8x128xf32>
    %101 = vector.extract_strided_slice %33 {offsets = [88, 0], sizes = [8, 128], strides = [1, 1]} : vector<200x128xf32> to vector<8x128xf32>
    %102 = arith.truncf %101 : vector<8x128xf32> to vector<8x128xbf16>
    %c11 = arith.constant 11 : index
    %c0_62 = arith.constant 0 : index
    %c0_63 = arith.constant 0 : index
    %103 = vector.load %arg3[%c11, %c0_62, %c0_63] : memref<25x128x128xbf16, #tpu.memory_space<vmem>>, vector<1x128x128xbf16>
    %104 = vector.shape_cast %103 : vector<1x128x128xbf16> to vector<128x128xbf16>
    %cst_64 = arith.constant dense<0.000000e+00> : vector<8x128xf32>
    %105 = tpu.matmul %102, %104, %cst_64 {dimension_numbers = #tpu.dot_dimension_numbers<[1], [0], [0], [1], [0, 0, 1, 1], [], []>} : vector<8x128xbf16>, vector<128x128xbf16>, vector<8x128xf32> -> vector<8x128xf32>
    %106 = arith.addf %100, %105 : vector<8x128xf32>
    %107 = vector.extract_strided_slice %33 {offsets = [96, 0], sizes = [8, 128], strides = [1, 1]} : vector<200x128xf32> to vector<8x128xf32>
    %108 = arith.truncf %107 : vector<8x128xf32> to vector<8x128xbf16>
    %c12 = arith.constant 12 : index
    %c0_65 = arith.constant 0 : index
    %c0_66 = arith.constant 0 : index
    %109 = vector.load %arg3[%c12, %c0_65, %c0_66] : memref<25x128x128xbf16, #tpu.memory_space<vmem>>, vector<1x128x128xbf16>
    %110 = vector.shape_cast %109 : vector<1x128x128xbf16> to vector<128x128xbf16>
    %cst_67 = arith.constant dense<0.000000e+00> : vector<8x128xf32>
    %111 = tpu.matmul %108, %110, %cst_67 {dimension_numbers = #tpu.dot_dimension_numbers<[1], [0], [0], [1], [0, 0, 1, 1], [], []>} : vector<8x128xbf16>, vector<128x128xbf16>, vector<8x128xf32> -> vector<8x128xf32>
    %112 = arith.addf %106, %111 : vector<8x128xf32>
    %113 = vector.extract_strided_slice %33 {offsets = [104, 0], sizes = [8, 128], strides = [1, 1]} : vector<200x128xf32> to vector<8x128xf32>
    %114 = arith.truncf %113 : vector<8x128xf32> to vector<8x128xbf16>
    %c13 = arith.constant 13 : index
    %c0_68 = arith.constant 0 : index
    %c0_69 = arith.constant 0 : index
    %115 = vector.load %arg3[%c13, %c0_68, %c0_69] : memref<25x128x128xbf16, #tpu.memory_space<vmem>>, vector<1x128x128xbf16>
    %116 = vector.shape_cast %115 : vector<1x128x128xbf16> to vector<128x128xbf16>
    %cst_70 = arith.constant dense<0.000000e+00> : vector<8x128xf32>
    %117 = tpu.matmul %114, %116, %cst_70 {dimension_numbers = #tpu.dot_dimension_numbers<[1], [0], [0], [1], [0, 0, 1, 1], [], []>} : vector<8x128xbf16>, vector<128x128xbf16>, vector<8x128xf32> -> vector<8x128xf32>
    %118 = arith.addf %112, %117 : vector<8x128xf32>
    %119 = vector.extract_strided_slice %33 {offsets = [112, 0], sizes = [8, 128], strides = [1, 1]} : vector<200x128xf32> to vector<8x128xf32>
    %120 = arith.truncf %119 : vector<8x128xf32> to vector<8x128xbf16>
    %c14 = arith.constant 14 : index
    %c0_71 = arith.constant 0 : index
    %c0_72 = arith.constant 0 : index
    %121 = vector.load %arg3[%c14, %c0_71, %c0_72] : memref<25x128x128xbf16, #tpu.memory_space<vmem>>, vector<1x128x128xbf16>
    %122 = vector.shape_cast %121 : vector<1x128x128xbf16> to vector<128x128xbf16>
    %cst_73 = arith.constant dense<0.000000e+00> : vector<8x128xf32>
    %123 = tpu.matmul %120, %122, %cst_73 {dimension_numbers = #tpu.dot_dimension_numbers<[1], [0], [0], [1], [0, 0, 1, 1], [], []>} : vector<8x128xbf16>, vector<128x128xbf16>, vector<8x128xf32> -> vector<8x128xf32>
    %124 = arith.addf %118, %123 : vector<8x128xf32>
    %125 = vector.extract_strided_slice %33 {offsets = [120, 0], sizes = [8, 128], strides = [1, 1]} : vector<200x128xf32> to vector<8x128xf32>
    %126 = arith.truncf %125 : vector<8x128xf32> to vector<8x128xbf16>
    %c15 = arith.constant 15 : index
    %c0_74 = arith.constant 0 : index
    %c0_75 = arith.constant 0 : index
    %127 = vector.load %arg3[%c15, %c0_74, %c0_75] : memref<25x128x128xbf16, #tpu.memory_space<vmem>>, vector<1x128x128xbf16>
    %128 = vector.shape_cast %127 : vector<1x128x128xbf16> to vector<128x128xbf16>
    %cst_76 = arith.constant dense<0.000000e+00> : vector<8x128xf32>
    %129 = tpu.matmul %126, %128, %cst_76 {dimension_numbers = #tpu.dot_dimension_numbers<[1], [0], [0], [1], [0, 0, 1, 1], [], []>} : vector<8x128xbf16>, vector<128x128xbf16>, vector<8x128xf32> -> vector<8x128xf32>
    %130 = arith.addf %124, %129 : vector<8x128xf32>
    %131 = vector.extract_strided_slice %33 {offsets = [128, 0], sizes = [8, 128], strides = [1, 1]} : vector<200x128xf32> to vector<8x128xf32>
    %132 = arith.truncf %131 : vector<8x128xf32> to vector<8x128xbf16>
    %c16 = arith.constant 16 : index
    %c0_77 = arith.constant 0 : index
    %c0_78 = arith.constant 0 : index
    %133 = vector.load %arg3[%c16, %c0_77, %c0_78] : memref<25x128x128xbf16, #tpu.memory_space<vmem>>, vector<1x128x128xbf16>
    %134 = vector.shape_cast %133 : vector<1x128x128xbf16> to vector<128x128xbf16>
    %cst_79 = arith.constant dense<0.000000e+00> : vector<8x128xf32>
    %135 = tpu.matmul %132, %134, %cst_79 {dimension_numbers = #tpu.dot_dimension_numbers<[1], [0], [0], [1], [0, 0, 1, 1], [], []>} : vector<8x128xbf16>, vector<128x128xbf16>, vector<8x128xf32> -> vector<8x128xf32>
    %136 = arith.addf %130, %135 : vector<8x128xf32>
    %137 = vector.extract_strided_slice %33 {offsets = [136, 0], sizes = [8, 128], strides = [1, 1]} : vector<200x128xf32> to vector<8x128xf32>
    %138 = arith.truncf %137 : vector<8x128xf32> to vector<8x128xbf16>
    %c17 = arith.constant 17 : index
    %c0_80 = arith.constant 0 : index
    %c0_81 = arith.constant 0 : index
    %139 = vector.load %arg3[%c17, %c0_80, %c0_81] : memref<25x128x128xbf16, #tpu.memory_space<vmem>>, vector<1x128x128xbf16>
    %140 = vector.shape_cast %139 : vector<1x128x128xbf16> to vector<128x128xbf16>
    %cst_82 = arith.constant dense<0.000000e+00> : vector<8x128xf32>
    %141 = tpu.matmul %138, %140, %cst_82 {dimension_numbers = #tpu.dot_dimension_numbers<[1], [0], [0], [1], [0, 0, 1, 1], [], []>} : vector<8x128xbf16>, vector<128x128xbf16>, vector<8x128xf32> -> vector<8x128xf32>
    %142 = arith.addf %136, %141 : vector<8x128xf32>
    %143 = vector.extract_strided_slice %33 {offsets = [144, 0], sizes = [8, 128], strides = [1, 1]} : vector<200x128xf32> to vector<8x128xf32>
    %144 = arith.truncf %143 : vector<8x128xf32> to vector<8x128xbf16>
    %c18 = arith.constant 18 : index
    %c0_83 = arith.constant 0 : index
    %c0_84 = arith.constant 0 : index
    %145 = vector.load %arg3[%c18, %c0_83, %c0_84] : memref<25x128x128xbf16, #tpu.memory_space<vmem>>, vector<1x128x128xbf16>
    %146 = vector.shape_cast %145 : vector<1x128x128xbf16> to vector<128x128xbf16>
    %cst_85 = arith.constant dense<0.000000e+00> : vector<8x128xf32>
    %147 = tpu.matmul %144, %146, %cst_85 {dimension_numbers = #tpu.dot_dimension_numbers<[1], [0], [0], [1], [0, 0, 1, 1], [], []>} : vector<8x128xbf16>, vector<128x128xbf16>, vector<8x128xf32> -> vector<8x128xf32>
    %148 = arith.addf %142, %147 : vector<8x128xf32>
    %149 = vector.extract_strided_slice %33 {offsets = [152, 0], sizes = [8, 128], strides = [1, 1]} : vector<200x128xf32> to vector<8x128xf32>
    %150 = arith.truncf %149 : vector<8x128xf32> to vector<8x128xbf16>
    %c19 = arith.constant 19 : index
    %c0_86 = arith.constant 0 : index
    %c0_87 = arith.constant 0 : index
    %151 = vector.load %arg3[%c19, %c0_86, %c0_87] : memref<25x128x128xbf16, #tpu.memory_space<vmem>>, vector<1x128x128xbf16>
    %152 = vector.shape_cast %151 : vector<1x128x128xbf16> to vector<128x128xbf16>
    %cst_88 = arith.constant dense<0.000000e+00> : vector<8x128xf32>
    %153 = tpu.matmul %150, %152, %cst_88 {dimension_numbers = #tpu.dot_dimension_numbers<[1], [0], [0], [1], [0, 0, 1, 1], [], []>} : vector<8x128xbf16>, vector<128x128xbf16>, vector<8x128xf32> -> vector<8x128xf32>
    %154 = arith.addf %148, %153 : vector<8x128xf32>
    %155 = vector.extract_strided_slice %33 {offsets = [160, 0], sizes = [8, 128], strides = [1, 1]} : vector<200x128xf32> to vector<8x128xf32>
    %156 = arith.truncf %155 : vector<8x128xf32> to vector<8x128xbf16>
    %c20 = arith.constant 20 : index
    %c0_89 = arith.constant 0 : index
    %c0_90 = arith.constant 0 : index
    %157 = vector.load %arg3[%c20, %c0_89, %c0_90] : memref<25x128x128xbf16, #tpu.memory_space<vmem>>, vector<1x128x128xbf16>
    %158 = vector.shape_cast %157 : vector<1x128x128xbf16> to vector<128x128xbf16>
    %cst_91 = arith.constant dense<0.000000e+00> : vector<8x128xf32>
    %159 = tpu.matmul %156, %158, %cst_91 {dimension_numbers = #tpu.dot_dimension_numbers<[1], [0], [0], [1], [0, 0, 1, 1], [], []>} : vector<8x128xbf16>, vector<128x128xbf16>, vector<8x128xf32> -> vector<8x128xf32>
    %160 = arith.addf %154, %159 : vector<8x128xf32>
    %161 = vector.extract_strided_slice %33 {offsets = [168, 0], sizes = [8, 128], strides = [1, 1]} : vector<200x128xf32> to vector<8x128xf32>
    %162 = arith.truncf %161 : vector<8x128xf32> to vector<8x128xbf16>
    %c21 = arith.constant 21 : index
    %c0_92 = arith.constant 0 : index
    %c0_93 = arith.constant 0 : index
    %163 = vector.load %arg3[%c21, %c0_92, %c0_93] : memref<25x128x128xbf16, #tpu.memory_space<vmem>>, vector<1x128x128xbf16>
    %164 = vector.shape_cast %163 : vector<1x128x128xbf16> to vector<128x128xbf16>
    %cst_94 = arith.constant dense<0.000000e+00> : vector<8x128xf32>
    %165 = tpu.matmul %162, %164, %cst_94 {dimension_numbers = #tpu.dot_dimension_numbers<[1], [0], [0], [1], [0, 0, 1, 1], [], []>} : vector<8x128xbf16>, vector<128x128xbf16>, vector<8x128xf32> -> vector<8x128xf32>
    %166 = arith.addf %160, %165 : vector<8x128xf32>
    %167 = vector.extract_strided_slice %33 {offsets = [176, 0], sizes = [8, 128], strides = [1, 1]} : vector<200x128xf32> to vector<8x128xf32>
    %168 = arith.truncf %167 : vector<8x128xf32> to vector<8x128xbf16>
    %c22 = arith.constant 22 : index
    %c0_95 = arith.constant 0 : index
    %c0_96 = arith.constant 0 : index
    %169 = vector.load %arg3[%c22, %c0_95, %c0_96] : memref<25x128x128xbf16, #tpu.memory_space<vmem>>, vector<1x128x128xbf16>
    %170 = vector.shape_cast %169 : vector<1x128x128xbf16> to vector<128x128xbf16>
    %cst_97 = arith.constant dense<0.000000e+00> : vector<8x128xf32>
    %171 = tpu.matmul %168, %170, %cst_97 {dimension_numbers = #tpu.dot_dimension_numbers<[1], [0], [0], [1], [0, 0, 1, 1], [], []>} : vector<8x128xbf16>, vector<128x128xbf16>, vector<8x128xf32> -> vector<8x128xf32>
    %172 = arith.addf %166, %171 : vector<8x128xf32>
    %173 = vector.extract_strided_slice %33 {offsets = [184, 0], sizes = [8, 128], strides = [1, 1]} : vector<200x128xf32> to vector<8x128xf32>
    %174 = arith.truncf %173 : vector<8x128xf32> to vector<8x128xbf16>
    %c23 = arith.constant 23 : index
    %c0_98 = arith.constant 0 : index
    %c0_99 = arith.constant 0 : index
    %175 = vector.load %arg3[%c23, %c0_98, %c0_99] : memref<25x128x128xbf16, #tpu.memory_space<vmem>>, vector<1x128x128xbf16>
    %176 = vector.shape_cast %175 : vector<1x128x128xbf16> to vector<128x128xbf16>
    %cst_100 = arith.constant dense<0.000000e+00> : vector<8x128xf32>
    %177 = tpu.matmul %174, %176, %cst_100 {dimension_numbers = #tpu.dot_dimension_numbers<[1], [0], [0], [1], [0, 0, 1, 1], [], []>} : vector<8x128xbf16>, vector<128x128xbf16>, vector<8x128xf32> -> vector<8x128xf32>
    %178 = arith.addf %172, %177 : vector<8x128xf32>
    %179 = vector.extract_strided_slice %33 {offsets = [192, 0], sizes = [8, 128], strides = [1, 1]} : vector<200x128xf32> to vector<8x128xf32>
    %180 = arith.truncf %179 : vector<8x128xf32> to vector<8x128xbf16>
    %c24 = arith.constant 24 : index
    %c0_101 = arith.constant 0 : index
    %c0_102 = arith.constant 0 : index
    %181 = vector.load %arg3[%c24, %c0_101, %c0_102] : memref<25x128x128xbf16, #tpu.memory_space<vmem>>, vector<1x128x128xbf16>
    %182 = vector.shape_cast %181 : vector<1x128x128xbf16> to vector<128x128xbf16>
    %cst_103 = arith.constant dense<0.000000e+00> : vector<8x128xf32>
    %183 = tpu.matmul %180, %182, %cst_103 {dimension_numbers = #tpu.dot_dimension_numbers<[1], [0], [0], [1], [0, 0, 1, 1], [], []>} : vector<8x128xbf16>, vector<128x128xbf16>, vector<8x128xf32> -> vector<8x128xf32>
    %184 = arith.addf %178, %183 : vector<8x128xf32>
    %c0_104 = arith.constant 0 : index
    %c0_105 = arith.constant 0 : index
    %185 = vector.load %arg6[%c0_104, %c0_105] : memref<8x128xf32, #tpu.memory_space<vmem>>, vector<1x128xf32>
    %186 = vector.broadcast %185 : vector<1x128xf32> to vector<8x128xf32>
    %187 = arith.addf %184, %186 : vector<8x128xf32>
    %188 = arith.truncf %187 : vector<8x128xf32> to vector<8x128xbf16>
    %c0_106 = arith.constant 0 : index
    %c0_107 = arith.constant 0 : index
    %189 = vector.load %arg4[%c0_106, %c0_107] : memref<128x128xbf16, #tpu.memory_space<vmem>>, vector<128x128xbf16>
    %cst_108 = arith.constant dense<0.000000e+00> : vector<8x128xf32>
    %190 = tpu.matmul %188, %189, %cst_108 {dimension_numbers = #tpu.dot_dimension_numbers<[1], [0], [0], [1], [0, 0, 1, 1], [], []>} : vector<8x128xbf16>, vector<128x128xbf16>, vector<8x128xf32> -> vector<8x128xf32>
    %c1_109 = arith.constant 1 : index
    %c0_110 = arith.constant 0 : index
    %191 = vector.load %arg6[%c1_109, %c0_110] : memref<8x128xf32, #tpu.memory_space<vmem>>, vector<1x128xf32>
    %192 = vector.broadcast %191 : vector<1x128xf32> to vector<8x128xf32>
    %193 = arith.addf %190, %192 : vector<8x128xf32>
    %194 = arith.truncf %193 : vector<8x128xf32> to vector<8x128xbf16>
    %c0_111 = arith.constant 0 : index
    %c0_112 = arith.constant 0 : index
    %195 = vector.load %arg5[%c0_111, %c0_112] : memref<128x128xbf16, #tpu.memory_space<vmem>>, vector<128x128xbf16>
    %cst_113 = arith.constant dense<0.000000e+00> : vector<8x128xf32>
    %196 = tpu.matmul %194, %195, %cst_113 {dimension_numbers = #tpu.dot_dimension_numbers<[1], [0], [0], [1], [0, 0, 1, 1], [], []>} : vector<8x128xbf16>, vector<128x128xbf16>, vector<8x128xf32> -> vector<8x128xf32>
    %c2_114 = arith.constant 2 : index
    %c0_115 = arith.constant 0 : index
    %197 = vector.load %arg6[%c2_114, %c0_115] : memref<8x128xf32, #tpu.memory_space<vmem>>, vector<1x128xf32>
    %198 = vector.broadcast %197 : vector<1x128xf32> to vector<8x128xf32>
    %199 = arith.addf %196, %198 : vector<8x128xf32>
    %c0_116 = arith.constant 0 : index
    %c0_117 = arith.constant 0 : index
    %200 = vector.load %arg7[%c0_116, %c0_117] : memref<8x128xf32, #tpu.memory_space<vmem>>, vector<8x128xf32>
    tpu.vector_store %arg7[%c0_116, %c0_117], %199 {strides = array<i32>} : memref<8x128xf32, #tpu.memory_space<vmem>>, vector<8x128xf32>,
    return
  }
  func.func @transform_0(%arg0: i32) -> (i32, i32, i32, i32) {
    %c0_i32 = arith.constant 0 : i32
    %c0_i32_0 = arith.constant 0 : i32
    %c0_i32_1 = arith.constant 0 : i32
    %c0_i32_2 = arith.constant 0 : i32
    return %arg0, %c0_i32, %c0_i32_0, %c0_i32_1 : i32, i32, i32, i32
  }
  func.func @transform_1(%arg0: i32) -> (i32, i32) {
    %c0_i32 = arith.constant 0 : i32
    %c0_i32_0 = arith.constant 0 : i32
    %c0_i32_1 = arith.constant 0 : i32
    return %c0_i32, %c0_i32_0 : i32, i32
  }
  func.func @transform_2(%arg0: i32) -> (i32, i32, i32) {
    %c0_i32 = arith.constant 0 : i32
    %c0_i32_0 = arith.constant 0 : i32
    %c0_i32_1 = arith.constant 0 : i32
    %c0_i32_2 = arith.constant 0 : i32
    return %c0_i32, %c0_i32_0, %c0_i32_1 : i32, i32, i32
  }
  func.func @transform_3(%arg0: i32) -> (i32, i32) {
    %c0_i32 = arith.constant 0 : i32
    %c0_i32_0 = arith.constant 0 : i32
    %c0_i32_1 = arith.constant 0 : i32
    return %c0_i32, %c0_i32_0 : i32, i32
  }
  func.func @transform_4(%arg0: i32) -> (i32, i32) {
    %c0_i32 = arith.constant 0 : i32
    %c0_i32_0 = arith.constant 0 : i32
    %c0_i32_1 = arith.constant 0 : i32
    return %c0_i32, %c0_i32_0 : i32, i32
  }
  func.func @transform_5(%arg0: i32) -> (i32, i32) {
    %c0_i32 = arith.constant 0 : i32
    %c0_i32_0 = arith.constant 0 : i32
    %c0_i32_1 = arith.constant 0 : i32
    return %c0_i32, %c0_i32_0 : i32, i32
  }
  func.func @transform_6(%arg0: i32) -> (i32, i32) {
    %c0_i32 = arith.constant 0 : i32
    %c0_i32_0 = arith.constant 0 : i32
    return %arg0, %c0_i32 : i32, i32
  }
}

</mosaic_0001>

<llo_original>
// kernel: lenet_forward.2
$region0: #{lenet_forward.2}
  #allocation0 [shape = 'u32[]', space=smem, size = 0x4, offset = 0x4, fixed_abs, tag = 'smem constant byte address 0x4 - core index']
  #allocation1 [shape = 'u32[144,128]{1,0:T(1,128)}', space=vmem, size = 0x12000, scoped, tag = 'internal scratch']
  %s0 = inlined_call_operand.vmem [shape: bf16[4,400,128], index: 0, kind: input, shape index: {}]
  %s1 = inlined_call_operand.vmem [shape: bf16[128,128], index: 1, kind: input, shape index: {}]
  %s2 = inlined_call_operand.vmem [shape: bf16[400,128], index: 2, kind: output, shape index: {}]
  %s3 = sld [smem:[#allocation0]]
  $region82: #{lenet_forward.2} parent=0
    _
  %s5 = ssub.s32 1, %s3
  %s6 = scalar_select 0, %s5, %s3
  $region1: #{lenet_forward.2} parent=0
    #allocation2 [shape = 'u8[409600]{0}', space=vmem, size = 0x64000, scoped, tag = 'input window, operand 0']
    loop: start=0, step=1, limit=4
    $region2: #{lenet_forward.2} parent=1 // loop_pre_header
      _
    $region3: #{lenet_forward.2} parent=1 // loop_header
      %s8 = sphi 0, %s12
      %p9 = scmp.ge.s32.totalorder %s8, 4
      %s18 = sphi 0, %s20
      %s21 = sphi 0, %s18
      %s22 = sphi 0, %s21
      %s38 = sphi 0, %s22
      %s42 = sphi 0, %s42
      %s44 = sphi 0, %s42
      %s45 = sphi 0, %s44
      %s59 = sphi 0, %s45
      %s65 = sphi 0, %s67
      %s68 = sphi 0, %s65
      %s69 = sphi 0, %s68
      %s85 = sphi 0, %s69
    $region4: #{lenet_forward.2} parent=1 // loop_header_branch
      %11 = sbr.rel (%p9) target = $region8
    $region5: #{lenet_forward.2} parent=1 // loop_body
      %s13 = ssub.s32 %s8, 1
      %s14 = ssub.s32 %s8, 2
      %s15 = sadd.s32 %s8, 1
      %s16 = ssub.s32 %s8, %s15
      %p17 = scmp.eq.s32.totalorder %s16, 0
      %s19 = sadd.s32 %s18, 1
      %s20 = scalar_select %p17, %s18, %s19
      %p23 = pneg %p17
      %p24 = scmp.eq.s32.totalorder %s8, 1
      %p25 = por %p23, %p24
      %p26 = scmp.ne.s32.totalorder %s18, %s21
      %p27 = scmp.eq.s32.totalorder %s8, 0
      %p28 = por %p26, %p27
      %p29 = scmp.ne.s32.totalorder %s18, %s21
      %p30 = scmp.eq.s32.totalorder %s13, 1
      %p31 = por %p29, %p30
      %p32 = scmp.ne.s32.totalorder %s21, %s22
      %p33 = scmp.eq.s32.totalorder %s13, 0
      %p34 = por %p32, %p33
      %p35 = scmp.ne.s32.totalorder %s21, %s22
      %p36 = scmp.eq.s32.totalorder %s14, 1
      %p37 = por %p35, %p36
      %p39 = scmp.ne.s32.totalorder %s22, %s38
      %p40 = scmp.eq.s32.totalorder %s14, 0
      %p41 = por %p39, %p40
      %s43 = sadd.s32 %s42, 1
      %p46 = scmp.eq.s32.totalorder %s8, 1
      %p47 = scmp.ne.s32.totalorder %s42, %s44
      %p48 = scmp.eq.s32.totalorder %s8, 0
      %p49 = por %p47, %p48
      %p50 = scmp.ne.s32.totalorder %s42, %s44
      %p51 = scmp.eq.s32.totalorder %s13, 1
      %p52 = por %p50, %p51
      %p53 = scmp.ne.s32.totalorder %s44, %s45
      %p54 = scmp.eq.s32.totalorder %s13, 0
      %p55 = por %p53, %p54
      %p56 = scmp.ne.s32.totalorder %s44, %s45
      %p57 = scmp.eq.s32.totalorder %s14, 1
      %p58 = por %p56, %p57
      %p60 = scmp.ne.s32.totalorder %s45, %s59
      %p61 = scmp.eq.s32.totalorder %s14, 0
      %p62 = por %p60, %p61
      %s63 = ssub.s32 %s8, %s15
      %p64 = scmp.eq.s32.totalorder %s63, 0
      %s66 = sadd.s32 %s65, 1
      %s67 = scalar_select %p64, %s65, %s66
      %p70 = pneg %p64
      %p71 = scmp.eq.s32.totalorder %s8, 1
      %p72 = por %p70, %p71
      %p73 = scmp.ne.s32.totalorder %s65, %s68
      %p74 = scmp.eq.s32.totalorder %s8, 0
      %p75 = por %p73, %p74
      %p76 = scmp.ne.s32.totalorder %s65, %s68
      %p77 = scmp.eq.s32.totalorder %s13, 1
      %p78 = por %p76, %p77
      %p79 = scmp.ne.s32.totalorder %s68, %s69
      %p80 = scmp.eq.s32.totalorder %s13, 0
      %p81 = por %p79, %p80
      %p82 = scmp.ne.s32.totalorder %s68, %s69
      %p83 = scmp.eq.s32.totalorder %s14, 1
      %p84 = por %p82, %p83
      %p86 = scmp.ne.s32.totalorder %s69, %s85
      %p87 = scmp.eq.s32.totalorder %s14, 0
      %p88 = por %p86, %p87
      %p89 = scmp.le.s32.totalorder 1, %s8
      %p90 = scmp.lt.s32.totalorder %s8, 3
      %p91 = pnand %p89, %p90
      %p92 = pneg %p91
      // Predicated region
      $region9: #{lenet_forward.2} parent=5 // pred_check
        _
      $region10: #{lenet_forward.2} parent=5 // pred_check_branch
        %94 = sbr.rel (%p91) target = $region12
      $region11: #{lenet_forward.2} parent=5 // pred_region
        %s95 = ssub.s32 %s8, 1
        // Predicated region
        $region13: #{lenet_forward.2} parent=11 // pred_check
          %p96 = pneg %p55
        $region14: #{lenet_forward.2} parent=11 // pred_check_branch
          %98 = sbr.rel (%p96) target = $region16
        $region15: #{lenet_forward.2} parent=11 // pred_region
          _
        $region16: #{lenet_forward.2} parent=11 // pred_fallthru
          _
      $region12: #{lenet_forward.2} parent=5 // pred_fallthru
        _
      %p99 = scmp.lt.s32.totalorder %s8, 2
      // Predicated region
      $region17: #{lenet_forward.2} parent=5 // pred_check
        %p100 = pneg %p99
      $region18: #{lenet_forward.2} parent=5 // pred_check_branch
        %102 = sbr.rel (%p100) target = $region20
      $region19: #{lenet_forward.2} parent=5 // pred_region
        // Predicated region
        $region21: #{lenet_forward.2} parent=19 // pred_check
          %p103 = pneg %p28
        $region22: #{lenet_forward.2} parent=19 // pred_check_branch
          %105 = sbr.rel (%p103) target = $region24
        $region23: #{lenet_forward.2} parent=19 // pred_region
          %s106 = sand.u32 %s18, 1
          %s107 = sand.u32 %s18, 1
          %s108 = smul.addr %s107, 400
          %s109 = scalar_lea.vmem [#allocation2], %s108
          %s110 = smul.u32 25, %s8
          %s111 = smul.addr %s110, 4
          %s112 = scalar_lea.vmem %s0, %s111
          // Predicated region
          $region25: #{lenet_forward.2} parent=23 // pred_check
            _
          $region26: #{lenet_forward.2} parent=23 // pred_check_branch
            %114 = sbr.rel (0) target = $region28
          $region27: #{lenet_forward.2} parent=23 // pred_region
            // Predicated region
            $region29: #{lenet_forward.2} parent=27 // pred_check
              _
            $region30: #{lenet_forward.2} parent=27 // pred_check_branch
              %116 = sbr.rel target = $region32
            $region31: #{lenet_forward.2} parent=27 // pred_region
              // Predicated region
              $region44: #{lenet_forward.2} parent=31 // pred_check
                _
              $region45: #{lenet_forward.2} parent=31 // pred_check_branch
                %330 = sbr.rel (0) target = $region47
              $region46: #{lenet_forward.2} parent=31 // pred_region
                loop: start=0, step=1, limit=1
                $region48: #{lenet_forward.2} parent=46 // loop_pre_header
                  _
                $region49: #{lenet_forward.2} parent=46 // loop_header
                  %s332 = sphi 0, %s336
                  %p333 = scmp.ge.s32.totalorder %s332, 1
                  %s337 = sphi %s112, %s112
                  %s338 = sphi %s109, %s109
                $region50: #{lenet_forward.2} parent=46 // loop_header_branch
                  %335 = sbr.rel (%p333) target = $region54
                $region51: #{lenet_forward.2} parent=46 // loop_body
                  _
                $region52: #{lenet_forward.2} parent=46 // loop_footer
                  %s336 = sadd.s32 1, %s332
                $region53: #{lenet_forward.2} parent=46 // loop_footer_branch
                  %331 = sbr.rel target = $region49
                $region54: #{lenet_forward.2} parent=46 // loop_exit
                  _
                %s340 = ssub.s32 16, 1
                loop: start=0, step=1, limit=1
                $region55: #{lenet_forward.2} parent=46 // loop_pre_header
                  _
                $region56: #{lenet_forward.2} parent=46 // loop_header
                  %s342 = sphi 0, %s346
                  %p343 = scmp.ge.s32.totalorder %s342, 1
                  %s347 = sphi %s112, %s112
                  %s348 = sphi %s109, %s109
                $region57: #{lenet_forward.2} parent=46 // loop_header_branch
                  %345 = sbr.rel (%p343) target = $region61
                $region58: #{lenet_forward.2} parent=46 // loop_body
                  %v349 = vld [vmem:[%s347] sm:%s340]
                  %350 = vst [vmem:[%s348] sm:%s340] %v349
                  %v351 = vld [vmem:[%s347 + $0x4] sm:%s340]
                  %352 = vst [vmem:[%s348 + $0x4] sm:%s340] %v351
                  %v353 = vld [vmem:[%s347 + $0x8] sm:%s340]
                  %354 = vst [vmem:[%s348 + $0x8] sm:%s340] %v353
                  %v355 = vld [vmem:[%s347 + $0xc] sm:%s340]
                  %356 = vst [vmem:[%s348 + $0xc] sm:%s340] %v355
                  %v357 = vld [vmem:[%s347 + $0x10] sm:%s340]
                  %358 = vst [vmem:[%s348 + $0x10] sm:%s340] %v357
                  %v359 = vld [vmem:[%s347 + $0x14] sm:%s340]
                  %360 = vst [vmem:[%s348 + $0x14] sm:%s340] %v359
                  %v361 = vld [vmem:[%s347 + $0x18] sm:%s340]
                  %362 = vst [vmem:[%s348 + $0x18] sm:%s340] %v361
                  %v363 = vld [vmem:[%s347 + $0x1c] sm:%s340]
                  %364 = vst [vmem:[%s348 + $0x1c] sm:%s340] %v363
                  %v365 = vld [vmem:[%s347 + $0x20] sm:%s340]
                  %366 = vst [vmem:[%s348 + $0x20] sm:%s340] %v365
                  %v367 = vld [vmem:[%s347 + $0x24] sm:%s340]
                  %368 = vst [vmem:[%s348 + $0x24] sm:%s340] %v367
                  %v369 = vld [vmem:[%s347 + $0x28] sm:%s340]
                  %370 = vst [vmem:[%s348 + $0x28] sm:%s340] %v369
                  %v371 = vld [vmem:[%s347 + $0x2c] sm:%s340]
                  %372 = vst [vmem:[%s348 + $0x2c] sm:%s340] %v371
                  %v373 = vld [vmem:[%s347 + $0x30] sm:%s340]
                  %374 = vst [vmem:[%s348 + $0x30] sm:%s340] %v373
                  %v375 = vld [vmem:[%s347 + $0x34] sm:%s340]
                  %376 = vst [vmem:[%s348 + $0x34] sm:%s340] %v375
                  %v377 = vld [vmem:[%s347 + $0x38] sm:%s340]
                  %378 = vst [vmem:[%s348 + $0x38] sm:%s340] %v377
                  %v379 = vld [vmem:[%s347 + $0x3c] sm:%s340]
                  %380 = vst [vmem:[%s348 + $0x3c] sm:%s340] %v379
                  %v381 = vld [vmem:[%s347 + $0x40] sm:%s340]
                  %382 = vst [vmem:[%s348 + $0x40] sm:%s340] %v381
                  %v383 = vld [vmem:[%s347 + $0x44] sm:%s340]
                  %384 = vst [vmem:[%s348 + $0x44] sm:%s340] %v383
                  %v385 = vld [vmem:[%s347 + $0x48] sm:%s340]
                  %386 = vst [vmem:[%s348 + $0x48] sm:%s340] %v385
                  %v387 = vld [vmem:[%s347 + $0x4c] sm:%s340]
                  %388 = vst [vmem:[%s348 + $0x4c] sm:%s340] %v387
                  %v389 = vld [vmem:[%s347 + $0x50] sm:%s340]
                  %390 = vst [vmem:[%s348 + $0x50] sm:%s340] %v389
                  %v391 = vld [vmem:[%s347 + $0x54] sm:%s340]
                  %392 = vst [vmem:[%s348 + $0x54] sm:%s340] %v391
                  %v393 = vld [vmem:[%s347 + $0x58] sm:%s340]
                  %394 = vst [vmem:[%s348 + $0x58] sm:%s340] %v393
                  %v395 = vld [vmem:[%s347 + $0x5c] sm:%s340]
                  %396 = vst [vmem:[%s348 + $0x5c] sm:%s340] %v395
                  %v397 = vld [vmem:[%s347 + $0x60] sm:%s340]
                  %398 = vst [vmem:[%s348 + $0x60] sm:%s340] %v397
                  %v399 = vld [vmem:[%s347 + $0xc8] sm:%s340]
                  %400 = vst [vmem:[%s348 + $0x64] sm:%s340] %v399
                  %v401 = vld [vmem:[%s347 + $0xcc] sm:%s340]
                  %402 = vst [vmem:[%s348 + $0x68] sm:%s340] %v401
                  %v403 = vld [vmem:[%s347 + $0xd0] sm:%s340]
                  %404 = vst [vmem:[%s348 + $0x6c] sm:%s340] %v403
                  %v405 = vld [vmem:[%s347 + $0xd4] sm:%s340]
                  %406 = vst [vmem:[%s348 + $0x70] sm:%s340] %v405
                  %v407 = vld [vmem:[%s347 + $0xd8] sm:%s340]
                  %408 = vst [vmem:[%s348 + $0x74] sm:%s340] %v407
                  %v409 = vld [vmem:[%s347 + $0xdc] sm:%s340]
                  %410 = vst [vmem:[%s348 + $0x78] sm:%s340] %v409
                  %v411 = vld [vmem:[%s347 + $0xe0] sm:%s340]
                  %412 = vst [vmem:[%s348 + $0x7c] sm:%s340] %v411
                  %v413 = vld [vmem:[%s347 + $0xe4] sm:%s340]
                  %414 = vst [vmem:[%s348 + $0x80] sm:%s340] %v413
                  %v415 = vld [vmem:[%s347 + $0xe8] sm:%s340]
                  %416 = vst [vmem:[%s348 + $0x84] sm:%s340] %v415
                  %v417 = vld [vmem:[%s347 + $0xec] sm:%s340]
                  %418 = vst [vmem:[%s348 + $0x88] sm:%s340] %v417
                  %v419 = vld [vmem:[%s347 + $0xf0] sm:%s340]
                  %420 = vst [vmem:[%s348 + $0x8c] sm:%s340] %v419
                  %v421 = vld [vmem:[%s347 + $0xf4] sm:%s340]
                  %422 = vst [vmem:[%s348 + $0x90] sm:%s340] %v421
                  %v423 = vld [vmem:[%s347 + $0xf8] sm:%s340]
                  %424 = vst [vmem:[%s348 + $0x94] sm:%s340] %v423
                  %v425 = vld [vmem:[%s347 + $0xfc] sm:%s340]
                  %426 = vst [vmem:[%s348 + $0x98] sm:%s340] %v425
                  %v427 = vld [vmem:[%s347 + $0x100] sm:%s340]
                  %428 = vst [vmem:[%s348 + $0x9c] sm:%s340] %v427
                  %v429 = vld [vmem:[%s347 + $0x104] sm:%s340]
                  %430 = vst [vmem:[%s348 + $0xa0] sm:%s340] %v429
                  %v431 = vld [vmem:[%s347 + $0x108] sm:%s340]
                  %432 = vst [vmem:[%s348 + $0xa4] sm:%s340] %v431
                  %v433 = vld [vmem:[%s347 + $0x10c] sm:%s340]
                  %434 = vst [vmem:[%s348 + $0xa8] sm:%s340] %v433
                  %v435 = vld [vmem:[%s347 + $0x110] sm:%s340]
                  %436 = vst [vmem:[%s348 + $0xac] sm:%s340] %v435
                  %v437 = vld [vmem:[%s347 + $0x114] sm:%s340]
                  %438 = vst [vmem:[%s348 + $0xb0] sm:%s340] %v437
                  %v439 = vld [vmem:[%s347 + $0x118] sm:%s340]
                  %440 = vst [vmem:[%s348 + $0xb4] sm:%s340] %v439
                  %v441 = vld [vmem:[%s347 + $0x11c] sm:%s340]
                  %442 = vst [vmem:[%s348 + $0xb8] sm:%s340] %v441
                  %v443 = vld [vmem:[%s347 + $0x120] sm:%s340]
                  %444 = vst [vmem:[%s348 + $0xbc] sm:%s340] %v443
                  %v445 = vld [vmem:[%s347 + $0x124] sm:%s340]
                  %446 = vst [vmem:[%s348 + $0xc0] sm:%s340] %v445
                  %v447 = vld [vmem:[%s347 + $0x128] sm:%s340]
                  %448 = vst [vmem:[%s348 + $0xc4] sm:%s340] %v447
                  %v449 = vld [vmem:[%s347 + $0x190] sm:%s340]
                  %450 = vst [vmem:[%s348 + $0xc8] sm:%s340] %v449
                  %v451 = vld [vmem:[%s347 + $0x194] sm:%s340]
                  %452 = vst [vmem:[%s348 + $0xcc] sm:%s340] %v451
                  %v453 = vld [vmem:[%s347 + $0x198] sm:%s340]
                  %454 = vst [vmem:[%s348 + $0xd0] sm:%s340] %v453
                  %v455 = vld [vmem:[%s347 + $0x19c] sm:%s340]
                  %456 = vst [vmem:[%s348 + $0xd4] sm:%s340] %v455
                  %v457 = vld [vmem:[%s347 + $0x1a0] sm:%s340]
                  %458 = vst [vmem:[%s348 + $0xd8] sm:%s340] %v457
                  %v459 = vld [vmem:[%s347 + $0x1a4] sm:%s340]
                  %460 = vst [vmem:[%s348 + $0xdc] sm:%s340] %v459
                  %v461 = vld [vmem:[%s347 + $0x1a8] sm:%s340]
                  %462 = vst [vmem:[%s348 + $0xe0] sm:%s340] %v461
                  %v463 = vld [vmem:[%s347 + $0x1ac] sm:%s340]
                  %464 = vst [vmem:[%s348 + $0xe4] sm:%s340] %v463
                  %v465 = vld [vmem:[%s347 + $0x1b0] sm:%s340]
                  %466 = vst [vmem:[%s348 + $0xe8] sm:%s340] %v465
                  %v467 = vld [vmem:[%s347 + $0x1b4] sm:%s340]
                  %468 = vst [vmem:[%s348 + $0xec] sm:%s340] %v467
                  %v469 = vld [vmem:[%s347 + $0x1b8] sm:%s340]
                  %470 = vst [vmem:[%s348 + $0xf0] sm:%s340] %v469
                  %v471 = vld [vmem:[%s347 + $0x1bc] sm:%s340]
                  %472 = vst [vmem:[%s348 + $0xf4] sm:%s340] %v471
                  %v473 = vld [vmem:[%s347 + $0x1c0] sm:%s340]
                  %474 = vst [vmem:[%s348 + $0xf8] sm:%s340] %v473
                  %v475 = vld [vmem:[%s347 + $0x1c4] sm:%s340]
                  %476 = vst [vmem:[%s348 + $0xfc] sm:%s340] %v475
                  %v477 = vld [vmem:[%s347 + $0x1c8] sm:%s340]
                  %478 = vst [vmem:[%s348 + $0x100] sm:%s340] %v477
                  %v479 = vld [vmem:[%s347 + $0x1cc] sm:%s340]
                  %480 = vst [vmem:[%s348 + $0x104] sm:%s340] %v479
                  %v481 = vld [vmem:[%s347 + $0x1d0] sm:%s340]
                  %482 = vst [vmem:[%s348 + $0x108] sm:%s340] %v481
                  %v483 = vld [vmem:[%s347 + $0x1d4] sm:%s340]
                  %484 = vst [vmem:[%s348 + $0x10c] sm:%s340] %v483
                  %v485 = vld [vmem:[%s347 + $0x1d8] sm:%s340]
                  %486 = vst [vmem:[%s348 + $0x110] sm:%s340] %v485
                  %v487 = vld [vmem:[%s347 + $0x1dc] sm:%s340]
                  %488 = vst [vmem:[%s348 + $0x114] sm:%s340] %v487
                  %v489 = vld [vmem:[%s347 + $0x1e0] sm:%s340]
                  %490 = vst [vmem:[%s348 + $0x118] sm:%s340] %v489
                  %v491 = vld [vmem:[%s347 + $0x1e4] sm:%s340]
                  %492 = vst [vmem:[%s348 + $0x11c] sm:%s340] %v491
                  %v493 = vld [vmem:[%s347 + $0x1e8] sm:%s340]
                  %494 = vst [vmem:[%s348 + $0x120] sm:%s340] %v493
                  %v495 = vld [vmem:[%s347 + $0x1ec] sm:%s340]
                  %496 = vst [vmem:[%s348 + $0x124] sm:%s340] %v495
                  %v497 = vld [vmem:[%s347 + $0x1f0] sm:%s340]
                  %498 = vst [vmem:[%s348 + $0x128] sm:%s340] %v497
                  %v499 = vld [vmem:[%s347 + $0x258] sm:%s340]
                  %500 = vst [vmem:[%s348 + $0x12c] sm:%s340] %v499
                  %v501 = vld [vmem:[%s347 + $0x25c] sm:%s340]
                  %502 = vst [vmem:[%s348 + $0x130] sm:%s340] %v501
                  %v503 = vld [vmem:[%s347 + $0x260] sm:%s340]
                  %504 = vst [vmem:[%s348 + $0x134] sm:%s340] %v503
                  %v505 = vld [vmem:[%s347 + $0x264] sm:%s340]
                  %506 = vst [vmem:[%s348 + $0x138] sm:%s340] %v505
                  %v507 = vld [vmem:[%s347 + $0x268] sm:%s340]
                  %508 = vst [vmem:[%s348 + $0x13c] sm:%s340] %v507
                  %v509 = vld [vmem:[%s347 + $0x26c] sm:%s340]
                  %510 = vst [vmem:[%s348 + $0x140] sm:%s340] %v509
                  %v511 = vld [vmem:[%s347 + $0x270] sm:%s340]
                  %512 = vst [vmem:[%s348 + $0x144] sm:%s340] %v511
                  %v513 = vld [vmem:[%s347 + $0x274] sm:%s340]
                  %514 = vst [vmem:[%s348 + $0x148] sm:%s340] %v513
                  %v515 = vld [vmem:[%s347 + $0x278] sm:%s340]
                  %516 = vst [vmem:[%s348 + $0x14c] sm:%s340] %v515
                  %v517 = vld [vmem:[%s347 + $0x27c] sm:%s340]
                  %518 = vst [vmem:[%s348 + $0x150] sm:%s340] %v517
                  %v519 = vld [vmem:[%s347 + $0x280] sm:%s340]
                  %520 = vst [vmem:[%s348 + $0x154] sm:%s340] %v519
                  %v521 = vld [vmem:[%s347 + $0x284] sm:%s340]
                  %522 = vst [vmem:[%s348 + $0x158] sm:%s340] %v521
                  %v523 = vld [vmem:[%s347 + $0x288] sm:%s340]
                  %524 = vst [vmem:[%s348 + $0x15c] sm:%s340] %v523
                  %v525 = vld [vmem:[%s347 + $0x28c] sm:%s340]
                  %526 = vst [vmem:[%s348 + $0x160] sm:%s340] %v525
                  %v527 = vld [vmem:[%s347 + $0x290] sm:%s340]
                  %528 = vst [vmem:[%s348 + $0x164] sm:%s340] %v527
                  %v529 = vld [vmem:[%s347 + $0x294] sm:%s340]
                  %530 = vst [vmem:[%s348 + $0x168] sm:%s340] %v529
                  %v531 = vld [vmem:[%s347 + $0x298] sm:%s340]
                  %532 = vst [vmem:[%s348 + $0x16c] sm:%s340] %v531
                  %v533 = vld [vmem:[%s347 + $0x29c] sm:%s340]
                  %534 = vst [vmem:[%s348 + $0x170] sm:%s340] %v533
                  %v535 = vld [vmem:[%s347 + $0x2a0] sm:%s340]
                  %536 = vst [vmem:[%s348 + $0x174] sm:%s340] %v535
                  %v537 = vld [vmem:[%s347 + $0x2a4] sm:%s340]
                  %538 = vst [vmem:[%s348 + $0x178] sm:%s340] %v537
                  %v539 = vld [vmem:[%s347 + $0x2a8] sm:%s340]
                  %540 = vst [vmem:[%s348 + $0x17c] sm:%s340] %v539
                  %v541 = vld [vmem:[%s347 + $0x2ac] sm:%s340]
                  %542 = vst [vmem:[%s348 + $0x180] sm:%s340] %v541
                  %v543 = vld [vmem:[%s347 + $0x2b0] sm:%s340]
                  %544 = vst [vmem:[%s348 + $0x184] sm:%s340] %v543
                  %v545 = vld [vmem:[%s347 + $0x2b4] sm:%s340]
                  %546 = vst [vmem:[%s348 + $0x188] sm:%s340] %v545
                  %v547 = vld [vmem:[%s347 + $0x2b8] sm:%s340]
                  %548 = vst [vmem:[%s348 + $0x18c] sm:%s340] %v547
                $region59: #{lenet_forward.2} parent=46 // loop_footer
                  %s346 = sadd.s32 1, %s342
                $region60: #{lenet_forward.2} parent=46 // loop_footer_branch
                  %341 = sbr.rel target = $region56
                $region61: #{lenet_forward.2} parent=46 // loop_exit
                  _
              $region47: #{lenet_forward.2} parent=31 // pred_fallthru
                _
            $region32: #{lenet_forward.2} parent=27 // pred_fallthru
              _
            // Predicated region
            $region33: #{lenet_forward.2} parent=27 // pred_check
              _
            $region34: #{lenet_forward.2} parent=27 // pred_check_branch
              %118 = sbr.rel (0) target = $region36
            $region35: #{lenet_forward.2} parent=27 // pred_region
              %s120 = ssub.s32 16, 1
              loop: start=0, step=1, limit=1
              $region37: #{lenet_forward.2} parent=35 // loop_pre_header
                _
              $region38: #{lenet_forward.2} parent=35 // loop_header
                %s122 = sphi 0, %s126
                %p123 = scmp.ge.s32.totalorder %s122, 1
                %s127 = sphi %s112, %s112
                %s128 = sphi %s109, %s109
              $region39: #{lenet_forward.2} parent=35 // loop_header_branch
                %125 = sbr.rel (%p123) target = $region43
              $region40: #{lenet_forward.2} parent=35 // loop_body
                %v129 = vld [vmem:[%s127] sm:%s120]
                %130 = vst [vmem:[%s128] sm:%s120] %v129
                %v131 = vld [vmem:[%s127 + $0x4] sm:%s120]
                %132 = vst [vmem:[%s128 + $0x4] sm:%s120] %v131
                %v133 = vld [vmem:[%s127 + $0x8] sm:%s120]
                %134 = vst [vmem:[%s128 + $0x8] sm:%s120] %v133
                %v135 = vld [vmem:[%s127 + $0xc] sm:%s120]
                %136 = vst [vmem:[%s128 + $0xc] sm:%s120] %v135
                %v137 = vld [vmem:[%s127 + $0x10] sm:%s120]
                %138 = vst [vmem:[%s128 + $0x10] sm:%s120] %v137
                %v139 = vld [vmem:[%s127 + $0x14] sm:%s120]
                %140 = vst [vmem:[%s128 + $0x14] sm:%s120] %v139
                %v141 = vld [vmem:[%s127 + $0x18] sm:%s120]
                %142 = vst [vmem:[%s128 + $0x18] sm:%s120] %v141
                %v143 = vld [vmem:[%s127 + $0x1c] sm:%s120]
                %144 = vst [vmem:[%s128 + $0x1c] sm:%s120] %v143
                %v145 = vld [vmem:[%s127 + $0x20] sm:%s120]
                %146 = vst [vmem:[%s128 + $0x20] sm:%s120] %v145
                %v147 = vld [vmem:[%s127 + $0x24] sm:%s120]
                %148 = vst [vmem:[%s128 + $0x24] sm:%s120] %v147
                %v149 = vld [vmem:[%s127 + $0x28] sm:%s120]
                %150 = vst [vmem:[%s128 + $0x28] sm:%s120] %v149
                %v151 = vld [vmem:[%s127 + $0x2c] sm:%s120]
                %152 = vst [vmem:[%s128 + $0x2c] sm:%s120] %v151
                %v153 = vld [vmem:[%s127 + $0x30] sm:%s120]
                %154 = vst [vmem:[%s128 + $0x30] sm:%s120] %v153
                %v155 = vld [vmem:[%s127 + $0x34] sm:%s120]
                %156 = vst [vmem:[%s128 + $0x34] sm:%s120] %v155
                %v157 = vld [vmem:[%s127 + $0x38] sm:%s120]
                %158 = vst [vmem:[%s128 + $0x38] sm:%s120] %v157
                %v159 = vld [vmem:[%s127 + $0x3c] sm:%s120]
                %160 = vst [vmem:[%s128 + $0x3c] sm:%s120] %v159
                %v161 = vld [vmem:[%s127 + $0x40] sm:%s120]
                %162 = vst [vmem:[%s128 + $0x40] sm:%s120] %v161
                %v163 = vld [vmem:[%s127 + $0x44] sm:%s120]
                %164 = vst [vmem:[%s128 + $0x44] sm:%s120] %v163
                %v165 = vld [vmem:[%s127 + $0x48] sm:%s120]
                %166 = vst [vmem:[%s128 + $0x48] sm:%s120] %v165
                %v167 = vld [vmem:[%s127 + $0x4c] sm:%s120]
                %168 = vst [vmem:[%s128 + $0x4c] sm:%s120] %v167
                %v169 = vld [vmem:[%s127 + $0x50] sm:%s120]
                %170 = vst [vmem:[%s128 + $0x50] sm:%s120] %v169
                %v171 = vld [vmem:[%s127 + $0x54] sm:%s120]
                %172 = vst [vmem:[%s128 + $0x54] sm:%s120] %v171
                %v173 = vld [vmem:[%s127 + $0x58] sm:%s120]
                %174 = vst [vmem:[%s128 + $0x58] sm:%s120] %v173
                %v175 = vld [vmem:[%s127 + $0x5c] sm:%s120]
                %176 = vst [vmem:[%s128 + $0x5c] sm:%s120] %v175
                %v177 = vld [vmem:[%s127 + $0x60] sm:%s120]
                %178 = vst [vmem:[%s128 + $0x60] sm:%s120] %v177
                %v179 = vld [vmem:[%s127 + $0xc8] sm:%s120]
                %180 = vst [vmem:[%s128 + $0x64] sm:%s120] %v179
                %v181 = vld [vmem:[%s127 + $0xcc] sm:%s120]
                %182 = vst [vmem:[%s128 + $0x68] sm:%s120] %v181
                %v183 = vld [vmem:[%s127 + $0xd0] sm:%s120]
                %184 = vst [vmem:[%s128 + $0x6c] sm:%s120] %v183
                %v185 = vld [vmem:[%s127 + $0xd4] sm:%s120]
                %186 = vst [vmem:[%s128 + $0x70] sm:%s120] %v185
                %v187 = vld [vmem:[%s127 + $0xd8] sm:%s120]
                %188 = vst [vmem:[%s128 + $0x74] sm:%s120] %v187
                %v189 = vld [vmem:[%s127 + $0xdc] sm:%s120]
                %190 = vst [vmem:[%s128 + $0x78] sm:%s120] %v189
                %v191 = vld [vmem:[%s127 + $0xe0] sm:%s120]
                %192 = vst [vmem:[%s128 + $0x7c] sm:%s120] %v191
                %v193 = vld [vmem:[%s127 + $0xe4] sm:%s120]
                %194 = vst [vmem:[%s128 + $0x80] sm:%s120] %v193
                %v195 = vld [vmem:[%s127 + $0xe8] sm:%s120]
                %196 = vst [vmem:[%s128 + $0x84] sm:%s120] %v195
                %v197 = vld [vmem:[%s127 + $0xec] sm:%s120]
                %198 = vst [vmem:[%s128 + $0x88] sm:%s120] %v197
                %v199 = vld [vmem:[%s127 + $0xf0] sm:%s120]
                %200 = vst [vmem:[%s128 + $0x8c] sm:%s120] %v199
                %v201 = vld [vmem:[%s127 + $0xf4] sm:%s120]
                %202 = vst [vmem:[%s128 + $0x90] sm:%s120] %v201
                %v203 = vld [vmem:[%s127 + $0xf8] sm:%s120]
                %204 = vst [vmem:[%s128 + $0x94] sm:%s120] %v203
                %v205 = vld [vmem:[%s127 + $0xfc] sm:%s120]
                %206 = vst [vmem:[%s128 + $0x98] sm:%s120] %v205
                %v207 = vld [vmem:[%s127 + $0x100] sm:%s120]
                %208 = vst [vmem:[%s128 + $0x9c] sm:%s120] %v207
                %v209 = vld [vmem:[%s127 + $0x104] sm:%s120]
                %210 = vst [vmem:[%s128 + $0xa0] sm:%s120] %v209
                %v211 = vld [vmem:[%s127 + $0x108] sm:%s120]
                %212 = vst [vmem:[%s128 + $0xa4] sm:%s120] %v211
                %v213 = vld [vmem:[%s127 + $0x10c] sm:%s120]
                %214 = vst [vmem:[%s128 + $0xa8] sm:%s120] %v213
                %v215 = vld [vmem:[%s127 + $0x110] sm:%s120]
                %216 = vst [vmem:[%s128 + $0xac] sm:%s120] %v215
                %v217 = vld [vmem:[%s127 + $0x114] sm:%s120]
                %218 = vst [vmem:[%s128 + $0xb0] sm:%s120] %v217
                %v219 = vld [vmem:[%s127 + $0x118] sm:%s120]
                %220 = vst [vmem:[%s128 + $0xb4] sm:%s120] %v219
                %v221 = vld [vmem:[%s127 + $0x11c] sm:%s120]
                %222 = vst [vmem:[%s128 + $0xb8] sm:%s120] %v221
                %v223 = vld [vmem:[%s127 + $0x120] sm:%s120]
                %224 = vst [vmem:[%s128 + $0xbc] sm:%s120] %v223
                %v225 = vld [vmem:[%s127 + $0x124] sm:%s120]
                %226 = vst [vmem:[%s128 + $0xc0] sm:%s120] %v225
                %v227 = vld [vmem:[%s127 + $0x128] sm:%s120]
                %228 = vst [vmem:[%s128 + $0xc4] sm:%s120] %v227
                %v229 = vld [vmem:[%s127 + $0x190] sm:%s120]
                %230 = vst [vmem:[%s128 + $0xc8] sm:%s120] %v229
                %v231 = vld [vmem:[%s127 + $0x194] sm:%s120]
                %232 = vst [vmem:[%s128 + $0xcc] sm:%s120] %v231
                %v233 = vld [vmem:[%s127 + $0x198] sm:%s120]
                %234 = vst [vmem:[%s128 + $0xd0] sm:%s120] %v233
                %v235 = vld [vmem:[%s127 + $0x19c] sm:%s120]
                %236 = vst [vmem:[%s128 + $0xd4] sm:%s120] %v235
                %v237 = vld [vmem:[%s127 + $0x1a0] sm:%s120]
                %238 = vst [vmem:[%s128 + $0xd8] sm:%s120] %v237
                %v239 = vld [vmem:[%s127 + $0x1a4] sm:%s120]
                %240 = vst [vmem:[%s128 + $0xdc] sm:%s120] %v239
                %v241 = vld [vmem:[%s127 + $0x1a8] sm:%s120]
                %242 = vst [vmem:[%s128 + $0xe0] sm:%s120] %v241
                %v243 = vld [vmem:[%s127 + $0x1ac] sm:%s120]
                %244 = vst [vmem:[%s128 + $0xe4] sm:%s120] %v243
                %v245 = vld [vmem:[%s127 + $0x1b0] sm:%s120]
                %246 = vst [vmem:[%s128 + $0xe8] sm:%s120] %v245
                %v247 = vld [vmem:[%s127 + $0x1b4] sm:%s120]
                %248 = vst [vmem:[%s128 + $0xec] sm:%s120] %v247
                %v249 = vld [vmem:[%s127 + $0x1b8] sm:%s120]
                %250 = vst [vmem:[%s128 + $0xf0] sm:%s120] %v249
                %v251 = vld [vmem:[%s127 + $0x1bc] sm:%s120]
                %252 = vst [vmem:[%s128 + $0xf4] sm:%s120] %v251
                %v253 = vld [vmem:[%s127 + $0x1c0] sm:%s120]
                %254 = vst [vmem:[%s128 + $0xf8] sm:%s120] %v253
                %v255 = vld [vmem:[%s127 + $0x1c4] sm:%s120]
                %256 = vst [vmem:[%s128 + $0xfc] sm:%s120] %v255
                %v257 = vld [vmem:[%s127 + $0x1c8] sm:%s120]
                %258 = vst [vmem:[%s128 + $0x100] sm:%s120] %v257
                %v259 = vld [vmem:[%s127 + $0x1cc] sm:%s120]
                %260 = vst [vmem:[%s128 + $0x104] sm:%s120] %v259
                %v261 = vld [vmem:[%s127 + $0x1d0] sm:%s120]
                %262 = vst [vmem:[%s128 + $0x108] sm:%s120] %v261
                %v263 = vld [vmem:[%s127 + $0x1d4] sm:%s120]
                %264 = vst [vmem:[%s128 + $0x10c] sm:%s120] %v263
                %v265 = vld [vmem:[%s127 + $0x1d8] sm:%s120]
                %266 = vst [vmem:[%s128 + $0x110] sm:%s120] %v265
                %v267 = vld [vmem:[%s127 + $0x1dc] sm:%s120]
                %268 = vst [vmem:[%s128 + $0x114] sm:%s120] %v267
                %v269 = vld [vmem:[%s127 + $0x1e0] sm:%s120]
                %270 = vst [vmem:[%s128 + $0x118] sm:%s120] %v269
                %v271 = vld [vmem:[%s127 + $0x1e4] sm:%s120]
                %272 = vst [vmem:[%s128 + $0x11c] sm:%s120] %v271
                %v273 = vld [vmem:[%s127 + $0x1e8] sm:%s120]
                %274 = vst [vmem:[%s128 + $0x120] sm:%s120] %v273
                %v275 = vld [vmem:[%s127 + $0x1ec] sm:%s120]
                %276 = vst [vmem:[%s128 + $0x124] sm:%s120] %v275
                %v277 = vld [vmem:[%s127 + $0x1f0] sm:%s120]
                %278 = vst [vmem:[%s128 + $0x128] sm:%s120] %v277
                %v279 = vld [vmem:[%s127 + $0x258] sm:%s120]
                %280 = vst [vmem:[%s128 + $0x12c] sm:%s120] %v279
                %v281 = vld [vmem:[%s127 + $0x25c] sm:%s120]
                %282 = vst [vmem:[%s128 + $0x130] sm:%s120] %v281
                %v283 = vld [vmem:[%s127 + $0x260] sm:%s120]
                %284 = vst [vmem:[%s128 + $0x134] sm:%s120] %v283
                %v285 = vld [vmem:[%s127 + $0x264] sm:%s120]
                %286 = vst [vmem:[%s128 + $0x138] sm:%s120] %v285
                %v287 = vld [vmem:[%s127 + $0x268] sm:%s120]
                %288 = vst [vmem:[%s128 + $0x13c] sm:%s120] %v287
                %v289 = vld [vmem:[%s127 + $0x26c] sm:%s120]
                %290 = vst [vmem:[%s128 + $0x140] sm:%s120] %v289
                %v291 = vld [vmem:[%s127 + $0x270] sm:%s120]
                %292 = vst [vmem:[%s128 + $0x144] sm:%s120] %v291
                %v293 = vld [vmem:[%s127 + $0x274] sm:%s120]
                %294 = vst [vmem:[%s128 + $0x148] sm:%s120] %v293
                %v295 = vld [vmem:[%s127 + $0x278] sm:%s120]
                %296 = vst [vmem:[%s128 + $0x14c] sm:%s120] %v295
                %v297 = vld [vmem:[%s127 + $0x27c] sm:%s120]
                %298 = vst [vmem:[%s128 + $0x150] sm:%s120] %v297
                %v299 = vld [vmem:[%s127 + $0x280] sm:%s120]
                %300 = vst [vmem:[%s128 + $0x154] sm:%s120] %v299
                %v301 = vld [vmem:[%s127 + $0x284] sm:%s120]
                %302 = vst [vmem:[%s128 + $0x158] sm:%s120] %v301
                %v303 = vld [vmem:[%s127 + $0x288] sm:%s120]
                %304 = vst [vmem:[%s128 + $0x15c] sm:%s120] %v303
                %v305 = vld [vmem:[%s127 + $0x28c] sm:%s120]
                %306 = vst [vmem:[%s128 + $0x160] sm:%s120] %v305
                %v307 = vld [vmem:[%s127 + $0x290] sm:%s120]
                %308 = vst [vmem:[%s128 + $0x164] sm:%s120] %v307
                %v309 = vld [vmem:[%s127 + $0x294] sm:%s120]
                %310 = vst [vmem:[%s128 + $0x168] sm:%s120] %v309
                %v311 = vld [vmem:[%s127 + $0x298] sm:%s120]
                %312 = vst [vmem:[%s128 + $0x16c] sm:%s120] %v311
                %v313 = vld [vmem:[%s127 + $0x29c] sm:%s120]
                %314 = vst [vmem:[%s128 + $0x170] sm:%s120] %v313
                %v315 = vld [vmem:[%s127 + $0x2a0] sm:%s120]
                %316 = vst [vmem:[%s128 + $0x174] sm:%s120] %v315
                %v317 = vld [vmem:[%s127 + $0x2a4] sm:%s120]
                %318 = vst [vmem:[%s128 + $0x178] sm:%s120] %v317
                %v319 = vld [vmem:[%s127 + $0x2a8] sm:%s120]
                %320 = vst [vmem:[%s128 + $0x17c] sm:%s120] %v319
                %v321 = vld [vmem:[%s127 + $0x2ac] sm:%s120]
                %322 = vst [vmem:[%s128 + $0x180] sm:%s120] %v321
                %v323 = vld [vmem:[%s127 + $0x2b0] sm:%s120]
                %324 = vst [vmem:[%s128 + $0x184] sm:%s120] %v323
                %v325 = vld [vmem:[%s127 + $0x2b4] sm:%s120]
                %326 = vst [vmem:[%s128 + $0x188] sm:%s120] %v325
                %v327 = vld [vmem:[%s127 + $0x2b8] sm:%s120]
                %328 = vst [vmem:[%s128 + $0x18c] sm:%s120] %v327
              $region41: #{lenet_forward.2} parent=35 // loop_footer
                %s126 = sadd.s32 1, %s122
              $region42: #{lenet_forward.2} parent=35 // loop_footer_branch
                %121 = sbr.rel target = $region38
              $region43: #{lenet_forward.2} parent=35 // loop_exit
                _
            $region36: #{lenet_forward.2} parent=27 // pred_fallthru
              _
          $region28: #{lenet_forward.2} parent=23 // pred_fallthru
            _
          %549 = vnop
        $region24: #{lenet_forward.2} parent=19 // pred_fallthru
          _
      $region20: #{lenet_forward.2} parent=5 // pred_fallthru
        _
      %p550 = scmp.le.s32.totalorder 1, %s8
      %p551 = scmp.lt.s32.totalorder %s8, 3
      %p552 = pnand %p550, %p551
      %p553 = pneg %p552
      // Predicated region
      $region62: #{lenet_forward.2} parent=5 // pred_check
        _
      $region63: #{lenet_forward.2} parent=5 // pred_check_branch
        %555 = sbr.rel (%p552) target = $region65
      $region64: #{lenet_forward.2} parent=5 // pred_region
        %s556 = ssub.s32 %s8, 1
        %s557 = sand.u32 %s21, 1
        %s558 = sand.u32 %s21, 1
        %s559 = smul.addr %s558, 400
        %s560 = scalar_lea.vmem [#allocation2], %s559
        // Predicated region
        $region66: #{lenet_forward.2} parent=64 // pred_check
          %p561 = pneg %p34
        $region67: #{lenet_forward.2} parent=64 // pred_check_branch
          %563 = sbr.rel (%p561) target = $region69
        $region68: #{lenet_forward.2} parent=64 // pred_region
          _
        $region69: #{lenet_forward.2} parent=64 // pred_fallthru
          _
        %s564 = sand.u32 %s21, 1
        %s565 = sand.u32 %s21, 1
        %s566 = smul.addr %s565, 400
        %s567 = scalar_lea.vmem [#allocation2], %s566
        %p568 = pneg %p34
        %p569 = pneg %p31
        %p570 = pneg %p55
        %p571 = pneg %p52
        %p572 = pneg %p81
        %p573 = pneg %p78
        %s574 = smul.u32 25, %s13
        %p575 = scmp.lt.s32.totalorder %s574, 49
        %s576 = scalar_select %p575, %s574, 49
        %s577 = smul.addr %s576, 4
        %s578 = scalar_lea.vmem %s2, %s577
        %s579 = smul.u32 25, %s13
        %s580 = smul.u32 25, %s13
        %p581 = scmp.lt.s32.totalorder %s580, 49
        %s582 = scalar_select %p581, %s580, 49
        %s583 = smul.addr %s582, 4
        %s584 = scalar_lea.vmem %s2, %s583
        %s585 = smul.u32 25, %s13
        %v587 = vld [vmem:[%s1] sm:$0xf]
        %v588 = vld [vmem:[%s1 + $0x4] sm:$0xf]
        %v589 = vld [vmem:[%s1 + $0x8] sm:$0xf]
        %v590 = vld [vmem:[%s1 + $0xc] sm:$0xf]
        %v591 = vld [vmem:[%s1 + $0x10] sm:$0xf]
        %v592 = vld [vmem:[%s1 + $0x14] sm:$0xf]
        %v593 = vld [vmem:[%s1 + $0x18] sm:$0xf]
        %v594 = vld [vmem:[%s1 + $0x1c] sm:$0xf]
        %v595 = vld [vmem:[%s1 + $0x20] sm:$0xf]
        %v596 = vld [vmem:[%s1 + $0x24] sm:$0xf]
        %v597 = vld [vmem:[%s1 + $0x28] sm:$0xf]
        %v598 = vld [vmem:[%s1 + $0x2c] sm:$0xf]
        %v599 = vld [vmem:[%s1 + $0x30] sm:$0xf]
        %v600 = vld [vmem:[%s1 + $0x34] sm:$0xf]
        %v601 = vld [vmem:[%s1 + $0x38] sm:$0xf]
        %v602 = vld [vmem:[%s1 + $0x3c] sm:$0xf]
        %v603 = vld [vmem:[%s560] sm:$0xf]
        %v604 = vld [vmem:[%s560 + $0x4] sm:$0xf]
        %v605 = vld [vmem:[%s560 + $0x8] sm:$0xf]
        %v606 = vld [vmem:[%s560 + $0xc] sm:$0xf]
        %v607 = vld [vmem:[%s560 + $0x10] sm:$0xf]
        %v608 = vld [vmem:[%s560 + $0x14] sm:$0xf]
        %v609 = vld [vmem:[%s560 + $0x18] sm:$0xf]
        %v610 = vld [vmem:[%s560 + $0x1c] sm:$0xf]
        %v611 = vld [vmem:[%s560 + $0x20] sm:$0xf]
        %v612 = vld [vmem:[%s560 + $0x24] sm:$0xf]
        %v613 = vld [vmem:[%s560 + $0x28] sm:$0xf]
        %v614 = vld [vmem:[%s560 + $0x2c] sm:$0xf]
        %v615 = vld [vmem:[%s560 + $0x30] sm:$0xf]
        %v616 = vld [vmem:[%s560 + $0x34] sm:$0xf]
        %v617 = vld [vmem:[%s560 + $0x38] sm:$0xf]
        %v618 = vld [vmem:[%s560 + $0x3c] sm:$0xf]
        %v619 = vld [vmem:[%s560 + $0x40] sm:$0xf]
        %v620 = vld [vmem:[%s560 + $0x44] sm:$0xf]
        %v621 = vld [vmem:[%s560 + $0x48] sm:$0xf]
        %v622 = vld [vmem:[%s560 + $0x4c] sm:$0xf]
        %v623 = vld [vmem:[%s560 + $0x50] sm:$0xf]
        %v624 = vld [vmem:[%s560 + $0x54] sm:$0xf]
        %v625 = vld [vmem:[%s560 + $0x58] sm:$0xf]
        %v626 = vld [vmem:[%s560 + $0x5c] sm:$0xf]
        %v627 = vld [vmem:[%s560 + $0x60] sm:$0xf]
        %v653 = vunpack.c.l.b16 %v603
        %v654 = vunpack.c.l.b16 %v604
        %v655 = vunpack.c.l.b16 %v605
        %v656 = vunpack.c.l.b16 %v606
        %v657 = vunpack.c.l.b16 %v607
        %v658 = vunpack.c.l.b16 %v608
        %v659 = vunpack.c.l.b16 %v609
        %v660 = vunpack.c.l.b16 %v610
        %v661 = vunpack.c.l.b16 %v611
        %v662 = vunpack.c.l.b16 %v612
        %v663 = vunpack.c.l.b16 %v613
        %v664 = vunpack.c.l.b16 %v614
        %v665 = vunpack.c.l.b16 %v615
        %v666 = vunpack.c.l.b16 %v616
        %v667 = vunpack.c.l.b16 %v617
        %v668 = vunpack.c.l.b16 %v618
        %v669 = vunpack.c.l.b16 %v619
        %v670 = vunpack.c.l.b16 %v620
        %v671 = vunpack.c.l.b16 %v621
        %v672 = vunpack.c.l.b16 %v622
        %v673 = vunpack.c.l.b16 %v623
        %v674 = vunpack.c.l.b16 %v624
        %v675 = vunpack.c.l.b16 %v625
        %v676 = vunpack.c.l.b16 %v626
        %v677 = vunpack.c.l.b16 %v627
        %v678 = vpack.c.b16 %v654, %v653
        %v679 = vpack.c.b16 %v656, %v655
        %v680 = vpack.c.b16 %v658, %v657
        %v681 = vpack.c.b16 %v660, %v659
        %v682 = vpack.c.b16 %v662, %v661
        %v683 = vpack.c.b16 %v664, %v663
        %v684 = vpack.c.b16 %v666, %v665
        %v685 = vpack.c.b16 %v668, %v667
        %v686 = vpack.c.b16 %v670, %v669
        %v687 = vpack.c.b16 %v672, %v671
        %v688 = vpack.c.b16 %v674, %v673
        %v689 = vpack.c.b16 %v676, %v675
        %v690 = vpack.c.b16 %v677, %v677
        %v720 = vunpack.c.l.b16 %v587
        %v721 = vunpack.c.l.b16 %v588
        %v722 = vunpack.c.l.b16 %v589
        %v723 = vunpack.c.l.b16 %v590
        %v724 = vunpack.c.l.b16 %v591
        %v725 = vunpack.c.l.b16 %v592
        %v726 = vunpack.c.l.b16 %v593
        %v727 = vunpack.c.l.b16 %v594
        %v728 = vunpack.c.l.b16 %v595
        %v729 = vunpack.c.l.b16 %v596
        %v730 = vunpack.c.l.b16 %v597
        %v731 = vunpack.c.l.b16 %v598
        %v732 = vunpack.c.l.b16 %v599
        %v733 = vunpack.c.l.b16 %v600
        %v734 = vunpack.c.l.b16 %v601
        %v735 = vunpack.c.l.b16 %v602
        %v736 = vpack.c.b16 %v721, %v720
        %v737 = vpack.c.b16 %v723, %v722
        %v738 = vpack.c.b16 %v725, %v724
        %v739 = vpack.c.b16 %v727, %v726
        %v740 = vpack.c.b16 %v729, %v728
        %v741 = vpack.c.b16 %v731, %v730
        %v742 = vpack.c.b16 %v733, %v732
        %v743 = vpack.c.b16 %v735, %v734
        %752 = vmatprep.subr.bf16.mxu0 0
        %753 = vmatpush1.bf16.msra.mxu0 %v743
        %754 = vmatprep.subr.bf16.mxu0 0
        %755 = vmatpush1.bf16.msra.mxu0 %v742
        %756 = vmatprep.subr.bf16.mxu0 0
        %757 = vmatpush1.bf16.msra.mxu0 %v741
        %758 = vmatprep.subr.bf16.mxu0 0
        %759 = vmatpush1.bf16.msra.mxu0 %v740
        %760 = vmatprep.subr.bf16.mxu0 0
        %761 = vmatpush1.bf16.msra.mxu0 %v739
        %762 = vmatprep.subr.bf16.mxu0 0
        %763 = vmatpush1.bf16.msra.mxu0 %v738
        %764 = vmatprep.subr.bf16.mxu0 0
        %765 = vmatpush1.bf16.msra.mxu0 %v737
        %766 = vmatprep.subr.bf16.mxu0 0
        %767 = vmatpush1.bf16.msra.mxu0 %v736
        %768 = vmatprep.subr.bf16.mxu0 0
        %769 = vmatpush2.bf16.msra.mxu0 0
        %770 = vmatprep.subr.bf16.mxu0 0
        %771 = vmatpush2.bf16.msra.mxu0 0
        %772 = vmatprep.subr.bf16.mxu0 0
        %773 = vmatpush2.bf16.msra.mxu0 0
        %774 = vmatprep.subr.bf16.mxu0 0
        %775 = vmatpush2.bf16.msra.mxu0 0
        %776 = vmatprep.subr.bf16.mxu0 0
        %777 = vmatpush2.bf16.msra.mxu0 0
        %778 = vmatprep.subr.bf16.mxu0 0
        %779 = vmatpush2.bf16.msra.mxu0 0
        %780 = vmatprep.subr.bf16.mxu0 0
        %781 = vmatpush2.bf16.msra.mxu0 0
        %782 = vmatprep.subr.bf16.mxu0 0
        %783 = vmatpush2.bf16.msra.mxu0 0
        %784 = vmatprep.mubr.bf16.mxu0 0
        %785 = vmatmul.mubr.bf16.gmra.mxu0 %v678
        %v786 = vpop.f32.mrf.mxu0
        %v787 = vadd.f32 0.0, %v786
        %v788 = vpop.f32.mrf.mxu0
        %v789 = vpop.f32.mrf.mxu0
        %v790 = vadd.f32 0.0, %v789
        %v791 = vpop.f32.mrf.mxu0
        %792 = vmatprep.mubr.bf16.mxu0 0
        %793 = vmatmul.mubr.bf16.gmra.mxu0 %v679
        %v794 = vpop.f32.mrf.mxu0
        %v795 = vadd.f32 0.0, %v794
        %v796 = vpop.f32.mrf.mxu0
        %v797 = vpop.f32.mrf.mxu0
        %v798 = vadd.f32 0.0, %v797
        %v799 = vpop.f32.mrf.mxu0
        %800 = vmatprep.mubr.bf16.mxu0 0
        %801 = vmatmul.mubr.bf16.gmra.mxu0 %v680
        %v802 = vpop.f32.mrf.mxu0
        %v803 = vadd.f32 0.0, %v802
        %v804 = vpop.f32.mrf.mxu0
        %v805 = vpop.f32.mrf.mxu0
        %v806 = vadd.f32 0.0, %v805
        %v807 = vpop.f32.mrf.mxu0
        %808 = vmatprep.mubr.bf16.mxu0 0
        %809 = vmatmul.mubr.bf16.gmra.mxu0 %v681
        %v810 = vpop.f32.mrf.mxu0
        %v811 = vadd.f32 0.0, %v810
        %v812 = vpop.f32.mrf.mxu0
        %v813 = vpop.f32.mrf.mxu0
        %v814 = vadd.f32 0.0, %v813
        %v815 = vpop.f32.mrf.mxu0
        %816 = vmatprep.mubr.bf16.mxu0 0
        %817 = vmatmul.mubr.bf16.gmra.mxu0 %v682
        %v818 = vpop.f32.mrf.mxu0
        %v819 = vadd.f32 0.0, %v818
        %v820 = vpop.f32.mrf.mxu0
        %v821 = vpop.f32.mrf.mxu0
        %v822 = vadd.f32 0.0, %v821
        %v823 = vpop.f32.mrf.mxu0
        %824 = vmatprep.mubr.bf16.mxu0 0
        %825 = vmatmul.mubr.bf16.gmra.mxu0 %v683
        %v826 = vpop.f32.mrf.mxu0
        %v827 = vadd.f32 0.0, %v826
        %v828 = vpop.f32.mrf.mxu0
        %v829 = vpop.f32.mrf.mxu0
        %v830 = vadd.f32 0.0, %v829
        %v831 = vpop.f32.mrf.mxu0
        %832 = vmatprep.mubr.bf16.mxu0 0
        %833 = vmatmul.mubr.bf16.gmra.mxu0 %v684
        %v834 = vpop.f32.mrf.mxu0
        %v835 = vadd.f32 0.0, %v834
        %v836 = vpop.f32.mrf.mxu0
        %v837 = vpop.f32.mrf.mxu0
        %v838 = vadd.f32 0.0, %v837
        %v839 = vpop.f32.mrf.mxu0
        %840 = vmatprep.mubr.bf16.mxu0 0
        %841 = vmatmul.mubr.bf16.gmra.mxu0 %v685
        %v842 = vpop.f32.mrf.mxu0
        %v843 = vadd.f32 0.0, %v842
        %v844 = vpop.f32.mrf.mxu0
        %v845 = vpop.f32.mrf.mxu0
        %v846 = vadd.f32 0.0, %v845
        %v847 = vpop.f32.mrf.mxu0
        %848 = vmatprep.mubr.bf16.mxu0 0
        %849 = vmatmul.mubr.bf16.gmra.mxu0 %v686
        %v850 = vpop.f32.mrf.mxu0
        %v851 = vadd.f32 0.0, %v850
        %v852 = vpop.f32.mrf.mxu0
        %v853 = vpop.f32.mrf.mxu0
        %v854 = vadd.f32 0.0, %v853
        %v855 = vpop.f32.mrf.mxu0
        %856 = vmatprep.mubr.bf16.mxu0 0
        %857 = vmatmul.mubr.bf16.gmra.mxu0 %v687
        %v858 = vpop.f32.mrf.mxu0
        %v859 = vadd.f32 0.0, %v858
        %v860 = vpop.f32.mrf.mxu0
        %v861 = vpop.f32.mrf.mxu0
        %v862 = vadd.f32 0.0, %v861
        %v863 = vpop.f32.mrf.mxu0
        %864 = vmatprep.mubr.bf16.mxu0 0
        %865 = vmatmul.mubr.bf16.gmra.mxu0 %v688
        %v866 = vpop.f32.mrf.mxu0
        %v867 = vadd.f32 0.0, %v866
        %v868 = vpop.f32.mrf.mxu0
        %v869 = vpop.f32.mrf.mxu0
        %v870 = vadd.f32 0.0, %v869
        %v871 = vpop.f32.mrf.mxu0
        %872 = vmatprep.mubr.bf16.mxu0 0
        %873 = vmatmul.mubr.bf16.gmra.mxu0 %v689
        %v874 = vpop.f32.mrf.mxu0
        %v875 = vadd.f32 0.0, %v874
        %v876 = vpop.f32.mrf.mxu0
        %v877 = vpop.f32.mrf.mxu0
        %v878 = vadd.f32 0.0, %v877
        %v879 = vpop.f32.mrf.mxu0
        %880 = vmatprep.mubr.bf16.mxu0 0
        %881 = vmatmul.mubr.bf16.gmra.mxu0 %v690
        %v882 = vpop.f32.mrf.mxu0
        %v883 = vadd.f32 0.0, %v882
        %v884 = vpop.f32.mrf.mxu0
        %v885 = vpop.f32.mrf.mxu0
        %v886 = vpop.f32.mrf.mxu0
        %887 = vdwg.mxu0
        %v888 = vmul.f32 %v787, 0.5
        %v889 = vmul.f32 %v790, 0.5
        %v890 = vmul.f32 %v795, 0.5
        %v891 = vmul.f32 %v798, 0.5
        %v892 = vmul.f32 %v803, 0.5
        %v893 = vmul.f32 %v806, 0.5
        %v894 = vmul.f32 %v811, 0.5
        %v895 = vmul.f32 %v814, 0.5
        %v896 = vmul.f32 %v819, 0.5
        %v897 = vmul.f32 %v822, 0.5
        %v898 = vmul.f32 %v827, 0.5
        %v899 = vmul.f32 %v830, 0.5
        %v900 = vmul.f32 %v835, 0.5
        %v901 = vmul.f32 %v838, 0.5
        %v902 = vmul.f32 %v843, 0.5
        %v903 = vmul.f32 %v846, 0.5
        %v904 = vmul.f32 %v851, 0.5
        %v905 = vmul.f32 %v854, 0.5
        %v906 = vmul.f32 %v859, 0.5
        %v907 = vmul.f32 %v862, 0.5
        %v908 = vmul.f32 %v867, 0.5
        %v909 = vmul.f32 %v870, 0.5
        %v910 = vmul.f32 %v875, 0.5
        %v911 = vmul.f32 %v878, 0.5
        %v912 = vmul.f32 %v883, 0.5
        %v913 = vtanh.pop %v888
        %v914 = vtanh.pop %v889
        %v915 = vtanh.pop %v890
        %v916 = vtanh.pop %v891
        %v917 = vtanh.pop %v892
        %v918 = vtanh.pop %v893
        %v919 = vtanh.pop %v894
        %v920 = vtanh.pop %v895
        %v921 = vtanh.pop %v896
        %v922 = vtanh.pop %v897
        %v923 = vtanh.pop %v898
        %v924 = vtanh.pop %v899
        %v925 = vtanh.pop %v900
        %v926 = vtanh.pop %v901
        %v927 = vtanh.pop %v902
        %v928 = vtanh.pop %v903
        %v929 = vtanh.pop %v904
        %v930 = vtanh.pop %v905
        %v931 = vtanh.pop %v906
        %v932 = vtanh.pop %v907
        %v933 = vtanh.pop %v908
        %v934 = vtanh.pop %v909
        %v935 = vtanh.pop %v910
        %v936 = vtanh.pop %v911
        %v937 = vtanh.pop %v912
        %v938 = vadd.f32 %v913, 0.0
        %v939 = vadd.f32 %v914, 0.0
        %v940 = vadd.f32 %v915, 0.0
        %v941 = vadd.f32 %v916, 0.0
        %v942 = vadd.f32 %v917, 0.0
        %v943 = vadd.f32 %v918, 0.0
        %v944 = vadd.f32 %v919, 0.0
        %v945 = vadd.f32 %v920, 0.0
        %v946 = vadd.f32 %v921, 0.0
        %v947 = vadd.f32 %v922, 0.0
        %v948 = vadd.f32 %v923, 0.0
        %v949 = vadd.f32 %v924, 0.0
        %v950 = vadd.f32 %v925, 0.0
        %v951 = vadd.f32 %v926, 0.0
        %v952 = vadd.f32 %v927, 0.0
        %v953 = vadd.f32 %v928, 0.0
        %v954 = vadd.f32 %v929, 0.0
        %v955 = vadd.f32 %v930, 0.0
        %v956 = vadd.f32 %v931, 0.0
        %v957 = vadd.f32 %v932, 0.0
        %v958 = vadd.f32 %v933, 0.0
        %v959 = vadd.f32 %v934, 0.0
        %v960 = vadd.f32 %v935, 0.0
        %v961 = vadd.f32 %v936, 0.0
        %v962 = vadd.f32 %v937, 0.0
        %s963 = scalar_lea.vmem %s560, 100 [#allocation2]
        %v964 = vld [vmem:[%s963] sm:$0xf]
        %v965 = vld [vmem:[%s963 + $0x4] sm:$0xf]
        %v966 = vld [vmem:[%s963 + $0x8] sm:$0xf]
        %v967 = vld [vmem:[%s963 + $0xc] sm:$0xf]
        %v968 = vld [vmem:[%s963 + $0x10] sm:$0xf]
        %v969 = vld [vmem:[%s963 + $0x14] sm:$0xf]
        %v970 = vld [vmem:[%s963 + $0x18] sm:$0xf]
        %v971 = vld [vmem:[%s963 + $0x1c] sm:$0xf]
        %v972 = vld [vmem:[%s963 + $0x20] sm:$0xf]
        %v973 = vld [vmem:[%s963 + $0x24] sm:$0xf]
        %v974 = vld [vmem:[%s963 + $0x28] sm:$0xf]
        %v975 = vld [vmem:[%s963 + $0x2c] sm:$0xf]
        %v976 = vld [vmem:[%s963 + $0x30] sm:$0xf]
        %v977 = vld [vmem:[%s963 + $0x34] sm:$0xf]
        %v978 = vld [vmem:[%s963 + $0x38] sm:$0xf]
        %v979 = vld [vmem:[%s963 + $0x3c] sm:$0xf]
        %v980 = vld [vmem:[%s963 + $0x40] sm:$0xf]
        %v981 = vld [vmem:[%s963 + $0x44] sm:$0xf]
        %v982 = vld [vmem:[%s963 + $0x48] sm:$0xf]
        %v983 = vld [vmem:[%s963 + $0x4c] sm:$0xf]
        %v984 = vld [vmem:[%s963 + $0x50] sm:$0xf]
        %v985 = vld [vmem:[%s963 + $0x54] sm:$0xf]
        %v986 = vld [vmem:[%s963 + $0x58] sm:$0xf]
        %v987 = vld [vmem:[%s963 + $0x5c] sm:$0xf]
        %v988 = vld [vmem:[%s963 + $0x60] sm:$0xf]
        %v1014 = vunpack.c.l.b16 %v964
        %v1015 = vunpack.c.l.b16 %v965
        %v1016 = vunpack.c.l.b16 %v966
        %v1017 = vunpack.c.l.b16 %v967
        %v1018 = vunpack.c.l.b16 %v968
        %v1019 = vunpack.c.l.b16 %v969
        %v1020 = vunpack.c.l.b16 %v970
        %v1021 = vunpack.c.l.b16 %v971
        %v1022 = vunpack.c.l.b16 %v972
        %v1023 = vunpack.c.l.b16 %v973
        %v1024 = vunpack.c.l.b16 %v974
        %v1025 = vunpack.c.l.b16 %v975
        %v1026 = vunpack.c.l.b16 %v976
        %v1027 = vunpack.c.l.b16 %v977
        %v1028 = vunpack.c.l.b16 %v978
        %v1029 = vunpack.c.l.b16 %v979
        %v1030 = vunpack.c.l.b16 %v980
        %v1031 = vunpack.c.l.b16 %v981
        %v1032 = vunpack.c.l.b16 %v982
        %v1033 = vunpack.c.l.b16 %v983
        %v1034 = vunpack.c.l.b16 %v984
        %v1035 = vunpack.c.l.b16 %v985
        %v1036 = vunpack.c.l.b16 %v986
        %v1037 = vunpack.c.l.b16 %v987
        %v1038 = vunpack.c.l.b16 %v988
        %v1039 = vpack.c.b16 %v1015, %v1014
        %v1040 = vpack.c.b16 %v1017, %v1016
        %v1041 = vpack.c.b16 %v1019, %v1018
        %v1042 = vpack.c.b16 %v1021, %v1020
        %v1043 = vpack.c.b16 %v1023, %v1022
        %v1044 = vpack.c.b16 %v1025, %v1024
        %v1045 = vpack.c.b16 %v1027, %v1026
        %v1046 = vpack.c.b16 %v1029, %v1028
        %v1047 = vpack.c.b16 %v1031, %v1030
        %v1048 = vpack.c.b16 %v1033, %v1032
        %v1049 = vpack.c.b16 %v1035, %v1034
        %v1050 = vpack.c.b16 %v1037, %v1036
        %v1051 = vpack.c.b16 %v1038, %v1038
        %1065 = vmatprep.subr.bf16.mxu0 0
        %1066 = vmatpush1.bf16.msra.mxu0 %v743
        %1067 = vmatprep.subr.bf16.mxu0 0
        %1068 = vmatpush1.bf16.msra.mxu0 %v742
        %1069 = vmatprep.subr.bf16.mxu0 0
        %1070 = vmatpush1.bf16.msra.mxu0 %v741
        %1071 = vmatprep.subr.bf16.mxu0 0
        %1072 = vmatpush1.bf16.msra.mxu0 %v740
        %1073 = vmatprep.subr.bf16.mxu0 0
        %1074 = vmatpush1.bf16.msra.mxu0 %v739
        %1075 = vmatprep.subr.bf16.mxu0 0
        %1076 = vmatpush1.bf16.msra.mxu0 %v738
        %1077 = vmatprep.subr.bf16.mxu0 0
        %1078 = vmatpush1.bf16.msra.mxu0 %v737
        %1079 = vmatprep.subr.bf16.mxu0 0
        %1080 = vmatpush1.bf16.msra.mxu0 %v736
        %1081 = vmatprep.subr.bf16.mxu0 0
        %1082 = vmatpush2.bf16.msra.mxu0 0
        %1083 = vmatprep.subr.bf16.mxu0 0
        %1084 = vmatpush2.bf16.msra.mxu0 0
        %1085 = vmatprep.subr.bf16.mxu0 0
        %1086 = vmatpush2.bf16.msra.mxu0 0
        %1087 = vmatprep.subr.bf16.mxu0 0
        %1088 = vmatpush2.bf16.msra.mxu0 0
        %1089 = vmatprep.subr.bf16.mxu0 0
        %1090 = vmatpush2.bf16.msra.mxu0 0
        %1091 = vmatprep.subr.bf16.mxu0 0
        %1092 = vmatpush2.bf16.msra.mxu0 0
        %1093 = vmatprep.subr.bf16.mxu0 0
        %1094 = vmatpush2.bf16.msra.mxu0 0
        %1095 = vmatprep.subr.bf16.mxu0 0
        %1096 = vmatpush2.bf16.msra.mxu0 0
        %1097 = vmatprep.mubr.bf16.mxu0 0
        %1098 = vmatmul.mubr.bf16.gmra.mxu0 %v1039
        %v1099 = vpop.f32.mrf.mxu0
        %v1100 = vadd.f32 0.0, %v1099
        %v1101 = vpop.f32.mrf.mxu0
        %v1102 = vpop.f32.mrf.mxu0
        %v1103 = vadd.f32 0.0, %v1102
        %v1104 = vpop.f32.mrf.mxu0
        %1105 = vmatprep.mubr.bf16.mxu0 0
        %1106 = vmatmul.mubr.bf16.gmra.mxu0 %v1040
        %v1107 = vpop.f32.mrf.mxu0
        %v1108 = vadd.f32 0.0, %v1107
        %v1109 = vpop.f32.mrf.mxu0
        %v1110 = vpop.f32.mrf.mxu0
        %v1111 = vadd.f32 0.0, %v1110
        %v1112 = vpop.f32.mrf.mxu0
        %1113 = vmatprep.mubr.bf16.mxu0 0
        %1114 = vmatmul.mubr.bf16.gmra.mxu0 %v1041
        %v1115 = vpop.f32.mrf.mxu0
        %v1116 = vadd.f32 0.0, %v1115
        %v1117 = vpop.f32.mrf.mxu0
        %v1118 = vpop.f32.mrf.mxu0
        %v1119 = vadd.f32 0.0, %v1118
        %v1120 = vpop.f32.mrf.mxu0
        %1121 = vmatprep.mubr.bf16.mxu0 0
        %1122 = vmatmul.mubr.bf16.gmra.mxu0 %v1042
        %v1123 = vpop.f32.mrf.mxu0
        %v1124 = vadd.f32 0.0, %v1123
        %v1125 = vpop.f32.mrf.mxu0
        %v1126 = vpop.f32.mrf.mxu0
        %v1127 = vadd.f32 0.0, %v1126
        %v1128 = vpop.f32.mrf.mxu0
        %1129 = vmatprep.mubr.bf16.mxu0 0
        %1130 = vmatmul.mubr.bf16.gmra.mxu0 %v1043
        %v1131 = vpop.f32.mrf.mxu0
        %v1132 = vadd.f32 0.0, %v1131
        %v1133 = vpop.f32.mrf.mxu0
        %v1134 = vpop.f32.mrf.mxu0
        %v1135 = vadd.f32 0.0, %v1134
        %v1136 = vpop.f32.mrf.mxu0
        %1137 = vmatprep.mubr.bf16.mxu0 0
        %1138 = vmatmul.mubr.bf16.gmra.mxu0 %v1044
        %v1139 = vpop.f32.mrf.mxu0
        %v1140 = vadd.f32 0.0, %v1139
        %v1141 = vpop.f32.mrf.mxu0
        %v1142 = vpop.f32.mrf.mxu0
        %v1143 = vadd.f32 0.0, %v1142
        %v1144 = vpop.f32.mrf.mxu0
        %1145 = vmatprep.mubr.bf16.mxu0 0
        %1146 = vmatmul.mubr.bf16.gmra.mxu0 %v1045
        %v1147 = vpop.f32.mrf.mxu0
        %v1148 = vadd.f32 0.0, %v1147
        %v1149 = vpop.f32.mrf.mxu0
        %v1150 = vpop.f32.mrf.mxu0
        %v1151 = vadd.f32 0.0, %v1150
        %v1152 = vpop.f32.mrf.mxu0
        %1153 = vmatprep.mubr.bf16.mxu0 0
        %1154 = vmatmul.mubr.bf16.gmra.mxu0 %v1046
        %v1155 = vpop.f32.mrf.mxu0
        %v1156 = vadd.f32 0.0, %v1155
        %v1157 = vpop.f32.mrf.mxu0
        %v1158 = vpop.f32.mrf.mxu0
        %v1159 = vadd.f32 0.0, %v1158
        %v1160 = vpop.f32.mrf.mxu0
        %1161 = vmatprep.mubr.bf16.mxu0 0
        %1162 = vmatmul.mubr.bf16.gmra.mxu0 %v1047
        %v1163 = vpop.f32.mrf.mxu0
        %v1164 = vadd.f32 0.0, %v1163
        %v1165 = vpop.f32.mrf.mxu0
        %v1166 = vpop.f32.mrf.mxu0
        %v1167 = vadd.f32 0.0, %v1166
        %v1168 = vpop.f32.mrf.mxu0
        %1169 = vmatprep.mubr.bf16.mxu0 0
        %1170 = vmatmul.mubr.bf16.gmra.mxu0 %v1048
        %v1171 = vpop.f32.mrf.mxu0
        %v1172 = vadd.f32 0.0, %v1171
        %v1173 = vpop.f32.mrf.mxu0
        %v1174 = vpop.f32.mrf.mxu0
        %v1175 = vadd.f32 0.0, %v1174
        %v1176 = vpop.f32.mrf.mxu0
        %1177 = vmatprep.mubr.bf16.mxu0 0
        %1178 = vmatmul.mubr.bf16.gmra.mxu0 %v1049
        %v1179 = vpop.f32.mrf.mxu0
        %v1180 = vadd.f32 0.0, %v1179
        %v1181 = vpop.f32.mrf.mxu0
        %v1182 = vpop.f32.mrf.mxu0
        %v1183 = vadd.f32 0.0, %v1182
        %v1184 = vpop.f32.mrf.mxu0
        %1185 = vmatprep.mubr.bf16.mxu0 0
        %1186 = vmatmul.mubr.bf16.gmra.mxu0 %v1050
        %v1187 = vpop.f32.mrf.mxu0
        %v1188 = vadd.f32 0.0, %v1187
        %v1189 = vpop.f32.mrf.mxu0
        %v1190 = vpop.f32.mrf.mxu0
        %v1191 = vadd.f32 0.0, %v1190
        %v1192 = vpop.f32.mrf.mxu0
        %1193 = vmatprep.mubr.bf16.mxu0 0
        %1194 = vmatmul.mubr.bf16.gmra.mxu0 %v1051
        %v1195 = vpop.f32.mrf.mxu0
        %v1196 = vadd.f32 0.0, %v1195
        %v1197 = vpop.f32.mrf.mxu0
        %v1198 = vpop.f32.mrf.mxu0
        %v1199 = vpop.f32.mrf.mxu0
        %1200 = vdwg.mxu0
        %v1201 = vmul.f32 %v1100, 0.5
        %v1202 = vmul.f32 %v1103, 0.5
        %v1203 = vmul.f32 %v1108, 0.5
        %v1204 = vmul.f32 %v1111, 0.5
        %v1205 = vmul.f32 %v1116, 0.5
        %v1206 = vmul.f32 %v1119, 0.5
        %v1207 = vmul.f32 %v1124, 0.5
        %v1208 = vmul.f32 %v1127, 0.5
        %v1209 = vmul.f32 %v1132, 0.5
        %v1210 = vmul.f32 %v1135, 0.5
        %v1211 = vmul.f32 %v1140, 0.5
        %v1212 = vmul.f32 %v1143, 0.5
        %v1213 = vmul.f32 %v1148, 0.5
        %v1214 = vmul.f32 %v1151, 0.5
        %v1215 = vmul.f32 %v1156, 0.5
        %v1216 = vmul.f32 %v1159, 0.5
        %v1217 = vmul.f32 %v1164, 0.5
        %v1218 = vmul.f32 %v1167, 0.5
        %v1219 = vmul.f32 %v1172, 0.5
        %v1220 = vmul.f32 %v1175, 0.5
        %v1221 = vmul.f32 %v1180, 0.5
        %v1222 = vmul.f32 %v1183, 0.5
        %v1223 = vmul.f32 %v1188, 0.5
        %v1224 = vmul.f32 %v1191, 0.5
        %v1225 = vmul.f32 %v1196, 0.5
        %v1226 = vtanh.pop %v1201
        %v1227 = vtanh.pop %v1202
        %v1228 = vtanh.pop %v1203
        %v1229 = vtanh.pop %v1204
        %v1230 = vtanh.pop %v1205
        %v1231 = vtanh.pop %v1206
        %v1232 = vtanh.pop %v1207
        %v1233 = vtanh.pop %v1208
        %v1234 = vtanh.pop %v1209
        %v1235 = vtanh.pop %v1210
        %v1236 = vtanh.pop %v1211
        %v1237 = vtanh.pop %v1212
        %v1238 = vtanh.pop %v1213
        %v1239 = vtanh.pop %v1214
        %v1240 = vtanh.pop %v1215
        %v1241 = vtanh.pop %v1216
        %v1242 = vtanh.pop %v1217
        %v1243 = vtanh.pop %v1218
        %v1244 = vtanh.pop %v1219
        %v1245 = vtanh.pop %v1220
        %v1246 = vtanh.pop %v1221
        %v1247 = vtanh.pop %v1222
        %v1248 = vtanh.pop %v1223
        %v1249 = vtanh.pop %v1224
        %v1250 = vtanh.pop %v1225
        %v1251 = vadd.f32 %v938, %v1226
        %v1252 = vadd.f32 %v939, %v1227
        %v1253 = vadd.f32 %v940, %v1228
        %v1254 = vadd.f32 %v941, %v1229
        %v1255 = vadd.f32 %v942, %v1230
        %v1256 = vadd.f32 %v943, %v1231
        %v1257 = vadd.f32 %v944, %v1232
        %v1258 = vadd.f32 %v945, %v1233
        %v1259 = vadd.f32 %v946, %v1234
        %v1260 = vadd.f32 %v947, %v1235
        %v1261 = vadd.f32 %v948, %v1236
        %v1262 = vadd.f32 %v949, %v1237
        %v1263 = vadd.f32 %v950, %v1238
        %v1264 = vadd.f32 %v951, %v1239
        %v1265 = vadd.f32 %v952, %v1240
        %v1266 = vadd.f32 %v953, %v1241
        %v1267 = vadd.f32 %v954, %v1242
        %v1268 = vadd.f32 %v955, %v1243
        %v1269 = vadd.f32 %v956, %v1244
        %v1270 = vadd.f32 %v957, %v1245
        %v1271 = vadd.f32 %v958, %v1246
        %v1272 = vadd.f32 %v959, %v1247
        %v1273 = vadd.f32 %v960, %v1248
        %v1274 = vadd.f32 %v961, %v1249
        %v1275 = vadd.f32 %v962, %v1250
        %s1276 = scalar_lea.vmem %s560, 200 [#allocation2]
        %v1277 = vld [vmem:[%s1276] sm:$0xf]
        %v1278 = vld [vmem:[%s1276 + $0x4] sm:$0xf]
        %v1279 = vld [vmem:[%s1276 + $0x8] sm:$0xf]
        %v1280 = vld [vmem:[%s1276 + $0xc] sm:$0xf]
        %v1281 = vld [vmem:[%s1276 + $0x10] sm:$0xf]
        %v1282 = vld [vmem:[%s1276 + $0x14] sm:$0xf]
        %v1283 = vld [vmem:[%s1276 + $0x18] sm:$0xf]
        %v1284 = vld [vmem:[%s1276 + $0x1c] sm:$0xf]
        %v1285 = vld [vmem:[%s1276 + $0x20] sm:$0xf]
        %v1286 = vld [vmem:[%s1276 + $0x24] sm:$0xf]
        %v1287 = vld [vmem:[%s1276 + $0x28] sm:$0xf]
        %v1288 = vld [vmem:[%s1276 + $0x2c] sm:$0xf]
        %v1289 = vld [vmem:[%s1276 + $0x30] sm:$0xf]
        %v1290 = vld [vmem:[%s1276 + $0x34] sm:$0xf]
        %v1291 = vld [vmem:[%s1276 + $0x38] sm:$0xf]
        %v1292 = vld [vmem:[%s1276 + $0x3c] sm:$0xf]
        %v1293 = vld [vmem:[%s1276 + $0x40] sm:$0xf]
        %v1294 = vld [vmem:[%s1276 + $0x44] sm:$0xf]
        %v1295 = vld [vmem:[%s1276 + $0x48] sm:$0xf]
        %v1296 = vld [vmem:[%s1276 + $0x4c] sm:$0xf]
        %v1297 = vld [vmem:[%s1276 + $0x50] sm:$0xf]
        %v1298 = vld [vmem:[%s1276 + $0x54] sm:$0xf]
        %v1299 = vld [vmem:[%s1276 + $0x58] sm:$0xf]
        %v1300 = vld [vmem:[%s1276 + $0x5c] sm:$0xf]
        %v1301 = vld [vmem:[%s1276 + $0x60] sm:$0xf]
        %v1327 = vunpack.c.l.b16 %v1277
        %v1328 = vunpack.c.l.b16 %v1278
        %v1329 = vunpack.c.l.b16 %v1279
        %v1330 = vunpack.c.l.b16 %v1280
        %v1331 = vunpack.c.l.b16 %v1281
        %v1332 = vunpack.c.l.b16 %v1282
        %v1333 = vunpack.c.l.b16 %v1283
        %v1334 = vunpack.c.l.b16 %v1284
        %v1335 = vunpack.c.l.b16 %v1285
        %v1336 = vunpack.c.l.b16 %v1286
        %v1337 = vunpack.c.l.b16 %v1287
        %v1338 = vunpack.c.l.b16 %v1288
        %v1339 = vunpack.c.l.b16 %v1289
        %v1340 = vunpack.c.l.b16 %v1290
        %v1341 = vunpack.c.l.b16 %v1291
        %v1342 = vunpack.c.l.b16 %v1292
        %v1343 = vunpack.c.l.b16 %v1293
        %v1344 = vunpack.c.l.b16 %v1294
        %v1345 = vunpack.c.l.b16 %v1295
        %v1346 = vunpack.c.l.b16 %v1296
        %v1347 = vunpack.c.l.b16 %v1297
        %v1348 = vunpack.c.l.b16 %v1298
        %v1349 = vunpack.c.l.b16 %v1299
        %v1350 = vunpack.c.l.b16 %v1300
        %v1351 = vunpack.c.l.b16 %v1301
        %v1352 = vpack.c.b16 %v1328, %v1327
        %v1353 = vpack.c.b16 %v1330, %v1329
        %v1354 = vpack.c.b16 %v1332, %v1331
        %v1355 = vpack.c.b16 %v1334, %v1333
        %v1356 = vpack.c.b16 %v1336, %v1335
        %v1357 = vpack.c.b16 %v1338, %v1337
        %v1358 = vpack.c.b16 %v1340, %v1339
        %v1359 = vpack.c.b16 %v1342, %v1341
        %v1360 = vpack.c.b16 %v1344, %v1343
        %v1361 = vpack.c.b16 %v1346, %v1345
        %v1362 = vpack.c.b16 %v1348, %v1347
        %v1363 = vpack.c.b16 %v1350, %v1349
        %v1364 = vpack.c.b16 %v1351, %v1351
        %1378 = vmatprep.subr.bf16.mxu0 0
        %1379 = vmatpush1.bf16.msra.mxu0 %v743
        %1380 = vmatprep.subr.bf16.mxu0 0
        %1381 = vmatpush1.bf16.msra.mxu0 %v742
        %1382 = vmatprep.subr.bf16.mxu0 0
        %1383 = vmatpush1.bf16.msra.mxu0 %v741
        %1384 = vmatprep.subr.bf16.mxu0 0
        %1385 = vmatpush1.bf16.msra.mxu0 %v740
        %1386 = vmatprep.subr.bf16.mxu0 0
        %1387 = vmatpush1.bf16.msra.mxu0 %v739
        %1388 = vmatprep.subr.bf16.mxu0 0
        %1389 = vmatpush1.bf16.msra.mxu0 %v738
        %1390 = vmatprep.subr.bf16.mxu0 0
        %1391 = vmatpush1.bf16.msra.mxu0 %v737
        %1392 = vmatprep.subr.bf16.mxu0 0
        %1393 = vmatpush1.bf16.msra.mxu0 %v736
        %1394 = vmatprep.subr.bf16.mxu0 0
        %1395 = vmatpush2.bf16.msra.mxu0 0
        %1396 = vmatprep.subr.bf16.mxu0 0
        %1397 = vmatpush2.bf16.msra.mxu0 0
        %1398 = vmatprep.subr.bf16.mxu0 0
        %1399 = vmatpush2.bf16.msra.mxu0 0
        %1400 = vmatprep.subr.bf16.mxu0 0
        %1401 = vmatpush2.bf16.msra.mxu0 0
        %1402 = vmatprep.subr.bf16.mxu0 0
        %1403 = vmatpush2.bf16.msra.mxu0 0
        %1404 = vmatprep.subr.bf16.mxu0 0
        %1405 = vmatpush2.bf16.msra.mxu0 0
        %1406 = vmatprep.subr.bf16.mxu0 0
        %1407 = vmatpush2.bf16.msra.mxu0 0
        %1408 = vmatprep.subr.bf16.mxu0 0
        %1409 = vmatpush2.bf16.msra.mxu0 0
        %1410 = vmatprep.mubr.bf16.mxu0 0
        %1411 = vmatmul.mubr.bf16.gmra.mxu0 %v1352
        %v1412 = vpop.f32.mrf.mxu0
        %v1413 = vadd.f32 0.0, %v1412
        %v1414 = vpop.f32.mrf.mxu0
        %v1415 = vpop.f32.mrf.mxu0
        %v1416 = vadd.f32 0.0, %v1415
        %v1417 = vpop.f32.mrf.mxu0
        %1418 = vmatprep.mubr.bf16.mxu0 0
        %1419 = vmatmul.mubr.bf16.gmra.mxu0 %v1353
        %v1420 = vpop.f32.mrf.mxu0
        %v1421 = vadd.f32 0.0, %v1420
        %v1422 = vpop.f32.mrf.mxu0
        %v1423 = vpop.f32.mrf.mxu0
        %v1424 = vadd.f32 0.0, %v1423
        %v1425 = vpop.f32.mrf.mxu0
        %1426 = vmatprep.mubr.bf16.mxu0 0
        %1427 = vmatmul.mubr.bf16.gmra.mxu0 %v1354
        %v1428 = vpop.f32.mrf.mxu0
        %v1429 = vadd.f32 0.0, %v1428
        %v1430 = vpop.f32.mrf.mxu0
        %v1431 = vpop.f32.mrf.mxu0
        %v1432 = vadd.f32 0.0, %v1431
        %v1433 = vpop.f32.mrf.mxu0
        %1434 = vmatprep.mubr.bf16.mxu0 0
        %1435 = vmatmul.mubr.bf16.gmra.mxu0 %v1355
        %v1436 = vpop.f32.mrf.mxu0
        %v1437 = vadd.f32 0.0, %v1436
        %v1438 = vpop.f32.mrf.mxu0
        %v1439 = vpop.f32.mrf.mxu0
        %v1440 = vadd.f32 0.0, %v1439
        %v1441 = vpop.f32.mrf.mxu0
        %1442 = vmatprep.mubr.bf16.mxu0 0
        %1443 = vmatmul.mubr.bf16.gmra.mxu0 %v1356
        %v1444 = vpop.f32.mrf.mxu0
        %v1445 = vadd.f32 0.0, %v1444
        %v1446 = vpop.f32.mrf.mxu0
        %v1447 = vpop.f32.mrf.mxu0
        %v1448 = vadd.f32 0.0, %v1447
        %v1449 = vpop.f32.mrf.mxu0
        %1450 = vmatprep.mubr.bf16.mxu0 0
        %1451 = vmatmul.mubr.bf16.gmra.mxu0 %v1357
        %v1452 = vpop.f32.mrf.mxu0
        %v1453 = vadd.f32 0.0, %v1452
        %v1454 = vpop.f32.mrf.mxu0
        %v1455 = vpop.f32.mrf.mxu0
        %v1456 = vadd.f32 0.0, %v1455
        %v1457 = vpop.f32.mrf.mxu0
        %1458 = vmatprep.mubr.bf16.mxu0 0
        %1459 = vmatmul.mubr.bf16.gmra.mxu0 %v1358
        %v1460 = vpop.f32.mrf.mxu0
        %v1461 = vadd.f32 0.0, %v1460
        %v1462 = vpop.f32.mrf.mxu0
        %v1463 = vpop.f32.mrf.mxu0
        %v1464 = vadd.f32 0.0, %v1463
        %v1465 = vpop.f32.mrf.mxu0
        %1466 = vmatprep.mubr.bf16.mxu0 0
        %1467 = vmatmul.mubr.bf16.gmra.mxu0 %v1359
        %v1468 = vpop.f32.mrf.mxu0
        %v1469 = vadd.f32 0.0, %v1468
        %v1470 = vpop.f32.mrf.mxu0
        %v1471 = vpop.f32.mrf.mxu0
        %v1472 = vadd.f32 0.0, %v1471
        %v1473 = vpop.f32.mrf.mxu0
        %1474 = vmatprep.mubr.bf16.mxu0 0
        %1475 = vmatmul.mubr.bf16.gmra.mxu0 %v1360
        %v1476 = vpop.f32.mrf.mxu0
        %v1477 = vadd.f32 0.0, %v1476
        %v1478 = vpop.f32.mrf.mxu0
        %v1479 = vpop.f32.mrf.mxu0
        %v1480 = vadd.f32 0.0, %v1479
        %v1481 = vpop.f32.mrf.mxu0
        %1482 = vmatprep.mubr.bf16.mxu0 0
        %1483 = vmatmul.mubr.bf16.gmra.mxu0 %v1361
        %v1484 = vpop.f32.mrf.mxu0
        %v1485 = vadd.f32 0.0, %v1484
        %v1486 = vpop.f32.mrf.mxu0
        %v1487 = vpop.f32.mrf.mxu0
        %v1488 = vadd.f32 0.0, %v1487
        %v1489 = vpop.f32.mrf.mxu0
        %1490 = vmatprep.mubr.bf16.mxu0 0
        %1491 = vmatmul.mubr.bf16.gmra.mxu0 %v1362
        %v1492 = vpop.f32.mrf.mxu0
        %v1493 = vadd.f32 0.0, %v1492
        %v1494 = vpop.f32.mrf.mxu0
        %v1495 = vpop.f32.mrf.mxu0
        %v1496 = vadd.f32 0.0, %v1495
        %v1497 = vpop.f32.mrf.mxu0
        %1498 = vmatprep.mubr.bf16.mxu0 0
        %1499 = vmatmul.mubr.bf16.gmra.mxu0 %v1363
        %v1500 = vpop.f32.mrf.mxu0
        %v1501 = vadd.f32 0.0, %v1500
        %v1502 = vpop.f32.mrf.mxu0
        %v1503 = vpop.f32.mrf.mxu0
        %v1504 = vadd.f32 0.0, %v1503
        %v1505 = vpop.f32.mrf.mxu0
        %1506 = vmatprep.mubr.bf16.mxu0 0
        %1507 = vmatmul.mubr.bf16.gmra.mxu0 %v1364
        %v1508 = vpop.f32.mrf.mxu0
        %v1509 = vadd.f32 0.0, %v1508
        %v1510 = vpop.f32.mrf.mxu0
        %v1511 = vpop.f32.mrf.mxu0
        %v1512 = vpop.f32.mrf.mxu0
        %1513 = vdwg.mxu0
        %v1514 = vmul.f32 %v1413, 0.5
        %v1515 = vmul.f32 %v1416, 0.5
        %v1516 = vmul.f32 %v1421, 0.5
        %v1517 = vmul.f32 %v1424, 0.5
        %v1518 = vmul.f32 %v1429, 0.5
        %v1519 = vmul.f32 %v1432, 0.5
        %v1520 = vmul.f32 %v1437, 0.5
        %v1521 = vmul.f32 %v1440, 0.5
        %v1522 = vmul.f32 %v1445, 0.5
        %v1523 = vmul.f32 %v1448, 0.5
        %v1524 = vmul.f32 %v1453, 0.5
        %v1525 = vmul.f32 %v1456, 0.5
        %v1526 = vmul.f32 %v1461, 0.5
        %v1527 = vmul.f32 %v1464, 0.5
        %v1528 = vmul.f32 %v1469, 0.5
        %v1529 = vmul.f32 %v1472, 0.5
        %v1530 = vmul.f32 %v1477, 0.5
        %v1531 = vmul.f32 %v1480, 0.5
        %v1532 = vmul.f32 %v1485, 0.5
        %v1533 = vmul.f32 %v1488, 0.5
        %v1534 = vmul.f32 %v1493, 0.5
        %v1535 = vmul.f32 %v1496, 0.5
        %v1536 = vmul.f32 %v1501, 0.5
        %v1537 = vmul.f32 %v1504, 0.5
        %v1538 = vmul.f32 %v1509, 0.5
        %v1539 = vtanh.pop %v1514
        %v1540 = vtanh.pop %v1515
        %v1541 = vtanh.pop %v1516
        %v1542 = vtanh.pop %v1517
        %v1543 = vtanh.pop %v1518
        %v1544 = vtanh.pop %v1519
        %v1545 = vtanh.pop %v1520
        %v1546 = vtanh.pop %v1521
        %v1547 = vtanh.pop %v1522
        %v1548 = vtanh.pop %v1523
        %v1549 = vtanh.pop %v1524
        %v1550 = vtanh.pop %v1525
        %v1551 = vtanh.pop %v1526
        %v1552 = vtanh.pop %v1527
        %v1553 = vtanh.pop %v1528
        %v1554 = vtanh.pop %v1529
        %v1555 = vtanh.pop %v1530
        %v1556 = vtanh.pop %v1531
        %v1557 = vtanh.pop %v1532
        %v1558 = vtanh.pop %v1533
        %v1559 = vtanh.pop %v1534
        %v1560 = vtanh.pop %v1535
        %v1561 = vtanh.pop %v1536
        %v1562 = vtanh.pop %v1537
        %v1563 = vtanh.pop %v1538
        %v1564 = vadd.f32 %v1251, %v1539
        %v1565 = vadd.f32 %v1252, %v1540
        %v1566 = vadd.f32 %v1253, %v1541
        %v1567 = vadd.f32 %v1254, %v1542
        %v1568 = vadd.f32 %v1255, %v1543
        %v1569 = vadd.f32 %v1256, %v1544
        %v1570 = vadd.f32 %v1257, %v1545
        %v1571 = vadd.f32 %v1258, %v1546
        %v1572 = vadd.f32 %v1259, %v1547
        %v1573 = vadd.f32 %v1260, %v1548
        %v1574 = vadd.f32 %v1261, %v1549
        %v1575 = vadd.f32 %v1262, %v1550
        %v1576 = vadd.f32 %v1263, %v1551
        %v1577 = vadd.f32 %v1264, %v1552
        %v1578 = vadd.f32 %v1265, %v1553
        %v1579 = vadd.f32 %v1266, %v1554
        %v1580 = vadd.f32 %v1267, %v1555
        %v1581 = vadd.f32 %v1268, %v1556
        %v1582 = vadd.f32 %v1269, %v1557
        %v1583 = vadd.f32 %v1270, %v1558
        %v1584 = vadd.f32 %v1271, %v1559
        %v1585 = vadd.f32 %v1272, %v1560
        %v1586 = vadd.f32 %v1273, %v1561
        %v1587 = vadd.f32 %v1274, %v1562
        %v1588 = vadd.f32 %v1275, %v1563
        %s1589 = scalar_lea.vmem %s560, 300 [#allocation2]
        %v1590 = vld [vmem:[%s1589] sm:$0xf]
        %v1591 = vld [vmem:[%s1589 + $0x4] sm:$0xf]
        %v1592 = vld [vmem:[%s1589 + $0x8] sm:$0xf]
        %v1593 = vld [vmem:[%s1589 + $0xc] sm:$0xf]
        %v1594 = vld [vmem:[%s1589 + $0x10] sm:$0xf]
        %v1595 = vld [vmem:[%s1589 + $0x14] sm:$0xf]
        %v1596 = vld [vmem:[%s1589 + $0x18] sm:$0xf]
        %v1597 = vld [vmem:[%s1589 + $0x1c] sm:$0xf]
        %v1598 = vld [vmem:[%s1589 + $0x20] sm:$0xf]
        %v1599 = vld [vmem:[%s1589 + $0x24] sm:$0xf]
        %v1600 = vld [vmem:[%s1589 + $0x28] sm:$0xf]
        %v1601 = vld [vmem:[%s1589 + $0x2c] sm:$0xf]
        %v1602 = vld [vmem:[%s1589 + $0x30] sm:$0xf]
        %v1603 = vld [vmem:[%s1589 + $0x34] sm:$0xf]
        %v1604 = vld [vmem:[%s1589 + $0x38] sm:$0xf]
        %v1605 = vld [vmem:[%s1589 + $0x3c] sm:$0xf]
        %v1606 = vld [vmem:[%s1589 + $0x40] sm:$0xf]
        %v1607 = vld [vmem:[%s1589 + $0x44] sm:$0xf]
        %v1608 = vld [vmem:[%s1589 + $0x48] sm:$0xf]
        %v1609 = vld [vmem:[%s1589 + $0x4c] sm:$0xf]
        %v1610 = vld [vmem:[%s1589 + $0x50] sm:$0xf]
        %v1611 = vld [vmem:[%s1589 + $0x54] sm:$0xf]
        %v1612 = vld [vmem:[%s1589 + $0x58] sm:$0xf]
        %v1613 = vld [vmem:[%s1589 + $0x5c] sm:$0xf]
        %v1614 = vld [vmem:[%s1589 + $0x60] sm:$0xf]
        %v1640 = vunpack.c.l.b16 %v1590
        %v1641 = vunpack.c.l.b16 %v1591
        %v1642 = vunpack.c.l.b16 %v1592
        %v1643 = vunpack.c.l.b16 %v1593
        %v1644 = vunpack.c.l.b16 %v1594
        %v1645 = vunpack.c.l.b16 %v1595
        %v1646 = vunpack.c.l.b16 %v1596
        %v1647 = vunpack.c.l.b16 %v1597
        %v1648 = vunpack.c.l.b16 %v1598
        %v1649 = vunpack.c.l.b16 %v1599
        %v1650 = vunpack.c.l.b16 %v1600
        %v1651 = vunpack.c.l.b16 %v1601
        %v1652 = vunpack.c.l.b16 %v1602
        %v1653 = vunpack.c.l.b16 %v1603
        %v1654 = vunpack.c.l.b16 %v1604
        %v1655 = vunpack.c.l.b16 %v1605
        %v1656 = vunpack.c.l.b16 %v1606
        %v1657 = vunpack.c.l.b16 %v1607
        %v1658 = vunpack.c.l.b16 %v1608
        %v1659 = vunpack.c.l.b16 %v1609
        %v1660 = vunpack.c.l.b16 %v1610
        %v1661 = vunpack.c.l.b16 %v1611
        %v1662 = vunpack.c.l.b16 %v1612
        %v1663 = vunpack.c.l.b16 %v1613
        %v1664 = vunpack.c.l.b16 %v1614
        %v1665 = vpack.c.b16 %v1641, %v1640
        %v1666 = vpack.c.b16 %v1643, %v1642
        %v1667 = vpack.c.b16 %v1645, %v1644
        %v1668 = vpack.c.b16 %v1647, %v1646
        %v1669 = vpack.c.b16 %v1649, %v1648
        %v1670 = vpack.c.b16 %v1651, %v1650
        %v1671 = vpack.c.b16 %v1653, %v1652
        %v1672 = vpack.c.b16 %v1655, %v1654
        %v1673 = vpack.c.b16 %v1657, %v1656
        %v1674 = vpack.c.b16 %v1659, %v1658
        %v1675 = vpack.c.b16 %v1661, %v1660
        %v1676 = vpack.c.b16 %v1663, %v1662
        %v1677 = vpack.c.b16 %v1664, %v1664
        %1691 = vmatprep.subr.bf16.mxu0 0
        %1692 = vmatpush1.bf16.msra.mxu0 %v743
        %1693 = vmatprep.subr.bf16.mxu0 0
        %1694 = vmatpush1.bf16.msra.mxu0 %v742
        %1695 = vmatprep.subr.bf16.mxu0 0
        %1696 = vmatpush1.bf16.msra.mxu0 %v741
        %1697 = vmatprep.subr.bf16.mxu0 0
        %1698 = vmatpush1.bf16.msra.mxu0 %v740
        %1699 = vmatprep.subr.bf16.mxu0 0
        %1700 = vmatpush1.bf16.msra.mxu0 %v739
        %1701 = vmatprep.subr.bf16.mxu0 0
        %1702 = vmatpush1.bf16.msra.mxu0 %v738
        %1703 = vmatprep.subr.bf16.mxu0 0
        %1704 = vmatpush1.bf16.msra.mxu0 %v737
        %1705 = vmatprep.subr.bf16.mxu0 0
        %1706 = vmatpush1.bf16.msra.mxu0 %v736
        %1707 = vmatprep.subr.bf16.mxu0 0
        %1708 = vmatpush2.bf16.msra.mxu0 0
        %1709 = vmatprep.subr.bf16.mxu0 0
        %1710 = vmatpush2.bf16.msra.mxu0 0
        %1711 = vmatprep.subr.bf16.mxu0 0
        %1712 = vmatpush2.bf16.msra.mxu0 0
        %1713 = vmatprep.subr.bf16.mxu0 0
        %1714 = vmatpush2.bf16.msra.mxu0 0
        %1715 = vmatprep.subr.bf16.mxu0 0
        %1716 = vmatpush2.bf16.msra.mxu0 0
        %1717 = vmatprep.subr.bf16.mxu0 0
        %1718 = vmatpush2.bf16.msra.mxu0 0
        %1719 = vmatprep.subr.bf16.mxu0 0
        %1720 = vmatpush2.bf16.msra.mxu0 0
        %1721 = vmatprep.subr.bf16.mxu0 0
        %1722 = vmatpush2.bf16.msra.mxu0 0
        %1723 = vmatprep.mubr.bf16.mxu0 0
        %1724 = vmatmul.mubr.bf16.gmra.mxu0 %v1665
        %v1725 = vpop.f32.mrf.mxu0
        %v1726 = vadd.f32 0.0, %v1725
        %v1727 = vpop.f32.mrf.mxu0
        %v1728 = vpop.f32.mrf.mxu0
        %v1729 = vadd.f32 0.0, %v1728
        %v1730 = vpop.f32.mrf.mxu0
        %1731 = vmatprep.mubr.bf16.mxu0 0
        %1732 = vmatmul.mubr.bf16.gmra.mxu0 %v1666
        %v1733 = vpop.f32.mrf.mxu0
        %v1734 = vadd.f32 0.0, %v1733
        %v1735 = vpop.f32.mrf.mxu0
        %v1736 = vpop.f32.mrf.mxu0
        %v1737 = vadd.f32 0.0, %v1736
        %v1738 = vpop.f32.mrf.mxu0
        %1739 = vmatprep.mubr.bf16.mxu0 0
        %1740 = vmatmul.mubr.bf16.gmra.mxu0 %v1667
        %v1741 = vpop.f32.mrf.mxu0
        %v1742 = vadd.f32 0.0, %v1741
        %v1743 = vpop.f32.mrf.mxu0
        %v1744 = vpop.f32.mrf.mxu0
        %v1745 = vadd.f32 0.0, %v1744
        %v1746 = vpop.f32.mrf.mxu0
        %1747 = vmatprep.mubr.bf16.mxu0 0
        %1748 = vmatmul.mubr.bf16.gmra.mxu0 %v1668
        %v1749 = vpop.f32.mrf.mxu0
        %v1750 = vadd.f32 0.0, %v1749
        %v1751 = vpop.f32.mrf.mxu0
        %v1752 = vpop.f32.mrf.mxu0
        %v1753 = vadd.f32 0.0, %v1752
        %v1754 = vpop.f32.mrf.mxu0
        %1755 = vmatprep.mubr.bf16.mxu0 0
        %1756 = vmatmul.mubr.bf16.gmra.mxu0 %v1669
        %v1757 = vpop.f32.mrf.mxu0
        %v1758 = vadd.f32 0.0, %v1757
        %v1759 = vpop.f32.mrf.mxu0
        %v1760 = vpop.f32.mrf.mxu0
        %v1761 = vadd.f32 0.0, %v1760
        %v1762 = vpop.f32.mrf.mxu0
        %1763 = vmatprep.mubr.bf16.mxu0 0
        %1764 = vmatmul.mubr.bf16.gmra.mxu0 %v1670
        %v1765 = vpop.f32.mrf.mxu0
        %v1766 = vadd.f32 0.0, %v1765
        %v1767 = vpop.f32.mrf.mxu0
        %v1768 = vpop.f32.mrf.mxu0
        %v1769 = vadd.f32 0.0, %v1768
        %v1770 = vpop.f32.mrf.mxu0
        %1771 = vmatprep.mubr.bf16.mxu0 0
        %1772 = vmatmul.mubr.bf16.gmra.mxu0 %v1671
        %v1773 = vpop.f32.mrf.mxu0
        %v1774 = vadd.f32 0.0, %v1773
        %v1775 = vpop.f32.mrf.mxu0
        %v1776 = vpop.f32.mrf.mxu0
        %v1777 = vadd.f32 0.0, %v1776
        %v1778 = vpop.f32.mrf.mxu0
        %1779 = vmatprep.mubr.bf16.mxu0 0
        %1780 = vmatmul.mubr.bf16.gmra.mxu0 %v1672
        %v1781 = vpop.f32.mrf.mxu0
        %v1782 = vadd.f32 0.0, %v1781
        %v1783 = vpop.f32.mrf.mxu0
        %v1784 = vpop.f32.mrf.mxu0
        %v1785 = vadd.f32 0.0, %v1784
        %v1786 = vpop.f32.mrf.mxu0
        %1787 = vmatprep.mubr.bf16.mxu0 0
        %1788 = vmatmul.mubr.bf16.gmra.mxu0 %v1673
        %v1789 = vpop.f32.mrf.mxu0
        %v1790 = vadd.f32 0.0, %v1789
        %v1791 = vpop.f32.mrf.mxu0
        %v1792 = vpop.f32.mrf.mxu0
        %v1793 = vadd.f32 0.0, %v1792
        %v1794 = vpop.f32.mrf.mxu0
        %1795 = vmatprep.mubr.bf16.mxu0 0
        %1796 = vmatmul.mubr.bf16.gmra.mxu0 %v1674
        %v1797 = vpop.f32.mrf.mxu0
        %v1798 = vadd.f32 0.0, %v1797
        %v1799 = vpop.f32.mrf.mxu0
        %v1800 = vpop.f32.mrf.mxu0
        %v1801 = vadd.f32 0.0, %v1800
        %v1802 = vpop.f32.mrf.mxu0
        %1803 = vmatprep.mubr.bf16.mxu0 0
        %1804 = vmatmul.mubr.bf16.gmra.mxu0 %v1675
        %v1805 = vpop.f32.mrf.mxu0
        %v1806 = vadd.f32 0.0, %v1805
        %v1807 = vpop.f32.mrf.mxu0
        %v1808 = vpop.f32.mrf.mxu0
        %v1809 = vadd.f32 0.0, %v1808
        %v1810 = vpop.f32.mrf.mxu0
        %1811 = vmatprep.mubr.bf16.mxu0 0
        %1812 = vmatmul.mubr.bf16.gmra.mxu0 %v1676
        %v1813 = vpop.f32.mrf.mxu0
        %v1814 = vadd.f32 0.0, %v1813
        %v1815 = vpop.f32.mrf.mxu0
        %v1816 = vpop.f32.mrf.mxu0
        %v1817 = vadd.f32 0.0, %v1816
        %v1818 = vpop.f32.mrf.mxu0
        %1819 = vmatprep.mubr.bf16.mxu0 0
        %1820 = vmatmul.mubr.bf16.gmra.mxu0 %v1677
        %v1821 = vpop.f32.mrf.mxu0
        %v1822 = vadd.f32 0.0, %v1821
        %v1823 = vpop.f32.mrf.mxu0
        %v1824 = vpop.f32.mrf.mxu0
        %v1825 = vpop.f32.mrf.mxu0
        %1826 = vdwg.mxu0
        %v1827 = vmul.f32 %v1726, 0.5
        %v1828 = vmul.f32 %v1729, 0.5
        %v1829 = vmul.f32 %v1734, 0.5
        %v1830 = vmul.f32 %v1737, 0.5
        %v1831 = vmul.f32 %v1742, 0.5
        %v1832 = vmul.f32 %v1745, 0.5
        %v1833 = vmul.f32 %v1750, 0.5
        %v1834 = vmul.f32 %v1753, 0.5
        %v1835 = vmul.f32 %v1758, 0.5
        %v1836 = vmul.f32 %v1761, 0.5
        %v1837 = vmul.f32 %v1766, 0.5
        %v1838 = vmul.f32 %v1769, 0.5
        %v1839 = vmul.f32 %v1774, 0.5
        %v1840 = vmul.f32 %v1777, 0.5
        %v1841 = vmul.f32 %v1782, 0.5
        %v1842 = vmul.f32 %v1785, 0.5
        %v1843 = vmul.f32 %v1790, 0.5
        %v1844 = vmul.f32 %v1793, 0.5
        %v1845 = vmul.f32 %v1798, 0.5
        %v1846 = vmul.f32 %v1801, 0.5
        %v1847 = vmul.f32 %v1806, 0.5
        %v1848 = vmul.f32 %v1809, 0.5
        %v1849 = vmul.f32 %v1814, 0.5
        %v1850 = vmul.f32 %v1817, 0.5
        %v1851 = vmul.f32 %v1822, 0.5
        %v1852 = vtanh.pop %v1827
        %v1853 = vtanh.pop %v1828
        %v1854 = vtanh.pop %v1829
        %v1855 = vtanh.pop %v1830
        %v1856 = vtanh.pop %v1831
        %v1857 = vtanh.pop %v1832
        %v1858 = vtanh.pop %v1833
        %v1859 = vtanh.pop %v1834
        %v1860 = vtanh.pop %v1835
        %v1861 = vtanh.pop %v1836
        %v1862 = vtanh.pop %v1837
        %v1863 = vtanh.pop %v1838
        %v1864 = vtanh.pop %v1839
        %v1865 = vtanh.pop %v1840
        %v1866 = vtanh.pop %v1841
        %v1867 = vtanh.pop %v1842
        %v1868 = vtanh.pop %v1843
        %v1869 = vtanh.pop %v1844
        %v1870 = vtanh.pop %v1845
        %v1871 = vtanh.pop %v1846
        %v1872 = vtanh.pop %v1847
        %v1873 = vtanh.pop %v1848
        %v1874 = vtanh.pop %v1849
        %v1875 = vtanh.pop %v1850
        %v1876 = vtanh.pop %v1851
        %v1877 = vadd.f32 %v1564, %v1852
        %v1878 = vadd.f32 %v1565, %v1853
        %v1879 = vadd.f32 %v1566, %v1854
        %v1880 = vadd.f32 %v1567, %v1855
        %v1881 = vadd.f32 %v1568, %v1856
        %v1882 = vadd.f32 %v1569, %v1857
        %v1883 = vadd.f32 %v1570, %v1858
        %v1884 = vadd.f32 %v1571, %v1859
        %v1885 = vadd.f32 %v1572, %v1860
        %v1886 = vadd.f32 %v1573, %v1861
        %v1887 = vadd.f32 %v1574, %v1862
        %v1888 = vadd.f32 %v1575, %v1863
        %v1889 = vadd.f32 %v1576, %v1864
        %v1890 = vadd.f32 %v1577, %v1865
        %v1891 = vadd.f32 %v1578, %v1866
        %v1892 = vadd.f32 %v1579, %v1867
        %v1893 = vadd.f32 %v1580, %v1868
        %v1894 = vadd.f32 %v1581, %v1869
        %v1895 = vadd.f32 %v1582, %v1870
        %v1896 = vadd.f32 %v1583, %v1871
        %v1897 = vadd.f32 %v1584, %v1872
        %v1898 = vadd.f32 %v1585, %v1873
        %v1899 = vadd.f32 %v1586, %v1874
        %v1900 = vadd.f32 %v1587, %v1875
        %v1901 = vadd.f32 %v1588, %v1876
        %v1902 = vmul.f32 %v1877, 0.125
        %v1903 = vmul.f32 %v1878, 0.125
        %v1904 = vmul.f32 %v1879, 0.125
        %v1905 = vmul.f32 %v1880, 0.125
        %v1906 = vmul.f32 %v1881, 0.125
        %v1907 = vmul.f32 %v1882, 0.125
        %v1908 = vmul.f32 %v1883, 0.125
        %v1909 = vmul.f32 %v1884, 0.125
        %v1910 = vmul.f32 %v1885, 0.125
        %v1911 = vmul.f32 %v1886, 0.125
        %v1912 = vmul.f32 %v1887, 0.125
        %v1913 = vmul.f32 %v1888, 0.125
        %v1914 = vmul.f32 %v1889, 0.125
        %v1915 = vmul.f32 %v1890, 0.125
        %v1916 = vmul.f32 %v1891, 0.125
        %v1917 = vmul.f32 %v1892, 0.125
        %v1918 = vmul.f32 %v1893, 0.125
        %v1919 = vmul.f32 %v1894, 0.125
        %v1920 = vmul.f32 %v1895, 0.125
        %v1921 = vmul.f32 %v1896, 0.125
        %v1922 = vmul.f32 %v1897, 0.125
        %v1923 = vmul.f32 %v1898, 0.125
        %v1924 = vmul.f32 %v1899, 0.125
        %v1925 = vmul.f32 %v1900, 0.125
        %v1926 = vmul.f32 %v1901, 0.125
        %v1927 = vadd.f32 %v1902, 0.5
        %v1928 = vadd.f32 %v1903, 0.5
        %v1929 = vadd.f32 %v1904, 0.5
        %v1930 = vadd.f32 %v1905, 0.5
        %v1931 = vadd.f32 %v1906, 0.5
        %v1932 = vadd.f32 %v1907, 0.5
        %v1933 = vadd.f32 %v1908, 0.5
        %v1934 = vadd.f32 %v1909, 0.5
        %v1935 = vadd.f32 %v1910, 0.5
        %v1936 = vadd.f32 %v1911, 0.5
        %v1937 = vadd.f32 %v1912, 0.5
        %v1938 = vadd.f32 %v1913, 0.5
        %v1939 = vadd.f32 %v1914, 0.5
        %v1940 = vadd.f32 %v1915, 0.5
        %v1941 = vadd.f32 %v1916, 0.5
        %v1942 = vadd.f32 %v1917, 0.5
        %v1943 = vadd.f32 %v1918, 0.5
        %v1944 = vadd.f32 %v1919, 0.5
        %v1945 = vadd.f32 %v1920, 0.5
        %v1946 = vadd.f32 %v1921, 0.5
        %v1947 = vadd.f32 %v1922, 0.5
        %v1948 = vadd.f32 %v1923, 0.5
        %v1949 = vadd.f32 %v1924, 0.5
        %v1950 = vadd.f32 %v1925, 0.5
        %v1951 = vadd.f32 %v1926, 0.5
        %v1952 = vpack.c.bf16 %v1928, %v1927
        %v1953 = vpack.c.bf16 %v1930, %v1929
        %v1954 = vpack.c.bf16 %v1932, %v1931
        %v1955 = vpack.c.bf16 %v1934, %v1933
        %v1956 = vpack.c.bf16 %v1936, %v1935
        %v1957 = vpack.c.bf16 %v1938, %v1937
        %v1958 = vpack.c.bf16 %v1940, %v1939
        %v1959 = vpack.c.bf16 %v1942, %v1941
        %v1960 = vpack.c.bf16 %v1944, %v1943
        %v1961 = vpack.c.bf16 %v1946, %v1945
        %v1962 = vpack.c.bf16 %v1948, %v1947
        %v1963 = vpack.c.bf16 %v1950, %v1949
        %v1964 = vpack.c.bf16 %v1951, %v1951
        %v1978 = vunpack.c.l.b16 %v1952
        %v1979 = vunpack.c.h.b16 %v1952
        %v1980 = vunpack.c.l.b16 %v1953
        %v1981 = vunpack.c.h.b16 %v1953
        %v1982 = vunpack.c.l.b16 %v1954
        %v1983 = vunpack.c.h.b16 %v1954
        %v1984 = vunpack.c.l.b16 %v1955
        %v1985 = vunpack.c.h.b16 %v1955
        %v1986 = vunpack.c.l.b16 %v1956
        %v1987 = vunpack.c.h.b16 %v1956
        %v1988 = vunpack.c.l.b16 %v1957
        %v1989 = vunpack.c.h.b16 %v1957
        %v1990 = vunpack.c.l.b16 %v1958
        %v1991 = vunpack.c.h.b16 %v1958
        %v1992 = vunpack.c.l.b16 %v1959
        %v1993 = vunpack.c.h.b16 %v1959
        %v1994 = vunpack.c.l.b16 %v1960
        %v1995 = vunpack.c.h.b16 %v1960
        %v1996 = vunpack.c.l.b16 %v1961
        %v1997 = vunpack.c.h.b16 %v1961
        %v1998 = vunpack.c.l.b16 %v1962
        %v1999 = vunpack.c.h.b16 %v1962
        %v2000 = vunpack.c.l.b16 %v1963
        %v2001 = vunpack.c.h.b16 %v1963
        %v2002 = vunpack.c.l.b16 %v1964
        %v2003 = vpack.c.b16 %v1978, %v1978
        %v2004 = vpack.c.b16 %v1979, %v1979
        %v2005 = vpack.c.b16 %v1980, %v1980
        %v2006 = vpack.c.b16 %v1981, %v1981
        %v2007 = vpack.c.b16 %v1982, %v1982
        %v2008 = vpack.c.b16 %v1983, %v1983
        %v2009 = vpack.c.b16 %v1984, %v1984
        %v2010 = vpack.c.b16 %v1985, %v1985
        %v2011 = vpack.c.b16 %v1986, %v1986
        %v2012 = vpack.c.b16 %v1987, %v1987
        %v2013 = vpack.c.b16 %v1988, %v1988
        %v2014 = vpack.c.b16 %v1989, %v1989
        %v2015 = vpack.c.b16 %v1990, %v1990
        %v2016 = vpack.c.b16 %v1991, %v1991
        %v2017 = vpack.c.b16 %v1992, %v1992
        %v2018 = vpack.c.b16 %v1993, %v1993
        %v2019 = vpack.c.b16 %v1994, %v1994
        %v2020 = vpack.c.b16 %v1995, %v1995
        %v2021 = vpack.c.b16 %v1996, %v1996
        %v2022 = vpack.c.b16 %v1997, %v1997
        %v2023 = vpack.c.b16 %v1998, %v1998
        %v2024 = vpack.c.b16 %v1999, %v1999
        %v2025 = vpack.c.b16 %v2000, %v2000
        %v2026 = vpack.c.b16 %v2001, %v2001
        %v2027 = vpack.c.b16 %v2002, %v2002
        %2053 = vst [vmem:[%s584] sm:$0xf] %v2003
        %2054 = vst [vmem:[%s584 + $0x4] sm:$0xf] %v2004
        %2055 = vst [vmem:[%s584 + $0x8] sm:$0xf] %v2005
        %2056 = vst [vmem:[%s584 + $0xc] sm:$0xf] %v2006
        %2057 = vst [vmem:[%s584 + $0x10] sm:$0xf] %v2007
        %2058 = vst [vmem:[%s584 + $0x14] sm:$0xf] %v2008
        %2059 = vst [vmem:[%s584 + $0x18] sm:$0xf] %v2009
        %2060 = vst [vmem:[%s584 + $0x1c] sm:$0xf] %v2010
        %2061 = vst [vmem:[%s584 + $0x20] sm:$0xf] %v2011
        %2062 = vst [vmem:[%s584 + $0x24] sm:$0xf] %v2012
        %2063 = vst [vmem:[%s584 + $0x28] sm:$0xf] %v2013
        %2064 = vst [vmem:[%s584 + $0x2c] sm:$0xf] %v2014
        %2065 = vst [vmem:[%s584 + $0x30] sm:$0xf] %v2015
        %2066 = vst [vmem:[%s584 + $0x34] sm:$0xf] %v2016
        %2067 = vst [vmem:[%s584 + $0x38] sm:$0xf] %v2017
        %2068 = vst [vmem:[%s584 + $0x3c] sm:$0xf] %v2018
        %2069 = vst [vmem:[%s584 + $0x40] sm:$0xf] %v2019
        %2070 = vst [vmem:[%s584 + $0x44] sm:$0xf] %v2020
        %2071 = vst [vmem:[%s584 + $0x48] sm:$0xf] %v2021
        %2072 = vst [vmem:[%s584 + $0x4c] sm:$0xf] %v2022
        %2073 = vst [vmem:[%s584 + $0x50] sm:$0xf] %v2023
        %2074 = vst [vmem:[%s584 + $0x54] sm:$0xf] %v2024
        %2075 = vst [vmem:[%s584 + $0x58] sm:$0xf] %v2025
        %2076 = vst [vmem:[%s584 + $0x5c] sm:$0xf] %v2026
        %2077 = vst [vmem:[%s584 + $0x60] sm:$0xf] %v2027
        %s2078 = smul.u32 25, %s13
        %p2079 = scmp.lt.s32.totalorder %s2078, 49
        %s2080 = scalar_select %p2079, %s2078, 49
        %s2081 = smul.addr %s2080, 4
        %s2082 = scalar_lea.vmem %s2, %s2081
        // Predicated region
        $region70: #{lenet_forward.2} parent=64 // pred_check
          %p2083 = pneg %p78
        $region71: #{lenet_forward.2} parent=64 // pred_check_branch
          %2085 = sbr.rel (%p2083) target = $region73
        $region72: #{lenet_forward.2} parent=64 // pred_region
          %s2086 = smul.u32 25, %s13
        $region73: #{lenet_forward.2} parent=64 // pred_fallthru
          _
      $region65: #{lenet_forward.2} parent=5 // pred_fallthru
        _
      %p2087 = scmp.le.s32.totalorder 2, %s8
      // Predicated region
      $region74: #{lenet_forward.2} parent=5 // pred_check
        %p2088 = pneg %p2087
      $region75: #{lenet_forward.2} parent=5 // pred_check_branch
        %2090 = sbr.rel (%p2088) target = $region77
      $region76: #{lenet_forward.2} parent=5 // pred_region
        %s2091 = ssub.s32 %s8, 2
        // Predicated region
        $region78: #{lenet_forward.2} parent=76 // pred_check
          %p2092 = pneg %p84
        $region79: #{lenet_forward.2} parent=76 // pred_check_branch
          %2094 = sbr.rel (%p2092) target = $region81
        $region80: #{lenet_forward.2} parent=76 // pred_region
          %s2095 = smul.u32 25, %s14
          %p2096 = scmp.lt.s32.totalorder %s2095, 49
          %s2097 = scalar_select %p2096, %s2095, 49
          %s2098 = smul.addr %s2097, 4
          %s2099 = scalar_lea.vmem %s2, %s2098
        $region81: #{lenet_forward.2} parent=76 // pred_fallthru
          _
      $region77: #{lenet_forward.2} parent=5 // pred_fallthru
        _
    $region6: #{lenet_forward.2} parent=1 // loop_footer
      %s12 = sadd.s32 1, %s8
    $region7: #{lenet_forward.2} parent=1 // loop_footer_branch
      %7 = sbr.rel target = $region3
    $region8: #{lenet_forward.2} parent=1 // loop_exit
      _

// kernel: lenet_forward.3
$region0: #{lenet_forward.3}
  #allocation0 [shape = 'u32[]', space=smem, size = 0x4, offset = 0x4, fixed_abs, tag = 'smem constant byte address 0x4 - core index']
  #allocation1 [shape = 'u32[144,128]{1,0:T(1,128)}', space=vmem, size = 0x12000, scoped, tag = 'internal scratch']
  %s0 = inlined_call_operand.vmem [shape: bf16[1,4,200,256], index: 0, kind: input, shape index: {}]
  %s1 = inlined_call_operand.vmem [shape: bf16[256,128], index: 1, kind: input, shape index: {}]
  %s2 = inlined_call_operand.vmem [shape: bf16[25,128,128], index: 2, kind: input, shape index: {}]
  %s3 = inlined_call_operand.vmem [shape: bf16[128,128], index: 3, kind: input, shape index: {}]
  %s4 = inlined_call_operand.vmem [shape: bf16[128,128], index: 4, kind: input, shape index: {}]
  %s5 = inlined_call_operand.vmem [shape: f32[8,128], index: 5, kind: input, shape index: {}]
  %s6 = inlined_call_operand.vmem [shape: f32[8,128], index: 6, kind: output, shape index: {}]
  %s7 = sld [smem:[#allocation0]]
  $region34: #{lenet_forward.3} parent=0
    _
  %s9 = ssub.s32 1, %s7
  %s10 = scalar_select 0, %s9, %s7
  // Predicated region
  $region2: #{lenet_forward.3} parent=0 // pred_check
    _
  $region3: #{lenet_forward.3} parent=0 // pred_check_branch
    %12 = sbr.rel (0) target = $region5
  $region4: #{lenet_forward.3} parent=0 // pred_region
    _
  $region5: #{lenet_forward.3} parent=0 // pred_fallthru
    _
  // Predicated region
  $region6: #{lenet_forward.3} parent=0 // pred_check
    _
  $region7: #{lenet_forward.3} parent=0 // pred_check_branch
    %14 = sbr.rel (0) target = $region9
  $region8: #{lenet_forward.3} parent=0 // pred_region
    _
  $region9: #{lenet_forward.3} parent=0 // pred_fallthru
    _
  // Predicated region
  $region10: #{lenet_forward.3} parent=0 // pred_check
    _
  $region11: #{lenet_forward.3} parent=0 // pred_check_branch
    %16 = sbr.rel (0) target = $region13
  $region12: #{lenet_forward.3} parent=0 // pred_region
    _
  $region13: #{lenet_forward.3} parent=0 // pred_fallthru
    _
  // Predicated region
  $region14: #{lenet_forward.3} parent=0 // pred_check
    _
  $region15: #{lenet_forward.3} parent=0 // pred_check_branch
    %18 = sbr.rel (0) target = $region17
  $region16: #{lenet_forward.3} parent=0 // pred_region
    _
  $region17: #{lenet_forward.3} parent=0 // pred_fallthru
    _
  // Predicated region
  $region18: #{lenet_forward.3} parent=0 // pred_check
    _
  $region19: #{lenet_forward.3} parent=0 // pred_check_branch
    %20 = sbr.rel (0) target = $region21
  $region20: #{lenet_forward.3} parent=0 // pred_region
    _
  $region21: #{lenet_forward.3} parent=0 // pred_fallthru
    _
  // Predicated region
  $region22: #{lenet_forward.3} parent=0 // pred_check
    _
  $region23: #{lenet_forward.3} parent=0 // pred_check_branch
    %22 = sbr.rel (0) target = $region25
  $region24: #{lenet_forward.3} parent=0 // pred_region
    _
  $region25: #{lenet_forward.3} parent=0 // pred_fallthru
    _
  %v24 = vld [vmem:[%s1] sm:$0xf]
  %v25 = vld [vmem:[%s1 + $0x4] sm:$0xf]
  %v26 = vld [vmem:[%s1 + $0x8] sm:$0xf]
  %v27 = vld [vmem:[%s1 + $0xc] sm:$0xf]
  %v28 = vld [vmem:[%s1 + $0x10] sm:$0xf]
  %v29 = vld [vmem:[%s1 + $0x14] sm:$0xf]
  %v30 = vld [vmem:[%s1 + $0x18] sm:$0xf]
  %v31 = vld [vmem:[%s1 + $0x1c] sm:$0xf]
  %v32 = vld [vmem:[%s1 + $0x20] sm:$0xf]
  %v33 = vld [vmem:[%s1 + $0x24] sm:$0xf]
  %v34 = vld [vmem:[%s1 + $0x28] sm:$0xf]
  %v35 = vld [vmem:[%s1 + $0x2c] sm:$0xf]
  %v36 = vld [vmem:[%s1 + $0x30] sm:$0xf]
  %v37 = vld [vmem:[%s1 + $0x34] sm:$0xf]
  %v38 = vld [vmem:[%s1 + $0x38] sm:$0xf]
  %v39 = vld [vmem:[%s1 + $0x3c] sm:$0xf]
  %v40 = vld [vmem:[%s1 + $0x40] sm:$0xf]
  %v41 = vld [vmem:[%s1 + $0x44] sm:$0xf]
  %v42 = vld [vmem:[%s1 + $0x48] sm:$0xf]
  %v43 = vld [vmem:[%s1 + $0x4c] sm:$0xf]
  %v44 = vld [vmem:[%s1 + $0x50] sm:$0xf]
  %v45 = vld [vmem:[%s1 + $0x54] sm:$0xf]
  %v46 = vld [vmem:[%s1 + $0x58] sm:$0xf]
  %v47 = vld [vmem:[%s1 + $0x5c] sm:$0xf]
  %v48 = vld [vmem:[%s1 + $0x60] sm:$0xf]
  %v49 = vld [vmem:[%s1 + $0x64] sm:$0xf]
  %v50 = vld [vmem:[%s1 + $0x68] sm:$0xf]
  %v51 = vld [vmem:[%s1 + $0x6c] sm:$0xf]
  %v52 = vld [vmem:[%s1 + $0x70] sm:$0xf]
  %v53 = vld [vmem:[%s1 + $0x74] sm:$0xf]
  %v54 = vld [vmem:[%s1 + $0x78] sm:$0xf]
  %v55 = vld [vmem:[%s1 + $0x7c] sm:$0xf]
  %v56 = vld [vmem:[%s0] sm:$0xff]
  %v57 = vld [vmem:[%s0 + $0x8] sm:$0xff]
  %v58 = vld [vmem:[%s0 + $0x10] sm:$0xff]
  %v59 = vld [vmem:[%s0 + $0x18] sm:$0xff]
  %v60 = vld [vmem:[%s0 + $0x20] sm:$0xff]
  %v61 = vld [vmem:[%s0 + $0x28] sm:$0xff]
  %v62 = vld [vmem:[%s0 + $0x30] sm:$0xff]
  %v63 = vld [vmem:[%s0 + $0x38] sm:$0xff]
  %v64 = vld [vmem:[%s0 + $0x40] sm:$0xff]
  %v65 = vld [vmem:[%s0 + $0x48] sm:$0xff]
  %v66 = vld [vmem:[%s0 + $0x50] sm:$0xff]
  %v67 = vld [vmem:[%s0 + $0x58] sm:$0xff]
  %v68 = vld [vmem:[%s0 + $0x60] sm:$0xff]
  %v69 = vld [vmem:[%s0 + $0x68] sm:$0xff]
  %v70 = vld [vmem:[%s0 + $0x70] sm:$0xff]
  %v71 = vld [vmem:[%s0 + $0x78] sm:$0xff]
  %v72 = vld [vmem:[%s0 + $0x80] sm:$0xff]
  %v73 = vld [vmem:[%s0 + $0x88] sm:$0xff]
  %v74 = vld [vmem:[%s0 + $0x90] sm:$0xff]
  %v75 = vld [vmem:[%s0 + $0x98] sm:$0xff]
  %v76 = vld [vmem:[%s0 + $0xa0] sm:$0xff]
  %v77 = vld [vmem:[%s0 + $0xa8] sm:$0xff]
  %v78 = vld [vmem:[%s0 + $0xb0] sm:$0xff]
  %v79 = vld [vmem:[%s0 + $0xb8] sm:$0xff]
  %v80 = vld [vmem:[%s0 + $0xc0] sm:$0xff]
  %v106 = vunpack.c.l.b16 %v56
  %v107 = vunpack.c.h.b16 %v56
  %v108 = vunpack.c.l.b16 %v57
  %v109 = vunpack.c.h.b16 %v57
  %v110 = vunpack.c.l.b16 %v58
  %v111 = vunpack.c.h.b16 %v58
  %v112 = vunpack.c.l.b16 %v59
  %v113 = vunpack.c.h.b16 %v59
  %v114 = vunpack.c.l.b16 %v60
  %v115 = vunpack.c.h.b16 %v60
  %v116 = vunpack.c.l.b16 %v61
  %v117 = vunpack.c.h.b16 %v61
  %v118 = vunpack.c.l.b16 %v62
  %v119 = vunpack.c.h.b16 %v62
  %v120 = vunpack.c.l.b16 %v63
  %v121 = vunpack.c.h.b16 %v63
  %v122 = vunpack.c.l.b16 %v64
  %v123 = vunpack.c.h.b16 %v64
  %v124 = vunpack.c.l.b16 %v65
  %v125 = vunpack.c.h.b16 %v65
  %v126 = vunpack.c.l.b16 %v66
  %v127 = vunpack.c.h.b16 %v66
  %v128 = vunpack.c.l.b16 %v67
  %v129 = vunpack.c.h.b16 %v67
  %v130 = vunpack.c.l.b16 %v68
  %v131 = vunpack.c.h.b16 %v68
  %v132 = vunpack.c.l.b16 %v69
  %v133 = vunpack.c.h.b16 %v69
  %v134 = vunpack.c.l.b16 %v70
  %v135 = vunpack.c.h.b16 %v70
  %v136 = vunpack.c.l.b16 %v71
  %v137 = vunpack.c.h.b16 %v71
  %v138 = vunpack.c.l.b16 %v72
  %v139 = vunpack.c.h.b16 %v72
  %v140 = vunpack.c.l.b16 %v73
  %v141 = vunpack.c.h.b16 %v73
  %v142 = vunpack.c.l.b16 %v74
  %v143 = vunpack.c.h.b16 %v74
  %v144 = vunpack.c.l.b16 %v75
  %v145 = vunpack.c.h.b16 %v75
  %v146 = vunpack.c.l.b16 %v76
  %v147 = vunpack.c.h.b16 %v76
  %v148 = vunpack.c.l.b16 %v77
  %v149 = vunpack.c.h.b16 %v77
  %v150 = vunpack.c.l.b16 %v78
  %v151 = vunpack.c.h.b16 %v78
  %v152 = vunpack.c.l.b16 %v79
  %v153 = vunpack.c.h.b16 %v79
  %v154 = vunpack.c.l.b16 %v80
  %v155 = vunpack.c.h.b16 %v80
  %v156 = vpack.c.b16 %v108, %v106
  %v157 = vpack.c.b16 %v109, %v107
  %v158 = vpack.c.b16 %v112, %v110
  %v159 = vpack.c.b16 %v113, %v111
  %v160 = vpack.c.b16 %v116, %v114
  %v161 = vpack.c.b16 %v117, %v115
  %v162 = vpack.c.b16 %v120, %v118
  %v163 = vpack.c.b16 %v121, %v119
  %v164 = vpack.c.b16 %v124, %v122
  %v165 = vpack.c.b16 %v125, %v123
  %v166 = vpack.c.b16 %v128, %v126
  %v167 = vpack.c.b16 %v129, %v127
  %v168 = vpack.c.b16 %v132, %v130
  %v169 = vpack.c.b16 %v133, %v131
  %v170 = vpack.c.b16 %v136, %v134
  %v171 = vpack.c.b16 %v137, %v135
  %v172 = vpack.c.b16 %v140, %v138
  %v173 = vpack.c.b16 %v141, %v139
  %v174 = vpack.c.b16 %v144, %v142
  %v175 = vpack.c.b16 %v145, %v143
  %v176 = vpack.c.b16 %v148, %v146
  %v177 = vpack.c.b16 %v149, %v147
  %v178 = vpack.c.b16 %v152, %v150
  %v179 = vpack.c.b16 %v153, %v151
  %v180 = vpack.c.b16 %v154, %v154
  %v181 = vpack.c.b16 %v155, %v155
  %v240 = vunpack.c.l.b16 %v24
  %v241 = vunpack.c.l.b16 %v25
  %v242 = vunpack.c.l.b16 %v26
  %v243 = vunpack.c.l.b16 %v27
  %v244 = vunpack.c.l.b16 %v28
  %v245 = vunpack.c.l.b16 %v29
  %v246 = vunpack.c.l.b16 %v30
  %v247 = vunpack.c.l.b16 %v31
  %v248 = vunpack.c.l.b16 %v32
  %v249 = vunpack.c.l.b16 %v33
  %v250 = vunpack.c.l.b16 %v34
  %v251 = vunpack.c.l.b16 %v35
  %v252 = vunpack.c.l.b16 %v36
  %v253 = vunpack.c.l.b16 %v37
  %v254 = vunpack.c.l.b16 %v38
  %v255 = vunpack.c.l.b16 %v39
  %v256 = vunpack.c.l.b16 %v40
  %v257 = vunpack.c.l.b16 %v41
  %v258 = vunpack.c.l.b16 %v42
  %v259 = vunpack.c.l.b16 %v43
  %v260 = vunpack.c.l.b16 %v44
  %v261 = vunpack.c.l.b16 %v45
  %v262 = vunpack.c.l.b16 %v46
  %v263 = vunpack.c.l.b16 %v47
  %v264 = vunpack.c.l.b16 %v48
  %v265 = vunpack.c.l.b16 %v49
  %v266 = vunpack.c.l.b16 %v50
  %v267 = vunpack.c.l.b16 %v51
  %v268 = vunpack.c.l.b16 %v52
  %v269 = vunpack.c.l.b16 %v53
  %v270 = vunpack.c.l.b16 %v54
  %v271 = vunpack.c.l.b16 %v55
  %v272 = vpack.c.b16 %v241, %v240
  %v273 = vpack.c.b16 %v243, %v242
  %v274 = vpack.c.b16 %v245, %v244
  %v275 = vpack.c.b16 %v247, %v246
  %v276 = vpack.c.b16 %v249, %v248
  %v277 = vpack.c.b16 %v251, %v250
  %v278 = vpack.c.b16 %v253, %v252
  %v279 = vpack.c.b16 %v255, %v254
  %v280 = vpack.c.b16 %v257, %v256
  %v281 = vpack.c.b16 %v259, %v258
  %v282 = vpack.c.b16 %v261, %v260
  %v283 = vpack.c.b16 %v263, %v262
  %v284 = vpack.c.b16 %v265, %v264
  %v285 = vpack.c.b16 %v267, %v266
  %v286 = vpack.c.b16 %v269, %v268
  %v287 = vpack.c.b16 %v271, %v270
  %304 = vmatprep.subr.bf16.mxu0 0
  %305 = vmatpush1.bf16.msra.mxu0 %v279
  %306 = vmatprep.subr.bf16.mxu0 0
  %307 = vmatpush1.bf16.msra.mxu0 %v278
  %308 = vmatprep.subr.bf16.mxu0 0
  %309 = vmatpush1.bf16.msra.mxu0 %v277
  %310 = vmatprep.subr.bf16.mxu0 0
  %311 = vmatpush1.bf16.msra.mxu0 %v276
  %312 = vmatprep.subr.bf16.mxu0 0
  %313 = vmatpush1.bf16.msra.mxu0 %v275
  %314 = vmatprep.subr.bf16.mxu0 0
  %315 = vmatpush1.bf16.msra.mxu0 %v274
  %316 = vmatprep.subr.bf16.mxu0 0
  %317 = vmatpush1.bf16.msra.mxu0 %v273
  %318 = vmatprep.subr.bf16.mxu0 0
  %319 = vmatpush1.bf16.msra.mxu0 %v272
  %320 = vmatprep.subr.bf16.mxu0 0
  %321 = vmatpush2.bf16.msra.mxu0 %v287
  %322 = vmatprep.subr.bf16.mxu0 0
  %323 = vmatpush2.bf16.msra.mxu0 %v286
  %324 = vmatprep.subr.bf16.mxu0 0
  %325 = vmatpush2.bf16.msra.mxu0 %v285
  %326 = vmatprep.subr.bf16.mxu0 0
  %327 = vmatpush2.bf16.msra.mxu0 %v284
  %328 = vmatprep.subr.bf16.mxu0 0
  %329 = vmatpush2.bf16.msra.mxu0 %v283
  %330 = vmatprep.subr.bf16.mxu0 0
  %331 = vmatpush2.bf16.msra.mxu0 %v282
  %332 = vmatprep.subr.bf16.mxu0 0
  %333 = vmatpush2.bf16.msra.mxu0 %v281
  %334 = vmatprep.subr.bf16.mxu0 0
  %335 = vmatpush2.bf16.msra.mxu0 %v280
  %336 = vmatprep.mubr.bf16.mxu0 %v157
  %337 = vmatmul.mubr.bf16.gmra.mxu0 %v156
  %v338 = vpop.f32.mrf.mxu0
  %v339 = vadd.f32 0.0, %v338
  %v340 = vpop.f32.mrf.mxu0
  %v341 = vpop.f32.mrf.mxu0
  %v342 = vadd.f32 0.0, %v341
  %v343 = vpop.f32.mrf.mxu0
  %344 = vmatprep.mubr.bf16.mxu0 %v159
  %345 = vmatmul.mubr.bf16.gmra.mxu0 %v158
  %v346 = vpop.f32.mrf.mxu0
  %v347 = vadd.f32 0.0, %v346
  %v348 = vpop.f32.mrf.mxu0
  %v349 = vpop.f32.mrf.mxu0
  %v350 = vadd.f32 0.0, %v349
  %v351 = vpop.f32.mrf.mxu0
  %352 = vmatprep.mubr.bf16.mxu0 %v161
  %353 = vmatmul.mubr.bf16.gmra.mxu0 %v160
  %v354 = vpop.f32.mrf.mxu0
  %v355 = vadd.f32 0.0, %v354
  %v356 = vpop.f32.mrf.mxu0
  %v357 = vpop.f32.mrf.mxu0
  %v358 = vadd.f32 0.0, %v357
  %v359 = vpop.f32.mrf.mxu0
  %360 = vmatprep.mubr.bf16.mxu0 %v163
  %361 = vmatmul.mubr.bf16.gmra.mxu0 %v162
  %v362 = vpop.f32.mrf.mxu0
  %v363 = vadd.f32 0.0, %v362
  %v364 = vpop.f32.mrf.mxu0
  %v365 = vpop.f32.mrf.mxu0
  %v366 = vadd.f32 0.0, %v365
  %v367 = vpop.f32.mrf.mxu0
  %368 = vmatprep.mubr.bf16.mxu0 %v165
  %369 = vmatmul.mubr.bf16.gmra.mxu0 %v164
  %v370 = vpop.f32.mrf.mxu0
  %v371 = vadd.f32 0.0, %v370
  %v372 = vpop.f32.mrf.mxu0
  %v373 = vpop.f32.mrf.mxu0
  %v374 = vadd.f32 0.0, %v373
  %v375 = vpop.f32.mrf.mxu0
  %376 = vmatprep.mubr.bf16.mxu0 %v167
  %377 = vmatmul.mubr.bf16.gmra.mxu0 %v166
  %v378 = vpop.f32.mrf.mxu0
  %v379 = vadd.f32 0.0, %v378
  %v380 = vpop.f32.mrf.mxu0
  %v381 = vpop.f32.mrf.mxu0
  %v382 = vadd.f32 0.0, %v381
  %v383 = vpop.f32.mrf.mxu0
  %384 = vmatprep.mubr.bf16.mxu0 %v169
  %385 = vmatmul.mubr.bf16.gmra.mxu0 %v168
  %v386 = vpop.f32.mrf.mxu0
  %v387 = vadd.f32 0.0, %v386
  %v388 = vpop.f32.mrf.mxu0
  %v389 = vpop.f32.mrf.mxu0
  %v390 = vadd.f32 0.0, %v389
  %v391 = vpop.f32.mrf.mxu0
  %392 = vmatprep.mubr.bf16.mxu0 %v171
  %393 = vmatmul.mubr.bf16.gmra.mxu0 %v170
  %v394 = vpop.f32.mrf.mxu0
  %v395 = vadd.f32 0.0, %v394
  %v396 = vpop.f32.mrf.mxu0
  %v397 = vpop.f32.mrf.mxu0
  %v398 = vadd.f32 0.0, %v397
  %v399 = vpop.f32.mrf.mxu0
  %400 = vmatprep.mubr.bf16.mxu0 %v173
  %401 = vmatmul.mubr.bf16.gmra.mxu0 %v172
  %v402 = vpop.f32.mrf.mxu0
  %v403 = vadd.f32 0.0, %v402
  %v404 = vpop.f32.mrf.mxu0
  %v405 = vpop.f32.mrf.mxu0
  %v406 = vadd.f32 0.0, %v405
  %v407 = vpop.f32.mrf.mxu0
  %408 = vmatprep.mubr.bf16.mxu0 %v175
  %409 = vmatmul.mubr.bf16.gmra.mxu0 %v174
  %v410 = vpop.f32.mrf.mxu0
  %v411 = vadd.f32 0.0, %v410
  %v412 = vpop.f32.mrf.mxu0
  %v413 = vpop.f32.mrf.mxu0
  %v414 = vadd.f32 0.0, %v413
  %v415 = vpop.f32.mrf.mxu0
  %416 = vmatprep.mubr.bf16.mxu0 %v177
  %417 = vmatmul.mubr.bf16.gmra.mxu0 %v176
  %v418 = vpop.f32.mrf.mxu0
  %v419 = vadd.f32 0.0, %v418
  %v420 = vpop.f32.mrf.mxu0
  %v421 = vpop.f32.mrf.mxu0
  %v422 = vadd.f32 0.0, %v421
  %v423 = vpop.f32.mrf.mxu0
  %424 = vmatprep.mubr.bf16.mxu0 %v179
  %425 = vmatmul.mubr.bf16.gmra.mxu0 %v178
  %v426 = vpop.f32.mrf.mxu0
  %v427 = vadd.f32 0.0, %v426
  %v428 = vpop.f32.mrf.mxu0
  %v429 = vpop.f32.mrf.mxu0
  %v430 = vadd.f32 0.0, %v429
  %v431 = vpop.f32.mrf.mxu0
  %432 = vmatprep.mubr.bf16.mxu0 %v181
  %433 = vmatmul.mubr.bf16.gmra.mxu0 %v180
  %v434 = vpop.f32.mrf.mxu0
  %v435 = vadd.f32 0.0, %v434
  %v436 = vpop.f32.mrf.mxu0
  %v437 = vpop.f32.mrf.mxu0
  %v438 = vpop.f32.mrf.mxu0
  %439 = vdwg.mxu0
  %v440 = vmul.f32 %v339, 0.5
  %v441 = vmul.f32 %v342, 0.5
  %v442 = vmul.f32 %v347, 0.5
  %v443 = vmul.f32 %v350, 0.5
  %v444 = vmul.f32 %v355, 0.5
  %v445 = vmul.f32 %v358, 0.5
  %v446 = vmul.f32 %v363, 0.5
  %v447 = vmul.f32 %v366, 0.5
  %v448 = vmul.f32 %v371, 0.5
  %v449 = vmul.f32 %v374, 0.5
  %v450 = vmul.f32 %v379, 0.5
  %v451 = vmul.f32 %v382, 0.5
  %v452 = vmul.f32 %v387, 0.5
  %v453 = vmul.f32 %v390, 0.5
  %v454 = vmul.f32 %v395, 0.5
  %v455 = vmul.f32 %v398, 0.5
  %v456 = vmul.f32 %v403, 0.5
  %v457 = vmul.f32 %v406, 0.5
  %v458 = vmul.f32 %v411, 0.5
  %v459 = vmul.f32 %v414, 0.5
  %v460 = vmul.f32 %v419, 0.5
  %v461 = vmul.f32 %v422, 0.5
  %v462 = vmul.f32 %v427, 0.5
  %v463 = vmul.f32 %v430, 0.5
  %v464 = vmul.f32 %v435, 0.5
  %v465 = vtanh.pop %v440
  %v466 = vtanh.pop %v441
  %v467 = vtanh.pop %v442
  %v468 = vtanh.pop %v443
  %v469 = vtanh.pop %v444
  %v470 = vtanh.pop %v445
  %v471 = vtanh.pop %v446
  %v472 = vtanh.pop %v447
  %v473 = vtanh.pop %v448
  %v474 = vtanh.pop %v449
  %v475 = vtanh.pop %v450
  %v476 = vtanh.pop %v451
  %v477 = vtanh.pop %v452
  %v478 = vtanh.pop %v453
  %v479 = vtanh.pop %v454
  %v480 = vtanh.pop %v455
  %v481 = vtanh.pop %v456
  %v482 = vtanh.pop %v457
  %v483 = vtanh.pop %v458
  %v484 = vtanh.pop %v459
  %v485 = vtanh.pop %v460
  %v486 = vtanh.pop %v461
  %v487 = vtanh.pop %v462
  %v488 = vtanh.pop %v463
  %v489 = vtanh.pop %v464
  %v490 = vadd.f32 %v465, 0.0
  %v491 = vadd.f32 %v466, 0.0
  %v492 = vadd.f32 %v467, 0.0
  %v493 = vadd.f32 %v468, 0.0
  %v494 = vadd.f32 %v469, 0.0
  %v495 = vadd.f32 %v470, 0.0
  %v496 = vadd.f32 %v471, 0.0
  %v497 = vadd.f32 %v472, 0.0
  %v498 = vadd.f32 %v473, 0.0
  %v499 = vadd.f32 %v474, 0.0
  %v500 = vadd.f32 %v475, 0.0
  %v501 = vadd.f32 %v476, 0.0
  %v502 = vadd.f32 %v477, 0.0
  %v503 = vadd.f32 %v478, 0.0
  %v504 = vadd.f32 %v479, 0.0
  %v505 = vadd.f32 %v480, 0.0
  %v506 = vadd.f32 %v481, 0.0
  %v507 = vadd.f32 %v482, 0.0
  %v508 = vadd.f32 %v483, 0.0
  %v509 = vadd.f32 %v484, 0.0
  %v510 = vadd.f32 %v485, 0.0
  %v511 = vadd.f32 %v486, 0.0
  %v512 = vadd.f32 %v487, 0.0
  %v513 = vadd.f32 %v488, 0.0
  %v514 = vadd.f32 %v489, 0.0
  %s515 = scalar_lea.vmem %s0, 200
  %v516 = vld [vmem:[%s515] sm:$0xff]
  %v517 = vld [vmem:[%s515 + $0x8] sm:$0xff]
  %v518 = vld [vmem:[%s515 + $0x10] sm:$0xff]
  %v519 = vld [vmem:[%s515 + $0x18] sm:$0xff]
  %v520 = vld [vmem:[%s515 + $0x20] sm:$0xff]
  %v521 = vld [vmem:[%s515 + $0x28] sm:$0xff]
  %v522 = vld [vmem:[%s515 + $0x30] sm:$0xff]
  %v523 = vld [vmem:[%s515 + $0x38] sm:$0xff]
  %v524 = vld [vmem:[%s515 + $0x40] sm:$0xff]
  %v525 = vld [vmem:[%s515 + $0x48] sm:$0xff]
  %v526 = vld [vmem:[%s515 + $0x50] sm:$0xff]
  %v527 = vld [vmem:[%s515 + $0x58] sm:$0xff]
  %v528 = vld [vmem:[%s515 + $0x60] sm:$0xff]
  %v529 = vld [vmem:[%s515 + $0x68] sm:$0xff]
  %v530 = vld [vmem:[%s515 + $0x70] sm:$0xff]
  %v531 = vld [vmem:[%s515 + $0x78] sm:$0xff]
  %v532 = vld [vmem:[%s515 + $0x80] sm:$0xff]
  %v533 = vld [vmem:[%s515 + $0x88] sm:$0xff]
  %v534 = vld [vmem:[%s515 + $0x90] sm:$0xff]
  %v535 = vld [vmem:[%s515 + $0x98] sm:$0xff]
  %v536 = vld [vmem:[%s515 + $0xa0] sm:$0xff]
  %v537 = vld [vmem:[%s515 + $0xa8] sm:$0xff]
  %v538 = vld [vmem:[%s515 + $0xb0] sm:$0xff]
  %v539 = vld [vmem:[%s515 + $0xb8] sm:$0xff]
  %v540 = vld [vmem:[%s515 + $0xc0] sm:$0xff]
  %v566 = vunpack.c.l.b16 %v516
  %v567 = vunpack.c.h.b16 %v516
  %v568 = vunpack.c.l.b16 %v517
  %v569 = vunpack.c.h.b16 %v517
  %v570 = vunpack.c.l.b16 %v518
  %v571 = vunpack.c.h.b16 %v518
  %v572 = vunpack.c.l.b16 %v519
  %v573 = vunpack.c.h.b16 %v519
  %v574 = vunpack.c.l.b16 %v520
  %v575 = vunpack.c.h.b16 %v520
  %v576 = vunpack.c.l.b16 %v521
  %v577 = vunpack.c.h.b16 %v521
  %v578 = vunpack.c.l.b16 %v522
  %v579 = vunpack.c.h.b16 %v522
  %v580 = vunpack.c.l.b16 %v523
  %v581 = vunpack.c.h.b16 %v523
  %v582 = vunpack.c.l.b16 %v524
  %v583 = vunpack.c.h.b16 %v524
  %v584 = vunpack.c.l.b16 %v525
  %v585 = vunpack.c.h.b16 %v525
  %v586 = vunpack.c.l.b16 %v526
  %v587 = vunpack.c.h.b16 %v526
  %v588 = vunpack.c.l.b16 %v527
  %v589 = vunpack.c.h.b16 %v527
  %v590 = vunpack.c.l.b16 %v528
  %v591 = vunpack.c.h.b16 %v528
  %v592 = vunpack.c.l.b16 %v529
  %v593 = vunpack.c.h.b16 %v529
  %v594 = vunpack.c.l.b16 %v530
  %v595 = vunpack.c.h.b16 %v530
  %v596 = vunpack.c.l.b16 %v531
  %v597 = vunpack.c.h.b16 %v531
  %v598 = vunpack.c.l.b16 %v532
  %v599 = vunpack.c.h.b16 %v532
  %v600 = vunpack.c.l.b16 %v533
  %v601 = vunpack.c.h.b16 %v533
  %v602 = vunpack.c.l.b16 %v534
  %v603 = vunpack.c.h.b16 %v534
  %v604 = vunpack.c.l.b16 %v535
  %v605 = vunpack.c.h.b16 %v535
  %v606 = vunpack.c.l.b16 %v536
  %v607 = vunpack.c.h.b16 %v536
  %v608 = vunpack.c.l.b16 %v537
  %v609 = vunpack.c.h.b16 %v537
  %v610 = vunpack.c.l.b16 %v538
  %v611 = vunpack.c.h.b16 %v538
  %v612 = vunpack.c.l.b16 %v539
  %v613 = vunpack.c.h.b16 %v539
  %v614 = vunpack.c.l.b16 %v540
  %v615 = vunpack.c.h.b16 %v540
  %v616 = vpack.c.b16 %v568, %v566
  %v617 = vpack.c.b16 %v569, %v567
  %v618 = vpack.c.b16 %v572, %v570
  %v619 = vpack.c.b16 %v573, %v571
  %v620 = vpack.c.b16 %v576, %v574
  %v621 = vpack.c.b16 %v577, %v575
  %v622 = vpack.c.b16 %v580, %v578
  %v623 = vpack.c.b16 %v581, %v579
  %v624 = vpack.c.b16 %v584, %v582
  %v625 = vpack.c.b16 %v585, %v583
  %v626 = vpack.c.b16 %v588, %v586
  %v627 = vpack.c.b16 %v589, %v587
  %v628 = vpack.c.b16 %v592, %v590
  %v629 = vpack.c.b16 %v593, %v591
  %v630 = vpack.c.b16 %v596, %v594
  %v631 = vpack.c.b16 %v597, %v595
  %v632 = vpack.c.b16 %v600, %v598
  %v633 = vpack.c.b16 %v601, %v599
  %v634 = vpack.c.b16 %v604, %v602
  %v635 = vpack.c.b16 %v605, %v603
  %v636 = vpack.c.b16 %v608, %v606
  %v637 = vpack.c.b16 %v609, %v607
  %v638 = vpack.c.b16 %v612, %v610
  %v639 = vpack.c.b16 %v613, %v611
  %v640 = vpack.c.b16 %v614, %v614
  %v641 = vpack.c.b16 %v615, %v615
  %668 = vmatprep.subr.bf16.mxu0 0
  %669 = vmatpush1.bf16.msra.mxu0 %v279
  %670 = vmatprep.subr.bf16.mxu0 0
  %671 = vmatpush1.bf16.msra.mxu0 %v278
  %672 = vmatprep.subr.bf16.mxu0 0
  %673 = vmatpush1.bf16.msra.mxu0 %v277
  %674 = vmatprep.subr.bf16.mxu0 0
  %675 = vmatpush1.bf16.msra.mxu0 %v276
  %676 = vmatprep.subr.bf16.mxu0 0
  %677 = vmatpush1.bf16.msra.mxu0 %v275
  %678 = vmatprep.subr.bf16.mxu0 0
  %679 = vmatpush1.bf16.msra.mxu0 %v274
  %680 = vmatprep.subr.bf16.mxu0 0
  %681 = vmatpush1.bf16.msra.mxu0 %v273
  %682 = vmatprep.subr.bf16.mxu0 0
  %683 = vmatpush1.bf16.msra.mxu0 %v272
  %684 = vmatprep.subr.bf16.mxu0 0
  %685 = vmatpush2.bf16.msra.mxu0 %v287
  %686 = vmatprep.subr.bf16.mxu0 0
  %687 = vmatpush2.bf16.msra.mxu0 %v286
  %688 = vmatprep.subr.bf16.mxu0 0
  %689 = vmatpush2.bf16.msra.mxu0 %v285
  %690 = vmatprep.subr.bf16.mxu0 0
  %691 = vmatpush2.bf16.msra.mxu0 %v284
  %692 = vmatprep.subr.bf16.mxu0 0
  %693 = vmatpush2.bf16.msra.mxu0 %v283
  %694 = vmatprep.subr.bf16.mxu0 0
  %695 = vmatpush2.bf16.msra.mxu0 %v282
  %696 = vmatprep.subr.bf16.mxu0 0
  %697 = vmatpush2.bf16.msra.mxu0 %v281
  %698 = vmatprep.subr.bf16.mxu0 0
  %699 = vmatpush2.bf16.msra.mxu0 %v280
  %700 = vmatprep.mubr.bf16.mxu0 %v617
  %701 = vmatmul.mubr.bf16.gmra.mxu0 %v616
  %v702 = vpop.f32.mrf.mxu0
  %v703 = vadd.f32 0.0, %v702
  %v704 = vpop.f32.mrf.mxu0
  %v705 = vpop.f32.mrf.mxu0
  %v706 = vadd.f32 0.0, %v705
  %v707 = vpop.f32.mrf.mxu0
  %708 = vmatprep.mubr.bf16.mxu0 %v619
  %709 = vmatmul.mubr.bf16.gmra.mxu0 %v618
  %v710 = vpop.f32.mrf.mxu0
  %v711 = vadd.f32 0.0, %v710
  %v712 = vpop.f32.mrf.mxu0
  %v713 = vpop.f32.mrf.mxu0
  %v714 = vadd.f32 0.0, %v713
  %v715 = vpop.f32.mrf.mxu0
  %716 = vmatprep.mubr.bf16.mxu0 %v621
  %717 = vmatmul.mubr.bf16.gmra.mxu0 %v620
  %v718 = vpop.f32.mrf.mxu0
  %v719 = vadd.f32 0.0, %v718
  %v720 = vpop.f32.mrf.mxu0
  %v721 = vpop.f32.mrf.mxu0
  %v722 = vadd.f32 0.0, %v721
  %v723 = vpop.f32.mrf.mxu0
  %724 = vmatprep.mubr.bf16.mxu0 %v623
  %725 = vmatmul.mubr.bf16.gmra.mxu0 %v622
  %v726 = vpop.f32.mrf.mxu0
  %v727 = vadd.f32 0.0, %v726
  %v728 = vpop.f32.mrf.mxu0
  %v729 = vpop.f32.mrf.mxu0
  %v730 = vadd.f32 0.0, %v729
  %v731 = vpop.f32.mrf.mxu0
  %732 = vmatprep.mubr.bf16.mxu0 %v625
  %733 = vmatmul.mubr.bf16.gmra.mxu0 %v624
  %v734 = vpop.f32.mrf.mxu0
  %v735 = vadd.f32 0.0, %v734
  %v736 = vpop.f32.mrf.mxu0
  %v737 = vpop.f32.mrf.mxu0
  %v738 = vadd.f32 0.0, %v737
  %v739 = vpop.f32.mrf.mxu0
  %740 = vmatprep.mubr.bf16.mxu0 %v627
  %741 = vmatmul.mubr.bf16.gmra.mxu0 %v626
  %v742 = vpop.f32.mrf.mxu0
  %v743 = vadd.f32 0.0, %v742
  %v744 = vpop.f32.mrf.mxu0
  %v745 = vpop.f32.mrf.mxu0
  %v746 = vadd.f32 0.0, %v745
  %v747 = vpop.f32.mrf.mxu0
  %748 = vmatprep.mubr.bf16.mxu0 %v629
  %749 = vmatmul.mubr.bf16.gmra.mxu0 %v628
  %v750 = vpop.f32.mrf.mxu0
  %v751 = vadd.f32 0.0, %v750
  %v752 = vpop.f32.mrf.mxu0
  %v753 = vpop.f32.mrf.mxu0
  %v754 = vadd.f32 0.0, %v753
  %v755 = vpop.f32.mrf.mxu0
  %756 = vmatprep.mubr.bf16.mxu0 %v631
  %757 = vmatmul.mubr.bf16.gmra.mxu0 %v630
  %v758 = vpop.f32.mrf.mxu0
  %v759 = vadd.f32 0.0, %v758
  %v760 = vpop.f32.mrf.mxu0
  %v761 = vpop.f32.mrf.mxu0
  %v762 = vadd.f32 0.0, %v761
  %v763 = vpop.f32.mrf.mxu0
  %764 = vmatprep.mubr.bf16.mxu0 %v633
  %765 = vmatmul.mubr.bf16.gmra.mxu0 %v632
  %v766 = vpop.f32.mrf.mxu0
  %v767 = vadd.f32 0.0, %v766
  %v768 = vpop.f32.mrf.mxu0
  %v769 = vpop.f32.mrf.mxu0
  %v770 = vadd.f32 0.0, %v769
  %v771 = vpop.f32.mrf.mxu0
  %772 = vmatprep.mubr.bf16.mxu0 %v635
  %773 = vmatmul.mubr.bf16.gmra.mxu0 %v634
  %v774 = vpop.f32.mrf.mxu0
  %v775 = vadd.f32 0.0, %v774
  %v776 = vpop.f32.mrf.mxu0
  %v777 = vpop.f32.mrf.mxu0
  %v778 = vadd.f32 0.0, %v777
  %v779 = vpop.f32.mrf.mxu0
  %780 = vmatprep.mubr.bf16.mxu0 %v637
  %781 = vmatmul.mubr.bf16.gmra.mxu0 %v636
  %v782 = vpop.f32.mrf.mxu0
  %v783 = vadd.f32 0.0, %v782
  %v784 = vpop.f32.mrf.mxu0
  %v785 = vpop.f32.mrf.mxu0
  %v786 = vadd.f32 0.0, %v785
  %v787 = vpop.f32.mrf.mxu0
  %788 = vmatprep.mubr.bf16.mxu0 %v639
  %789 = vmatmul.mubr.bf16.gmra.mxu0 %v638
  %v790 = vpop.f32.mrf.mxu0
  %v791 = vadd.f32 0.0, %v790
  %v792 = vpop.f32.mrf.mxu0
  %v793 = vpop.f32.mrf.mxu0
  %v794 = vadd.f32 0.0, %v793
  %v795 = vpop.f32.mrf.mxu0
  %796 = vmatprep.mubr.bf16.mxu0 %v641
  %797 = vmatmul.mubr.bf16.gmra.mxu0 %v640
  %v798 = vpop.f32.mrf.mxu0
  %v799 = vadd.f32 0.0, %v798
  %v800 = vpop.f32.mrf.mxu0
  %v801 = vpop.f32.mrf.mxu0
  %v802 = vpop.f32.mrf.mxu0
  %803 = vdwg.mxu0
  %v804 = vmul.f32 %v703, 0.5
  %v805 = vmul.f32 %v706, 0.5
  %v806 = vmul.f32 %v711, 0.5
  %v807 = vmul.f32 %v714, 0.5
  %v808 = vmul.f32 %v719, 0.5
  %v809 = vmul.f32 %v722, 0.5
  %v810 = vmul.f32 %v727, 0.5
  %v811 = vmul.f32 %v730, 0.5
  %v812 = vmul.f32 %v735, 0.5
  %v813 = vmul.f32 %v738, 0.5
  %v814 = vmul.f32 %v743, 0.5
  %v815 = vmul.f32 %v746, 0.5
  %v816 = vmul.f32 %v751, 0.5
  %v817 = vmul.f32 %v754, 0.5
  %v818 = vmul.f32 %v759, 0.5
  %v819 = vmul.f32 %v762, 0.5
  %v820 = vmul.f32 %v767, 0.5
  %v821 = vmul.f32 %v770, 0.5
  %v822 = vmul.f32 %v775, 0.5
  %v823 = vmul.f32 %v778, 0.5
  %v824 = vmul.f32 %v783, 0.5
  %v825 = vmul.f32 %v786, 0.5
  %v826 = vmul.f32 %v791, 0.5
  %v827 = vmul.f32 %v794, 0.5
  %v828 = vmul.f32 %v799, 0.5
  %v829 = vtanh.pop %v804
  %v830 = vtanh.pop %v805
  %v831 = vtanh.pop %v806
  %v832 = vtanh.pop %v807
  %v833 = vtanh.pop %v808
  %v834 = vtanh.pop %v809
  %v835 = vtanh.pop %v810
  %v836 = vtanh.pop %v811
  %v837 = vtanh.pop %v812
  %v838 = vtanh.pop %v813
  %v839 = vtanh.pop %v814
  %v840 = vtanh.pop %v815
  %v841 = vtanh.pop %v816
  %v842 = vtanh.pop %v817
  %v843 = vtanh.pop %v818
  %v844 = vtanh.pop %v819
  %v845 = vtanh.pop %v820
  %v846 = vtanh.pop %v821
  %v847 = vtanh.pop %v822
  %v848 = vtanh.pop %v823
  %v849 = vtanh.pop %v824
  %v850 = vtanh.pop %v825
  %v851 = vtanh.pop %v826
  %v852 = vtanh.pop %v827
  %v853 = vtanh.pop %v828
  %v854 = vadd.f32 %v490, %v829
  %v855 = vadd.f32 %v491, %v830
  %v856 = vadd.f32 %v492, %v831
  %v857 = vadd.f32 %v493, %v832
  %v858 = vadd.f32 %v494, %v833
  %v859 = vadd.f32 %v495, %v834
  %v860 = vadd.f32 %v496, %v835
  %v861 = vadd.f32 %v497, %v836
  %v862 = vadd.f32 %v498, %v837
  %v863 = vadd.f32 %v499, %v838
  %v864 = vadd.f32 %v500, %v839
  %v865 = vadd.f32 %v501, %v840
  %v866 = vadd.f32 %v502, %v841
  %v867 = vadd.f32 %v503, %v842
  %v868 = vadd.f32 %v504, %v843
  %v869 = vadd.f32 %v505, %v844
  %v870 = vadd.f32 %v506, %v845
  %v871 = vadd.f32 %v507, %v846
  %v872 = vadd.f32 %v508, %v847
  %v873 = vadd.f32 %v509, %v848
  %v874 = vadd.f32 %v510, %v849
  %v875 = vadd.f32 %v511, %v850
  %v876 = vadd.f32 %v512, %v851
  %v877 = vadd.f32 %v513, %v852
  %v878 = vadd.f32 %v514, %v853
  %s879 = scalar_lea.vmem %s0, 400
  %v880 = vld [vmem:[%s879] sm:$0xff]
  %v881 = vld [vmem:[%s879 + $0x8] sm:$0xff]
  %v882 = vld [vmem:[%s879 + $0x10] sm:$0xff]
  %v883 = vld [vmem:[%s879 + $0x18] sm:$0xff]
  %v884 = vld [vmem:[%s879 + $0x20] sm:$0xff]
  %v885 = vld [vmem:[%s879 + $0x28] sm:$0xff]
  %v886 = vld [vmem:[%s879 + $0x30] sm:$0xff]
  %v887 = vld [vmem:[%s879 + $0x38] sm:$0xff]
  %v888 = vld [vmem:[%s879 + $0x40] sm:$0xff]
  %v889 = vld [vmem:[%s879 + $0x48] sm:$0xff]
  %v890 = vld [vmem:[%s879 + $0x50] sm:$0xff]
  %v891 = vld [vmem:[%s879 + $0x58] sm:$0xff]
  %v892 = vld [vmem:[%s879 + $0x60] sm:$0xff]
  %v893 = vld [vmem:[%s879 + $0x68] sm:$0xff]
  %v894 = vld [vmem:[%s879 + $0x70] sm:$0xff]
  %v895 = vld [vmem:[%s879 + $0x78] sm:$0xff]
  %v896 = vld [vmem:[%s879 + $0x80] sm:$0xff]
  %v897 = vld [vmem:[%s879 + $0x88] sm:$0xff]
  %v898 = vld [vmem:[%s879 + $0x90] sm:$0xff]
  %v899 = vld [vmem:[%s879 + $0x98] sm:$0xff]
  %v900 = vld [vmem:[%s879 + $0xa0] sm:$0xff]
  %v901 = vld [vmem:[%s879 + $0xa8] sm:$0xff]
  %v902 = vld [vmem:[%s879 + $0xb0] sm:$0xff]
  %v903 = vld [vmem:[%s879 + $0xb8] sm:$0xff]
  %v904 = vld [vmem:[%s879 + $0xc0] sm:$0xff]
  %v930 = vunpack.c.l.b16 %v880
  %v931 = vunpack.c.h.b16 %v880
  %v932 = vunpack.c.l.b16 %v881
  %v933 = vunpack.c.h.b16 %v881
  %v934 = vunpack.c.l.b16 %v882
  %v935 = vunpack.c.h.b16 %v882
  %v936 = vunpack.c.l.b16 %v883
  %v937 = vunpack.c.h.b16 %v883
  %v938 = vunpack.c.l.b16 %v884
  %v939 = vunpack.c.h.b16 %v884
  %v940 = vunpack.c.l.b16 %v885
  %v941 = vunpack.c.h.b16 %v885
  %v942 = vunpack.c.l.b16 %v886
  %v943 = vunpack.c.h.b16 %v886
  %v944 = vunpack.c.l.b16 %v887
  %v945 = vunpack.c.h.b16 %v887
  %v946 = vunpack.c.l.b16 %v888
  %v947 = vunpack.c.h.b16 %v888
  %v948 = vunpack.c.l.b16 %v889
  %v949 = vunpack.c.h.b16 %v889
  %v950 = vunpack.c.l.b16 %v890
  %v951 = vunpack.c.h.b16 %v890
  %v952 = vunpack.c.l.b16 %v891
  %v953 = vunpack.c.h.b16 %v891
  %v954 = vunpack.c.l.b16 %v892
  %v955 = vunpack.c.h.b16 %v892
  %v956 = vunpack.c.l.b16 %v893
  %v957 = vunpack.c.h.b16 %v893
  %v958 = vunpack.c.l.b16 %v894
  %v959 = vunpack.c.h.b16 %v894
  %v960 = vunpack.c.l.b16 %v895
  %v961 = vunpack.c.h.b16 %v895
  %v962 = vunpack.c.l.b16 %v896
  %v963 = vunpack.c.h.b16 %v896
  %v964 = vunpack.c.l.b16 %v897
  %v965 = vunpack.c.h.b16 %v897
  %v966 = vunpack.c.l.b16 %v898
  %v967 = vunpack.c.h.b16 %v898
  %v968 = vunpack.c.l.b16 %v899
  %v969 = vunpack.c.h.b16 %v899
  %v970 = vunpack.c.l.b16 %v900
  %v971 = vunpack.c.h.b16 %v900
  %v972 = vunpack.c.l.b16 %v901
  %v973 = vunpack.c.h.b16 %v901
  %v974 = vunpack.c.l.b16 %v902
  %v975 = vunpack.c.h.b16 %v902
  %v976 = vunpack.c.l.b16 %v903
  %v977 = vunpack.c.h.b16 %v903
  %v978 = vunpack.c.l.b16 %v904
  %v979 = vunpack.c.h.b16 %v904
  %v980 = vpack.c.b16 %v932, %v930
  %v981 = vpack.c.b16 %v933, %v931
  %v982 = vpack.c.b16 %v936, %v934
  %v983 = vpack.c.b16 %v937, %v935
  %v984 = vpack.c.b16 %v940, %v938
  %v985 = vpack.c.b16 %v941, %v939
  %v986 = vpack.c.b16 %v944, %v942
  %v987 = vpack.c.b16 %v945, %v943
  %v988 = vpack.c.b16 %v948, %v946
  %v989 = vpack.c.b16 %v949, %v947
  %v990 = vpack.c.b16 %v952, %v950
  %v991 = vpack.c.b16 %v953, %v951
  %v992 = vpack.c.b16 %v956, %v954
  %v993 = vpack.c.b16 %v957, %v955
  %v994 = vpack.c.b16 %v960, %v958
  %v995 = vpack.c.b16 %v961, %v959
  %v996 = vpack.c.b16 %v964, %v962
  %v997 = vpack.c.b16 %v965, %v963
  %v998 = vpack.c.b16 %v968, %v966
  %v999 = vpack.c.b16 %v969, %v967
  %v1000 = vpack.c.b16 %v972, %v970
  %v1001 = vpack.c.b16 %v973, %v971
  %v1002 = vpack.c.b16 %v976, %v974
  %v1003 = vpack.c.b16 %v977, %v975
  %v1004 = vpack.c.b16 %v978, %v978
  %v1005 = vpack.c.b16 %v979, %v979
  %1032 = vmatprep.subr.bf16.mxu0 0
  %1033 = vmatpush1.bf16.msra.mxu0 %v279
  %1034 = vmatprep.subr.bf16.mxu0 0
  %1035 = vmatpush1.bf16.msra.mxu0 %v278
  %1036 = vmatprep.subr.bf16.mxu0 0
  %1037 = vmatpush1.bf16.msra.mxu0 %v277
  %1038 = vmatprep.subr.bf16.mxu0 0
  %1039 = vmatpush1.bf16.msra.mxu0 %v276
  %1040 = vmatprep.subr.bf16.mxu0 0
  %1041 = vmatpush1.bf16.msra.mxu0 %v275
  %1042 = vmatprep.subr.bf16.mxu0 0
  %1043 = vmatpush1.bf16.msra.mxu0 %v274
  %1044 = vmatprep.subr.bf16.mxu0 0
  %1045 = vmatpush1.bf16.msra.mxu0 %v273
  %1046 = vmatprep.subr.bf16.mxu0 0
  %1047 = vmatpush1.bf16.msra.mxu0 %v272
  %1048 = vmatprep.subr.bf16.mxu0 0
  %1049 = vmatpush2.bf16.msra.mxu0 %v287
  %1050 = vmatprep.subr.bf16.mxu0 0
  %1051 = vmatpush2.bf16.msra.mxu0 %v286
  %1052 = vmatprep.subr.bf16.mxu0 0
  %1053 = vmatpush2.bf16.msra.mxu0 %v285
  %1054 = vmatprep.subr.bf16.mxu0 0
  %1055 = vmatpush2.bf16.msra.mxu0 %v284
  %1056 = vmatprep.subr.bf16.mxu0 0
  %1057 = vmatpush2.bf16.msra.mxu0 %v283
  %1058 = vmatprep.subr.bf16.mxu0 0
  %1059 = vmatpush2.bf16.msra.mxu0 %v282
  %1060 = vmatprep.subr.bf16.mxu0 0
  %1061 = vmatpush2.bf16.msra.mxu0 %v281
  %1062 = vmatprep.subr.bf16.mxu0 0
  %1063 = vmatpush2.bf16.msra.mxu0 %v280
  %1064 = vmatprep.mubr.bf16.mxu0 %v981
  %1065 = vmatmul.mubr.bf16.gmra.mxu0 %v980
  %v1066 = vpop.f32.mrf.mxu0
  %v1067 = vadd.f32 0.0, %v1066
  %v1068 = vpop.f32.mrf.mxu0
  %v1069 = vpop.f32.mrf.mxu0
  %v1070 = vadd.f32 0.0, %v1069
  %v1071 = vpop.f32.mrf.mxu0
  %1072 = vmatprep.mubr.bf16.mxu0 %v983
  %1073 = vmatmul.mubr.bf16.gmra.mxu0 %v982
  %v1074 = vpop.f32.mrf.mxu0
  %v1075 = vadd.f32 0.0, %v1074
  %v1076 = vpop.f32.mrf.mxu0
  %v1077 = vpop.f32.mrf.mxu0
  %v1078 = vadd.f32 0.0, %v1077
  %v1079 = vpop.f32.mrf.mxu0
  %1080 = vmatprep.mubr.bf16.mxu0 %v985
  %1081 = vmatmul.mubr.bf16.gmra.mxu0 %v984
  %v1082 = vpop.f32.mrf.mxu0
  %v1083 = vadd.f32 0.0, %v1082
  %v1084 = vpop.f32.mrf.mxu0
  %v1085 = vpop.f32.mrf.mxu0
  %v1086 = vadd.f32 0.0, %v1085
  %v1087 = vpop.f32.mrf.mxu0
  %1088 = vmatprep.mubr.bf16.mxu0 %v987
  %1089 = vmatmul.mubr.bf16.gmra.mxu0 %v986
  %v1090 = vpop.f32.mrf.mxu0
  %v1091 = vadd.f32 0.0, %v1090
  %v1092 = vpop.f32.mrf.mxu0
  %v1093 = vpop.f32.mrf.mxu0
  %v1094 = vadd.f32 0.0, %v1093
  %v1095 = vpop.f32.mrf.mxu0
  %1096 = vmatprep.mubr.bf16.mxu0 %v989
  %1097 = vmatmul.mubr.bf16.gmra.mxu0 %v988
  %v1098 = vpop.f32.mrf.mxu0
  %v1099 = vadd.f32 0.0, %v1098
  %v1100 = vpop.f32.mrf.mxu0
  %v1101 = vpop.f32.mrf.mxu0
  %v1102 = vadd.f32 0.0, %v1101
  %v1103 = vpop.f32.mrf.mxu0
  %1104 = vmatprep.mubr.bf16.mxu0 %v991
  %1105 = vmatmul.mubr.bf16.gmra.mxu0 %v990
  %v1106 = vpop.f32.mrf.mxu0
  %v1107 = vadd.f32 0.0, %v1106
  %v1108 = vpop.f32.mrf.mxu0
  %v1109 = vpop.f32.mrf.mxu0
  %v1110 = vadd.f32 0.0, %v1109
  %v1111 = vpop.f32.mrf.mxu0
  %1112 = vmatprep.mubr.bf16.mxu0 %v993
  %1113 = vmatmul.mubr.bf16.gmra.mxu0 %v992
  %v1114 = vpop.f32.mrf.mxu0
  %v1115 = vadd.f32 0.0, %v1114
  %v1116 = vpop.f32.mrf.mxu0
  %v1117 = vpop.f32.mrf.mxu0
  %v1118 = vadd.f32 0.0, %v1117
  %v1119 = vpop.f32.mrf.mxu0
  %1120 = vmatprep.mubr.bf16.mxu0 %v995
  %1121 = vmatmul.mubr.bf16.gmra.mxu0 %v994
  %v1122 = vpop.f32.mrf.mxu0
  %v1123 = vadd.f32 0.0, %v1122
  %v1124 = vpop.f32.mrf.mxu0
  %v1125 = vpop.f32.mrf.mxu0
  %v1126 = vadd.f32 0.0, %v1125
  %v1127 = vpop.f32.mrf.mxu0
  %1128 = vmatprep.mubr.bf16.mxu0 %v997
  %1129 = vmatmul.mubr.bf16.gmra.mxu0 %v996
  %v1130 = vpop.f32.mrf.mxu0
  %v1131 = vadd.f32 0.0, %v1130
  %v1132 = vpop.f32.mrf.mxu0
  %v1133 = vpop.f32.mrf.mxu0
  %v1134 = vadd.f32 0.0, %v1133
  %v1135 = vpop.f32.mrf.mxu0
  %1136 = vmatprep.mubr.bf16.mxu0 %v999
  %1137 = vmatmul.mubr.bf16.gmra.mxu0 %v998
  %v1138 = vpop.f32.mrf.mxu0
  %v1139 = vadd.f32 0.0, %v1138
  %v1140 = vpop.f32.mrf.mxu0
  %v1141 = vpop.f32.mrf.mxu0
  %v1142 = vadd.f32 0.0, %v1141
  %v1143 = vpop.f32.mrf.mxu0
  %1144 = vmatprep.mubr.bf16.mxu0 %v1001
  %1145 = vmatmul.mubr.bf16.gmra.mxu0 %v1000
  %v1146 = vpop.f32.mrf.mxu0
  %v1147 = vadd.f32 0.0, %v1146
  %v1148 = vpop.f32.mrf.mxu0
  %v1149 = vpop.f32.mrf.mxu0
  %v1150 = vadd.f32 0.0, %v1149
  %v1151 = vpop.f32.mrf.mxu0
  %1152 = vmatprep.mubr.bf16.mxu0 %v1003
  %1153 = vmatmul.mubr.bf16.gmra.mxu0 %v1002
  %v1154 = vpop.f32.mrf.mxu0
  %v1155 = vadd.f32 0.0, %v1154
  %v1156 = vpop.f32.mrf.mxu0
  %v1157 = vpop.f32.mrf.mxu0
  %v1158 = vadd.f32 0.0, %v1157
  %v1159 = vpop.f32.mrf.mxu0
  %1160 = vmatprep.mubr.bf16.mxu0 %v1005
  %1161 = vmatmul.mubr.bf16.gmra.mxu0 %v1004
  %v1162 = vpop.f32.mrf.mxu0
  %v1163 = vadd.f32 0.0, %v1162
  %v1164 = vpop.f32.mrf.mxu0
  %v1165 = vpop.f32.mrf.mxu0
  %v1166 = vpop.f32.mrf.mxu0
  %1167 = vdwg.mxu0
  %v1168 = vmul.f32 %v1067, 0.5
  %v1169 = vmul.f32 %v1070, 0.5
  %v1170 = vmul.f32 %v1075, 0.5
  %v1171 = vmul.f32 %v1078, 0.5
  %v1172 = vmul.f32 %v1083, 0.5
  %v1173 = vmul.f32 %v1086, 0.5
  %v1174 = vmul.f32 %v1091, 0.5
  %v1175 = vmul.f32 %v1094, 0.5
  %v1176 = vmul.f32 %v1099, 0.5
  %v1177 = vmul.f32 %v1102, 0.5
  %v1178 = vmul.f32 %v1107, 0.5
  %v1179 = vmul.f32 %v1110, 0.5
  %v1180 = vmul.f32 %v1115, 0.5
  %v1181 = vmul.f32 %v1118, 0.5
  %v1182 = vmul.f32 %v1123, 0.5
  %v1183 = vmul.f32 %v1126, 0.5
  %v1184 = vmul.f32 %v1131, 0.5
  %v1185 = vmul.f32 %v1134, 0.5
  %v1186 = vmul.f32 %v1139, 0.5
  %v1187 = vmul.f32 %v1142, 0.5
  %v1188 = vmul.f32 %v1147, 0.5
  %v1189 = vmul.f32 %v1150, 0.5
  %v1190 = vmul.f32 %v1155, 0.5
  %v1191 = vmul.f32 %v1158, 0.5
  %v1192 = vmul.f32 %v1163, 0.5
  %v1193 = vtanh.pop %v1168
  %v1194 = vtanh.pop %v1169
  %v1195 = vtanh.pop %v1170
  %v1196 = vtanh.pop %v1171
  %v1197 = vtanh.pop %v1172
  %v1198 = vtanh.pop %v1173
  %v1199 = vtanh.pop %v1174
  %v1200 = vtanh.pop %v1175
  %v1201 = vtanh.pop %v1176
  %v1202 = vtanh.pop %v1177
  %v1203 = vtanh.pop %v1178
  %v1204 = vtanh.pop %v1179
  %v1205 = vtanh.pop %v1180
  %v1206 = vtanh.pop %v1181
  %v1207 = vtanh.pop %v1182
  %v1208 = vtanh.pop %v1183
  %v1209 = vtanh.pop %v1184
  %v1210 = vtanh.pop %v1185
  %v1211 = vtanh.pop %v1186
  %v1212 = vtanh.pop %v1187
  %v1213 = vtanh.pop %v1188
  %v1214 = vtanh.pop %v1189
  %v1215 = vtanh.pop %v1190
  %v1216 = vtanh.pop %v1191
  %v1217 = vtanh.pop %v1192
  %v1218 = vadd.f32 %v854, %v1193
  %v1219 = vadd.f32 %v855, %v1194
  %v1220 = vadd.f32 %v856, %v1195
  %v1221 = vadd.f32 %v857, %v1196
  %v1222 = vadd.f32 %v858, %v1197
  %v1223 = vadd.f32 %v859, %v1198
  %v1224 = vadd.f32 %v860, %v1199
  %v1225 = vadd.f32 %v861, %v1200
  %v1226 = vadd.f32 %v862, %v1201
  %v1227 = vadd.f32 %v863, %v1202
  %v1228 = vadd.f32 %v864, %v1203
  %v1229 = vadd.f32 %v865, %v1204
  %v1230 = vadd.f32 %v866, %v1205
  %v1231 = vadd.f32 %v867, %v1206
  %v1232 = vadd.f32 %v868, %v1207
  %v1233 = vadd.f32 %v869, %v1208
  %v1234 = vadd.f32 %v870, %v1209
  %v1235 = vadd.f32 %v871, %v1210
  %v1236 = vadd.f32 %v872, %v1211
  %v1237 = vadd.f32 %v873, %v1212
  %v1238 = vadd.f32 %v874, %v1213
  %v1239 = vadd.f32 %v875, %v1214
  %v1240 = vadd.f32 %v876, %v1215
  %v1241 = vadd.f32 %v877, %v1216
  %v1242 = vadd.f32 %v878, %v1217
  %s1243 = scalar_lea.vmem %s0, 600
  %v1244 = vld [vmem:[%s1243] sm:$0xff]
  %v1245 = vld [vmem:[%s1243 + $0x8] sm:$0xff]
  %v1246 = vld [vmem:[%s1243 + $0x10] sm:$0xff]
  %v1247 = vld [vmem:[%s1243 + $0x18] sm:$0xff]
  %v1248 = vld [vmem:[%s1243 + $0x20] sm:$0xff]
  %v1249 = vld [vmem:[%s1243 + $0x28] sm:$0xff]
  %v1250 = vld [vmem:[%s1243 + $0x30] sm:$0xff]
  %v1251 = vld [vmem:[%s1243 + $0x38] sm:$0xff]
  %v1252 = vld [vmem:[%s1243 + $0x40] sm:$0xff]
  %v1253 = vld [vmem:[%s1243 + $0x48] sm:$0xff]
  %v1254 = vld [vmem:[%s1243 + $0x50] sm:$0xff]
  %v1255 = vld [vmem:[%s1243 + $0x58] sm:$0xff]
  %v1256 = vld [vmem:[%s1243 + $0x60] sm:$0xff]
  %v1257 = vld [vmem:[%s1243 + $0x68] sm:$0xff]
  %v1258 = vld [vmem:[%s1243 + $0x70] sm:$0xff]
  %v1259 = vld [vmem:[%s1243 + $0x78] sm:$0xff]
  %v1260 = vld [vmem:[%s1243 + $0x80] sm:$0xff]
  %v1261 = vld [vmem:[%s1243 + $0x88] sm:$0xff]
  %v1262 = vld [vmem:[%s1243 + $0x90] sm:$0xff]
  %v1263 = vld [vmem:[%s1243 + $0x98] sm:$0xff]
  %v1264 = vld [vmem:[%s1243 + $0xa0] sm:$0xff]
  %v1265 = vld [vmem:[%s1243 + $0xa8] sm:$0xff]
  %v1266 = vld [vmem:[%s1243 + $0xb0] sm:$0xff]
  %v1267 = vld [vmem:[%s1243 + $0xb8] sm:$0xff]
  %v1268 = vld [vmem:[%s1243 + $0xc0] sm:$0xff]
  %v1294 = vunpack.c.l.b16 %v1244
  %v1295 = vunpack.c.h.b16 %v1244
  %v1296 = vunpack.c.l.b16 %v1245
  %v1297 = vunpack.c.h.b16 %v1245
  %v1298 = vunpack.c.l.b16 %v1246
  %v1299 = vunpack.c.h.b16 %v1246
  %v1300 = vunpack.c.l.b16 %v1247
  %v1301 = vunpack.c.h.b16 %v1247
  %v1302 = vunpack.c.l.b16 %v1248
  %v1303 = vunpack.c.h.b16 %v1248
  %v1304 = vunpack.c.l.b16 %v1249
  %v1305 = vunpack.c.h.b16 %v1249
  %v1306 = vunpack.c.l.b16 %v1250
  %v1307 = vunpack.c.h.b16 %v1250
  %v1308 = vunpack.c.l.b16 %v1251
  %v1309 = vunpack.c.h.b16 %v1251
  %v1310 = vunpack.c.l.b16 %v1252
  %v1311 = vunpack.c.h.b16 %v1252
  %v1312 = vunpack.c.l.b16 %v1253
  %v1313 = vunpack.c.h.b16 %v1253
  %v1314 = vunpack.c.l.b16 %v1254
  %v1315 = vunpack.c.h.b16 %v1254
  %v1316 = vunpack.c.l.b16 %v1255
  %v1317 = vunpack.c.h.b16 %v1255
  %v1318 = vunpack.c.l.b16 %v1256
  %v1319 = vunpack.c.h.b16 %v1256
  %v1320 = vunpack.c.l.b16 %v1257
  %v1321 = vunpack.c.h.b16 %v1257
  %v1322 = vunpack.c.l.b16 %v1258
  %v1323 = vunpack.c.h.b16 %v1258
  %v1324 = vunpack.c.l.b16 %v1259
  %v1325 = vunpack.c.h.b16 %v1259
  %v1326 = vunpack.c.l.b16 %v1260
  %v1327 = vunpack.c.h.b16 %v1260
  %v1328 = vunpack.c.l.b16 %v1261
  %v1329 = vunpack.c.h.b16 %v1261
  %v1330 = vunpack.c.l.b16 %v1262
  %v1331 = vunpack.c.h.b16 %v1262
  %v1332 = vunpack.c.l.b16 %v1263
  %v1333 = vunpack.c.h.b16 %v1263
  %v1334 = vunpack.c.l.b16 %v1264
  %v1335 = vunpack.c.h.b16 %v1264
  %v1336 = vunpack.c.l.b16 %v1265
  %v1337 = vunpack.c.h.b16 %v1265
  %v1338 = vunpack.c.l.b16 %v1266
  %v1339 = vunpack.c.h.b16 %v1266
  %v1340 = vunpack.c.l.b16 %v1267
  %v1341 = vunpack.c.h.b16 %v1267
  %v1342 = vunpack.c.l.b16 %v1268
  %v1343 = vunpack.c.h.b16 %v1268
  %v1344 = vpack.c.b16 %v1296, %v1294
  %v1345 = vpack.c.b16 %v1297, %v1295
  %v1346 = vpack.c.b16 %v1300, %v1298
  %v1347 = vpack.c.b16 %v1301, %v1299
  %v1348 = vpack.c.b16 %v1304, %v1302
  %v1349 = vpack.c.b16 %v1305, %v1303
  %v1350 = vpack.c.b16 %v1308, %v1306
  %v1351 = vpack.c.b16 %v1309, %v1307
  %v1352 = vpack.c.b16 %v1312, %v1310
  %v1353 = vpack.c.b16 %v1313, %v1311
  %v1354 = vpack.c.b16 %v1316, %v1314
  %v1355 = vpack.c.b16 %v1317, %v1315
  %v1356 = vpack.c.b16 %v1320, %v1318
  %v1357 = vpack.c.b16 %v1321, %v1319
  %v1358 = vpack.c.b16 %v1324, %v1322
  %v1359 = vpack.c.b16 %v1325, %v1323
  %v1360 = vpack.c.b16 %v1328, %v1326
  %v1361 = vpack.c.b16 %v1329, %v1327
  %v1362 = vpack.c.b16 %v1332, %v1330
  %v1363 = vpack.c.b16 %v1333, %v1331
  %v1364 = vpack.c.b16 %v1336, %v1334
  %v1365 = vpack.c.b16 %v1337, %v1335
  %v1366 = vpack.c.b16 %v1340, %v1338
  %v1367 = vpack.c.b16 %v1341, %v1339
  %v1368 = vpack.c.b16 %v1342, %v1342
  %v1369 = vpack.c.b16 %v1343, %v1343
  %1396 = vmatprep.subr.bf16.mxu0 0
  %1397 = vmatpush1.bf16.msra.mxu0 %v279
  %1398 = vmatprep.subr.bf16.mxu0 0
  %1399 = vmatpush1.bf16.msra.mxu0 %v278
  %1400 = vmatprep.subr.bf16.mxu0 0
  %1401 = vmatpush1.bf16.msra.mxu0 %v277
  %1402 = vmatprep.subr.bf16.mxu0 0
  %1403 = vmatpush1.bf16.msra.mxu0 %v276
  %1404 = vmatprep.subr.bf16.mxu0 0
  %1405 = vmatpush1.bf16.msra.mxu0 %v275
  %1406 = vmatprep.subr.bf16.mxu0 0
  %1407 = vmatpush1.bf16.msra.mxu0 %v274
  %1408 = vmatprep.subr.bf16.mxu0 0
  %1409 = vmatpush1.bf16.msra.mxu0 %v273
  %1410 = vmatprep.subr.bf16.mxu0 0
  %1411 = vmatpush1.bf16.msra.mxu0 %v272
  %1412 = vmatprep.subr.bf16.mxu0 0
  %1413 = vmatpush2.bf16.msra.mxu0 %v287
  %1414 = vmatprep.subr.bf16.mxu0 0
  %1415 = vmatpush2.bf16.msra.mxu0 %v286
  %1416 = vmatprep.subr.bf16.mxu0 0
  %1417 = vmatpush2.bf16.msra.mxu0 %v285
  %1418 = vmatprep.subr.bf16.mxu0 0
  %1419 = vmatpush2.bf16.msra.mxu0 %v284
  %1420 = vmatprep.subr.bf16.mxu0 0
  %1421 = vmatpush2.bf16.msra.mxu0 %v283
  %1422 = vmatprep.subr.bf16.mxu0 0
  %1423 = vmatpush2.bf16.msra.mxu0 %v282
  %1424 = vmatprep.subr.bf16.mxu0 0
  %1425 = vmatpush2.bf16.msra.mxu0 %v281
  %1426 = vmatprep.subr.bf16.mxu0 0
  %1427 = vmatpush2.bf16.msra.mxu0 %v280
  %1428 = vmatprep.mubr.bf16.mxu0 %v1345
  %1429 = vmatmul.mubr.bf16.gmra.mxu0 %v1344
  %v1430 = vpop.f32.mrf.mxu0
  %v1431 = vadd.f32 0.0, %v1430
  %v1432 = vpop.f32.mrf.mxu0
  %v1433 = vpop.f32.mrf.mxu0
  %v1434 = vadd.f32 0.0, %v1433
  %v1435 = vpop.f32.mrf.mxu0
  %1436 = vmatprep.mubr.bf16.mxu0 %v1347
  %1437 = vmatmul.mubr.bf16.gmra.mxu0 %v1346
  %v1438 = vpop.f32.mrf.mxu0
  %v1439 = vadd.f32 0.0, %v1438
  %v1440 = vpop.f32.mrf.mxu0
  %v1441 = vpop.f32.mrf.mxu0
  %v1442 = vadd.f32 0.0, %v1441
  %v1443 = vpop.f32.mrf.mxu0
  %1444 = vmatprep.mubr.bf16.mxu0 %v1349
  %1445 = vmatmul.mubr.bf16.gmra.mxu0 %v1348
  %v1446 = vpop.f32.mrf.mxu0
  %v1447 = vadd.f32 0.0, %v1446
  %v1448 = vpop.f32.mrf.mxu0
  %v1449 = vpop.f32.mrf.mxu0
  %v1450 = vadd.f32 0.0, %v1449
  %v1451 = vpop.f32.mrf.mxu0
  %1452 = vmatprep.mubr.bf16.mxu0 %v1351
  %1453 = vmatmul.mubr.bf16.gmra.mxu0 %v1350
  %v1454 = vpop.f32.mrf.mxu0
  %v1455 = vadd.f32 0.0, %v1454
  %v1456 = vpop.f32.mrf.mxu0
  %v1457 = vpop.f32.mrf.mxu0
  %v1458 = vadd.f32 0.0, %v1457
  %v1459 = vpop.f32.mrf.mxu0
  %1460 = vmatprep.mubr.bf16.mxu0 %v1353
  %1461 = vmatmul.mubr.bf16.gmra.mxu0 %v1352
  %v1462 = vpop.f32.mrf.mxu0
  %v1463 = vadd.f32 0.0, %v1462
  %v1464 = vpop.f32.mrf.mxu0
  %v1465 = vpop.f32.mrf.mxu0
  %v1466 = vadd.f32 0.0, %v1465
  %v1467 = vpop.f32.mrf.mxu0
  %1468 = vmatprep.mubr.bf16.mxu0 %v1355
  %1469 = vmatmul.mubr.bf16.gmra.mxu0 %v1354
  %v1470 = vpop.f32.mrf.mxu0
  %v1471 = vadd.f32 0.0, %v1470
  %v1472 = vpop.f32.mrf.mxu0
  %v1473 = vpop.f32.mrf.mxu0
  %v1474 = vadd.f32 0.0, %v1473
  %v1475 = vpop.f32.mrf.mxu0
  %1476 = vmatprep.mubr.bf16.mxu0 %v1357
  %1477 = vmatmul.mubr.bf16.gmra.mxu0 %v1356
  %v1478 = vpop.f32.mrf.mxu0
  %v1479 = vadd.f32 0.0, %v1478
  %v1480 = vpop.f32.mrf.mxu0
  %v1481 = vpop.f32.mrf.mxu0
  %v1482 = vadd.f32 0.0, %v1481
  %v1483 = vpop.f32.mrf.mxu0
  %1484 = vmatprep.mubr.bf16.mxu0 %v1359
  %1485 = vmatmul.mubr.bf16.gmra.mxu0 %v1358
  %v1486 = vpop.f32.mrf.mxu0
  %v1487 = vadd.f32 0.0, %v1486
  %v1488 = vpop.f32.mrf.mxu0
  %v1489 = vpop.f32.mrf.mxu0
  %v1490 = vadd.f32 0.0, %v1489
  %v1491 = vpop.f32.mrf.mxu0
  %1492 = vmatprep.mubr.bf16.mxu0 %v1361
  %1493 = vmatmul.mubr.bf16.gmra.mxu0 %v1360
  %v1494 = vpop.f32.mrf.mxu0
  %v1495 = vadd.f32 0.0, %v1494
  %v1496 = vpop.f32.mrf.mxu0
  %v1497 = vpop.f32.mrf.mxu0
  %v1498 = vadd.f32 0.0, %v1497
  %v1499 = vpop.f32.mrf.mxu0
  %1500 = vmatprep.mubr.bf16.mxu0 %v1363
  %1501 = vmatmul.mubr.bf16.gmra.mxu0 %v1362
  %v1502 = vpop.f32.mrf.mxu0
  %v1503 = vadd.f32 0.0, %v1502
  %v1504 = vpop.f32.mrf.mxu0
  %v1505 = vpop.f32.mrf.mxu0
  %v1506 = vadd.f32 0.0, %v1505
  %v1507 = vpop.f32.mrf.mxu0
  %1508 = vmatprep.mubr.bf16.mxu0 %v1365
  %1509 = vmatmul.mubr.bf16.gmra.mxu0 %v1364
  %v1510 = vpop.f32.mrf.mxu0
  %v1511 = vadd.f32 0.0, %v1510
  %v1512 = vpop.f32.mrf.mxu0
  %v1513 = vpop.f32.mrf.mxu0
  %v1514 = vadd.f32 0.0, %v1513
  %v1515 = vpop.f32.mrf.mxu0
  %1516 = vmatprep.mubr.bf16.mxu0 %v1367
  %1517 = vmatmul.mubr.bf16.gmra.mxu0 %v1366
  %v1518 = vpop.f32.mrf.mxu0
  %v1519 = vadd.f32 0.0, %v1518
  %v1520 = vpop.f32.mrf.mxu0
  %v1521 = vpop.f32.mrf.mxu0
  %v1522 = vadd.f32 0.0, %v1521
  %v1523 = vpop.f32.mrf.mxu0
  %1524 = vmatprep.mubr.bf16.mxu0 %v1369
  %1525 = vmatmul.mubr.bf16.gmra.mxu0 %v1368
  %v1526 = vpop.f32.mrf.mxu0
  %v1527 = vadd.f32 0.0, %v1526
  %v1528 = vpop.f32.mrf.mxu0
  %v1529 = vpop.f32.mrf.mxu0
  %v1530 = vpop.f32.mrf.mxu0
  %1531 = vdwg.mxu0
  %v1532 = vmul.f32 %v1431, 0.5
  %v1533 = vmul.f32 %v1434, 0.5
  %v1534 = vmul.f32 %v1439, 0.5
  %v1535 = vmul.f32 %v1442, 0.5
  %v1536 = vmul.f32 %v1447, 0.5
  %v1537 = vmul.f32 %v1450, 0.5
  %v1538 = vmul.f32 %v1455, 0.5
  %v1539 = vmul.f32 %v1458, 0.5
  %v1540 = vmul.f32 %v1463, 0.5
  %v1541 = vmul.f32 %v1466, 0.5
  %v1542 = vmul.f32 %v1471, 0.5
  %v1543 = vmul.f32 %v1474, 0.5
  %v1544 = vmul.f32 %v1479, 0.5
  %v1545 = vmul.f32 %v1482, 0.5
  %v1546 = vmul.f32 %v1487, 0.5
  %v1547 = vmul.f32 %v1490, 0.5
  %v1548 = vmul.f32 %v1495, 0.5
  %v1549 = vmul.f32 %v1498, 0.5
  %v1550 = vmul.f32 %v1503, 0.5
  %v1551 = vmul.f32 %v1506, 0.5
  %v1552 = vmul.f32 %v1511, 0.5
  %v1553 = vmul.f32 %v1514, 0.5
  %v1554 = vmul.f32 %v1519, 0.5
  %v1555 = vmul.f32 %v1522, 0.5
  %v1556 = vmul.f32 %v1527, 0.5
  %v1557 = vtanh.pop %v1532
  %v1558 = vtanh.pop %v1533
  %v1559 = vtanh.pop %v1534
  %v1560 = vtanh.pop %v1535
  %v1561 = vtanh.pop %v1536
  %v1562 = vtanh.pop %v1537
  %v1563 = vtanh.pop %v1538
  %v1564 = vtanh.pop %v1539
  %v1565 = vtanh.pop %v1540
  %v1566 = vtanh.pop %v1541
  %v1567 = vtanh.pop %v1542
  %v1568 = vtanh.pop %v1543
  %v1569 = vtanh.pop %v1544
  %v1570 = vtanh.pop %v1545
  %v1571 = vtanh.pop %v1546
  %v1572 = vtanh.pop %v1547
  %v1573 = vtanh.pop %v1548
  %v1574 = vtanh.pop %v1549
  %v1575 = vtanh.pop %v1550
  %v1576 = vtanh.pop %v1551
  %v1577 = vtanh.pop %v1552
  %v1578 = vtanh.pop %v1553
  %v1579 = vtanh.pop %v1554
  %v1580 = vtanh.pop %v1555
  %v1581 = vtanh.pop %v1556
  %v1582 = vadd.f32 %v1218, %v1557
  %v1583 = vadd.f32 %v1219, %v1558
  %v1584 = vadd.f32 %v1220, %v1559
  %v1585 = vadd.f32 %v1221, %v1560
  %v1586 = vadd.f32 %v1222, %v1561
  %v1587 = vadd.f32 %v1223, %v1562
  %v1588 = vadd.f32 %v1224, %v1563
  %v1589 = vadd.f32 %v1225, %v1564
  %v1590 = vadd.f32 %v1226, %v1565
  %v1591 = vadd.f32 %v1227, %v1566
  %v1592 = vadd.f32 %v1228, %v1567
  %v1593 = vadd.f32 %v1229, %v1568
  %v1594 = vadd.f32 %v1230, %v1569
  %v1595 = vadd.f32 %v1231, %v1570
  %v1596 = vadd.f32 %v1232, %v1571
  %v1597 = vadd.f32 %v1233, %v1572
  %v1598 = vadd.f32 %v1234, %v1573
  %v1599 = vadd.f32 %v1235, %v1574
  %v1600 = vadd.f32 %v1236, %v1575
  %v1601 = vadd.f32 %v1237, %v1576
  %v1602 = vadd.f32 %v1238, %v1577
  %v1603 = vadd.f32 %v1239, %v1578
  %v1604 = vadd.f32 %v1240, %v1579
  %v1605 = vadd.f32 %v1241, %v1580
  %v1606 = vadd.f32 %v1242, %v1581
  %v1607 = vmul.f32 %v1582, 0.125
  %v1608 = vmul.f32 %v1583, 0.125
  %v1609 = vmul.f32 %v1584, 0.125
  %v1610 = vmul.f32 %v1585, 0.125
  %v1611 = vmul.f32 %v1586, 0.125
  %v1612 = vmul.f32 %v1587, 0.125
  %v1613 = vmul.f32 %v1588, 0.125
  %v1614 = vmul.f32 %v1589, 0.125
  %v1615 = vmul.f32 %v1590, 0.125
  %v1616 = vmul.f32 %v1591, 0.125
  %v1617 = vmul.f32 %v1592, 0.125
  %v1618 = vmul.f32 %v1593, 0.125
  %v1619 = vmul.f32 %v1594, 0.125
  %v1620 = vmul.f32 %v1595, 0.125
  %v1621 = vmul.f32 %v1596, 0.125
  %v1622 = vmul.f32 %v1597, 0.125
  %v1623 = vmul.f32 %v1598, 0.125
  %v1624 = vmul.f32 %v1599, 0.125
  %v1625 = vmul.f32 %v1600, 0.125
  %v1626 = vmul.f32 %v1601, 0.125
  %v1627 = vmul.f32 %v1602, 0.125
  %v1628 = vmul.f32 %v1603, 0.125
  %v1629 = vmul.f32 %v1604, 0.125
  %v1630 = vmul.f32 %v1605, 0.125
  %v1631 = vmul.f32 %v1606, 0.125
  %v1632 = vadd.f32 %v1607, 0.5
  %v1633 = vadd.f32 %v1608, 0.5
  %v1634 = vadd.f32 %v1609, 0.5
  %v1635 = vadd.f32 %v1610, 0.5
  %v1636 = vadd.f32 %v1611, 0.5
  %v1637 = vadd.f32 %v1612, 0.5
  %v1638 = vadd.f32 %v1613, 0.5
  %v1639 = vadd.f32 %v1614, 0.5
  %v1640 = vadd.f32 %v1615, 0.5
  %v1641 = vadd.f32 %v1616, 0.5
  %v1642 = vadd.f32 %v1617, 0.5
  %v1643 = vadd.f32 %v1618, 0.5
  %v1644 = vadd.f32 %v1619, 0.5
  %v1645 = vadd.f32 %v1620, 0.5
  %v1646 = vadd.f32 %v1621, 0.5
  %v1647 = vadd.f32 %v1622, 0.5
  %v1648 = vadd.f32 %v1623, 0.5
  %v1649 = vadd.f32 %v1624, 0.5
  %v1650 = vadd.f32 %v1625, 0.5
  %v1651 = vadd.f32 %v1626, 0.5
  %v1652 = vadd.f32 %v1627, 0.5
  %v1653 = vadd.f32 %v1628, 0.5
  %v1654 = vadd.f32 %v1629, 0.5
  %v1655 = vadd.f32 %v1630, 0.5
  %v1656 = vadd.f32 %v1631, 0.5
  %v1657 = vpack.c.bf16 %v1632, %v1632
  %v1658 = vld [vmem:[%s2] sm:$0xf]
  %v1659 = vld [vmem:[%s2 + $0x4] sm:$0xf]
  %v1660 = vld [vmem:[%s2 + $0x8] sm:$0xf]
  %v1661 = vld [vmem:[%s2 + $0xc] sm:$0xf]
  %v1662 = vld [vmem:[%s2 + $0x10] sm:$0xf]
  %v1663 = vld [vmem:[%s2 + $0x14] sm:$0xf]
  %v1664 = vld [vmem:[%s2 + $0x18] sm:$0xf]
  %v1665 = vld [vmem:[%s2 + $0x1c] sm:$0xf]
  %v1666 = vld [vmem:[%s2 + $0x20] sm:$0xf]
  %v1667 = vld [vmem:[%s2 + $0x24] sm:$0xf]
  %v1668 = vld [vmem:[%s2 + $0x28] sm:$0xf]
  %v1669 = vld [vmem:[%s2 + $0x2c] sm:$0xf]
  %v1670 = vld [vmem:[%s2 + $0x30] sm:$0xf]
  %v1671 = vld [vmem:[%s2 + $0x34] sm:$0xf]
  %v1672 = vld [vmem:[%s2 + $0x38] sm:$0xf]
  %v1673 = vld [vmem:[%s2 + $0x3c] sm:$0xf]
  %v1674 = vpack.c.bf16 %v1633, %v1633
  %s1675 = scalar_lea.vmem %s2, 64
  %v1676 = vld [vmem:[%s1675] sm:$0xf]
  %v1677 = vld [vmem:[%s1675 + $0x4] sm:$0xf]
  %v1678 = vld [vmem:[%s1675 + $0x8] sm:$0xf]
  %v1679 = vld [vmem:[%s1675 + $0xc] sm:$0xf]
  %v1680 = vld [vmem:[%s1675 + $0x10] sm:$0xf]
  %v1681 = vld [vmem:[%s1675 + $0x14] sm:$0xf]
  %v1682 = vld [vmem:[%s1675 + $0x18] sm:$0xf]
  %v1683 = vld [vmem:[%s1675 + $0x1c] sm:$0xf]
  %v1684 = vld [vmem:[%s1675 + $0x20] sm:$0xf]
  %v1685 = vld [vmem:[%s1675 + $0x24] sm:$0xf]
  %v1686 = vld [vmem:[%s1675 + $0x28] sm:$0xf]
  %v1687 = vld [vmem:[%s1675 + $0x2c] sm:$0xf]
  %v1688 = vld [vmem:[%s1675 + $0x30] sm:$0xf]
  %v1689 = vld [vmem:[%s1675 + $0x34] sm:$0xf]
  %v1690 = vld [vmem:[%s1675 + $0x38] sm:$0xf]
  %v1691 = vld [vmem:[%s1675 + $0x3c] sm:$0xf]
  %v1708 = vunpack.c.l.b16 %v1676
  %v1709 = vunpack.c.l.b16 %v1677
  %v1710 = vunpack.c.l.b16 %v1678
  %v1711 = vunpack.c.l.b16 %v1679
  %v1712 = vunpack.c.l.b16 %v1680
  %v1713 = vunpack.c.l.b16 %v1681
  %v1714 = vunpack.c.l.b16 %v1682
  %v1715 = vunpack.c.l.b16 %v1683
  %v1716 = vunpack.c.l.b16 %v1684
  %v1717 = vunpack.c.l.b16 %v1685
  %v1718 = vunpack.c.l.b16 %v1686
  %v1719 = vunpack.c.l.b16 %v1687
  %v1720 = vunpack.c.l.b16 %v1688
  %v1721 = vunpack.c.l.b16 %v1689
  %v1722 = vunpack.c.l.b16 %v1690
  %v1723 = vunpack.c.l.b16 %v1691
  %v1724 = vpack.c.b16 %v1709, %v1708
  %v1725 = vpack.c.b16 %v1711, %v1710
  %v1726 = vpack.c.b16 %v1713, %v1712
  %v1727 = vpack.c.b16 %v1715, %v1714
  %v1728 = vpack.c.b16 %v1717, %v1716
  %v1729 = vpack.c.b16 %v1719, %v1718
  %v1730 = vpack.c.b16 %v1721, %v1720
  %v1731 = vpack.c.b16 %v1723, %v1722
  %1740 = vmatprep.subr.bf16.mxu0 0
  %1741 = vmatpush1.bf16.msra.mxu0 %v1731
  %1742 = vmatprep.subr.bf16.mxu0 0
  %1743 = vmatpush1.bf16.msra.mxu0 %v1730
  %1744 = vmatprep.subr.bf16.mxu0 0
  %1745 = vmatpush1.bf16.msra.mxu0 %v1729
  %1746 = vmatprep.subr.bf16.mxu0 0
  %1747 = vmatpush1.bf16.msra.mxu0 %v1728
  %1748 = vmatprep.subr.bf16.mxu0 0
  %1749 = vmatpush1.bf16.msra.mxu0 %v1727
  %1750 = vmatprep.subr.bf16.mxu0 0
  %1751 = vmatpush1.bf16.msra.mxu0 %v1726
  %1752 = vmatprep.subr.bf16.mxu0 0
  %1753 = vmatpush1.bf16.msra.mxu0 %v1725
  %1754 = vmatprep.subr.bf16.mxu0 0
  %1755 = vmatpush1.bf16.msra.mxu0 %v1724
  %1756 = vmatprep.subr.bf16.mxu0 0
  %1757 = vmatpush2.bf16.msra.mxu0 0
  %1758 = vmatprep.subr.bf16.mxu0 0
  %1759 = vmatpush2.bf16.msra.mxu0 0
  %1760 = vmatprep.subr.bf16.mxu0 0
  %1761 = vmatpush2.bf16.msra.mxu0 0
  %1762 = vmatprep.subr.bf16.mxu0 0
  %1763 = vmatpush2.bf16.msra.mxu0 0
  %1764 = vmatprep.subr.bf16.mxu0 0
  %1765 = vmatpush2.bf16.msra.mxu0 0
  %1766 = vmatprep.subr.bf16.mxu0 0
  %1767 = vmatpush2.bf16.msra.mxu0 0
  %1768 = vmatprep.subr.bf16.mxu0 0
  %1769 = vmatpush2.bf16.msra.mxu0 0
  %1770 = vmatprep.subr.bf16.mxu0 0
  %1771 = vmatpush2.bf16.msra.mxu0 0
  %1772 = vmatprep.mubr.bf16.mxu0 0
  %1773 = vmatmul.mubr.bf16.gmra.mxu0 %v1674
  %v1774 = vpop.f32.mrf.mxu0
  %v1775 = vadd.f32 0.0, %v1774
  %v1776 = vpop.f32.mrf.mxu0
  %v1777 = vpop.f32.mrf.mxu0
  %v1778 = vpop.f32.mrf.mxu0
  %1779 = vdwg.mxu0
  %v1796 = vunpack.c.l.b16 %v1658
  %v1797 = vunpack.c.l.b16 %v1659
  %v1798 = vunpack.c.l.b16 %v1660
  %v1799 = vunpack.c.l.b16 %v1661
  %v1800 = vunpack.c.l.b16 %v1662
  %v1801 = vunpack.c.l.b16 %v1663
  %v1802 = vunpack.c.l.b16 %v1664
  %v1803 = vunpack.c.l.b16 %v1665
  %v1804 = vunpack.c.l.b16 %v1666
  %v1805 = vunpack.c.l.b16 %v1667
  %v1806 = vunpack.c.l.b16 %v1668
  %v1807 = vunpack.c.l.b16 %v1669
  %v1808 = vunpack.c.l.b16 %v1670
  %v1809 = vunpack.c.l.b16 %v1671
  %v1810 = vunpack.c.l.b16 %v1672
  %v1811 = vunpack.c.l.b16 %v1673
  %v1812 = vpack.c.b16 %v1797, %v1796
  %v1813 = vpack.c.b16 %v1799, %v1798
  %v1814 = vpack.c.b16 %v1801, %v1800
  %v1815 = vpack.c.b16 %v1803, %v1802
  %v1816 = vpack.c.b16 %v1805, %v1804
  %v1817 = vpack.c.b16 %v1807, %v1806
  %v1818 = vpack.c.b16 %v1809, %v1808
  %v1819 = vpack.c.b16 %v1811, %v1810
  %1828 = vmatprep.subr.bf16.mxu0 0
  %1829 = vmatpush1.bf16.msra.mxu0 %v1819
  %1830 = vmatprep.subr.bf16.mxu0 0
  %1831 = vmatpush1.bf16.msra.mxu0 %v1818
  %1832 = vmatprep.subr.bf16.mxu0 0
  %1833 = vmatpush1.bf16.msra.mxu0 %v1817
  %1834 = vmatprep.subr.bf16.mxu0 0
  %1835 = vmatpush1.bf16.msra.mxu0 %v1816
  %1836 = vmatprep.subr.bf16.mxu0 0
  %1837 = vmatpush1.bf16.msra.mxu0 %v1815
  %1838 = vmatprep.subr.bf16.mxu0 0
  %1839 = vmatpush1.bf16.msra.mxu0 %v1814
  %1840 = vmatprep.subr.bf16.mxu0 0
  %1841 = vmatpush1.bf16.msra.mxu0 %v1813
  %1842 = vmatprep.subr.bf16.mxu0 0
  %1843 = vmatpush1.bf16.msra.mxu0 %v1812
  %1844 = vmatprep.subr.bf16.mxu0 0
  %1845 = vmatpush2.bf16.msra.mxu0 0
  %1846 = vmatprep.subr.bf16.mxu0 0
  %1847 = vmatpush2.bf16.msra.mxu0 0
  %1848 = vmatprep.subr.bf16.mxu0 0
  %1849 = vmatpush2.bf16.msra.mxu0 0
  %1850 = vmatprep.subr.bf16.mxu0 0
  %1851 = vmatpush2.bf16.msra.mxu0 0
  %1852 = vmatprep.subr.bf16.mxu0 0
  %1853 = vmatpush2.bf16.msra.mxu0 0
  %1854 = vmatprep.subr.bf16.mxu0 0
  %1855 = vmatpush2.bf16.msra.mxu0 0
  %1856 = vmatprep.subr.bf16.mxu0 0
  %1857 = vmatpush2.bf16.msra.mxu0 0
  %1858 = vmatprep.subr.bf16.mxu0 0
  %1859 = vmatpush2.bf16.msra.mxu0 0
  %1860 = vmatprep.mubr.bf16.mxu0 0
  %1861 = vmatmul.mubr.bf16.gmra.mxu0 %v1657
  %v1862 = vpop.f32.mrf.mxu0
  %v1863 = vadd.f32 %v1775, %v1862
  %v1864 = vpop.f32.mrf.mxu0
  %v1865 = vpop.f32.mrf.mxu0
  %v1866 = vpop.f32.mrf.mxu0
  %1867 = vdwg.mxu0
  %v1868 = vpack.c.bf16 %v1634, %v1634
  %s1869 = scalar_lea.vmem %s2, 128
  %v1870 = vld [vmem:[%s1869] sm:$0xf]
  %v1871 = vld [vmem:[%s1869 + $0x4] sm:$0xf]
  %v1872 = vld [vmem:[%s1869 + $0x8] sm:$0xf]
  %v1873 = vld [vmem:[%s1869 + $0xc] sm:$0xf]
  %v1874 = vld [vmem:[%s1869 + $0x10] sm:$0xf]
  %v1875 = vld [vmem:[%s1869 + $0x14] sm:$0xf]
  %v1876 = vld [vmem:[%s1869 + $0x18] sm:$0xf]
  %v1877 = vld [vmem:[%s1869 + $0x1c] sm:$0xf]
  %v1878 = vld [vmem:[%s1869 + $0x20] sm:$0xf]
  %v1879 = vld [vmem:[%s1869 + $0x24] sm:$0xf]
  %v1880 = vld [vmem:[%s1869 + $0x28] sm:$0xf]
  %v1881 = vld [vmem:[%s1869 + $0x2c] sm:$0xf]
  %v1882 = vld [vmem:[%s1869 + $0x30] sm:$0xf]
  %v1883 = vld [vmem:[%s1869 + $0x34] sm:$0xf]
  %v1884 = vld [vmem:[%s1869 + $0x38] sm:$0xf]
  %v1885 = vld [vmem:[%s1869 + $0x3c] sm:$0xf]
  %v1902 = vunpack.c.l.b16 %v1870
  %v1903 = vunpack.c.l.b16 %v1871
  %v1904 = vunpack.c.l.b16 %v1872
  %v1905 = vunpack.c.l.b16 %v1873
  %v1906 = vunpack.c.l.b16 %v1874
  %v1907 = vunpack.c.l.b16 %v1875
  %v1908 = vunpack.c.l.b16 %v1876
  %v1909 = vunpack.c.l.b16 %v1877
  %v1910 = vunpack.c.l.b16 %v1878
  %v1911 = vunpack.c.l.b16 %v1879
  %v1912 = vunpack.c.l.b16 %v1880
  %v1913 = vunpack.c.l.b16 %v1881
  %v1914 = vunpack.c.l.b16 %v1882
  %v1915 = vunpack.c.l.b16 %v1883
  %v1916 = vunpack.c.l.b16 %v1884
  %v1917 = vunpack.c.l.b16 %v1885
  %v1918 = vpack.c.b16 %v1903, %v1902
  %v1919 = vpack.c.b16 %v1905, %v1904
  %v1920 = vpack.c.b16 %v1907, %v1906
  %v1921 = vpack.c.b16 %v1909, %v1908
  %v1922 = vpack.c.b16 %v1911, %v1910
  %v1923 = vpack.c.b16 %v1913, %v1912
  %v1924 = vpack.c.b16 %v1915, %v1914
  %v1925 = vpack.c.b16 %v1917, %v1916
  %1934 = vmatprep.subr.bf16.mxu0 0
  %1935 = vmatpush1.bf16.msra.mxu0 %v1925
  %1936 = vmatprep.subr.bf16.mxu0 0
  %1937 = vmatpush1.bf16.msra.mxu0 %v1924
  %1938 = vmatprep.subr.bf16.mxu0 0
  %1939 = vmatpush1.bf16.msra.mxu0 %v1923
  %1940 = vmatprep.subr.bf16.mxu0 0
  %1941 = vmatpush1.bf16.msra.mxu0 %v1922
  %1942 = vmatprep.subr.bf16.mxu0 0
  %1943 = vmatpush1.bf16.msra.mxu0 %v1921
  %1944 = vmatprep.subr.bf16.mxu0 0
  %1945 = vmatpush1.bf16.msra.mxu0 %v1920
  %1946 = vmatprep.subr.bf16.mxu0 0
  %1947 = vmatpush1.bf16.msra.mxu0 %v1919
  %1948 = vmatprep.subr.bf16.mxu0 0
  %1949 = vmatpush1.bf16.msra.mxu0 %v1918
  %1950 = vmatprep.subr.bf16.mxu0 0
  %1951 = vmatpush2.bf16.msra.mxu0 0
  %1952 = vmatprep.subr.bf16.mxu0 0
  %1953 = vmatpush2.bf16.msra.mxu0 0
  %1954 = vmatprep.subr.bf16.mxu0 0
  %1955 = vmatpush2.bf16.msra.mxu0 0
  %1956 = vmatprep.subr.bf16.mxu0 0
  %1957 = vmatpush2.bf16.msra.mxu0 0
  %1958 = vmatprep.subr.bf16.mxu0 0
  %1959 = vmatpush2.bf16.msra.mxu0 0
  %1960 = vmatprep.subr.bf16.mxu0 0
  %1961 = vmatpush2.bf16.msra.mxu0 0
  %1962 = vmatprep.subr.bf16.mxu0 0
  %1963 = vmatpush2.bf16.msra.mxu0 0
  %1964 = vmatprep.subr.bf16.mxu0 0
  %1965 = vmatpush2.bf16.msra.mxu0 0
  %1966 = vmatprep.mubr.bf16.mxu0 0
  %1967 = vmatmul.mubr.bf16.gmra.mxu0 %v1868
  %v1968 = vpop.f32.mrf.mxu0
  %v1969 = vadd.f32 0.0, %v1968
  %v1970 = vpop.f32.mrf.mxu0
  %v1971 = vpop.f32.mrf.mxu0
  %v1972 = vpop.f32.mrf.mxu0
  %1973 = vdwg.mxu0
  %v1974 = vadd.f32 %v1863, %v1969
  %v1975 = vpack.c.bf16 %v1635, %v1635
  %s1976 = scalar_lea.vmem %s2, 192
  %v1977 = vld [vmem:[%s1976] sm:$0xf]
  %v1978 = vld [vmem:[%s1976 + $0x4] sm:$0xf]
  %v1979 = vld [vmem:[%s1976 + $0x8] sm:$0xf]
  %v1980 = vld [vmem:[%s1976 + $0xc] sm:$0xf]
  %v1981 = vld [vmem:[%s1976 + $0x10] sm:$0xf]
  %v1982 = vld [vmem:[%s1976 + $0x14] sm:$0xf]
  %v1983 = vld [vmem:[%s1976 + $0x18] sm:$0xf]
  %v1984 = vld [vmem:[%s1976 + $0x1c] sm:$0xf]
  %v1985 = vld [vmem:[%s1976 + $0x20] sm:$0xf]
  %v1986 = vld [vmem:[%s1976 + $0x24] sm:$0xf]
  %v1987 = vld [vmem:[%s1976 + $0x28] sm:$0xf]
  %v1988 = vld [vmem:[%s1976 + $0x2c] sm:$0xf]
  %v1989 = vld [vmem:[%s1976 + $0x30] sm:$0xf]
  %v1990 = vld [vmem:[%s1976 + $0x34] sm:$0xf]
  %v1991 = vld [vmem:[%s1976 + $0x38] sm:$0xf]
  %v1992 = vld [vmem:[%s1976 + $0x3c] sm:$0xf]
  %v2009 = vunpack.c.l.b16 %v1977
  %v2010 = vunpack.c.l.b16 %v1978
  %v2011 = vunpack.c.l.b16 %v1979
  %v2012 = vunpack.c.l.b16 %v1980
  %v2013 = vunpack.c.l.b16 %v1981
  %v2014 = vunpack.c.l.b16 %v1982
  %v2015 = vunpack.c.l.b16 %v1983
  %v2016 = vunpack.c.l.b16 %v1984
  %v2017 = vunpack.c.l.b16 %v1985
  %v2018 = vunpack.c.l.b16 %v1986
  %v2019 = vunpack.c.l.b16 %v1987
  %v2020 = vunpack.c.l.b16 %v1988
  %v2021 = vunpack.c.l.b16 %v1989
  %v2022 = vunpack.c.l.b16 %v1990
  %v2023 = vunpack.c.l.b16 %v1991
  %v2024 = vunpack.c.l.b16 %v1992
  %v2025 = vpack.c.b16 %v2010, %v2009
  %v2026 = vpack.c.b16 %v2012, %v2011
  %v2027 = vpack.c.b16 %v2014, %v2013
  %v2028 = vpack.c.b16 %v2016, %v2015
  %v2029 = vpack.c.b16 %v2018, %v2017
  %v2030 = vpack.c.b16 %v2020, %v2019
  %v2031 = vpack.c.b16 %v2022, %v2021
  %v2032 = vpack.c.b16 %v2024, %v2023
  %2041 = vmatprep.subr.bf16.mxu0 0
  %2042 = vmatpush1.bf16.msra.mxu0 %v2032
  %2043 = vmatprep.subr.bf16.mxu0 0
  %2044 = vmatpush1.bf16.msra.mxu0 %v2031
  %2045 = vmatprep.subr.bf16.mxu0 0
  %2046 = vmatpush1.bf16.msra.mxu0 %v2030
  %2047 = vmatprep.subr.bf16.mxu0 0
  %2048 = vmatpush1.bf16.msra.mxu0 %v2029
  %2049 = vmatprep.subr.bf16.mxu0 0
  %2050 = vmatpush1.bf16.msra.mxu0 %v2028
  %2051 = vmatprep.subr.bf16.mxu0 0
  %2052 = vmatpush1.bf16.msra.mxu0 %v2027
  %2053 = vmatprep.subr.bf16.mxu0 0
  %2054 = vmatpush1.bf16.msra.mxu0 %v2026
  %2055 = vmatprep.subr.bf16.mxu0 0
  %2056 = vmatpush1.bf16.msra.mxu0 %v2025
  %2057 = vmatprep.subr.bf16.mxu0 0
  %2058 = vmatpush2.bf16.msra.mxu0 0
  %2059 = vmatprep.subr.bf16.mxu0 0
  %2060 = vmatpush2.bf16.msra.mxu0 0
  %2061 = vmatprep.subr.bf16.mxu0 0
  %2062 = vmatpush2.bf16.msra.mxu0 0
  %2063 = vmatprep.subr.bf16.mxu0 0
  %2064 = vmatpush2.bf16.msra.mxu0 0
  %2065 = vmatprep.subr.bf16.mxu0 0
  %2066 = vmatpush2.bf16.msra.mxu0 0
  %2067 = vmatprep.subr.bf16.mxu0 0
  %2068 = vmatpush2.bf16.msra.mxu0 0
  %2069 = vmatprep.subr.bf16.mxu0 0
  %2070 = vmatpush2.bf16.msra.mxu0 0
  %2071 = vmatprep.subr.bf16.mxu0 0
  %2072 = vmatpush2.bf16.msra.mxu0 0
  %2073 = vmatprep.mubr.bf16.mxu0 0
  %2074 = vmatmul.mubr.bf16.gmra.mxu0 %v1975
  %v2075 = vpop.f32.mrf.mxu0
  %v2076 = vadd.f32 0.0, %v2075
  %v2077 = vpop.f32.mrf.mxu0
  %v2078 = vpop.f32.mrf.mxu0
  %v2079 = vpop.f32.mrf.mxu0
  %2080 = vdwg.mxu0
  %v2081 = vadd.f32 %v1974, %v2076
  %v2082 = vpack.c.bf16 %v1636, %v1636
  %s2083 = scalar_lea.vmem %s2, 256
  %v2084 = vld [vmem:[%s2083] sm:$0xf]
  %v2085 = vld [vmem:[%s2083 + $0x4] sm:$0xf]
  %v2086 = vld [vmem:[%s2083 + $0x8] sm:$0xf]
  %v2087 = vld [vmem:[%s2083 + $0xc] sm:$0xf]
  %v2088 = vld [vmem:[%s2083 + $0x10] sm:$0xf]
  %v2089 = vld [vmem:[%s2083 + $0x14] sm:$0xf]
  %v2090 = vld [vmem:[%s2083 + $0x18] sm:$0xf]
  %v2091 = vld [vmem:[%s2083 + $0x1c] sm:$0xf]
  %v2092 = vld [vmem:[%s2083 + $0x20] sm:$0xf]
  %v2093 = vld [vmem:[%s2083 + $0x24] sm:$0xf]
  %v2094 = vld [vmem:[%s2083 + $0x28] sm:$0xf]
  %v2095 = vld [vmem:[%s2083 + $0x2c] sm:$0xf]
  %v2096 = vld [vmem:[%s2083 + $0x30] sm:$0xf]
  %v2097 = vld [vmem:[%s2083 + $0x34] sm:$0xf]
  %v2098 = vld [vmem:[%s2083 + $0x38] sm:$0xf]
  %v2099 = vld [vmem:[%s2083 + $0x3c] sm:$0xf]
  %v2116 = vunpack.c.l.b16 %v2084
  %v2117 = vunpack.c.l.b16 %v2085
  %v2118 = vunpack.c.l.b16 %v2086
  %v2119 = vunpack.c.l.b16 %v2087
  %v2120 = vunpack.c.l.b16 %v2088
  %v2121 = vunpack.c.l.b16 %v2089
  %v2122 = vunpack.c.l.b16 %v2090
  %v2123 = vunpack.c.l.b16 %v2091
  %v2124 = vunpack.c.l.b16 %v2092
  %v2125 = vunpack.c.l.b16 %v2093
  %v2126 = vunpack.c.l.b16 %v2094
  %v2127 = vunpack.c.l.b16 %v2095
  %v2128 = vunpack.c.l.b16 %v2096
  %v2129 = vunpack.c.l.b16 %v2097
  %v2130 = vunpack.c.l.b16 %v2098
  %v2131 = vunpack.c.l.b16 %v2099
  %v2132 = vpack.c.b16 %v2117, %v2116
  %v2133 = vpack.c.b16 %v2119, %v2118
  %v2134 = vpack.c.b16 %v2121, %v2120
  %v2135 = vpack.c.b16 %v2123, %v2122
  %v2136 = vpack.c.b16 %v2125, %v2124
  %v2137 = vpack.c.b16 %v2127, %v2126
  %v2138 = vpack.c.b16 %v2129, %v2128
  %v2139 = vpack.c.b16 %v2131, %v2130
  %2148 = vmatprep.subr.bf16.mxu0 0
  %2149 = vmatpush1.bf16.msra.mxu0 %v2139
  %2150 = vmatprep.subr.bf16.mxu0 0
  %2151 = vmatpush1.bf16.msra.mxu0 %v2138
  %2152 = vmatprep.subr.bf16.mxu0 0
  %2153 = vmatpush1.bf16.msra.mxu0 %v2137
  %2154 = vmatprep.subr.bf16.mxu0 0
  %2155 = vmatpush1.bf16.msra.mxu0 %v2136
  %2156 = vmatprep.subr.bf16.mxu0 0
  %2157 = vmatpush1.bf16.msra.mxu0 %v2135
  %2158 = vmatprep.subr.bf16.mxu0 0
  %2159 = vmatpush1.bf16.msra.mxu0 %v2134
  %2160 = vmatprep.subr.bf16.mxu0 0
  %2161 = vmatpush1.bf16.msra.mxu0 %v2133
  %2162 = vmatprep.subr.bf16.mxu0 0
  %2163 = vmatpush1.bf16.msra.mxu0 %v2132
  %2164 = vmatprep.subr.bf16.mxu0 0
  %2165 = vmatpush2.bf16.msra.mxu0 0
  %2166 = vmatprep.subr.bf16.mxu0 0
  %2167 = vmatpush2.bf16.msra.mxu0 0
  %2168 = vmatprep.subr.bf16.mxu0 0
  %2169 = vmatpush2.bf16.msra.mxu0 0
  %2170 = vmatprep.subr.bf16.mxu0 0
  %2171 = vmatpush2.bf16.msra.mxu0 0
  %2172 = vmatprep.subr.bf16.mxu0 0
  %2173 = vmatpush2.bf16.msra.mxu0 0
  %2174 = vmatprep.subr.bf16.mxu0 0
  %2175 = vmatpush2.bf16.msra.mxu0 0
  %2176 = vmatprep.subr.bf16.mxu0 0
  %2177 = vmatpush2.bf16.msra.mxu0 0
  %2178 = vmatprep.subr.bf16.mxu0 0
  %2179 = vmatpush2.bf16.msra.mxu0 0
  %2180 = vmatprep.mubr.bf16.mxu0 0
  %2181 = vmatmul.mubr.bf16.gmra.mxu0 %v2082
  %v2182 = vpop.f32.mrf.mxu0
  %v2183 = vadd.f32 0.0, %v2182
  %v2184 = vpop.f32.mrf.mxu0
  %v2185 = vpop.f32.mrf.mxu0
  %v2186 = vpop.f32.mrf.mxu0
  %2187 = vdwg.mxu0
  %v2188 = vadd.f32 %v2081, %v2183
  %v2189 = vpack.c.bf16 %v1637, %v1637
  %s2190 = scalar_lea.vmem %s2, 320
  %v2191 = vld [vmem:[%s2190] sm:$0xf]
  %v2192 = vld [vmem:[%s2190 + $0x4] sm:$0xf]
  %v2193 = vld [vmem:[%s2190 + $0x8] sm:$0xf]
  %v2194 = vld [vmem:[%s2190 + $0xc] sm:$0xf]
  %v2195 = vld [vmem:[%s2190 + $0x10] sm:$0xf]
  %v2196 = vld [vmem:[%s2190 + $0x14] sm:$0xf]
  %v2197 = vld [vmem:[%s2190 + $0x18] sm:$0xf]
  %v2198 = vld [vmem:[%s2190 + $0x1c] sm:$0xf]
  %v2199 = vld [vmem:[%s2190 + $0x20] sm:$0xf]
  %v2200 = vld [vmem:[%s2190 + $0x24] sm:$0xf]
  %v2201 = vld [vmem:[%s2190 + $0x28] sm:$0xf]
  %v2202 = vld [vmem:[%s2190 + $0x2c] sm:$0xf]
  %v2203 = vld [vmem:[%s2190 + $0x30] sm:$0xf]
  %v2204 = vld [vmem:[%s2190 + $0x34] sm:$0xf]
  %v2205 = vld [vmem:[%s2190 + $0x38] sm:$0xf]
  %v2206 = vld [vmem:[%s2190 + $0x3c] sm:$0xf]
  %v2223 = vunpack.c.l.b16 %v2191
  %v2224 = vunpack.c.l.b16 %v2192
  %v2225 = vunpack.c.l.b16 %v2193
  %v2226 = vunpack.c.l.b16 %v2194
  %v2227 = vunpack.c.l.b16 %v2195
  %v2228 = vunpack.c.l.b16 %v2196
  %v2229 = vunpack.c.l.b16 %v2197
  %v2230 = vunpack.c.l.b16 %v2198
  %v2231 = vunpack.c.l.b16 %v2199
  %v2232 = vunpack.c.l.b16 %v2200
  %v2233 = vunpack.c.l.b16 %v2201
  %v2234 = vunpack.c.l.b16 %v2202
  %v2235 = vunpack.c.l.b16 %v2203
  %v2236 = vunpack.c.l.b16 %v2204
  %v2237 = vunpack.c.l.b16 %v2205
  %v2238 = vunpack.c.l.b16 %v2206
  %v2239 = vpack.c.b16 %v2224, %v2223
  %v2240 = vpack.c.b16 %v2226, %v2225
  %v2241 = vpack.c.b16 %v2228, %v2227
  %v2242 = vpack.c.b16 %v2230, %v2229
  %v2243 = vpack.c.b16 %v2232, %v2231
  %v2244 = vpack.c.b16 %v2234, %v2233
  %v2245 = vpack.c.b16 %v2236, %v2235
  %v2246 = vpack.c.b16 %v2238, %v2237
  %2255 = vmatprep.subr.bf16.mxu0 0
  %2256 = vmatpush1.bf16.msra.mxu0 %v2246
  %2257 = vmatprep.subr.bf16.mxu0 0
  %2258 = vmatpush1.bf16.msra.mxu0 %v2245
  %2259 = vmatprep.subr.bf16.mxu0 0
  %2260 = vmatpush1.bf16.msra.mxu0 %v2244
  %2261 = vmatprep.subr.bf16.mxu0 0
  %2262 = vmatpush1.bf16.msra.mxu0 %v2243
  %2263 = vmatprep.subr.bf16.mxu0 0
  %2264 = vmatpush1.bf16.msra.mxu0 %v2242
  %2265 = vmatprep.subr.bf16.mxu0 0
  %2266 = vmatpush1.bf16.msra.mxu0 %v2241
  %2267 = vmatprep.subr.bf16.mxu0 0
  %2268 = vmatpush1.bf16.msra.mxu0 %v2240
  %2269 = vmatprep.subr.bf16.mxu0 0
  %2270 = vmatpush1.bf16.msra.mxu0 %v2239
  %2271 = vmatprep.subr.bf16.mxu0 0
  %2272 = vmatpush2.bf16.msra.mxu0 0
  %2273 = vmatprep.subr.bf16.mxu0 0
  %2274 = vmatpush2.bf16.msra.mxu0 0
  %2275 = vmatprep.subr.bf16.mxu0 0
  %2276 = vmatpush2.bf16.msra.mxu0 0
  %2277 = vmatprep.subr.bf16.mxu0 0
  %2278 = vmatpush2.bf16.msra.mxu0 0
  %2279 = vmatprep.subr.bf16.mxu0 0
  %2280 = vmatpush2.bf16.msra.mxu0 0
  %2281 = vmatprep.subr.bf16.mxu0 0
  %2282 = vmatpush2.bf16.msra.mxu0 0
  %2283 = vmatprep.subr.bf16.mxu0 0
  %2284 = vmatpush2.bf16.msra.mxu0 0
  %2285 = vmatprep.subr.bf16.mxu0 0
  %2286 = vmatpush2.bf16.msra.mxu0 0
  %2287 = vmatprep.mubr.bf16.mxu0 0
  %2288 = vmatmul.mubr.bf16.gmra.mxu0 %v2189
  %v2289 = vpop.f32.mrf.mxu0
  %v2290 = vadd.f32 0.0, %v2289
  %v2291 = vpop.f32.mrf.mxu0
  %v2292 = vpop.f32.mrf.mxu0
  %v2293 = vpop.f32.mrf.mxu0
  %2294 = vdwg.mxu0
  %v2295 = vadd.f32 %v2188, %v2290
  %v2296 = vpack.c.bf16 %v1638, %v1638
  %s2297 = scalar_lea.vmem %s2, 384
  %v2298 = vld [vmem:[%s2297] sm:$0xf]
  %v2299 = vld [vmem:[%s2297 + $0x4] sm:$0xf]
  %v2300 = vld [vmem:[%s2297 + $0x8] sm:$0xf]
  %v2301 = vld [vmem:[%s2297 + $0xc] sm:$0xf]
  %v2302 = vld [vmem:[%s2297 + $0x10] sm:$0xf]
  %v2303 = vld [vmem:[%s2297 + $0x14] sm:$0xf]
  %v2304 = vld [vmem:[%s2297 + $0x18] sm:$0xf]
  %v2305 = vld [vmem:[%s2297 + $0x1c] sm:$0xf]
  %v2306 = vld [vmem:[%s2297 + $0x20] sm:$0xf]
  %v2307 = vld [vmem:[%s2297 + $0x24] sm:$0xf]
  %v2308 = vld [vmem:[%s2297 + $0x28] sm:$0xf]
  %v2309 = vld [vmem:[%s2297 + $0x2c] sm:$0xf]
  %v2310 = vld [vmem:[%s2297 + $0x30] sm:$0xf]
  %v2311 = vld [vmem:[%s2297 + $0x34] sm:$0xf]
  %v2312 = vld [vmem:[%s2297 + $0x38] sm:$0xf]
  %v2313 = vld [vmem:[%s2297 + $0x3c] sm:$0xf]
  %v2330 = vunpack.c.l.b16 %v2298
  %v2331 = vunpack.c.l.b16 %v2299
  %v2332 = vunpack.c.l.b16 %v2300
  %v2333 = vunpack.c.l.b16 %v2301
  %v2334 = vunpack.c.l.b16 %v2302
  %v2335 = vunpack.c.l.b16 %v2303
  %v2336 = vunpack.c.l.b16 %v2304
  %v2337 = vunpack.c.l.b16 %v2305
  %v2338 = vunpack.c.l.b16 %v2306
  %v2339 = vunpack.c.l.b16 %v2307
  %v2340 = vunpack.c.l.b16 %v2308
  %v2341 = vunpack.c.l.b16 %v2309
  %v2342 = vunpack.c.l.b16 %v2310
  %v2343 = vunpack.c.l.b16 %v2311
  %v2344 = vunpack.c.l.b16 %v2312
  %v2345 = vunpack.c.l.b16 %v2313
  %v2346 = vpack.c.b16 %v2331, %v2330
  %v2347 = vpack.c.b16 %v2333, %v2332
  %v2348 = vpack.c.b16 %v2335, %v2334
  %v2349 = vpack.c.b16 %v2337, %v2336
  %v2350 = vpack.c.b16 %v2339, %v2338
  %v2351 = vpack.c.b16 %v2341, %v2340
  %v2352 = vpack.c.b16 %v2343, %v2342
  %v2353 = vpack.c.b16 %v2345, %v2344
  %2362 = vmatprep.subr.bf16.mxu0 0
  %2363 = vmatpush1.bf16.msra.mxu0 %v2353
  %2364 = vmatprep.subr.bf16.mxu0 0
  %2365 = vmatpush1.bf16.msra.mxu0 %v2352
  %2366 = vmatprep.subr.bf16.mxu0 0
  %2367 = vmatpush1.bf16.msra.mxu0 %v2351
  %2368 = vmatprep.subr.bf16.mxu0 0
  %2369 = vmatpush1.bf16.msra.mxu0 %v2350
  %2370 = vmatprep.subr.bf16.mxu0 0
  %2371 = vmatpush1.bf16.msra.mxu0 %v2349
  %2372 = vmatprep.subr.bf16.mxu0 0
  %2373 = vmatpush1.bf16.msra.mxu0 %v2348
  %2374 = vmatprep.subr.bf16.mxu0 0
  %2375 = vmatpush1.bf16.msra.mxu0 %v2347
  %2376 = vmatprep.subr.bf16.mxu0 0
  %2377 = vmatpush1.bf16.msra.mxu0 %v2346
  %2378 = vmatprep.subr.bf16.mxu0 0
  %2379 = vmatpush2.bf16.msra.mxu0 0
  %2380 = vmatprep.subr.bf16.mxu0 0
  %2381 = vmatpush2.bf16.msra.mxu0 0
  %2382 = vmatprep.subr.bf16.mxu0 0
  %2383 = vmatpush2.bf16.msra.mxu0 0
  %2384 = vmatprep.subr.bf16.mxu0 0
  %2385 = vmatpush2.bf16.msra.mxu0 0
  %2386 = vmatprep.subr.bf16.mxu0 0
  %2387 = vmatpush2.bf16.msra.mxu0 0
  %2388 = vmatprep.subr.bf16.mxu0 0
  %2389 = vmatpush2.bf16.msra.mxu0 0
  %2390 = vmatprep.subr.bf16.mxu0 0
  %2391 = vmatpush2.bf16.msra.mxu0 0
  %2392 = vmatprep.subr.bf16.mxu0 0
  %2393 = vmatpush2.bf16.msra.mxu0 0
  %2394 = vmatprep.mubr.bf16.mxu0 0
  %2395 = vmatmul.mubr.bf16.gmra.mxu0 %v2296
  %v2396 = vpop.f32.mrf.mxu0
  %v2397 = vadd.f32 0.0, %v2396
  %v2398 = vpop.f32.mrf.mxu0
  %v2399 = vpop.f32.mrf.mxu0
  %v2400 = vpop.f32.mrf.mxu0
  %2401 = vdwg.mxu0
  %v2402 = vadd.f32 %v2295, %v2397
  %v2403 = vpack.c.bf16 %v1639, %v1639
  %s2404 = scalar_lea.vmem %s2, 448
  %v2405 = vld [vmem:[%s2404] sm:$0xf]
  %v2406 = vld [vmem:[%s2404 + $0x4] sm:$0xf]
  %v2407 = vld [vmem:[%s2404 + $0x8] sm:$0xf]
  %v2408 = vld [vmem:[%s2404 + $0xc] sm:$0xf]
  %v2409 = vld [vmem:[%s2404 + $0x10] sm:$0xf]
  %v2410 = vld [vmem:[%s2404 + $0x14] sm:$0xf]
  %v2411 = vld [vmem:[%s2404 + $0x18] sm:$0xf]
  %v2412 = vld [vmem:[%s2404 + $0x1c] sm:$0xf]
  %v2413 = vld [vmem:[%s2404 + $0x20] sm:$0xf]
  %v2414 = vld [vmem:[%s2404 + $0x24] sm:$0xf]
  %v2415 = vld [vmem:[%s2404 + $0x28] sm:$0xf]
  %v2416 = vld [vmem:[%s2404 + $0x2c] sm:$0xf]
  %v2417 = vld [vmem:[%s2404 + $0x30] sm:$0xf]
  %v2418 = vld [vmem:[%s2404 + $0x34] sm:$0xf]
  %v2419 = vld [vmem:[%s2404 + $0x38] sm:$0xf]
  %v2420 = vld [vmem:[%s2404 + $0x3c] sm:$0xf]
  %v2437 = vunpack.c.l.b16 %v2405
  %v2438 = vunpack.c.l.b16 %v2406
  %v2439 = vunpack.c.l.b16 %v2407
  %v2440 = vunpack.c.l.b16 %v2408
  %v2441 = vunpack.c.l.b16 %v2409
  %v2442 = vunpack.c.l.b16 %v2410
  %v2443 = vunpack.c.l.b16 %v2411
  %v2444 = vunpack.c.l.b16 %v2412
  %v2445 = vunpack.c.l.b16 %v2413
  %v2446 = vunpack.c.l.b16 %v2414
  %v2447 = vunpack.c.l.b16 %v2415
  %v2448 = vunpack.c.l.b16 %v2416
  %v2449 = vunpack.c.l.b16 %v2417
  %v2450 = vunpack.c.l.b16 %v2418
  %v2451 = vunpack.c.l.b16 %v2419
  %v2452 = vunpack.c.l.b16 %v2420
  %v2453 = vpack.c.b16 %v2438, %v2437
  %v2454 = vpack.c.b16 %v2440, %v2439
  %v2455 = vpack.c.b16 %v2442, %v2441
  %v2456 = vpack.c.b16 %v2444, %v2443
  %v2457 = vpack.c.b16 %v2446, %v2445
  %v2458 = vpack.c.b16 %v2448, %v2447
  %v2459 = vpack.c.b16 %v2450, %v2449
  %v2460 = vpack.c.b16 %v2452, %v2451
  %2469 = vmatprep.subr.bf16.mxu0 0
  %2470 = vmatpush1.bf16.msra.mxu0 %v2460
  %2471 = vmatprep.subr.bf16.mxu0 0
  %2472 = vmatpush1.bf16.msra.mxu0 %v2459
  %2473 = vmatprep.subr.bf16.mxu0 0
  %2474 = vmatpush1.bf16.msra.mxu0 %v2458
  %2475 = vmatprep.subr.bf16.mxu0 0
  %2476 = vmatpush1.bf16.msra.mxu0 %v2457
  %2477 = vmatprep.subr.bf16.mxu0 0
  %2478 = vmatpush1.bf16.msra.mxu0 %v2456
  %2479 = vmatprep.subr.bf16.mxu0 0
  %2480 = vmatpush1.bf16.msra.mxu0 %v2455
  %2481 = vmatprep.subr.bf16.mxu0 0
  %2482 = vmatpush1.bf16.msra.mxu0 %v2454
  %2483 = vmatprep.subr.bf16.mxu0 0
  %2484 = vmatpush1.bf16.msra.mxu0 %v2453
  %2485 = vmatprep.subr.bf16.mxu0 0
  %2486 = vmatpush2.bf16.msra.mxu0 0
  %2487 = vmatprep.subr.bf16.mxu0 0
  %2488 = vmatpush2.bf16.msra.mxu0 0
  %2489 = vmatprep.subr.bf16.mxu0 0
  %2490 = vmatpush2.bf16.msra.mxu0 0
  %2491 = vmatprep.subr.bf16.mxu0 0
  %2492 = vmatpush2.bf16.msra.mxu0 0
  %2493 = vmatprep.subr.bf16.mxu0 0
  %2494 = vmatpush2.bf16.msra.mxu0 0
  %2495 = vmatprep.subr.bf16.mxu0 0
  %2496 = vmatpush2.bf16.msra.mxu0 0
  %2497 = vmatprep.subr.bf16.mxu0 0
  %2498 = vmatpush2.bf16.msra.mxu0 0
  %2499 = vmatprep.subr.bf16.mxu0 0
  %2500 = vmatpush2.bf16.msra.mxu0 0
  %2501 = vmatprep.mubr.bf16.mxu0 0
  %2502 = vmatmul.mubr.bf16.gmra.mxu0 %v2403
  %v2503 = vpop.f32.mrf.mxu0
  %v2504 = vadd.f32 0.0, %v2503
  %v2505 = vpop.f32.mrf.mxu0
  %v2506 = vpop.f32.mrf.mxu0
  %v2507 = vpop.f32.mrf.mxu0
  %2508 = vdwg.mxu0
  %v2509 = vadd.f32 %v2402, %v2504
  %v2510 = vpack.c.bf16 %v1640, %v1640
  %s2511 = scalar_lea.vmem %s2, 512
  %v2512 = vld [vmem:[%s2511] sm:$0xf]
  %v2513 = vld [vmem:[%s2511 + $0x4] sm:$0xf]
  %v2514 = vld [vmem:[%s2511 + $0x8] sm:$0xf]
  %v2515 = vld [vmem:[%s2511 + $0xc] sm:$0xf]
  %v2516 = vld [vmem:[%s2511 + $0x10] sm:$0xf]
  %v2517 = vld [vmem:[%s2511 + $0x14] sm:$0xf]
  %v2518 = vld [vmem:[%s2511 + $0x18] sm:$0xf]
  %v2519 = vld [vmem:[%s2511 + $0x1c] sm:$0xf]
  %v2520 = vld [vmem:[%s2511 + $0x20] sm:$0xf]
  %v2521 = vld [vmem:[%s2511 + $0x24] sm:$0xf]
  %v2522 = vld [vmem:[%s2511 + $0x28] sm:$0xf]
  %v2523 = vld [vmem:[%s2511 + $0x2c] sm:$0xf]
  %v2524 = vld [vmem:[%s2511 + $0x30] sm:$0xf]
  %v2525 = vld [vmem:[%s2511 + $0x34] sm:$0xf]
  %v2526 = vld [vmem:[%s2511 + $0x38] sm:$0xf]
  %v2527 = vld [vmem:[%s2511 + $0x3c] sm:$0xf]
  %v2544 = vunpack.c.l.b16 %v2512
  %v2545 = vunpack.c.l.b16 %v2513
  %v2546 = vunpack.c.l.b16 %v2514
  %v2547 = vunpack.c.l.b16 %v2515
  %v2548 = vunpack.c.l.b16 %v2516
  %v2549 = vunpack.c.l.b16 %v2517
  %v2550 = vunpack.c.l.b16 %v2518
  %v2551 = vunpack.c.l.b16 %v2519
  %v2552 = vunpack.c.l.b16 %v2520
  %v2553 = vunpack.c.l.b16 %v2521
  %v2554 = vunpack.c.l.b16 %v2522
  %v2555 = vunpack.c.l.b16 %v2523
  %v2556 = vunpack.c.l.b16 %v2524
  %v2557 = vunpack.c.l.b16 %v2525
  %v2558 = vunpack.c.l.b16 %v2526
  %v2559 = vunpack.c.l.b16 %v2527
  %v2560 = vpack.c.b16 %v2545, %v2544
  %v2561 = vpack.c.b16 %v2547, %v2546
  %v2562 = vpack.c.b16 %v2549, %v2548
  %v2563 = vpack.c.b16 %v2551, %v2550
  %v2564 = vpack.c.b16 %v2553, %v2552
  %v2565 = vpack.c.b16 %v2555, %v2554
  %v2566 = vpack.c.b16 %v2557, %v2556
  %v2567 = vpack.c.b16 %v2559, %v2558
  %2576 = vmatprep.subr.bf16.mxu0 0
  %2577 = vmatpush1.bf16.msra.mxu0 %v2567
  %2578 = vmatprep.subr.bf16.mxu0 0
  %2579 = vmatpush1.bf16.msra.mxu0 %v2566
  %2580 = vmatprep.subr.bf16.mxu0 0
  %2581 = vmatpush1.bf16.msra.mxu0 %v2565
  %2582 = vmatprep.subr.bf16.mxu0 0
  %2583 = vmatpush1.bf16.msra.mxu0 %v2564
  %2584 = vmatprep.subr.bf16.mxu0 0
  %2585 = vmatpush1.bf16.msra.mxu0 %v2563
  %2586 = vmatprep.subr.bf16.mxu0 0
  %2587 = vmatpush1.bf16.msra.mxu0 %v2562
  %2588 = vmatprep.subr.bf16.mxu0 0
  %2589 = vmatpush1.bf16.msra.mxu0 %v2561
  %2590 = vmatprep.subr.bf16.mxu0 0
  %2591 = vmatpush1.bf16.msra.mxu0 %v2560
  %2592 = vmatprep.subr.bf16.mxu0 0
  %2593 = vmatpush2.bf16.msra.mxu0 0
  %2594 = vmatprep.subr.bf16.mxu0 0
  %2595 = vmatpush2.bf16.msra.mxu0 0
  %2596 = vmatprep.subr.bf16.mxu0 0
  %2597 = vmatpush2.bf16.msra.mxu0 0
  %2598 = vmatprep.subr.bf16.mxu0 0
  %2599 = vmatpush2.bf16.msra.mxu0 0
  %2600 = vmatprep.subr.bf16.mxu0 0
  %2601 = vmatpush2.bf16.msra.mxu0 0
  %2602 = vmatprep.subr.bf16.mxu0 0
  %2603 = vmatpush2.bf16.msra.mxu0 0
  %2604 = vmatprep.subr.bf16.mxu0 0
  %2605 = vmatpush2.bf16.msra.mxu0 0
  %2606 = vmatprep.subr.bf16.mxu0 0
  %2607 = vmatpush2.bf16.msra.mxu0 0
  %2608 = vmatprep.mubr.bf16.mxu0 0
  %2609 = vmatmul.mubr.bf16.gmra.mxu0 %v2510
  %v2610 = vpop.f32.mrf.mxu0
  %v2611 = vadd.f32 0.0, %v2610
  %v2612 = vpop.f32.mrf.mxu0
  %v2613 = vpop.f32.mrf.mxu0
  %v2614 = vpop.f32.mrf.mxu0
  %2615 = vdwg.mxu0
  %v2616 = vadd.f32 %v2509, %v2611
  %v2617 = vpack.c.bf16 %v1641, %v1641
  %s2618 = scalar_lea.vmem %s2, 576
  %v2619 = vld [vmem:[%s2618] sm:$0xf]
  %v2620 = vld [vmem:[%s2618 + $0x4] sm:$0xf]
  %v2621 = vld [vmem:[%s2618 + $0x8] sm:$0xf]
  %v2622 = vld [vmem:[%s2618 + $0xc] sm:$0xf]
  %v2623 = vld [vmem:[%s2618 + $0x10] sm:$0xf]
  %v2624 = vld [vmem:[%s2618 + $0x14] sm:$0xf]
  %v2625 = vld [vmem:[%s2618 + $0x18] sm:$0xf]
  %v2626 = vld [vmem:[%s2618 + $0x1c] sm:$0xf]
  %v2627 = vld [vmem:[%s2618 + $0x20] sm:$0xf]
  %v2628 = vld [vmem:[%s2618 + $0x24] sm:$0xf]
  %v2629 = vld [vmem:[%s2618 + $0x28] sm:$0xf]
  %v2630 = vld [vmem:[%s2618 + $0x2c] sm:$0xf]
  %v2631 = vld [vmem:[%s2618 + $0x30] sm:$0xf]
  %v2632 = vld [vmem:[%s2618 + $0x34] sm:$0xf]
  %v2633 = vld [vmem:[%s2618 + $0x38] sm:$0xf]
  %v2634 = vld [vmem:[%s2618 + $0x3c] sm:$0xf]
  %v2651 = vunpack.c.l.b16 %v2619
  %v2652 = vunpack.c.l.b16 %v2620
  %v2653 = vunpack.c.l.b16 %v2621
  %v2654 = vunpack.c.l.b16 %v2622
  %v2655 = vunpack.c.l.b16 %v2623
  %v2656 = vunpack.c.l.b16 %v2624
  %v2657 = vunpack.c.l.b16 %v2625
  %v2658 = vunpack.c.l.b16 %v2626
  %v2659 = vunpack.c.l.b16 %v2627
  %v2660 = vunpack.c.l.b16 %v2628
  %v2661 = vunpack.c.l.b16 %v2629
  %v2662 = vunpack.c.l.b16 %v2630
  %v2663 = vunpack.c.l.b16 %v2631
  %v2664 = vunpack.c.l.b16 %v2632
  %v2665 = vunpack.c.l.b16 %v2633
  %v2666 = vunpack.c.l.b16 %v2634
  %v2667 = vpack.c.b16 %v2652, %v2651
  %v2668 = vpack.c.b16 %v2654, %v2653
  %v2669 = vpack.c.b16 %v2656, %v2655
  %v2670 = vpack.c.b16 %v2658, %v2657
  %v2671 = vpack.c.b16 %v2660, %v2659
  %v2672 = vpack.c.b16 %v2662, %v2661
  %v2673 = vpack.c.b16 %v2664, %v2663
  %v2674 = vpack.c.b16 %v2666, %v2665
  %2683 = vmatprep.subr.bf16.mxu0 0
  %2684 = vmatpush1.bf16.msra.mxu0 %v2674
  %2685 = vmatprep.subr.bf16.mxu0 0
  %2686 = vmatpush1.bf16.msra.mxu0 %v2673
  %2687 = vmatprep.subr.bf16.mxu0 0
  %2688 = vmatpush1.bf16.msra.mxu0 %v2672
  %2689 = vmatprep.subr.bf16.mxu0 0
  %2690 = vmatpush1.bf16.msra.mxu0 %v2671
  %2691 = vmatprep.subr.bf16.mxu0 0
  %2692 = vmatpush1.bf16.msra.mxu0 %v2670
  %2693 = vmatprep.subr.bf16.mxu0 0
  %2694 = vmatpush1.bf16.msra.mxu0 %v2669
  %2695 = vmatprep.subr.bf16.mxu0 0
  %2696 = vmatpush1.bf16.msra.mxu0 %v2668
  %2697 = vmatprep.subr.bf16.mxu0 0
  %2698 = vmatpush1.bf16.msra.mxu0 %v2667
  %2699 = vmatprep.subr.bf16.mxu0 0
  %2700 = vmatpush2.bf16.msra.mxu0 0
  %2701 = vmatprep.subr.bf16.mxu0 0
  %2702 = vmatpush2.bf16.msra.mxu0 0
  %2703 = vmatprep.subr.bf16.mxu0 0
  %2704 = vmatpush2.bf16.msra.mxu0 0
  %2705 = vmatprep.subr.bf16.mxu0 0
  %2706 = vmatpush2.bf16.msra.mxu0 0
  %2707 = vmatprep.subr.bf16.mxu0 0
  %2708 = vmatpush2.bf16.msra.mxu0 0
  %2709 = vmatprep.subr.bf16.mxu0 0
  %2710 = vmatpush2.bf16.msra.mxu0 0
  %2711 = vmatprep.subr.bf16.mxu0 0
  %2712 = vmatpush2.bf16.msra.mxu0 0
  %2713 = vmatprep.subr.bf16.mxu0 0
  %2714 = vmatpush2.bf16.msra.mxu0 0
  %2715 = vmatprep.mubr.bf16.mxu0 0
  %2716 = vmatmul.mubr.bf16.gmra.mxu0 %v2617
  %v2717 = vpop.f32.mrf.mxu0
  %v2718 = vadd.f32 0.0, %v2717
  %v2719 = vpop.f32.mrf.mxu0
  %v2720 = vpop.f32.mrf.mxu0
  %v2721 = vpop.f32.mrf.mxu0
  %2722 = vdwg.mxu0
  %v2723 = vadd.f32 %v2616, %v2718
  %v2724 = vpack.c.bf16 %v1642, %v1642
  %s2725 = scalar_lea.vmem %s2, 640
  %v2726 = vld [vmem:[%s2725] sm:$0xf]
  %v2727 = vld [vmem:[%s2725 + $0x4] sm:$0xf]
  %v2728 = vld [vmem:[%s2725 + $0x8] sm:$0xf]
  %v2729 = vld [vmem:[%s2725 + $0xc] sm:$0xf]
  %v2730 = vld [vmem:[%s2725 + $0x10] sm:$0xf]
  %v2731 = vld [vmem:[%s2725 + $0x14] sm:$0xf]
  %v2732 = vld [vmem:[%s2725 + $0x18] sm:$0xf]
  %v2733 = vld [vmem:[%s2725 + $0x1c] sm:$0xf]
  %v2734 = vld [vmem:[%s2725 + $0x20] sm:$0xf]
  %v2735 = vld [vmem:[%s2725 + $0x24] sm:$0xf]
  %v2736 = vld [vmem:[%s2725 + $0x28] sm:$0xf]
  %v2737 = vld [vmem:[%s2725 + $0x2c] sm:$0xf]
  %v2738 = vld [vmem:[%s2725 + $0x30] sm:$0xf]
  %v2739 = vld [vmem:[%s2725 + $0x34] sm:$0xf]
  %v2740 = vld [vmem:[%s2725 + $0x38] sm:$0xf]
  %v2741 = vld [vmem:[%s2725 + $0x3c] sm:$0xf]
  %v2758 = vunpack.c.l.b16 %v2726
  %v2759 = vunpack.c.l.b16 %v2727
  %v2760 = vunpack.c.l.b16 %v2728
  %v2761 = vunpack.c.l.b16 %v2729
  %v2762 = vunpack.c.l.b16 %v2730
  %v2763 = vunpack.c.l.b16 %v2731
  %v2764 = vunpack.c.l.b16 %v2732
  %v2765 = vunpack.c.l.b16 %v2733
  %v2766 = vunpack.c.l.b16 %v2734
  %v2767 = vunpack.c.l.b16 %v2735
  %v2768 = vunpack.c.l.b16 %v2736
  %v2769 = vunpack.c.l.b16 %v2737
  %v2770 = vunpack.c.l.b16 %v2738
  %v2771 = vunpack.c.l.b16 %v2739
  %v2772 = vunpack.c.l.b16 %v2740
  %v2773 = vunpack.c.l.b16 %v2741
  %v2774 = vpack.c.b16 %v2759, %v2758
  %v2775 = vpack.c.b16 %v2761, %v2760
  %v2776 = vpack.c.b16 %v2763, %v2762
  %v2777 = vpack.c.b16 %v2765, %v2764
  %v2778 = vpack.c.b16 %v2767, %v2766
  %v2779 = vpack.c.b16 %v2769, %v2768
  %v2780 = vpack.c.b16 %v2771, %v2770
  %v2781 = vpack.c.b16 %v2773, %v2772
  %2790 = vmatprep.subr.bf16.mxu0 0
  %2791 = vmatpush1.bf16.msra.mxu0 %v2781
  %2792 = vmatprep.subr.bf16.mxu0 0
  %2793 = vmatpush1.bf16.msra.mxu0 %v2780
  %2794 = vmatprep.subr.bf16.mxu0 0
  %2795 = vmatpush1.bf16.msra.mxu0 %v2779
  %2796 = vmatprep.subr.bf16.mxu0 0
  %2797 = vmatpush1.bf16.msra.mxu0 %v2778
  %2798 = vmatprep.subr.bf16.mxu0 0
  %2799 = vmatpush1.bf16.msra.mxu0 %v2777
  %2800 = vmatprep.subr.bf16.mxu0 0
  %2801 = vmatpush1.bf16.msra.mxu0 %v2776
  %2802 = vmatprep.subr.bf16.mxu0 0
  %2803 = vmatpush1.bf16.msra.mxu0 %v2775
  %2804 = vmatprep.subr.bf16.mxu0 0
  %2805 = vmatpush1.bf16.msra.mxu0 %v2774
  %2806 = vmatprep.subr.bf16.mxu0 0
  %2807 = vmatpush2.bf16.msra.mxu0 0
  %2808 = vmatprep.subr.bf16.mxu0 0
  %2809 = vmatpush2.bf16.msra.mxu0 0
  %2810 = vmatprep.subr.bf16.mxu0 0
  %2811 = vmatpush2.bf16.msra.mxu0 0
  %2812 = vmatprep.subr.bf16.mxu0 0
  %2813 = vmatpush2.bf16.msra.mxu0 0
  %2814 = vmatprep.subr.bf16.mxu0 0
  %2815 = vmatpush2.bf16.msra.mxu0 0
  %2816 = vmatprep.subr.bf16.mxu0 0
  %2817 = vmatpush2.bf16.msra.mxu0 0
  %2818 = vmatprep.subr.bf16.mxu0 0
  %2819 = vmatpush2.bf16.msra.mxu0 0
  %2820 = vmatprep.subr.bf16.mxu0 0
  %2821 = vmatpush2.bf16.msra.mxu0 0
  %2822 = vmatprep.mubr.bf16.mxu0 0
  %2823 = vmatmul.mubr.bf16.gmra.mxu0 %v2724
  %v2824 = vpop.f32.mrf.mxu0
  %v2825 = vadd.f32 0.0, %v2824
  %v2826 = vpop.f32.mrf.mxu0
  %v2827 = vpop.f32.mrf.mxu0
  %v2828 = vpop.f32.mrf.mxu0
  %2829 = vdwg.mxu0
  %v2830 = vadd.f32 %v2723, %v2825
  %v2831 = vpack.c.bf16 %v1643, %v1643
  %s2832 = scalar_lea.vmem %s2, 704
  %v2833 = vld [vmem:[%s2832] sm:$0xf]
  %v2834 = vld [vmem:[%s2832 + $0x4] sm:$0xf]
  %v2835 = vld [vmem:[%s2832 + $0x8] sm:$0xf]
  %v2836 = vld [vmem:[%s2832 + $0xc] sm:$0xf]
  %v2837 = vld [vmem:[%s2832 + $0x10] sm:$0xf]
  %v2838 = vld [vmem:[%s2832 + $0x14] sm:$0xf]
  %v2839 = vld [vmem:[%s2832 + $0x18] sm:$0xf]
  %v2840 = vld [vmem:[%s2832 + $0x1c] sm:$0xf]
  %v2841 = vld [vmem:[%s2832 + $0x20] sm:$0xf]
  %v2842 = vld [vmem:[%s2832 + $0x24] sm:$0xf]
  %v2843 = vld [vmem:[%s2832 + $0x28] sm:$0xf]
  %v2844 = vld [vmem:[%s2832 + $0x2c] sm:$0xf]
  %v2845 = vld [vmem:[%s2832 + $0x30] sm:$0xf]
  %v2846 = vld [vmem:[%s2832 + $0x34] sm:$0xf]
  %v2847 = vld [vmem:[%s2832 + $0x38] sm:$0xf]
  %v2848 = vld [vmem:[%s2832 + $0x3c] sm:$0xf]
  %v2865 = vunpack.c.l.b16 %v2833
  %v2866 = vunpack.c.l.b16 %v2834
  %v2867 = vunpack.c.l.b16 %v2835
  %v2868 = vunpack.c.l.b16 %v2836
  %v2869 = vunpack.c.l.b16 %v2837
  %v2870 = vunpack.c.l.b16 %v2838
  %v2871 = vunpack.c.l.b16 %v2839
  %v2872 = vunpack.c.l.b16 %v2840
  %v2873 = vunpack.c.l.b16 %v2841
  %v2874 = vunpack.c.l.b16 %v2842
  %v2875 = vunpack.c.l.b16 %v2843
  %v2876 = vunpack.c.l.b16 %v2844
  %v2877 = vunpack.c.l.b16 %v2845
  %v2878 = vunpack.c.l.b16 %v2846
  %v2879 = vunpack.c.l.b16 %v2847
  %v2880 = vunpack.c.l.b16 %v2848
  %v2881 = vpack.c.b16 %v2866, %v2865
  %v2882 = vpack.c.b16 %v2868, %v2867
  %v2883 = vpack.c.b16 %v2870, %v2869
  %v2884 = vpack.c.b16 %v2872, %v2871
  %v2885 = vpack.c.b16 %v2874, %v2873
  %v2886 = vpack.c.b16 %v2876, %v2875
  %v2887 = vpack.c.b16 %v2878, %v2877
  %v2888 = vpack.c.b16 %v2880, %v2879
  %2897 = vmatprep.subr.bf16.mxu0 0
  %2898 = vmatpush1.bf16.msra.mxu0 %v2888
  %2899 = vmatprep.subr.bf16.mxu0 0
  %2900 = vmatpush1.bf16.msra.mxu0 %v2887
  %2901 = vmatprep.subr.bf16.mxu0 0
  %2902 = vmatpush1.bf16.msra.mxu0 %v2886
  %2903 = vmatprep.subr.bf16.mxu0 0
  %2904 = vmatpush1.bf16.msra.mxu0 %v2885
  %2905 = vmatprep.subr.bf16.mxu0 0
  %2906 = vmatpush1.bf16.msra.mxu0 %v2884
  %2907 = vmatprep.subr.bf16.mxu0 0
  %2908 = vmatpush1.bf16.msra.mxu0 %v2883
  %2909 = vmatprep.subr.bf16.mxu0 0
  %2910 = vmatpush1.bf16.msra.mxu0 %v2882
  %2911 = vmatprep.subr.bf16.mxu0 0
  %2912 = vmatpush1.bf16.msra.mxu0 %v2881
  %2913 = vmatprep.subr.bf16.mxu0 0
  %2914 = vmatpush2.bf16.msra.mxu0 0
  %2915 = vmatprep.subr.bf16.mxu0 0
  %2916 = vmatpush2.bf16.msra.mxu0 0
  %2917 = vmatprep.subr.bf16.mxu0 0
  %2918 = vmatpush2.bf16.msra.mxu0 0
  %2919 = vmatprep.subr.bf16.mxu0 0
  %2920 = vmatpush2.bf16.msra.mxu0 0
  %2921 = vmatprep.subr.bf16.mxu0 0
  %2922 = vmatpush2.bf16.msra.mxu0 0
  %2923 = vmatprep.subr.bf16.mxu0 0
  %2924 = vmatpush2.bf16.msra.mxu0 0
  %2925 = vmatprep.subr.bf16.mxu0 0
  %2926 = vmatpush2.bf16.msra.mxu0 0
  %2927 = vmatprep.subr.bf16.mxu0 0
  %2928 = vmatpush2.bf16.msra.mxu0 0
  %2929 = vmatprep.mubr.bf16.mxu0 0
  %2930 = vmatmul.mubr.bf16.gmra.mxu0 %v2831
  %v2931 = vpop.f32.mrf.mxu0
  %v2932 = vadd.f32 0.0, %v2931
  %v2933 = vpop.f32.mrf.mxu0
  %v2934 = vpop.f32.mrf.mxu0
  %v2935 = vpop.f32.mrf.mxu0
  %2936 = vdwg.mxu0
  %v2937 = vadd.f32 %v2830, %v2932
  %v2938 = vpack.c.bf16 %v1644, %v1644
  %s2939 = scalar_lea.vmem %s2, 768
  %v2940 = vld [vmem:[%s2939] sm:$0xf]
  %v2941 = vld [vmem:[%s2939 + $0x4] sm:$0xf]
  %v2942 = vld [vmem:[%s2939 + $0x8] sm:$0xf]
  %v2943 = vld [vmem:[%s2939 + $0xc] sm:$0xf]
  %v2944 = vld [vmem:[%s2939 + $0x10] sm:$0xf]
  %v2945 = vld [vmem:[%s2939 + $0x14] sm:$0xf]
  %v2946 = vld [vmem:[%s2939 + $0x18] sm:$0xf]
  %v2947 = vld [vmem:[%s2939 + $0x1c] sm:$0xf]
  %v2948 = vld [vmem:[%s2939 + $0x20] sm:$0xf]
  %v2949 = vld [vmem:[%s2939 + $0x24] sm:$0xf]
  %v2950 = vld [vmem:[%s2939 + $0x28] sm:$0xf]
  %v2951 = vld [vmem:[%s2939 + $0x2c] sm:$0xf]
  %v2952 = vld [vmem:[%s2939 + $0x30] sm:$0xf]
  %v2953 = vld [vmem:[%s2939 + $0x34] sm:$0xf]
  %v2954 = vld [vmem:[%s2939 + $0x38] sm:$0xf]
  %v2955 = vld [vmem:[%s2939 + $0x3c] sm:$0xf]
  %v2972 = vunpack.c.l.b16 %v2940
  %v2973 = vunpack.c.l.b16 %v2941
  %v2974 = vunpack.c.l.b16 %v2942
  %v2975 = vunpack.c.l.b16 %v2943
  %v2976 = vunpack.c.l.b16 %v2944
  %v2977 = vunpack.c.l.b16 %v2945
  %v2978 = vunpack.c.l.b16 %v2946
  %v2979 = vunpack.c.l.b16 %v2947
  %v2980 = vunpack.c.l.b16 %v2948
  %v2981 = vunpack.c.l.b16 %v2949
  %v2982 = vunpack.c.l.b16 %v2950
  %v2983 = vunpack.c.l.b16 %v2951
  %v2984 = vunpack.c.l.b16 %v2952
  %v2985 = vunpack.c.l.b16 %v2953
  %v2986 = vunpack.c.l.b16 %v2954
  %v2987 = vunpack.c.l.b16 %v2955
  %v2988 = vpack.c.b16 %v2973, %v2972
  %v2989 = vpack.c.b16 %v2975, %v2974
  %v2990 = vpack.c.b16 %v2977, %v2976
  %v2991 = vpack.c.b16 %v2979, %v2978
  %v2992 = vpack.c.b16 %v2981, %v2980
  %v2993 = vpack.c.b16 %v2983, %v2982
  %v2994 = vpack.c.b16 %v2985, %v2984
  %v2995 = vpack.c.b16 %v2987, %v2986
  %3004 = vmatprep.subr.bf16.mxu0 0
  %3005 = vmatpush1.bf16.msra.mxu0 %v2995
  %3006 = vmatprep.subr.bf16.mxu0 0
  %3007 = vmatpush1.bf16.msra.mxu0 %v2994
  %3008 = vmatprep.subr.bf16.mxu0 0
  %3009 = vmatpush1.bf16.msra.mxu0 %v2993
  %3010 = vmatprep.subr.bf16.mxu0 0
  %3011 = vmatpush1.bf16.msra.mxu0 %v2992
  %3012 = vmatprep.subr.bf16.mxu0 0
  %3013 = vmatpush1.bf16.msra.mxu0 %v2991
  %3014 = vmatprep.subr.bf16.mxu0 0
  %3015 = vmatpush1.bf16.msra.mxu0 %v2990
  %3016 = vmatprep.subr.bf16.mxu0 0
  %3017 = vmatpush1.bf16.msra.mxu0 %v2989
  %3018 = vmatprep.subr.bf16.mxu0 0
  %3019 = vmatpush1.bf16.msra.mxu0 %v2988
  %3020 = vmatprep.subr.bf16.mxu0 0
  %3021 = vmatpush2.bf16.msra.mxu0 0
  %3022 = vmatprep.subr.bf16.mxu0 0
  %3023 = vmatpush2.bf16.msra.mxu0 0
  %3024 = vmatprep.subr.bf16.mxu0 0
  %3025 = vmatpush2.bf16.msra.mxu0 0
  %3026 = vmatprep.subr.bf16.mxu0 0
  %3027 = vmatpush2.bf16.msra.mxu0 0
  %3028 = vmatprep.subr.bf16.mxu0 0
  %3029 = vmatpush2.bf16.msra.mxu0 0
  %3030 = vmatprep.subr.bf16.mxu0 0
  %3031 = vmatpush2.bf16.msra.mxu0 0
  %3032 = vmatprep.subr.bf16.mxu0 0
  %3033 = vmatpush2.bf16.msra.mxu0 0
  %3034 = vmatprep.subr.bf16.mxu0 0
  %3035 = vmatpush2.bf16.msra.mxu0 0
  %3036 = vmatprep.mubr.bf16.mxu0 0
  %3037 = vmatmul.mubr.bf16.gmra.mxu0 %v2938
  %v3038 = vpop.f32.mrf.mxu0
  %v3039 = vadd.f32 0.0, %v3038
  %v3040 = vpop.f32.mrf.mxu0
  %v3041 = vpop.f32.mrf.mxu0
  %v3042 = vpop.f32.mrf.mxu0
  %3043 = vdwg.mxu0
  %v3044 = vadd.f32 %v2937, %v3039
  %v3045 = vpack.c.bf16 %v1645, %v1645
  %s3046 = scalar_lea.vmem %s2, 832
  %v3047 = vld [vmem:[%s3046] sm:$0xf]
  %v3048 = vld [vmem:[%s3046 + $0x4] sm:$0xf]
  %v3049 = vld [vmem:[%s3046 + $0x8] sm:$0xf]
  %v3050 = vld [vmem:[%s3046 + $0xc] sm:$0xf]
  %v3051 = vld [vmem:[%s3046 + $0x10] sm:$0xf]
  %v3052 = vld [vmem:[%s3046 + $0x14] sm:$0xf]
  %v3053 = vld [vmem:[%s3046 + $0x18] sm:$0xf]
  %v3054 = vld [vmem:[%s3046 + $0x1c] sm:$0xf]
  %v3055 = vld [vmem:[%s3046 + $0x20] sm:$0xf]
  %v3056 = vld [vmem:[%s3046 + $0x24] sm:$0xf]
  %v3057 = vld [vmem:[%s3046 + $0x28] sm:$0xf]
  %v3058 = vld [vmem:[%s3046 + $0x2c] sm:$0xf]
  %v3059 = vld [vmem:[%s3046 + $0x30] sm:$0xf]
  %v3060 = vld [vmem:[%s3046 + $0x34] sm:$0xf]
  %v3061 = vld [vmem:[%s3046 + $0x38] sm:$0xf]
  %v3062 = vld [vmem:[%s3046 + $0x3c] sm:$0xf]
  %v3079 = vunpack.c.l.b16 %v3047
  %v3080 = vunpack.c.l.b16 %v3048
  %v3081 = vunpack.c.l.b16 %v3049
  %v3082 = vunpack.c.l.b16 %v3050
  %v3083 = vunpack.c.l.b16 %v3051
  %v3084 = vunpack.c.l.b16 %v3052
  %v3085 = vunpack.c.l.b16 %v3053
  %v3086 = vunpack.c.l.b16 %v3054
  %v3087 = vunpack.c.l.b16 %v3055
  %v3088 = vunpack.c.l.b16 %v3056
  %v3089 = vunpack.c.l.b16 %v3057
  %v3090 = vunpack.c.l.b16 %v3058
  %v3091 = vunpack.c.l.b16 %v3059
  %v3092 = vunpack.c.l.b16 %v3060
  %v3093 = vunpack.c.l.b16 %v3061
  %v3094 = vunpack.c.l.b16 %v3062
  %v3095 = vpack.c.b16 %v3080, %v3079
  %v3096 = vpack.c.b16 %v3082, %v3081
  %v3097 = vpack.c.b16 %v3084, %v3083
  %v3098 = vpack.c.b16 %v3086, %v3085
  %v3099 = vpack.c.b16 %v3088, %v3087
  %v3100 = vpack.c.b16 %v3090, %v3089
  %v3101 = vpack.c.b16 %v3092, %v3091
  %v3102 = vpack.c.b16 %v3094, %v3093
  %3111 = vmatprep.subr.bf16.mxu0 0
  %3112 = vmatpush1.bf16.msra.mxu0 %v3102
  %3113 = vmatprep.subr.bf16.mxu0 0
  %3114 = vmatpush1.bf16.msra.mxu0 %v3101
  %3115 = vmatprep.subr.bf16.mxu0 0
  %3116 = vmatpush1.bf16.msra.mxu0 %v3100
  %3117 = vmatprep.subr.bf16.mxu0 0
  %3118 = vmatpush1.bf16.msra.mxu0 %v3099
  %3119 = vmatprep.subr.bf16.mxu0 0
  %3120 = vmatpush1.bf16.msra.mxu0 %v3098
  %3121 = vmatprep.subr.bf16.mxu0 0
  %3122 = vmatpush1.bf16.msra.mxu0 %v3097
  %3123 = vmatprep.subr.bf16.mxu0 0
  %3124 = vmatpush1.bf16.msra.mxu0 %v3096
  %3125 = vmatprep.subr.bf16.mxu0 0
  %3126 = vmatpush1.bf16.msra.mxu0 %v3095
  %3127 = vmatprep.subr.bf16.mxu0 0
  %3128 = vmatpush2.bf16.msra.mxu0 0
  %3129 = vmatprep.subr.bf16.mxu0 0
  %3130 = vmatpush2.bf16.msra.mxu0 0
  %3131 = vmatprep.subr.bf16.mxu0 0
  %3132 = vmatpush2.bf16.msra.mxu0 0
  %3133 = vmatprep.subr.bf16.mxu0 0
  %3134 = vmatpush2.bf16.msra.mxu0 0
  %3135 = vmatprep.subr.bf16.mxu0 0
  %3136 = vmatpush2.bf16.msra.mxu0 0
  %3137 = vmatprep.subr.bf16.mxu0 0
  %3138 = vmatpush2.bf16.msra.mxu0 0
  %3139 = vmatprep.subr.bf16.mxu0 0
  %3140 = vmatpush2.bf16.msra.mxu0 0
  %3141 = vmatprep.subr.bf16.mxu0 0
  %3142 = vmatpush2.bf16.msra.mxu0 0
  %3143 = vmatprep.mubr.bf16.mxu0 0
  %3144 = vmatmul.mubr.bf16.gmra.mxu0 %v3045
  %v3145 = vpop.f32.mrf.mxu0
  %v3146 = vadd.f32 0.0, %v3145
  %v3147 = vpop.f32.mrf.mxu0
  %v3148 = vpop.f32.mrf.mxu0
  %v3149 = vpop.f32.mrf.mxu0
  %3150 = vdwg.mxu0
  %v3151 = vadd.f32 %v3044, %v3146
  %v3152 = vpack.c.bf16 %v1646, %v1646
  %s3153 = scalar_lea.vmem %s2, 896
  %v3154 = vld [vmem:[%s3153] sm:$0xf]
  %v3155 = vld [vmem:[%s3153 + $0x4] sm:$0xf]
  %v3156 = vld [vmem:[%s3153 + $0x8] sm:$0xf]
  %v3157 = vld [vmem:[%s3153 + $0xc] sm:$0xf]
  %v3158 = vld [vmem:[%s3153 + $0x10] sm:$0xf]
  %v3159 = vld [vmem:[%s3153 + $0x14] sm:$0xf]
  %v3160 = vld [vmem:[%s3153 + $0x18] sm:$0xf]
  %v3161 = vld [vmem:[%s3153 + $0x1c] sm:$0xf]
  %v3162 = vld [vmem:[%s3153 + $0x20] sm:$0xf]
  %v3163 = vld [vmem:[%s3153 + $0x24] sm:$0xf]
  %v3164 = vld [vmem:[%s3153 + $0x28] sm:$0xf]
  %v3165 = vld [vmem:[%s3153 + $0x2c] sm:$0xf]
  %v3166 = vld [vmem:[%s3153 + $0x30] sm:$0xf]
  %v3167 = vld [vmem:[%s3153 + $0x34] sm:$0xf]
  %v3168 = vld [vmem:[%s3153 + $0x38] sm:$0xf]
  %v3169 = vld [vmem:[%s3153 + $0x3c] sm:$0xf]
  %v3186 = vunpack.c.l.b16 %v3154
  %v3187 = vunpack.c.l.b16 %v3155
  %v3188 = vunpack.c.l.b16 %v3156
  %v3189 = vunpack.c.l.b16 %v3157
  %v3190 = vunpack.c.l.b16 %v3158
  %v3191 = vunpack.c.l.b16 %v3159
  %v3192 = vunpack.c.l.b16 %v3160
  %v3193 = vunpack.c.l.b16 %v3161
  %v3194 = vunpack.c.l.b16 %v3162
  %v3195 = vunpack.c.l.b16 %v3163
  %v3196 = vunpack.c.l.b16 %v3164
  %v3197 = vunpack.c.l.b16 %v3165
  %v3198 = vunpack.c.l.b16 %v3166
  %v3199 = vunpack.c.l.b16 %v3167
  %v3200 = vunpack.c.l.b16 %v3168
  %v3201 = vunpack.c.l.b16 %v3169
  %v3202 = vpack.c.b16 %v3187, %v3186
  %v3203 = vpack.c.b16 %v3189, %v3188
  %v3204 = vpack.c.b16 %v3191, %v3190
  %v3205 = vpack.c.b16 %v3193, %v3192
  %v3206 = vpack.c.b16 %v3195, %v3194
  %v3207 = vpack.c.b16 %v3197, %v3196
  %v3208 = vpack.c.b16 %v3199, %v3198
  %v3209 = vpack.c.b16 %v3201, %v3200
  %3218 = vmatprep.subr.bf16.mxu0 0
  %3219 = vmatpush1.bf16.msra.mxu0 %v3209
  %3220 = vmatprep.subr.bf16.mxu0 0
  %3221 = vmatpush1.bf16.msra.mxu0 %v3208
  %3222 = vmatprep.subr.bf16.mxu0 0
  %3223 = vmatpush1.bf16.msra.mxu0 %v3207
  %3224 = vmatprep.subr.bf16.mxu0 0
  %3225 = vmatpush1.bf16.msra.mxu0 %v3206
  %3226 = vmatprep.subr.bf16.mxu0 0
  %3227 = vmatpush1.bf16.msra.mxu0 %v3205
  %3228 = vmatprep.subr.bf16.mxu0 0
  %3229 = vmatpush1.bf16.msra.mxu0 %v3204
  %3230 = vmatprep.subr.bf16.mxu0 0
  %3231 = vmatpush1.bf16.msra.mxu0 %v3203
  %3232 = vmatprep.subr.bf16.mxu0 0
  %3233 = vmatpush1.bf16.msra.mxu0 %v3202
  %3234 = vmatprep.subr.bf16.mxu0 0
  %3235 = vmatpush2.bf16.msra.mxu0 0
  %3236 = vmatprep.subr.bf16.mxu0 0
  %3237 = vmatpush2.bf16.msra.mxu0 0
  %3238 = vmatprep.subr.bf16.mxu0 0
  %3239 = vmatpush2.bf16.msra.mxu0 0
  %3240 = vmatprep.subr.bf16.mxu0 0
  %3241 = vmatpush2.bf16.msra.mxu0 0
  %3242 = vmatprep.subr.bf16.mxu0 0
  %3243 = vmatpush2.bf16.msra.mxu0 0
  %3244 = vmatprep.subr.bf16.mxu0 0
  %3245 = vmatpush2.bf16.msra.mxu0 0
  %3246 = vmatprep.subr.bf16.mxu0 0
  %3247 = vmatpush2.bf16.msra.mxu0 0
  %3248 = vmatprep.subr.bf16.mxu0 0
  %3249 = vmatpush2.bf16.msra.mxu0 0
  %3250 = vmatprep.mubr.bf16.mxu0 0
  %3251 = vmatmul.mubr.bf16.gmra.mxu0 %v3152
  %v3252 = vpop.f32.mrf.mxu0
  %v3253 = vadd.f32 0.0, %v3252
  %v3254 = vpop.f32.mrf.mxu0
  %v3255 = vpop.f32.mrf.mxu0
  %v3256 = vpop.f32.mrf.mxu0
  %3257 = vdwg.mxu0
  %v3258 = vadd.f32 %v3151, %v3253
  %v3259 = vpack.c.bf16 %v1647, %v1647
  %s3260 = scalar_lea.vmem %s2, 960
  %v3261 = vld [vmem:[%s3260] sm:$0xf]
  %v3262 = vld [vmem:[%s3260 + $0x4] sm:$0xf]
  %v3263 = vld [vmem:[%s3260 + $0x8] sm:$0xf]
  %v3264 = vld [vmem:[%s3260 + $0xc] sm:$0xf]
  %v3265 = vld [vmem:[%s3260 + $0x10] sm:$0xf]
  %v3266 = vld [vmem:[%s3260 + $0x14] sm:$0xf]
  %v3267 = vld [vmem:[%s3260 + $0x18] sm:$0xf]
  %v3268 = vld [vmem:[%s3260 + $0x1c] sm:$0xf]
  %v3269 = vld [vmem:[%s3260 + $0x20] sm:$0xf]
  %v3270 = vld [vmem:[%s3260 + $0x24] sm:$0xf]
  %v3271 = vld [vmem:[%s3260 + $0x28] sm:$0xf]
  %v3272 = vld [vmem:[%s3260 + $0x2c] sm:$0xf]
  %v3273 = vld [vmem:[%s3260 + $0x30] sm:$0xf]
  %v3274 = vld [vmem:[%s3260 + $0x34] sm:$0xf]
  %v3275 = vld [vmem:[%s3260 + $0x38] sm:$0xf]
  %v3276 = vld [vmem:[%s3260 + $0x3c] sm:$0xf]
  %v3293 = vunpack.c.l.b16 %v3261
  %v3294 = vunpack.c.l.b16 %v3262
  %v3295 = vunpack.c.l.b16 %v3263
  %v3296 = vunpack.c.l.b16 %v3264
  %v3297 = vunpack.c.l.b16 %v3265
  %v3298 = vunpack.c.l.b16 %v3266
  %v3299 = vunpack.c.l.b16 %v3267
  %v3300 = vunpack.c.l.b16 %v3268
  %v3301 = vunpack.c.l.b16 %v3269
  %v3302 = vunpack.c.l.b16 %v3270
  %v3303 = vunpack.c.l.b16 %v3271
  %v3304 = vunpack.c.l.b16 %v3272
  %v3305 = vunpack.c.l.b16 %v3273
  %v3306 = vunpack.c.l.b16 %v3274
  %v3307 = vunpack.c.l.b16 %v3275
  %v3308 = vunpack.c.l.b16 %v3276
  %v3309 = vpack.c.b16 %v3294, %v3293
  %v3310 = vpack.c.b16 %v3296, %v3295
  %v3311 = vpack.c.b16 %v3298, %v3297
  %v3312 = vpack.c.b16 %v3300, %v3299
  %v3313 = vpack.c.b16 %v3302, %v3301
  %v3314 = vpack.c.b16 %v3304, %v3303
  %v3315 = vpack.c.b16 %v3306, %v3305
  %v3316 = vpack.c.b16 %v3308, %v3307
  %3325 = vmatprep.subr.bf16.mxu0 0
  %3326 = vmatpush1.bf16.msra.mxu0 %v3316
  %3327 = vmatprep.subr.bf16.mxu0 0
  %3328 = vmatpush1.bf16.msra.mxu0 %v3315
  %3329 = vmatprep.subr.bf16.mxu0 0
  %3330 = vmatpush1.bf16.msra.mxu0 %v3314
  %3331 = vmatprep.subr.bf16.mxu0 0
  %3332 = vmatpush1.bf16.msra.mxu0 %v3313
  %3333 = vmatprep.subr.bf16.mxu0 0
  %3334 = vmatpush1.bf16.msra.mxu0 %v3312
  %3335 = vmatprep.subr.bf16.mxu0 0
  %3336 = vmatpush1.bf16.msra.mxu0 %v3311
  %3337 = vmatprep.subr.bf16.mxu0 0
  %3338 = vmatpush1.bf16.msra.mxu0 %v3310
  %3339 = vmatprep.subr.bf16.mxu0 0
  %3340 = vmatpush1.bf16.msra.mxu0 %v3309
  %3341 = vmatprep.subr.bf16.mxu0 0
  %3342 = vmatpush2.bf16.msra.mxu0 0
  %3343 = vmatprep.subr.bf16.mxu0 0
  %3344 = vmatpush2.bf16.msra.mxu0 0
  %3345 = vmatprep.subr.bf16.mxu0 0
  %3346 = vmatpush2.bf16.msra.mxu0 0
  %3347 = vmatprep.subr.bf16.mxu0 0
  %3348 = vmatpush2.bf16.msra.mxu0 0
  %3349 = vmatprep.subr.bf16.mxu0 0
  %3350 = vmatpush2.bf16.msra.mxu0 0
  %3351 = vmatprep.subr.bf16.mxu0 0
  %3352 = vmatpush2.bf16.msra.mxu0 0
  %3353 = vmatprep.subr.bf16.mxu0 0
  %3354 = vmatpush2.bf16.msra.mxu0 0
  %3355 = vmatprep.subr.bf16.mxu0 0
  %3356 = vmatpush2.bf16.msra.mxu0 0
  %3357 = vmatprep.mubr.bf16.mxu0 0
  %3358 = vmatmul.mubr.bf16.gmra.mxu0 %v3259
  %v3359 = vpop.f32.mrf.mxu0
  %v3360 = vadd.f32 0.0, %v3359
  %v3361 = vpop.f32.mrf.mxu0
  %v3362 = vpop.f32.mrf.mxu0
  %v3363 = vpop.f32.mrf.mxu0
  %3364 = vdwg.mxu0
  %v3365 = vadd.f32 %v3258, %v3360
  %v3366 = vpack.c.bf16 %v1648, %v1648
  %s3367 = scalar_lea.vmem %s2, 1024
  %v3368 = vld [vmem:[%s3367] sm:$0xf]
  %v3369 = vld [vmem:[%s3367 + $0x4] sm:$0xf]
  %v3370 = vld [vmem:[%s3367 + $0x8] sm:$0xf]
  %v3371 = vld [vmem:[%s3367 + $0xc] sm:$0xf]
  %v3372 = vld [vmem:[%s3367 + $0x10] sm:$0xf]
  %v3373 = vld [vmem:[%s3367 + $0x14] sm:$0xf]
  %v3374 = vld [vmem:[%s3367 + $0x18] sm:$0xf]
  %v3375 = vld [vmem:[%s3367 + $0x1c] sm:$0xf]
  %v3376 = vld [vmem:[%s3367 + $0x20] sm:$0xf]
  %v3377 = vld [vmem:[%s3367 + $0x24] sm:$0xf]
  %v3378 = vld [vmem:[%s3367 + $0x28] sm:$0xf]
  %v3379 = vld [vmem:[%s3367 + $0x2c] sm:$0xf]
  %v3380 = vld [vmem:[%s3367 + $0x30] sm:$0xf]
  %v3381 = vld [vmem:[%s3367 + $0x34] sm:$0xf]
  %v3382 = vld [vmem:[%s3367 + $0x38] sm:$0xf]
  %v3383 = vld [vmem:[%s3367 + $0x3c] sm:$0xf]
  %v3400 = vunpack.c.l.b16 %v3368
  %v3401 = vunpack.c.l.b16 %v3369
  %v3402 = vunpack.c.l.b16 %v3370
  %v3403 = vunpack.c.l.b16 %v3371
  %v3404 = vunpack.c.l.b16 %v3372
  %v3405 = vunpack.c.l.b16 %v3373
  %v3406 = vunpack.c.l.b16 %v3374
  %v3407 = vunpack.c.l.b16 %v3375
  %v3408 = vunpack.c.l.b16 %v3376
  %v3409 = vunpack.c.l.b16 %v3377
  %v3410 = vunpack.c.l.b16 %v3378
  %v3411 = vunpack.c.l.b16 %v3379
  %v3412 = vunpack.c.l.b16 %v3380
  %v3413 = vunpack.c.l.b16 %v3381
  %v3414 = vunpack.c.l.b16 %v3382
  %v3415 = vunpack.c.l.b16 %v3383
  %v3416 = vpack.c.b16 %v3401, %v3400
  %v3417 = vpack.c.b16 %v3403, %v3402
  %v3418 = vpack.c.b16 %v3405, %v3404
  %v3419 = vpack.c.b16 %v3407, %v3406
  %v3420 = vpack.c.b16 %v3409, %v3408
  %v3421 = vpack.c.b16 %v3411, %v3410
  %v3422 = vpack.c.b16 %v3413, %v3412
  %v3423 = vpack.c.b16 %v3415, %v3414
  %3432 = vmatprep.subr.bf16.mxu0 0
  %3433 = vmatpush1.bf16.msra.mxu0 %v3423
  %3434 = vmatprep.subr.bf16.mxu0 0
  %3435 = vmatpush1.bf16.msra.mxu0 %v3422
  %3436 = vmatprep.subr.bf16.mxu0 0
  %3437 = vmatpush1.bf16.msra.mxu0 %v3421
  %3438 = vmatprep.subr.bf16.mxu0 0
  %3439 = vmatpush1.bf16.msra.mxu0 %v3420
  %3440 = vmatprep.subr.bf16.mxu0 0
  %3441 = vmatpush1.bf16.msra.mxu0 %v3419
  %3442 = vmatprep.subr.bf16.mxu0 0
  %3443 = vmatpush1.bf16.msra.mxu0 %v3418
  %3444 = vmatprep.subr.bf16.mxu0 0
  %3445 = vmatpush1.bf16.msra.mxu0 %v3417
  %3446 = vmatprep.subr.bf16.mxu0 0
  %3447 = vmatpush1.bf16.msra.mxu0 %v3416
  %3448 = vmatprep.subr.bf16.mxu0 0
  %3449 = vmatpush2.bf16.msra.mxu0 0
  %3450 = vmatprep.subr.bf16.mxu0 0
  %3451 = vmatpush2.bf16.msra.mxu0 0
  %3452 = vmatprep.subr.bf16.mxu0 0
  %3453 = vmatpush2.bf16.msra.mxu0 0
  %3454 = vmatprep.subr.bf16.mxu0 0
  %3455 = vmatpush2.bf16.msra.mxu0 0
  %3456 = vmatprep.subr.bf16.mxu0 0
  %3457 = vmatpush2.bf16.msra.mxu0 0
  %3458 = vmatprep.subr.bf16.mxu0 0
  %3459 = vmatpush2.bf16.msra.mxu0 0
  %3460 = vmatprep.subr.bf16.mxu0 0
  %3461 = vmatpush2.bf16.msra.mxu0 0
  %3462 = vmatprep.subr.bf16.mxu0 0
  %3463 = vmatpush2.bf16.msra.mxu0 0
  %3464 = vmatprep.mubr.bf16.mxu0 0
  %3465 = vmatmul.mubr.bf16.gmra.mxu0 %v3366
  %v3466 = vpop.f32.mrf.mxu0
  %v3467 = vadd.f32 0.0, %v3466
  %v3468 = vpop.f32.mrf.mxu0
  %v3469 = vpop.f32.mrf.mxu0
  %v3470 = vpop.f32.mrf.mxu0
  %3471 = vdwg.mxu0
  %v3472 = vadd.f32 %v3365, %v3467
  %v3473 = vpack.c.bf16 %v1649, %v1649
  %s3474 = scalar_lea.vmem %s2, 1088
  %v3475 = vld [vmem:[%s3474] sm:$0xf]
  %v3476 = vld [vmem:[%s3474 + $0x4] sm:$0xf]
  %v3477 = vld [vmem:[%s3474 + $0x8] sm:$0xf]
  %v3478 = vld [vmem:[%s3474 + $0xc] sm:$0xf]
  %v3479 = vld [vmem:[%s3474 + $0x10] sm:$0xf]
  %v3480 = vld [vmem:[%s3474 + $0x14] sm:$0xf]
  %v3481 = vld [vmem:[%s3474 + $0x18] sm:$0xf]
  %v3482 = vld [vmem:[%s3474 + $0x1c] sm:$0xf]
  %v3483 = vld [vmem:[%s3474 + $0x20] sm:$0xf]
  %v3484 = vld [vmem:[%s3474 + $0x24] sm:$0xf]
  %v3485 = vld [vmem:[%s3474 + $0x28] sm:$0xf]
  %v3486 = vld [vmem:[%s3474 + $0x2c] sm:$0xf]
  %v3487 = vld [vmem:[%s3474 + $0x30] sm:$0xf]
  %v3488 = vld [vmem:[%s3474 + $0x34] sm:$0xf]
  %v3489 = vld [vmem:[%s3474 + $0x38] sm:$0xf]
  %v3490 = vld [vmem:[%s3474 + $0x3c] sm:$0xf]
  %v3507 = vunpack.c.l.b16 %v3475
  %v3508 = vunpack.c.l.b16 %v3476
  %v3509 = vunpack.c.l.b16 %v3477
  %v3510 = vunpack.c.l.b16 %v3478
  %v3511 = vunpack.c.l.b16 %v3479
  %v3512 = vunpack.c.l.b16 %v3480
  %v3513 = vunpack.c.l.b16 %v3481
  %v3514 = vunpack.c.l.b16 %v3482
  %v3515 = vunpack.c.l.b16 %v3483
  %v3516 = vunpack.c.l.b16 %v3484
  %v3517 = vunpack.c.l.b16 %v3485
  %v3518 = vunpack.c.l.b16 %v3486
  %v3519 = vunpack.c.l.b16 %v3487
  %v3520 = vunpack.c.l.b16 %v3488
  %v3521 = vunpack.c.l.b16 %v3489
  %v3522 = vunpack.c.l.b16 %v3490
  %v3523 = vpack.c.b16 %v3508, %v3507
  %v3524 = vpack.c.b16 %v3510, %v3509
  %v3525 = vpack.c.b16 %v3512, %v3511
  %v3526 = vpack.c.b16 %v3514, %v3513
  %v3527 = vpack.c.b16 %v3516, %v3515
  %v3528 = vpack.c.b16 %v3518, %v3517
  %v3529 = vpack.c.b16 %v3520, %v3519
  %v3530 = vpack.c.b16 %v3522, %v3521
  %3539 = vmatprep.subr.bf16.mxu0 0
  %3540 = vmatpush1.bf16.msra.mxu0 %v3530
  %3541 = vmatprep.subr.bf16.mxu0 0
  %3542 = vmatpush1.bf16.msra.mxu0 %v3529
  %3543 = vmatprep.subr.bf16.mxu0 0
  %3544 = vmatpush1.bf16.msra.mxu0 %v3528
  %3545 = vmatprep.subr.bf16.mxu0 0
  %3546 = vmatpush1.bf16.msra.mxu0 %v3527
  %3547 = vmatprep.subr.bf16.mxu0 0
  %3548 = vmatpush1.bf16.msra.mxu0 %v3526
  %3549 = vmatprep.subr.bf16.mxu0 0
  %3550 = vmatpush1.bf16.msra.mxu0 %v3525
  %3551 = vmatprep.subr.bf16.mxu0 0
  %3552 = vmatpush1.bf16.msra.mxu0 %v3524
  %3553 = vmatprep.subr.bf16.mxu0 0
  %3554 = vmatpush1.bf16.msra.mxu0 %v3523
  %3555 = vmatprep.subr.bf16.mxu0 0
  %3556 = vmatpush2.bf16.msra.mxu0 0
  %3557 = vmatprep.subr.bf16.mxu0 0
  %3558 = vmatpush2.bf16.msra.mxu0 0
  %3559 = vmatprep.subr.bf16.mxu0 0
  %3560 = vmatpush2.bf16.msra.mxu0 0
  %3561 = vmatprep.subr.bf16.mxu0 0
  %3562 = vmatpush2.bf16.msra.mxu0 0
  %3563 = vmatprep.subr.bf16.mxu0 0
  %3564 = vmatpush2.bf16.msra.mxu0 0
  %3565 = vmatprep.subr.bf16.mxu0 0
  %3566 = vmatpush2.bf16.msra.mxu0 0
  %3567 = vmatprep.subr.bf16.mxu0 0
  %3568 = vmatpush2.bf16.msra.mxu0 0
  %3569 = vmatprep.subr.bf16.mxu0 0
  %3570 = vmatpush2.bf16.msra.mxu0 0
  %3571 = vmatprep.mubr.bf16.mxu0 0
  %3572 = vmatmul.mubr.bf16.gmra.mxu0 %v3473
  %v3573 = vpop.f32.mrf.mxu0
  %v3574 = vadd.f32 0.0, %v3573
  %v3575 = vpop.f32.mrf.mxu0
  %v3576 = vpop.f32.mrf.mxu0
  %v3577 = vpop.f32.mrf.mxu0
  %3578 = vdwg.mxu0
  %v3579 = vadd.f32 %v3472, %v3574
  %v3580 = vpack.c.bf16 %v1650, %v1650
  %s3581 = scalar_lea.vmem %s2, 1152
  %v3582 = vld [vmem:[%s3581] sm:$0xf]
  %v3583 = vld [vmem:[%s3581 + $0x4] sm:$0xf]
  %v3584 = vld [vmem:[%s3581 + $0x8] sm:$0xf]
  %v3585 = vld [vmem:[%s3581 + $0xc] sm:$0xf]
  %v3586 = vld [vmem:[%s3581 + $0x10] sm:$0xf]
  %v3587 = vld [vmem:[%s3581 + $0x14] sm:$0xf]
  %v3588 = vld [vmem:[%s3581 + $0x18] sm:$0xf]
  %v3589 = vld [vmem:[%s3581 + $0x1c] sm:$0xf]
  %v3590 = vld [vmem:[%s3581 + $0x20] sm:$0xf]
  %v3591 = vld [vmem:[%s3581 + $0x24] sm:$0xf]
  %v3592 = vld [vmem:[%s3581 + $0x28] sm:$0xf]
  %v3593 = vld [vmem:[%s3581 + $0x2c] sm:$0xf]
  %v3594 = vld [vmem:[%s3581 + $0x30] sm:$0xf]
  %v3595 = vld [vmem:[%s3581 + $0x34] sm:$0xf]
  %v3596 = vld [vmem:[%s3581 + $0x38] sm:$0xf]
  %v3597 = vld [vmem:[%s3581 + $0x3c] sm:$0xf]
  %v3614 = vunpack.c.l.b16 %v3582
  %v3615 = vunpack.c.l.b16 %v3583
  %v3616 = vunpack.c.l.b16 %v3584
  %v3617 = vunpack.c.l.b16 %v3585
  %v3618 = vunpack.c.l.b16 %v3586
  %v3619 = vunpack.c.l.b16 %v3587
  %v3620 = vunpack.c.l.b16 %v3588
  %v3621 = vunpack.c.l.b16 %v3589
  %v3622 = vunpack.c.l.b16 %v3590
  %v3623 = vunpack.c.l.b16 %v3591
  %v3624 = vunpack.c.l.b16 %v3592
  %v3625 = vunpack.c.l.b16 %v3593
  %v3626 = vunpack.c.l.b16 %v3594
  %v3627 = vunpack.c.l.b16 %v3595
  %v3628 = vunpack.c.l.b16 %v3596
  %v3629 = vunpack.c.l.b16 %v3597
  %v3630 = vpack.c.b16 %v3615, %v3614
  %v3631 = vpack.c.b16 %v3617, %v3616
  %v3632 = vpack.c.b16 %v3619, %v3618
  %v3633 = vpack.c.b16 %v3621, %v3620
  %v3634 = vpack.c.b16 %v3623, %v3622
  %v3635 = vpack.c.b16 %v3625, %v3624
  %v3636 = vpack.c.b16 %v3627, %v3626
  %v3637 = vpack.c.b16 %v3629, %v3628
  %3646 = vmatprep.subr.bf16.mxu0 0
  %3647 = vmatpush1.bf16.msra.mxu0 %v3637
  %3648 = vmatprep.subr.bf16.mxu0 0
  %3649 = vmatpush1.bf16.msra.mxu0 %v3636
  %3650 = vmatprep.subr.bf16.mxu0 0
  %3651 = vmatpush1.bf16.msra.mxu0 %v3635
  %3652 = vmatprep.subr.bf16.mxu0 0
  %3653 = vmatpush1.bf16.msra.mxu0 %v3634
  %3654 = vmatprep.subr.bf16.mxu0 0
  %3655 = vmatpush1.bf16.msra.mxu0 %v3633
  %3656 = vmatprep.subr.bf16.mxu0 0
  %3657 = vmatpush1.bf16.msra.mxu0 %v3632
  %3658 = vmatprep.subr.bf16.mxu0 0
  %3659 = vmatpush1.bf16.msra.mxu0 %v3631
  %3660 = vmatprep.subr.bf16.mxu0 0
  %3661 = vmatpush1.bf16.msra.mxu0 %v3630
  %3662 = vmatprep.subr.bf16.mxu0 0
  %3663 = vmatpush2.bf16.msra.mxu0 0
  %3664 = vmatprep.subr.bf16.mxu0 0
  %3665 = vmatpush2.bf16.msra.mxu0 0
  %3666 = vmatprep.subr.bf16.mxu0 0
  %3667 = vmatpush2.bf16.msra.mxu0 0
  %3668 = vmatprep.subr.bf16.mxu0 0
  %3669 = vmatpush2.bf16.msra.mxu0 0
  %3670 = vmatprep.subr.bf16.mxu0 0
  %3671 = vmatpush2.bf16.msra.mxu0 0
  %3672 = vmatprep.subr.bf16.mxu0 0
  %3673 = vmatpush2.bf16.msra.mxu0 0
  %3674 = vmatprep.subr.bf16.mxu0 0
  %3675 = vmatpush2.bf16.msra.mxu0 0
  %3676 = vmatprep.subr.bf16.mxu0 0
  %3677 = vmatpush2.bf16.msra.mxu0 0
  %3678 = vmatprep.mubr.bf16.mxu0 0
  %3679 = vmatmul.mubr.bf16.gmra.mxu0 %v3580
  %v3680 = vpop.f32.mrf.mxu0
  %v3681 = vadd.f32 0.0, %v3680
  %v3682 = vpop.f32.mrf.mxu0
  %v3683 = vpop.f32.mrf.mxu0
  %v3684 = vpop.f32.mrf.mxu0
  %3685 = vdwg.mxu0
  %v3686 = vadd.f32 %v3579, %v3681
  %v3687 = vpack.c.bf16 %v1651, %v1651
  %s3688 = scalar_lea.vmem %s2, 1216
  %v3689 = vld [vmem:[%s3688] sm:$0xf]
  %v3690 = vld [vmem:[%s3688 + $0x4] sm:$0xf]
  %v3691 = vld [vmem:[%s3688 + $0x8] sm:$0xf]
  %v3692 = vld [vmem:[%s3688 + $0xc] sm:$0xf]
  %v3693 = vld [vmem:[%s3688 + $0x10] sm:$0xf]
  %v3694 = vld [vmem:[%s3688 + $0x14] sm:$0xf]
  %v3695 = vld [vmem:[%s3688 + $0x18] sm:$0xf]
  %v3696 = vld [vmem:[%s3688 + $0x1c] sm:$0xf]
  %v3697 = vld [vmem:[%s3688 + $0x20] sm:$0xf]
  %v3698 = vld [vmem:[%s3688 + $0x24] sm:$0xf]
  %v3699 = vld [vmem:[%s3688 + $0x28] sm:$0xf]
  %v3700 = vld [vmem:[%s3688 + $0x2c] sm:$0xf]
  %v3701 = vld [vmem:[%s3688 + $0x30] sm:$0xf]
  %v3702 = vld [vmem:[%s3688 + $0x34] sm:$0xf]
  %v3703 = vld [vmem:[%s3688 + $0x38] sm:$0xf]
  %v3704 = vld [vmem:[%s3688 + $0x3c] sm:$0xf]
  %v3721 = vunpack.c.l.b16 %v3689
  %v3722 = vunpack.c.l.b16 %v3690
  %v3723 = vunpack.c.l.b16 %v3691
  %v3724 = vunpack.c.l.b16 %v3692
  %v3725 = vunpack.c.l.b16 %v3693
  %v3726 = vunpack.c.l.b16 %v3694
  %v3727 = vunpack.c.l.b16 %v3695
  %v3728 = vunpack.c.l.b16 %v3696
  %v3729 = vunpack.c.l.b16 %v3697
  %v3730 = vunpack.c.l.b16 %v3698
  %v3731 = vunpack.c.l.b16 %v3699
  %v3732 = vunpack.c.l.b16 %v3700
  %v3733 = vunpack.c.l.b16 %v3701
  %v3734 = vunpack.c.l.b16 %v3702
  %v3735 = vunpack.c.l.b16 %v3703
  %v3736 = vunpack.c.l.b16 %v3704
  %v3737 = vpack.c.b16 %v3722, %v3721
  %v3738 = vpack.c.b16 %v3724, %v3723
  %v3739 = vpack.c.b16 %v3726, %v3725
  %v3740 = vpack.c.b16 %v3728, %v3727
  %v3741 = vpack.c.b16 %v3730, %v3729
  %v3742 = vpack.c.b16 %v3732, %v3731
  %v3743 = vpack.c.b16 %v3734, %v3733
  %v3744 = vpack.c.b16 %v3736, %v3735
  %3753 = vmatprep.subr.bf16.mxu0 0
  %3754 = vmatpush1.bf16.msra.mxu0 %v3744
  %3755 = vmatprep.subr.bf16.mxu0 0
  %3756 = vmatpush1.bf16.msra.mxu0 %v3743
  %3757 = vmatprep.subr.bf16.mxu0 0
  %3758 = vmatpush1.bf16.msra.mxu0 %v3742
  %3759 = vmatprep.subr.bf16.mxu0 0
  %3760 = vmatpush1.bf16.msra.mxu0 %v3741
  %3761 = vmatprep.subr.bf16.mxu0 0
  %3762 = vmatpush1.bf16.msra.mxu0 %v3740
  %3763 = vmatprep.subr.bf16.mxu0 0
  %3764 = vmatpush1.bf16.msra.mxu0 %v3739
  %3765 = vmatprep.subr.bf16.mxu0 0
  %3766 = vmatpush1.bf16.msra.mxu0 %v3738
  %3767 = vmatprep.subr.bf16.mxu0 0
  %3768 = vmatpush1.bf16.msra.mxu0 %v3737
  %3769 = vmatprep.subr.bf16.mxu0 0
  %3770 = vmatpush2.bf16.msra.mxu0 0
  %3771 = vmatprep.subr.bf16.mxu0 0
  %3772 = vmatpush2.bf16.msra.mxu0 0
  %3773 = vmatprep.subr.bf16.mxu0 0
  %3774 = vmatpush2.bf16.msra.mxu0 0
  %3775 = vmatprep.subr.bf16.mxu0 0
  %3776 = vmatpush2.bf16.msra.mxu0 0
  %3777 = vmatprep.subr.bf16.mxu0 0
  %3778 = vmatpush2.bf16.msra.mxu0 0
  %3779 = vmatprep.subr.bf16.mxu0 0
  %3780 = vmatpush2.bf16.msra.mxu0 0
  %3781 = vmatprep.subr.bf16.mxu0 0
  %3782 = vmatpush2.bf16.msra.mxu0 0
  %3783 = vmatprep.subr.bf16.mxu0 0
  %3784 = vmatpush2.bf16.msra.mxu0 0
  %3785 = vmatprep.mubr.bf16.mxu0 0
  %3786 = vmatmul.mubr.bf16.gmra.mxu0 %v3687
  %v3787 = vpop.f32.mrf.mxu0
  %v3788 = vadd.f32 0.0, %v3787
  %v3789 = vpop.f32.mrf.mxu0
  %v3790 = vpop.f32.mrf.mxu0
  %v3791 = vpop.f32.mrf.mxu0
  %3792 = vdwg.mxu0
  %v3793 = vadd.f32 %v3686, %v3788
  %v3794 = vpack.c.bf16 %v1652, %v1652
  %s3795 = scalar_lea.vmem %s2, 1280
  %v3796 = vld [vmem:[%s3795] sm:$0xf]
  %v3797 = vld [vmem:[%s3795 + $0x4] sm:$0xf]
  %v3798 = vld [vmem:[%s3795 + $0x8] sm:$0xf]
  %v3799 = vld [vmem:[%s3795 + $0xc] sm:$0xf]
  %v3800 = vld [vmem:[%s3795 + $0x10] sm:$0xf]
  %v3801 = vld [vmem:[%s3795 + $0x14] sm:$0xf]
  %v3802 = vld [vmem:[%s3795 + $0x18] sm:$0xf]
  %v3803 = vld [vmem:[%s3795 + $0x1c] sm:$0xf]
  %v3804 = vld [vmem:[%s3795 + $0x20] sm:$0xf]
  %v3805 = vld [vmem:[%s3795 + $0x24] sm:$0xf]
  %v3806 = vld [vmem:[%s3795 + $0x28] sm:$0xf]
  %v3807 = vld [vmem:[%s3795 + $0x2c] sm:$0xf]
  %v3808 = vld [vmem:[%s3795 + $0x30] sm:$0xf]
  %v3809 = vld [vmem:[%s3795 + $0x34] sm:$0xf]
  %v3810 = vld [vmem:[%s3795 + $0x38] sm:$0xf]
  %v3811 = vld [vmem:[%s3795 + $0x3c] sm:$0xf]
  %v3828 = vunpack.c.l.b16 %v3796
  %v3829 = vunpack.c.l.b16 %v3797
  %v3830 = vunpack.c.l.b16 %v3798
  %v3831 = vunpack.c.l.b16 %v3799
  %v3832 = vunpack.c.l.b16 %v3800
  %v3833 = vunpack.c.l.b16 %v3801
  %v3834 = vunpack.c.l.b16 %v3802
  %v3835 = vunpack.c.l.b16 %v3803
  %v3836 = vunpack.c.l.b16 %v3804
  %v3837 = vunpack.c.l.b16 %v3805
  %v3838 = vunpack.c.l.b16 %v3806
  %v3839 = vunpack.c.l.b16 %v3807
  %v3840 = vunpack.c.l.b16 %v3808
  %v3841 = vunpack.c.l.b16 %v3809
  %v3842 = vunpack.c.l.b16 %v3810
  %v3843 = vunpack.c.l.b16 %v3811
  %v3844 = vpack.c.b16 %v3829, %v3828
  %v3845 = vpack.c.b16 %v3831, %v3830
  %v3846 = vpack.c.b16 %v3833, %v3832
  %v3847 = vpack.c.b16 %v3835, %v3834
  %v3848 = vpack.c.b16 %v3837, %v3836
  %v3849 = vpack.c.b16 %v3839, %v3838
  %v3850 = vpack.c.b16 %v3841, %v3840
  %v3851 = vpack.c.b16 %v3843, %v3842
  %3860 = vmatprep.subr.bf16.mxu0 0
  %3861 = vmatpush1.bf16.msra.mxu0 %v3851
  %3862 = vmatprep.subr.bf16.mxu0 0
  %3863 = vmatpush1.bf16.msra.mxu0 %v3850
  %3864 = vmatprep.subr.bf16.mxu0 0
  %3865 = vmatpush1.bf16.msra.mxu0 %v3849
  %3866 = vmatprep.subr.bf16.mxu0 0
  %3867 = vmatpush1.bf16.msra.mxu0 %v3848
  %3868 = vmatprep.subr.bf16.mxu0 0
  %3869 = vmatpush1.bf16.msra.mxu0 %v3847
  %3870 = vmatprep.subr.bf16.mxu0 0
  %3871 = vmatpush1.bf16.msra.mxu0 %v3846
  %3872 = vmatprep.subr.bf16.mxu0 0
  %3873 = vmatpush1.bf16.msra.mxu0 %v3845
  %3874 = vmatprep.subr.bf16.mxu0 0
  %3875 = vmatpush1.bf16.msra.mxu0 %v3844
  %3876 = vmatprep.subr.bf16.mxu0 0
  %3877 = vmatpush2.bf16.msra.mxu0 0
  %3878 = vmatprep.subr.bf16.mxu0 0
  %3879 = vmatpush2.bf16.msra.mxu0 0
  %3880 = vmatprep.subr.bf16.mxu0 0
  %3881 = vmatpush2.bf16.msra.mxu0 0
  %3882 = vmatprep.subr.bf16.mxu0 0
  %3883 = vmatpush2.bf16.msra.mxu0 0
  %3884 = vmatprep.subr.bf16.mxu0 0
  %3885 = vmatpush2.bf16.msra.mxu0 0
  %3886 = vmatprep.subr.bf16.mxu0 0
  %3887 = vmatpush2.bf16.msra.mxu0 0
  %3888 = vmatprep.subr.bf16.mxu0 0
  %3889 = vmatpush2.bf16.msra.mxu0 0
  %3890 = vmatprep.subr.bf16.mxu0 0
  %3891 = vmatpush2.bf16.msra.mxu0 0
  %3892 = vmatprep.mubr.bf16.mxu0 0
  %3893 = vmatmul.mubr.bf16.gmra.mxu0 %v3794
  %v3894 = vpop.f32.mrf.mxu0
  %v3895 = vadd.f32 0.0, %v3894
  %v3896 = vpop.f32.mrf.mxu0
  %v3897 = vpop.f32.mrf.mxu0
  %v3898 = vpop.f32.mrf.mxu0
  %3899 = vdwg.mxu0
  %v3900 = vadd.f32 %v3793, %v3895
  %v3901 = vpack.c.bf16 %v1653, %v1653
  %s3902 = scalar_lea.vmem %s2, 1344
  %v3903 = vld [vmem:[%s3902] sm:$0xf]
  %v3904 = vld [vmem:[%s3902 + $0x4] sm:$0xf]
  %v3905 = vld [vmem:[%s3902 + $0x8] sm:$0xf]
  %v3906 = vld [vmem:[%s3902 + $0xc] sm:$0xf]
  %v3907 = vld [vmem:[%s3902 + $0x10] sm:$0xf]
  %v3908 = vld [vmem:[%s3902 + $0x14] sm:$0xf]
  %v3909 = vld [vmem:[%s3902 + $0x18] sm:$0xf]
  %v3910 = vld [vmem:[%s3902 + $0x1c] sm:$0xf]
  %v3911 = vld [vmem:[%s3902 + $0x20] sm:$0xf]
  %v3912 = vld [vmem:[%s3902 + $0x24] sm:$0xf]
  %v3913 = vld [vmem:[%s3902 + $0x28] sm:$0xf]
  %v3914 = vld [vmem:[%s3902 + $0x2c] sm:$0xf]
  %v3915 = vld [vmem:[%s3902 + $0x30] sm:$0xf]
  %v3916 = vld [vmem:[%s3902 + $0x34] sm:$0xf]
  %v3917 = vld [vmem:[%s3902 + $0x38] sm:$0xf]
  %v3918 = vld [vmem:[%s3902 + $0x3c] sm:$0xf]
  %v3935 = vunpack.c.l.b16 %v3903
  %v3936 = vunpack.c.l.b16 %v3904
  %v3937 = vunpack.c.l.b16 %v3905
  %v3938 = vunpack.c.l.b16 %v3906
  %v3939 = vunpack.c.l.b16 %v3907
  %v3940 = vunpack.c.l.b16 %v3908
  %v3941 = vunpack.c.l.b16 %v3909
  %v3942 = vunpack.c.l.b16 %v3910
  %v3943 = vunpack.c.l.b16 %v3911
  %v3944 = vunpack.c.l.b16 %v3912
  %v3945 = vunpack.c.l.b16 %v3913
  %v3946 = vunpack.c.l.b16 %v3914
  %v3947 = vunpack.c.l.b16 %v3915
  %v3948 = vunpack.c.l.b16 %v3916
  %v3949 = vunpack.c.l.b16 %v3917
  %v3950 = vunpack.c.l.b16 %v3918
  %v3951 = vpack.c.b16 %v3936, %v3935
  %v3952 = vpack.c.b16 %v3938, %v3937
  %v3953 = vpack.c.b16 %v3940, %v3939
  %v3954 = vpack.c.b16 %v3942, %v3941
  %v3955 = vpack.c.b16 %v3944, %v3943
  %v3956 = vpack.c.b16 %v3946, %v3945
  %v3957 = vpack.c.b16 %v3948, %v3947
  %v3958 = vpack.c.b16 %v3950, %v3949
  %3967 = vmatprep.subr.bf16.mxu0 0
  %3968 = vmatpush1.bf16.msra.mxu0 %v3958
  %3969 = vmatprep.subr.bf16.mxu0 0
  %3970 = vmatpush1.bf16.msra.mxu0 %v3957
  %3971 = vmatprep.subr.bf16.mxu0 0
  %3972 = vmatpush1.bf16.msra.mxu0 %v3956
  %3973 = vmatprep.subr.bf16.mxu0 0
  %3974 = vmatpush1.bf16.msra.mxu0 %v3955
  %3975 = vmatprep.subr.bf16.mxu0 0
  %3976 = vmatpush1.bf16.msra.mxu0 %v3954
  %3977 = vmatprep.subr.bf16.mxu0 0
  %3978 = vmatpush1.bf16.msra.mxu0 %v3953
  %3979 = vmatprep.subr.bf16.mxu0 0
  %3980 = vmatpush1.bf16.msra.mxu0 %v3952
  %3981 = vmatprep.subr.bf16.mxu0 0
  %3982 = vmatpush1.bf16.msra.mxu0 %v3951
  %3983 = vmatprep.subr.bf16.mxu0 0
  %3984 = vmatpush2.bf16.msra.mxu0 0
  %3985 = vmatprep.subr.bf16.mxu0 0
  %3986 = vmatpush2.bf16.msra.mxu0 0
  %3987 = vmatprep.subr.bf16.mxu0 0
  %3988 = vmatpush2.bf16.msra.mxu0 0
  %3989 = vmatprep.subr.bf16.mxu0 0
  %3990 = vmatpush2.bf16.msra.mxu0 0
  %3991 = vmatprep.subr.bf16.mxu0 0
  %3992 = vmatpush2.bf16.msra.mxu0 0
  %3993 = vmatprep.subr.bf16.mxu0 0
  %3994 = vmatpush2.bf16.msra.mxu0 0
  %3995 = vmatprep.subr.bf16.mxu0 0
  %3996 = vmatpush2.bf16.msra.mxu0 0
  %3997 = vmatprep.subr.bf16.mxu0 0
  %3998 = vmatpush2.bf16.msra.mxu0 0
  %3999 = vmatprep.mubr.bf16.mxu0 0
  %4000 = vmatmul.mubr.bf16.gmra.mxu0 %v3901
  %v4001 = vpop.f32.mrf.mxu0
  %v4002 = vadd.f32 0.0, %v4001
  %v4003 = vpop.f32.mrf.mxu0
  %v4004 = vpop.f32.mrf.mxu0
  %v4005 = vpop.f32.mrf.mxu0
  %4006 = vdwg.mxu0
  %v4007 = vadd.f32 %v3900, %v4002
  %v4008 = vpack.c.bf16 %v1654, %v1654
  %s4009 = scalar_lea.vmem %s2, 1408
  %v4010 = vld [vmem:[%s4009] sm:$0xf]
  %v4011 = vld [vmem:[%s4009 + $0x4] sm:$0xf]
  %v4012 = vld [vmem:[%s4009 + $0x8] sm:$0xf]
  %v4013 = vld [vmem:[%s4009 + $0xc] sm:$0xf]
  %v4014 = vld [vmem:[%s4009 + $0x10] sm:$0xf]
  %v4015 = vld [vmem:[%s4009 + $0x14] sm:$0xf]
  %v4016 = vld [vmem:[%s4009 + $0x18] sm:$0xf]
  %v4017 = vld [vmem:[%s4009 + $0x1c] sm:$0xf]
  %v4018 = vld [vmem:[%s4009 + $0x20] sm:$0xf]
  %v4019 = vld [vmem:[%s4009 + $0x24] sm:$0xf]
  %v4020 = vld [vmem:[%s4009 + $0x28] sm:$0xf]
  %v4021 = vld [vmem:[%s4009 + $0x2c] sm:$0xf]
  %v4022 = vld [vmem:[%s4009 + $0x30] sm:$0xf]
  %v4023 = vld [vmem:[%s4009 + $0x34] sm:$0xf]
  %v4024 = vld [vmem:[%s4009 + $0x38] sm:$0xf]
  %v4025 = vld [vmem:[%s4009 + $0x3c] sm:$0xf]
  %v4042 = vunpack.c.l.b16 %v4010
  %v4043 = vunpack.c.l.b16 %v4011
  %v4044 = vunpack.c.l.b16 %v4012
  %v4045 = vunpack.c.l.b16 %v4013
  %v4046 = vunpack.c.l.b16 %v4014
  %v4047 = vunpack.c.l.b16 %v4015
  %v4048 = vunpack.c.l.b16 %v4016
  %v4049 = vunpack.c.l.b16 %v4017
  %v4050 = vunpack.c.l.b16 %v4018
  %v4051 = vunpack.c.l.b16 %v4019
  %v4052 = vunpack.c.l.b16 %v4020
  %v4053 = vunpack.c.l.b16 %v4021
  %v4054 = vunpack.c.l.b16 %v4022
  %v4055 = vunpack.c.l.b16 %v4023
  %v4056 = vunpack.c.l.b16 %v4024
  %v4057 = vunpack.c.l.b16 %v4025
  %v4058 = vpack.c.b16 %v4043, %v4042
  %v4059 = vpack.c.b16 %v4045, %v4044
  %v4060 = vpack.c.b16 %v4047, %v4046
  %v4061 = vpack.c.b16 %v4049, %v4048
  %v4062 = vpack.c.b16 %v4051, %v4050
  %v4063 = vpack.c.b16 %v4053, %v4052
  %v4064 = vpack.c.b16 %v4055, %v4054
  %v4065 = vpack.c.b16 %v4057, %v4056
  %4074 = vmatprep.subr.bf16.mxu0 0
  %4075 = vmatpush1.bf16.msra.mxu0 %v4065
  %4076 = vmatprep.subr.bf16.mxu0 0
  %4077 = vmatpush1.bf16.msra.mxu0 %v4064
  %4078 = vmatprep.subr.bf16.mxu0 0
  %4079 = vmatpush1.bf16.msra.mxu0 %v4063
  %4080 = vmatprep.subr.bf16.mxu0 0
  %4081 = vmatpush1.bf16.msra.mxu0 %v4062
  %4082 = vmatprep.subr.bf16.mxu0 0
  %4083 = vmatpush1.bf16.msra.mxu0 %v4061
  %4084 = vmatprep.subr.bf16.mxu0 0
  %4085 = vmatpush1.bf16.msra.mxu0 %v4060
  %4086 = vmatprep.subr.bf16.mxu0 0
  %4087 = vmatpush1.bf16.msra.mxu0 %v4059
  %4088 = vmatprep.subr.bf16.mxu0 0
  %4089 = vmatpush1.bf16.msra.mxu0 %v4058
  %4090 = vmatprep.subr.bf16.mxu0 0
  %4091 = vmatpush2.bf16.msra.mxu0 0
  %4092 = vmatprep.subr.bf16.mxu0 0
  %4093 = vmatpush2.bf16.msra.mxu0 0
  %4094 = vmatprep.subr.bf16.mxu0 0
  %4095 = vmatpush2.bf16.msra.mxu0 0
  %4096 = vmatprep.subr.bf16.mxu0 0
  %4097 = vmatpush2.bf16.msra.mxu0 0
  %4098 = vmatprep.subr.bf16.mxu0 0
  %4099 = vmatpush2.bf16.msra.mxu0 0
  %4100 = vmatprep.subr.bf16.mxu0 0
  %4101 = vmatpush2.bf16.msra.mxu0 0
  %4102 = vmatprep.subr.bf16.mxu0 0
  %4103 = vmatpush2.bf16.msra.mxu0 0
  %4104 = vmatprep.subr.bf16.mxu0 0
  %4105 = vmatpush2.bf16.msra.mxu0 0
  %4106 = vmatprep.mubr.bf16.mxu0 0
  %4107 = vmatmul.mubr.bf16.gmra.mxu0 %v4008
  %v4108 = vpop.f32.mrf.mxu0
  %v4109 = vadd.f32 0.0, %v4108
  %v4110 = vpop.f32.mrf.mxu0
  %v4111 = vpop.f32.mrf.mxu0
  %v4112 = vpop.f32.mrf.mxu0
  %4113 = vdwg.mxu0
  %v4114 = vadd.f32 %v4007, %v4109
  %v4115 = vpack.c.bf16 %v1655, %v1655
  %s4116 = scalar_lea.vmem %s2, 1472
  %v4117 = vld [vmem:[%s4116] sm:$0xf]
  %v4118 = vld [vmem:[%s4116 + $0x4] sm:$0xf]
  %v4119 = vld [vmem:[%s4116 + $0x8] sm:$0xf]
  %v4120 = vld [vmem:[%s4116 + $0xc] sm:$0xf]
  %v4121 = vld [vmem:[%s4116 + $0x10] sm:$0xf]
  %v4122 = vld [vmem:[%s4116 + $0x14] sm:$0xf]
  %v4123 = vld [vmem:[%s4116 + $0x18] sm:$0xf]
  %v4124 = vld [vmem:[%s4116 + $0x1c] sm:$0xf]
  %v4125 = vld [vmem:[%s4116 + $0x20] sm:$0xf]
  %v4126 = vld [vmem:[%s4116 + $0x24] sm:$0xf]
  %v4127 = vld [vmem:[%s4116 + $0x28] sm:$0xf]
  %v4128 = vld [vmem:[%s4116 + $0x2c] sm:$0xf]
  %v4129 = vld [vmem:[%s4116 + $0x30] sm:$0xf]
  %v4130 = vld [vmem:[%s4116 + $0x34] sm:$0xf]
  %v4131 = vld [vmem:[%s4116 + $0x38] sm:$0xf]
  %v4132 = vld [vmem:[%s4116 + $0x3c] sm:$0xf]
  %v4149 = vunpack.c.l.b16 %v4117
  %v4150 = vunpack.c.l.b16 %v4118
  %v4151 = vunpack.c.l.b16 %v4119
  %v4152 = vunpack.c.l.b16 %v4120
  %v4153 = vunpack.c.l.b16 %v4121
  %v4154 = vunpack.c.l.b16 %v4122
  %v4155 = vunpack.c.l.b16 %v4123
  %v4156 = vunpack.c.l.b16 %v4124
  %v4157 = vunpack.c.l.b16 %v4125
  %v4158 = vunpack.c.l.b16 %v4126
  %v4159 = vunpack.c.l.b16 %v4127
  %v4160 = vunpack.c.l.b16 %v4128
  %v4161 = vunpack.c.l.b16 %v4129
  %v4162 = vunpack.c.l.b16 %v4130
  %v4163 = vunpack.c.l.b16 %v4131
  %v4164 = vunpack.c.l.b16 %v4132
  %v4165 = vpack.c.b16 %v4150, %v4149
  %v4166 = vpack.c.b16 %v4152, %v4151
  %v4167 = vpack.c.b16 %v4154, %v4153
  %v4168 = vpack.c.b16 %v4156, %v4155
  %v4169 = vpack.c.b16 %v4158, %v4157
  %v4170 = vpack.c.b16 %v4160, %v4159
  %v4171 = vpack.c.b16 %v4162, %v4161
  %v4172 = vpack.c.b16 %v4164, %v4163
  %4181 = vmatprep.subr.bf16.mxu0 0
  %4182 = vmatpush1.bf16.msra.mxu0 %v4172
  %4183 = vmatprep.subr.bf16.mxu0 0
  %4184 = vmatpush1.bf16.msra.mxu0 %v4171
  %4185 = vmatprep.subr.bf16.mxu0 0
  %4186 = vmatpush1.bf16.msra.mxu0 %v4170
  %4187 = vmatprep.subr.bf16.mxu0 0
  %4188 = vmatpush1.bf16.msra.mxu0 %v4169
  %4189 = vmatprep.subr.bf16.mxu0 0
  %4190 = vmatpush1.bf16.msra.mxu0 %v4168
  %4191 = vmatprep.subr.bf16.mxu0 0
  %4192 = vmatpush1.bf16.msra.mxu0 %v4167
  %4193 = vmatprep.subr.bf16.mxu0 0
  %4194 = vmatpush1.bf16.msra.mxu0 %v4166
  %4195 = vmatprep.subr.bf16.mxu0 0
  %4196 = vmatpush1.bf16.msra.mxu0 %v4165
  %4197 = vmatprep.subr.bf16.mxu0 0
  %4198 = vmatpush2.bf16.msra.mxu0 0
  %4199 = vmatprep.subr.bf16.mxu0 0
  %4200 = vmatpush2.bf16.msra.mxu0 0
  %4201 = vmatprep.subr.bf16.mxu0 0
  %4202 = vmatpush2.bf16.msra.mxu0 0
  %4203 = vmatprep.subr.bf16.mxu0 0
  %4204 = vmatpush2.bf16.msra.mxu0 0
  %4205 = vmatprep.subr.bf16.mxu0 0
  %4206 = vmatpush2.bf16.msra.mxu0 0
  %4207 = vmatprep.subr.bf16.mxu0 0
  %4208 = vmatpush2.bf16.msra.mxu0 0
  %4209 = vmatprep.subr.bf16.mxu0 0
  %4210 = vmatpush2.bf16.msra.mxu0 0
  %4211 = vmatprep.subr.bf16.mxu0 0
  %4212 = vmatpush2.bf16.msra.mxu0 0
  %4213 = vmatprep.mubr.bf16.mxu0 0
  %4214 = vmatmul.mubr.bf16.gmra.mxu0 %v4115
  %v4215 = vpop.f32.mrf.mxu0
  %v4216 = vadd.f32 0.0, %v4215
  %v4217 = vpop.f32.mrf.mxu0
  %v4218 = vpop.f32.mrf.mxu0
  %v4219 = vpop.f32.mrf.mxu0
  %4220 = vdwg.mxu0
  %v4221 = vadd.f32 %v4114, %v4216
  %v4222 = vpack.c.bf16 %v1656, %v1656
  %s4223 = scalar_lea.vmem %s2, 1536
  %v4224 = vld [vmem:[%s4223] sm:$0xf]
  %v4225 = vld [vmem:[%s4223 + $0x4] sm:$0xf]
  %v4226 = vld [vmem:[%s4223 + $0x8] sm:$0xf]
  %v4227 = vld [vmem:[%s4223 + $0xc] sm:$0xf]
  %v4228 = vld [vmem:[%s4223 + $0x10] sm:$0xf]
  %v4229 = vld [vmem:[%s4223 + $0x14] sm:$0xf]
  %v4230 = vld [vmem:[%s4223 + $0x18] sm:$0xf]
  %v4231 = vld [vmem:[%s4223 + $0x1c] sm:$0xf]
  %v4232 = vld [vmem:[%s4223 + $0x20] sm:$0xf]
  %v4233 = vld [vmem:[%s4223 + $0x24] sm:$0xf]
  %v4234 = vld [vmem:[%s4223 + $0x28] sm:$0xf]
  %v4235 = vld [vmem:[%s4223 + $0x2c] sm:$0xf]
  %v4236 = vld [vmem:[%s4223 + $0x30] sm:$0xf]
  %v4237 = vld [vmem:[%s4223 + $0x34] sm:$0xf]
  %v4238 = vld [vmem:[%s4223 + $0x38] sm:$0xf]
  %v4239 = vld [vmem:[%s4223 + $0x3c] sm:$0xf]
  %v4256 = vunpack.c.l.b16 %v4224
  %v4257 = vunpack.c.l.b16 %v4225
  %v4258 = vunpack.c.l.b16 %v4226
  %v4259 = vunpack.c.l.b16 %v4227
  %v4260 = vunpack.c.l.b16 %v4228
  %v4261 = vunpack.c.l.b16 %v4229
  %v4262 = vunpack.c.l.b16 %v4230
  %v4263 = vunpack.c.l.b16 %v4231
  %v4264 = vunpack.c.l.b16 %v4232
  %v4265 = vunpack.c.l.b16 %v4233
  %v4266 = vunpack.c.l.b16 %v4234
  %v4267 = vunpack.c.l.b16 %v4235
  %v4268 = vunpack.c.l.b16 %v4236
  %v4269 = vunpack.c.l.b16 %v4237
  %v4270 = vunpack.c.l.b16 %v4238
  %v4271 = vunpack.c.l.b16 %v4239
  %v4272 = vpack.c.b16 %v4257, %v4256
  %v4273 = vpack.c.b16 %v4259, %v4258
  %v4274 = vpack.c.b16 %v4261, %v4260
  %v4275 = vpack.c.b16 %v4263, %v4262
  %v4276 = vpack.c.b16 %v4265, %v4264
  %v4277 = vpack.c.b16 %v4267, %v4266
  %v4278 = vpack.c.b16 %v4269, %v4268
  %v4279 = vpack.c.b16 %v4271, %v4270
  %4288 = vmatprep.subr.bf16.mxu0 0
  %4289 = vmatpush1.bf16.msra.mxu0 %v4279
  %4290 = vmatprep.subr.bf16.mxu0 0
  %4291 = vmatpush1.bf16.msra.mxu0 %v4278
  %4292 = vmatprep.subr.bf16.mxu0 0
  %4293 = vmatpush1.bf16.msra.mxu0 %v4277
  %4294 = vmatprep.subr.bf16.mxu0 0
  %4295 = vmatpush1.bf16.msra.mxu0 %v4276
  %4296 = vmatprep.subr.bf16.mxu0 0
  %4297 = vmatpush1.bf16.msra.mxu0 %v4275
  %4298 = vmatprep.subr.bf16.mxu0 0
  %4299 = vmatpush1.bf16.msra.mxu0 %v4274
  %4300 = vmatprep.subr.bf16.mxu0 0
  %4301 = vmatpush1.bf16.msra.mxu0 %v4273
  %4302 = vmatprep.subr.bf16.mxu0 0
  %4303 = vmatpush1.bf16.msra.mxu0 %v4272
  %4304 = vmatprep.subr.bf16.mxu0 0
  %4305 = vmatpush2.bf16.msra.mxu0 0
  %4306 = vmatprep.subr.bf16.mxu0 0
  %4307 = vmatpush2.bf16.msra.mxu0 0
  %4308 = vmatprep.subr.bf16.mxu0 0
  %4309 = vmatpush2.bf16.msra.mxu0 0
  %4310 = vmatprep.subr.bf16.mxu0 0
  %4311 = vmatpush2.bf16.msra.mxu0 0
  %4312 = vmatprep.subr.bf16.mxu0 0
  %4313 = vmatpush2.bf16.msra.mxu0 0
  %4314 = vmatprep.subr.bf16.mxu0 0
  %4315 = vmatpush2.bf16.msra.mxu0 0
  %4316 = vmatprep.subr.bf16.mxu0 0
  %4317 = vmatpush2.bf16.msra.mxu0 0
  %4318 = vmatprep.subr.bf16.mxu0 0
  %4319 = vmatpush2.bf16.msra.mxu0 0
  %4320 = vmatprep.mubr.bf16.mxu0 0
  %4321 = vmatmul.mubr.bf16.gmra.mxu0 %v4222
  %v4322 = vpop.f32.mrf.mxu0
  %v4323 = vadd.f32 0.0, %v4322
  %v4324 = vpop.f32.mrf.mxu0
  %v4325 = vpop.f32.mrf.mxu0
  %v4326 = vpop.f32.mrf.mxu0
  %4327 = vdwg.mxu0
  %v4328 = vadd.f32 %v4221, %v4323
  %v4329 = vld [vmem:[%s5] sm:$0x1]
  %v4330 = vlaneseq
  %v4331 = vshrl.u32 %v4330, 7
  %v4332 = vsub.s32 0, %v4331
  %v4333 = vrot.slane %v4329, %v4332
  %v4334 = vadd.f32 %v4328, %v4333
  %v4335 = vpack.c.bf16 %v4334, %v4334
  %v4336 = vld [vmem:[%s3] sm:$0xf]
  %v4337 = vld [vmem:[%s3 + $0x4] sm:$0xf]
  %v4338 = vld [vmem:[%s3 + $0x8] sm:$0xf]
  %v4339 = vld [vmem:[%s3 + $0xc] sm:$0xf]
  %v4340 = vld [vmem:[%s3 + $0x10] sm:$0xf]
  %v4341 = vld [vmem:[%s3 + $0x14] sm:$0xf]
  %v4342 = vld [vmem:[%s3 + $0x18] sm:$0xf]
  %v4343 = vld [vmem:[%s3 + $0x1c] sm:$0xf]
  %v4344 = vld [vmem:[%s3 + $0x20] sm:$0xf]
  %v4345 = vld [vmem:[%s3 + $0x24] sm:$0xf]
  %v4346 = vld [vmem:[%s3 + $0x28] sm:$0xf]
  %v4347 = vld [vmem:[%s3 + $0x2c] sm:$0xf]
  %v4348 = vld [vmem:[%s3 + $0x30] sm:$0xf]
  %v4349 = vld [vmem:[%s3 + $0x34] sm:$0xf]
  %v4350 = vld [vmem:[%s3 + $0x38] sm:$0xf]
  %v4351 = vld [vmem:[%s3 + $0x3c] sm:$0xf]
  %v4352 = vld [vmem:[%s5 + $0x1] sm:$0x1]
  %v4353 = vlaneseq
  %v4354 = vshrl.u32 %v4353, 7
  %v4355 = vsub.s32 0, %v4354
  %v4356 = vrot.slane %v4352, %v4355
  %v4373 = vunpack.c.l.b16 %v4336
  %v4374 = vunpack.c.l.b16 %v4337
  %v4375 = vunpack.c.l.b16 %v4338
  %v4376 = vunpack.c.l.b16 %v4339
  %v4377 = vunpack.c.l.b16 %v4340
  %v4378 = vunpack.c.l.b16 %v4341
  %v4379 = vunpack.c.l.b16 %v4342
  %v4380 = vunpack.c.l.b16 %v4343
  %v4381 = vunpack.c.l.b16 %v4344
  %v4382 = vunpack.c.l.b16 %v4345
  %v4383 = vunpack.c.l.b16 %v4346
  %v4384 = vunpack.c.l.b16 %v4347
  %v4385 = vunpack.c.l.b16 %v4348
  %v4386 = vunpack.c.l.b16 %v4349
  %v4387 = vunpack.c.l.b16 %v4350
  %v4388 = vunpack.c.l.b16 %v4351
  %v4389 = vpack.c.b16 %v4374, %v4373
  %v4390 = vpack.c.b16 %v4376, %v4375
  %v4391 = vpack.c.b16 %v4378, %v4377
  %v4392 = vpack.c.b16 %v4380, %v4379
  %v4393 = vpack.c.b16 %v4382, %v4381
  %v4394 = vpack.c.b16 %v4384, %v4383
  %v4395 = vpack.c.b16 %v4386, %v4385
  %v4396 = vpack.c.b16 %v4388, %v4387
  %4405 = vmatprep.subr.bf16.mxu0 0
  %4406 = vmatpush1.bf16.msra.mxu0 %v4396
  %4407 = vmatprep.subr.bf16.mxu0 0
  %4408 = vmatpush1.bf16.msra.mxu0 %v4395
  %4409 = vmatprep.subr.bf16.mxu0 0
  %4410 = vmatpush1.bf16.msra.mxu0 %v4394
  %4411 = vmatprep.subr.bf16.mxu0 0
  %4412 = vmatpush1.bf16.msra.mxu0 %v4393
  %4413 = vmatprep.subr.bf16.mxu0 0
  %4414 = vmatpush1.bf16.msra.mxu0 %v4392
  %4415 = vmatprep.subr.bf16.mxu0 0
  %4416 = vmatpush1.bf16.msra.mxu0 %v4391
  %4417 = vmatprep.subr.bf16.mxu0 0
  %4418 = vmatpush1.bf16.msra.mxu0 %v4390
  %4419 = vmatprep.subr.bf16.mxu0 0
  %4420 = vmatpush1.bf16.msra.mxu0 %v4389
  %4421 = vmatprep.subr.bf16.mxu0 0
  %4422 = vmatpush2.bf16.msra.mxu0 0
  %4423 = vmatprep.subr.bf16.mxu0 0
  %4424 = vmatpush2.bf16.msra.mxu0 0
  %4425 = vmatprep.subr.bf16.mxu0 0
  %4426 = vmatpush2.bf16.msra.mxu0 0
  %4427 = vmatprep.subr.bf16.mxu0 0
  %4428 = vmatpush2.bf16.msra.mxu0 0
  %4429 = vmatprep.subr.bf16.mxu0 0
  %4430 = vmatpush2.bf16.msra.mxu0 0
  %4431 = vmatprep.subr.bf16.mxu0 0
  %4432 = vmatpush2.bf16.msra.mxu0 0
  %4433 = vmatprep.subr.bf16.mxu0 0
  %4434 = vmatpush2.bf16.msra.mxu0 0
  %4435 = vmatprep.subr.bf16.mxu0 0
  %4436 = vmatpush2.bf16.msra.mxu0 0
  %4437 = vmatprep.mubr.bf16.mxu0 0
  %4438 = vmatmul.mubr.bf16.gmra.mxu0 %v4335
  %v4439 = vpop.f32.mrf.mxu0
  %v4440 = vadd.f32 %v4356, %v4439
  %v4441 = vpop.f32.mrf.mxu0
  %v4442 = vpop.f32.mrf.mxu0
  %v4443 = vpop.f32.mrf.mxu0
  %4444 = vdwg.mxu0
  %v4445 = vpack.c.bf16 %v4440, %v4440
  %v4446 = vld [vmem:[%s4] sm:$0xf]
  %v4447 = vld [vmem:[%s4 + $0x4] sm:$0xf]
  %v4448 = vld [vmem:[%s4 + $0x8] sm:$0xf]
  %v4449 = vld [vmem:[%s4 + $0xc] sm:$0xf]
  %v4450 = vld [vmem:[%s4 + $0x10] sm:$0xf]
  %v4451 = vld [vmem:[%s4 + $0x14] sm:$0xf]
  %v4452 = vld [vmem:[%s4 + $0x18] sm:$0xf]
  %v4453 = vld [vmem:[%s4 + $0x1c] sm:$0xf]
  %v4454 = vld [vmem:[%s4 + $0x20] sm:$0xf]
  %v4455 = vld [vmem:[%s4 + $0x24] sm:$0xf]
  %v4456 = vld [vmem:[%s4 + $0x28] sm:$0xf]
  %v4457 = vld [vmem:[%s4 + $0x2c] sm:$0xf]
  %v4458 = vld [vmem:[%s4 + $0x30] sm:$0xf]
  %v4459 = vld [vmem:[%s4 + $0x34] sm:$0xf]
  %v4460 = vld [vmem:[%s4 + $0x38] sm:$0xf]
  %v4461 = vld [vmem:[%s4 + $0x3c] sm:$0xf]
  %v4462 = vld [vmem:[%s5 + $0x2] sm:$0x1]
  %v4463 = vlaneseq
  %v4464 = vshrl.u32 %v4463, 7
  %v4465 = vsub.s32 0, %v4464
  %v4466 = vrot.slane %v4462, %v4465
  %v4483 = vunpack.c.l.b16 %v4446
  %v4484 = vunpack.c.l.b16 %v4447
  %v4485 = vunpack.c.l.b16 %v4448
  %v4486 = vunpack.c.l.b16 %v4449
  %v4487 = vunpack.c.l.b16 %v4450
  %v4488 = vunpack.c.l.b16 %v4451
  %v4489 = vunpack.c.l.b16 %v4452
  %v4490 = vunpack.c.l.b16 %v4453
  %v4491 = vunpack.c.l.b16 %v4454
  %v4492 = vunpack.c.l.b16 %v4455
  %v4493 = vunpack.c.l.b16 %v4456
  %v4494 = vunpack.c.l.b16 %v4457
  %v4495 = vunpack.c.l.b16 %v4458
  %v4496 = vunpack.c.l.b16 %v4459
  %v4497 = vunpack.c.l.b16 %v4460
  %v4498 = vunpack.c.l.b16 %v4461
  %v4499 = vpack.c.b16 %v4484, %v4483
  %v4500 = vpack.c.b16 %v4486, %v4485
  %v4501 = vpack.c.b16 %v4488, %v4487
  %v4502 = vpack.c.b16 %v4490, %v4489
  %v4503 = vpack.c.b16 %v4492, %v4491
  %v4504 = vpack.c.b16 %v4494, %v4493
  %v4505 = vpack.c.b16 %v4496, %v4495
  %v4506 = vpack.c.b16 %v4498, %v4497
  %4515 = vmatprep.subr.bf16.mxu0 0
  %4516 = vmatpush1.bf16.msra.mxu0 %v4506
  %4517 = vmatprep.subr.bf16.mxu0 0
  %4518 = vmatpush1.bf16.msra.mxu0 %v4505
  %4519 = vmatprep.subr.bf16.mxu0 0
  %4520 = vmatpush1.bf16.msra.mxu0 %v4504
  %4521 = vmatprep.subr.bf16.mxu0 0
  %4522 = vmatpush1.bf16.msra.mxu0 %v4503
  %4523 = vmatprep.subr.bf16.mxu0 0
  %4524 = vmatpush1.bf16.msra.mxu0 %v4502
  %4525 = vmatprep.subr.bf16.mxu0 0
  %4526 = vmatpush1.bf16.msra.mxu0 %v4501
  %4527 = vmatprep.subr.bf16.mxu0 0
  %4528 = vmatpush1.bf16.msra.mxu0 %v4500
  %4529 = vmatprep.subr.bf16.mxu0 0
  %4530 = vmatpush1.bf16.msra.mxu0 %v4499
  %4531 = vmatprep.subr.bf16.mxu0 0
  %4532 = vmatpush2.bf16.msra.mxu0 0
  %4533 = vmatprep.subr.bf16.mxu0 0
  %4534 = vmatpush2.bf16.msra.mxu0 0
  %4535 = vmatprep.subr.bf16.mxu0 0
  %4536 = vmatpush2.bf16.msra.mxu0 0
  %4537 = vmatprep.subr.bf16.mxu0 0
  %4538 = vmatpush2.bf16.msra.mxu0 0
  %4539 = vmatprep.subr.bf16.mxu0 0
  %4540 = vmatpush2.bf16.msra.mxu0 0
  %4541 = vmatprep.subr.bf16.mxu0 0
  %4542 = vmatpush2.bf16.msra.mxu0 0
  %4543 = vmatprep.subr.bf16.mxu0 0
  %4544 = vmatpush2.bf16.msra.mxu0 0
  %4545 = vmatprep.subr.bf16.mxu0 0
  %4546 = vmatpush2.bf16.msra.mxu0 0
  %4547 = vmatprep.mubr.bf16.mxu0 0
  %4548 = vmatmul.mubr.bf16.gmra.mxu0 %v4445
  %v4549 = vpop.f32.mrf.mxu0
  %v4550 = vadd.f32 %v4466, %v4549
  %v4551 = vpop.f32.mrf.mxu0
  %v4552 = vpop.f32.mrf.mxu0
  %v4553 = vpop.f32.mrf.mxu0
  %4554 = vdwg.mxu0
  %4555 = vst [vmem:[%s6] sm:$0xff] %v4550
  // Predicated region
  $region26: #{lenet_forward.3} parent=0 // pred_check
    _
  $region27: #{lenet_forward.3} parent=0 // pred_check_branch
    %4557 = sbr.rel (0) target = $region29
  $region28: #{lenet_forward.3} parent=0 // pred_region
    _
  $region29: #{lenet_forward.3} parent=0 // pred_fallthru
    _
  // Predicated region
  $region30: #{lenet_forward.3} parent=0 // pred_check
    _
  $region31: #{lenet_forward.3} parent=0 // pred_check_branch
    %4559 = sbr.rel (0) target = $region33
  $region32: #{lenet_forward.3} parent=0 // pred_region
    _
  $region33: #{lenet_forward.3} parent=0 // pred_fallthru
    _

</llo_original>
